<compile_context>
chip_gen: v6e
topology: v6e:2x2x1
jax: 0.10.0
libtpu: 0.0.40
codegen_flags: <defaults>
</compile_context>

<pallas_src>
import jax
import jax.numpy as jnp
from jax.experimental import pallas as pl
from jax.experimental.pallas import tpu as pltpu

BN_EPS = 1e-5
HIDDEN = 1024
OUT_DIM = 768


# ---------------------------------------------------------------------------
# Fused kernel: per-tile [rows, V, C] -> mean over V -> (TM, 1024) -> MLP.
# ---------------------------------------------------------------------------
def _fused_kernel(x_ref, w1_ref, c1_ref, w2_ref, c2_ref, w3_ref, b3_ref, o_ref):
    tm = o_ref.shape[0]
    x = x_ref[...].astype(jnp.float32)                 # (tm*rpf, V, C), upcast in-kernel
    pooled = jnp.mean(x, axis=1)                       # avg_pool2d((V,1)).squeeze(2)
    feats = pooled.reshape(tm, HIDDEN)                 # reshape(-1, 1024) per tile

    # Linear+BN1 folded -> ReLU   (bf16 operands, f32 accumulation on the MXU)
    h = jnp.dot(feats.astype(jnp.bfloat16), w1_ref[...],
                preferred_element_type=jnp.float32) + c1_ref[...]
    h = jnp.maximum(h, 0.0)
    # Linear+BN2 folded -> ReLU
    h = jnp.dot(h.astype(jnp.bfloat16), w2_ref[...],
                preferred_element_type=jnp.float32) + c2_ref[...]
    h = jnp.maximum(h, 0.0)
    # final Linear(1024, 768)
    o = jnp.dot(h.astype(jnp.bfloat16), w3_ref[...],
                preferred_element_type=jnp.float32) + b3_ref[...]
    o_ref[...] = o.astype(o_ref.dtype)


# ---------------------------------------------------------------------------
# Parameter setup (deterministic, synthetic) + BN folding.
# ---------------------------------------------------------------------------
def init_params(key):
    ks = jax.random.split(key, 12)
    p = {}
    # Linear weights stored [in, out] (== torch weight.T), biases [out].
    p["w1"] = jax.random.normal(ks[0], (HIDDEN, HIDDEN), jnp.float32) * 0.02
    p["b1"] = jax.random.normal(ks[1], (HIDDEN,), jnp.float32) * 0.02
    p["w2"] = jax.random.normal(ks[2], (HIDDEN, HIDDEN), jnp.float32) * 0.02
    p["b2"] = jax.random.normal(ks[3], (HIDDEN,), jnp.float32) * 0.02
    p["w3"] = jax.random.normal(ks[4], (HIDDEN, OUT_DIM), jnp.float32) * 0.02
    p["b3"] = jax.random.normal(ks[5], (OUT_DIM,), jnp.float32) * 0.02
    # BatchNorm1d params + running stats (eval mode).
    p["bn1_gamma"] = 1.0 + 0.1 * jax.random.normal(ks[6], (HIDDEN,), jnp.float32)
    p["bn1_beta"] = 0.1 * jax.random.normal(ks[7], (HIDDEN,), jnp.float32)
    p["bn1_mean"] = 0.1 * jax.random.normal(ks[8], (HIDDEN,), jnp.float32)
    p["bn1_var"] = jax.random.uniform(ks[9], (HIDDEN,), jnp.float32, 0.5, 1.5)
    p["bn2_gamma"] = 1.0 + 0.1 * jax.random.normal(ks[10], (HIDDEN,), jnp.float32)
    p["bn2_beta"] = 0.1 * jax.random.normal(ks[11], (HIDDEN,), jnp.float32)
    p["bn2_mean"] = jnp.zeros((HIDDEN,), jnp.float32)
    p["bn2_var"] = jnp.ones((HIDDEN,), jnp.float32)
    return p


def _fold_bn(gamma, beta, mean, var):
    scale = gamma / jnp.sqrt(var + BN_EPS)
    shift = beta - mean * scale
    return scale, shift


def _folded_weights(params):
    """BN (eval) folded into the Linear weights; weights cast to bf16."""
    s1, t1 = _fold_bn(params["bn1_gamma"], params["bn1_beta"],
                      params["bn1_mean"], params["bn1_var"])
    s2, t2 = _fold_bn(params["bn2_gamma"], params["bn2_beta"],
                      params["bn2_mean"], params["bn2_var"])
    w1 = (params["w1"] * s1[None, :]).astype(jnp.bfloat16)
    c1 = (params["b1"] * s1 + t1).astype(jnp.float32)
    w2 = (params["w2"] * s2[None, :]).astype(jnp.bfloat16)
    c2 = (params["b2"] * s2 + t2).astype(jnp.float32)
    w3 = params["w3"].astype(jnp.bfloat16)
    b3 = params["b3"].astype(jnp.float32)
    return w1, c1, w2, c2, w3, b3


def _choose_row_tile(n, bytes_per_row, *, target=256, x_tile_budget=12 * 1024 * 1024):
    """Largest row tile that divides n, is <= target, and keeps a single
    (double-buffered) x tile inside the VMEM budget."""
    cap = max(8, x_tile_budget // max(bytes_per_row, 1))
    cap = min(target, cap, n)
    start = cap - (cap % 8)
    for tm in range(start, 7, -8):        # prefer sublane-aligned tiles
        if n % tm == 0:
            return tm
    for tm in range(cap, 0, -1):          # fall back to any divisor
        if n % tm == 0:
            return tm
    return n


# ---------------------------------------------------------------------------
# Wrapper.
# ---------------------------------------------------------------------------
def dim_conv_forward(x, params, *, target_tm=256):
    B, T, V, C = x.shape
    assert (B * T * C) % HIDDEN == 0, "B*T*C must be a multiple of 1024"
    assert HIDDEN % C == 0, "fused pooling path requires C to divide 1024"
    rpf = HIDDEN // C                      # pooled rows per 1024-wide feature row
    N = (B * T) // rpf                     # number of feature rows

    w1, c1, w2, c2, w3, b3 = _folded_weights(params)

    bytes_per_row = rpf * V * C * x.dtype.itemsize
    TM = _choose_row_tile(N, bytes_per_row, target=target_tm)
    grid = (N // TM,)
    xr = x.reshape(B * T, V, C)            # contiguous view, no copy

    def row(v):                            # 1-D vector -> (1, D) for TPU layout
        return v.reshape(1, -1)

    const2 = lambda shape: pl.BlockSpec(shape, lambda i: (0, 0))  # resident operand

    # Advisory cost hint for the XLA scheduler around the custom call.
    flops = 2 * N * (HIDDEN * HIDDEN * 2 + HIDDEN * OUT_DIM)
    bytes_accessed = (xr.size * xr.dtype.itemsize
                      + (w1.size + w2.size + w3.size) * 2
                      + (c1.size + c2.size + b3.size) * 4
                      + N * OUT_DIM * 4)

    out = pl.pallas_call(
        _fused_kernel,
        out_shape=jax.ShapeDtypeStruct((N, OUT_DIM), jnp.float32),
        grid=grid,
        in_specs=[
            # streamed per-tile input (native dtype, upcast in kernel)
            pl.BlockSpec((TM * rpf, V, C), lambda i: (i, 0, 0)),
            # weights / biases: constant index_map -> DMA'd once, stay in VMEM
            const2((HIDDEN, HIDDEN)), const2((1, HIDDEN)),
            const2((HIDDEN, HIDDEN)), const2((1, HIDDEN)),
            const2((HIDDEN, OUT_DIM)), const2((1, OUT_DIM)),
        ],
        out_specs=pl.BlockSpec((TM, OUT_DIM), lambda i: (i, 0)),
        compiler_params=pltpu.CompilerParams(
            dimension_semantics=("parallel",),          # megacore sharding
            vmem_limit_bytes=48 * 1024 * 1024,          # fits v7x's 64 MiB VMEM
        ),
        cost_estimate=pl.CostEstimate(flops=int(flops), transcendentals=0,
                                      bytes_accessed=int(bytes_accessed)),
    )(xr, w1, row(c1), w2, row(c2), w3, row(b3))

    return out.reshape(B, -1, OUT_DIM)


# ---------------------------------------------------------------------------
# Pure-JAX references for correctness checking.
# ---------------------------------------------------------------------------
def reference_f32(x, params):
    """Exact eval-mode module semantics in f32."""
    B, T, V, C = x.shape
    pooled = jnp.mean(x.astype(jnp.float32), axis=2)          # [B, T, C]
    h = pooled.reshape(-1, HIDDEN)
    s1, t1 = _fold_bn(params["bn1_gamma"], params["bn1_beta"],
                      params["bn1_mean"], params["bn1_var"])
    s2, t2 = _fold_bn(params["bn2_gamma"], params["bn2_beta"],
                      params["bn2_mean"], params["bn2_var"])
    h = jnp.maximum((h @ params["w1"] + params["b1"]) * s1 + t1, 0.0)
    h = jnp.maximum((h @ params["w2"] + params["b2"]) * s2 + t2, 0.0)
    o = h @ params["w3"] + params["b3"]
    return o.reshape(B, -1, OUT_DIM)


def reference_bf16(x, params):
    """Same bf16-weight / f32-accumulation numerics as the kernel (tight check)."""
    B, T, V, C = x.shape
    w1, c1, w2, c2, w3, b3 = _folded_weights(params)
    feats = jnp.mean(x.astype(jnp.float32), axis=2).reshape(-1, HIDDEN)
    h = jnp.dot(feats.astype(jnp.bfloat16), w1, preferred_element_type=jnp.float32) + c1
    h = jnp.maximum(h, 0.0)
    h = jnp.dot(h.astype(jnp.bfloat16), w2, preferred_element_type=jnp.float32) + c2
    h = jnp.maximum(h, 0.0)
    o = jnp.dot(h.astype(jnp.bfloat16), w3, preferred_element_type=jnp.float32) + b3
    return o.reshape(B, -1, OUT_DIM)


if __name__ == "__main__":
    key = jax.random.PRNGKey(0)
    k_x, k_p = jax.random.split(key)

    # Small shapes consistent with the module (real model: V=22 vertices,
    # C=512 channels, T*C multiple of 1024).  Here: B=2, T=8, V=8, C=512.
    B, T, V, C = 2, 8, 8, 512
    x = jax.random.normal(k_x, (B, T, V, C), dtype=jnp.float32)
    params = init_params(k_p)

    out = jax.block_until_ready(dim_conv_forward(x, params))
    assert out.shape == (B, (T * C) // HIDDEN, OUT_DIM), out.shape

    # Tight check against an identical-precision (bf16 weights, f32 acc) reference.
    ref_bf16 = reference_bf16(x, params)
    assert jnp.allclose(out, ref_bf16, atol=1e-3, rtol=1e-3), "mismatch vs bf16 reference"

    # Looser check against the exact f32 module semantics (bf16 weight rounding).
    ref_f32 = reference_f32(x, params)
    assert jnp.allclose(out, ref_f32, atol=3e-2, rtol=3e-2), "mismatch vs f32 reference"

    print("KERNEL_OK")
</pallas_src>

<mosaic_0001>
module attributes {stable_mosaic.version = 11 : i64} {
  func.func @_fused_kernel(%arg0: i32, %arg1: memref<16x8x512xf32, #tpu.memory_space<vmem>>, %arg2: memref<1024x1024xbf16, #tpu.memory_space<vmem>>, %arg3: memref<1x1024xf32, #tpu.memory_space<vmem>>, %arg4: memref<1024x1024xbf16, #tpu.memory_space<vmem>>, %arg5: memref<1x1024xf32, #tpu.memory_space<vmem>>, %arg6: memref<1024x768xbf16, #tpu.memory_space<vmem>>, %arg7: memref<1x768xf32, #tpu.memory_space<vmem>>, %arg8: memref<8x768xf32, #tpu.memory_space<vmem>>) attributes {dimension_semantics = [#tpu.dimension_semantics<parallel>], iteration_bounds = array<i64: 1>, scalar_prefetch = 0 : i64, scratch_operands = 0 : i64, tpu.core_type = #tpu.core_type<tc>, window_params = [{transform_indices = @transform_0, window_bounds = array<i64: 16, 8, 512>}, {pipeline_mode = #tpu.pipeline_mode<synchronous>, transform_indices = @transform_1, window_bounds = array<i64: 1024, 1024>}, {pipeline_mode = #tpu.pipeline_mode<synchronous>, transform_indices = @transform_2, window_bounds = array<i64: 1, 1024>}, {pipeline_mode = #tpu.pipeline_mode<synchronous>, transform_indices = @transform_3, window_bounds = array<i64: 1024, 1024>}, {pipeline_mode = #tpu.pipeline_mode<synchronous>, transform_indices = @transform_4, window_bounds = array<i64: 1, 1024>}, {pipeline_mode = #tpu.pipeline_mode<synchronous>, transform_indices = @transform_5, window_bounds = array<i64: 1024, 768>}, {pipeline_mode = #tpu.pipeline_mode<synchronous>, transform_indices = @transform_6, window_bounds = array<i64: 1, 768>}, {transform_indices = @transform_7, window_bounds = array<i64: 8, 768>}]} {
    %c0 = arith.constant 0 : index
    %c0_0 = arith.constant 0 : index
    %c0_1 = arith.constant 0 : index
    %0 = vector.load %arg1[%c0, %c0_0, %c0_1] : memref<16x8x512xf32, #tpu.memory_space<vmem>>, vector<16x8x512xf32>
    %cst = arith.constant dense<0.000000e+00> : vector<16x512xf32>
    %1 = vector.multi_reduction <add>, %0, %cst [1] : vector<16x8x512xf32> to vector<16x512xf32>
    %cst_2 = arith.constant 8.000000e+00 : f32
    %2 = vector.broadcast %cst_2 : f32 to vector<16x512xf32>
    %3 = arith.divf %1, %2 : vector<16x512xf32>
    %4 = vector.shape_cast %3 : vector<16x512xf32> to vector<8x1024xf32>
    %5 = arith.truncf %4 : vector<8x1024xf32> to vector<8x1024xbf16>
    %c0_3 = arith.constant 0 : index
    %c0_4 = arith.constant 0 : index
    %6 = vector.load %arg2[%c0_3, %c0_4] : memref<1024x1024xbf16, #tpu.memory_space<vmem>>, vector<1024x1024xbf16>
    %cst_5 = arith.constant dense<0.000000e+00> : vector<8x1024xf32>
    %7 = tpu.matmul %5, %6, %cst_5 {dimension_numbers = #tpu.dot_dimension_numbers<[1], [0], [0], [1], [0, 0, 1, 1], [], []>} : vector<8x1024xbf16>, vector<1024x1024xbf16>, vector<8x1024xf32> -> vector<8x1024xf32>
    %c0_6 = arith.constant 0 : index
    %c0_7 = arith.constant 0 : index
    %8 = vector.load %arg3[%c0_6, %c0_7] : memref<1x1024xf32, #tpu.memory_space<vmem>>, vector<1x1024xf32>
    %9 = vector.broadcast %8 : vector<1x1024xf32> to vector<8x1024xf32>
    %10 = arith.addf %7, %9 : vector<8x1024xf32>
    %cst_8 = arith.constant 0.000000e+00 : f32
    %11 = vector.broadcast %cst_8 : f32 to vector<8x1024xf32>
    %12 = arith.maximumf %10, %11 : vector<8x1024xf32>
    %13 = arith.truncf %12 : vector<8x1024xf32> to vector<8x1024xbf16>
    %c0_9 = arith.constant 0 : index
    %c0_10 = arith.constant 0 : index
    %14 = vector.load %arg4[%c0_9, %c0_10] : memref<1024x1024xbf16, #tpu.memory_space<vmem>>, vector<1024x1024xbf16>
    %cst_11 = arith.constant dense<0.000000e+00> : vector<8x1024xf32>
    %15 = tpu.matmul %13, %14, %cst_11 {dimension_numbers = #tpu.dot_dimension_numbers<[1], [0], [0], [1], [0, 0, 1, 1], [], []>} : vector<8x1024xbf16>, vector<1024x1024xbf16>, vector<8x1024xf32> -> vector<8x1024xf32>
    %c0_12 = arith.constant 0 : index
    %c0_13 = arith.constant 0 : index
    %16 = vector.load %arg5[%c0_12, %c0_13] : memref<1x1024xf32, #tpu.memory_space<vmem>>, vector<1x1024xf32>
    %17 = vector.broadcast %16 : vector<1x1024xf32> to vector<8x1024xf32>
    %18 = arith.addf %15, %17 : vector<8x1024xf32>
    %cst_14 = arith.constant 0.000000e+00 : f32
    %19 = vector.broadcast %cst_14 : f32 to vector<8x1024xf32>
    %20 = arith.maximumf %18, %19 : vector<8x1024xf32>
    %21 = arith.truncf %20 : vector<8x1024xf32> to vector<8x1024xbf16>
    %c0_15 = arith.constant 0 : index
    %c0_16 = arith.constant 0 : index
    %22 = vector.load %arg6[%c0_15, %c0_16] : memref<1024x768xbf16, #tpu.memory_space<vmem>>, vector<1024x768xbf16>
    %cst_17 = arith.constant dense<0.000000e+00> : vector<8x768xf32>
    %23 = tpu.matmul %21, %22, %cst_17 {dimension_numbers = #tpu.dot_dimension_numbers<[1], [0], [0], [1], [0, 0, 1, 1], [], []>} : vector<8x1024xbf16>, vector<1024x768xbf16>, vector<8x768xf32> -> vector<8x768xf32>
    %c0_18 = arith.constant 0 : index
    %c0_19 = arith.constant 0 : index
    %24 = vector.load %arg7[%c0_18, %c0_19] : memref<1x768xf32, #tpu.memory_space<vmem>>, vector<1x768xf32>
    %25 = vector.broadcast %24 : vector<1x768xf32> to vector<8x768xf32>
    %26 = arith.addf %23, %25 : vector<8x768xf32>
    %c0_20 = arith.constant 0 : index
    %c0_21 = arith.constant 0 : index
    %27 = vector.load %arg8[%c0_20, %c0_21] : memref<8x768xf32, #tpu.memory_space<vmem>>, vector<8x768xf32>
    tpu.vector_store %arg8[%c0_20, %c0_21], %26 {strides = array<i32>} : memref<8x768xf32, #tpu.memory_space<vmem>>, vector<8x768xf32>,
    return
  }
  func.func @transform_0(%arg0: i32) -> (i32, i32, i32) {
    %c0_i32 = arith.constant 0 : i32
    %c0_i32_0 = arith.constant 0 : i32
    %c0_i32_1 = arith.constant 0 : i32
    return %arg0, %c0_i32, %c0_i32_0 : i32, i32, i32
  }
  func.func @transform_1(%arg0: i32) -> (i32, i32) {
    %c0_i32 = arith.constant 0 : i32
    %c0_i32_0 = arith.constant 0 : i32
    %c0_i32_1 = arith.constant 0 : i32
    return %c0_i32, %c0_i32_0 : i32, i32
  }
  func.func @transform_2(%arg0: i32) -> (i32, i32) {
    %c0_i32 = arith.constant 0 : i32
    %c0_i32_0 = arith.constant 0 : i32
    %c0_i32_1 = arith.constant 0 : i32
    return %c0_i32, %c0_i32_0 : i32, i32
  }
  func.func @transform_3(%arg0: i32) -> (i32, i32) {
    %c0_i32 = arith.constant 0 : i32
    %c0_i32_0 = arith.constant 0 : i32
    %c0_i32_1 = arith.constant 0 : i32
    return %c0_i32, %c0_i32_0 : i32, i32
  }
  func.func @transform_4(%arg0: i32) -> (i32, i32) {
    %c0_i32 = arith.constant 0 : i32
    %c0_i32_0 = arith.constant 0 : i32
    %c0_i32_1 = arith.constant 0 : i32
    return %c0_i32, %c0_i32_0 : i32, i32
  }
  func.func @transform_5(%arg0: i32) -> (i32, i32) {
    %c0_i32 = arith.constant 0 : i32
    %c0_i32_0 = arith.constant 0 : i32
    %c0_i32_1 = arith.constant 0 : i32
    return %c0_i32, %c0_i32_0 : i32, i32
  }
  func.func @transform_6(%arg0: i32) -> (i32, i32) {
    %c0_i32 = arith.constant 0 : i32
    %c0_i32_0 = arith.constant 0 : i32
    %c0_i32_1 = arith.constant 0 : i32
    return %c0_i32, %c0_i32_0 : i32, i32
  }
  func.func @transform_7(%arg0: i32) -> (i32, i32) {
    %c0_i32 = arith.constant 0 : i32
    %c0_i32_0 = arith.constant 0 : i32
    return %arg0, %c0_i32 : i32, i32
  }
}

</mosaic_0001>

<llo_original>
// kernel: tpu_custom_call.1
$region0: #{tpu_custom_call.1}
  #allocation0 [shape = 'u32[]', space=smem, size = 0x4, offset = 0x4, fixed_abs, tag = 'smem constant byte address 0x4 - core index']
  #allocation1 [shape = 'u32[144,128]{1,0:T(1,128)}', space=vmem, size = 0x12000, scoped, tag = 'internal scratch']
  %s0 = inlined_call_operand.hbm [shape: f32[16,8,512], index: 0, kind: input, shape index: {}]
  %s1 = inlined_call_operand.hbm [shape: bf16[1024,1024], index: 1, kind: input, shape index: {}]
  %s2 = inlined_call_operand.hbm [shape: f32[1,1024], index: 2, kind: input, shape index: {}]
  %s3 = inlined_call_operand.hbm [shape: bf16[1024,1024], index: 3, kind: input, shape index: {}]
  %s4 = inlined_call_operand.hbm [shape: f32[1,1024], index: 4, kind: input, shape index: {}]
  %s5 = inlined_call_operand.hbm [shape: bf16[1024,768], index: 5, kind: input, shape index: {}]
  %s6 = inlined_call_operand.hbm [shape: f32[1,768], index: 6, kind: input, shape index: {}]
  %s7 = inlined_call_operand.hbm [shape: f32[8,768], index: 7, kind: output, shape index: {}]
  %s8 = sld [smem:[#allocation0]]
  $region66: #{tpu_custom_call.1} parent=0
    _
  %s10 = ssub.s32 1, %s8
  %s11 = scalar_select 0, %s10, %s8
  $region1: #{tpu_custom_call.1} parent=0
    #allocation2 [shape = 'u8[262144]{0}', space=vmem, size = 0x40000, scoped, tag = 'input window, operand 0, single buffered']
    #allocation3 [shape = 's32[1]{0}', space=sflag, size = 0x4, scoped, tag = 'scoped memory for tpu_custom_call.1']
    #allocation4 [shape = 's32[1]{0}', space=sflag, size = 0x4, scoped, tag = 'scoped memory for tpu_custom_call.1']
    #allocation5 [shape = 'u8[2097152]{0}', space=vmem, size = 0x200000, scoped, tag = 'input window, operand 1, single buffered']
    #allocation6 [shape = 's32[1]{0}', space=sflag, size = 0x4, scoped, tag = 'scoped memory for tpu_custom_call.1']
    #allocation7 [shape = 'u8[4096]{0}', space=vmem, size = 0x1000, scoped, tag = 'input window, operand 2, single buffered']
    #allocation8 [shape = 'u8[2097152]{0}', space=vmem, size = 0x200000, scoped, tag = 'input window, operand 3, single buffered']
    #allocation9 [shape = 's32[1]{0}', space=sflag, size = 0x4, scoped, tag = 'scoped memory for tpu_custom_call.1']
    #allocation10 [shape = 'u8[4096]{0}', space=vmem, size = 0x1000, scoped, tag = 'input window, operand 4, single buffered']
    #allocation11 [shape = 'u8[1572864]{0}', space=vmem, size = 0x180000, scoped, tag = 'input window, operand 5, single buffered']
    #allocation12 [shape = 's32[1]{0}', space=sflag, size = 0x4, scoped, tag = 'scoped memory for tpu_custom_call.1']
    #allocation13 [shape = 'u8[3072]{0}', space=vmem, size = 0xc00, scoped, tag = 'input window, operand 6, single buffered']
    #allocation14 [shape = 'u8[24576]{0}', space=vmem, size = 0x6000, scoped, tag = 'output window, operand 0, single buffered']
    %12 = vsyncpa [#allocation3], 0
    %13 = vsyncpa [#allocation6], 0
    %14 = vsyncpa [#allocation9], 0
    %15 = vsyncpa [#allocation12], 0
    %16 = vsyncpa [#allocation4], 0
    // Predicated region
    $region2: #{tpu_custom_call.1} parent=1 // pred_check
      _
    $region3: #{tpu_custom_call.1} parent=1 // pred_check_branch
      %18 = sbr.rel (0) target = $region5
    $region4: #{tpu_custom_call.1} parent=1 // pred_region
      %s20 = ssub.s32 8192, 8192
      %21 = vsyncadd [#allocation3], %s20
      %s22 = sshll.u32 [#allocation2], 4
      %s23 = int_to_ptr.vmem [resolvable:$true] %s22
      %28 = dma.hbm_to_vmem [thread:$0]  %s0, 8192, %s23, [#allocation3], 512, 512, 32
    $region5: #{tpu_custom_call.1} parent=1 // pred_fallthru
      _
    // Predicated region
    $region6: #{tpu_custom_call.1} parent=1 // pred_check
      _
    $region7: #{tpu_custom_call.1} parent=1 // pred_check_branch
      %30 = sbr.rel (0) target = $region9
    $region8: #{tpu_custom_call.1} parent=1 // pred_region
      %s32 = ssub.s32 65536, 65536
      %33 = vsyncadd [#allocation6], %s32
      %s34 = sshll.u32 [#allocation5], 4
      %s35 = int_to_ptr.vmem [resolvable:$true] %s34
      %40 = dma.hbm_to_vmem [thread:$0]  %s1, 65536, %s35, [#allocation6], 512, 512, 32
    $region9: #{tpu_custom_call.1} parent=1 // pred_fallthru
      _
    // Predicated region
    $region10: #{tpu_custom_call.1} parent=1 // pred_check
      _
    $region11: #{tpu_custom_call.1} parent=1 // pred_check_branch
      %42 = sbr.rel (0) target = $region13
    $region12: #{tpu_custom_call.1} parent=1 // pred_region
      %s44 = ssub.s32 128, 128
      %45 = vsyncadd [#allocation6], %s44
      %s47 = sshll.u32 [#allocation7], 4
      %s48 = int_to_ptr.vmem [resolvable:$true] %s47
      %50 = dma.hbm_to_vmem [thread:$0]  %s2, 128, %s48, [#allocation6]
    $region13: #{tpu_custom_call.1} parent=1 // pred_fallthru
      _
    // Predicated region
    $region14: #{tpu_custom_call.1} parent=1 // pred_check
      _
    $region15: #{tpu_custom_call.1} parent=1 // pred_check_branch
      %52 = sbr.rel (0) target = $region17
    $region16: #{tpu_custom_call.1} parent=1 // pred_region
      %s54 = ssub.s32 65536, 65536
      %55 = vsyncadd [#allocation9], %s54
      %s56 = sshll.u32 [#allocation8], 4
      %s57 = int_to_ptr.vmem [resolvable:$true] %s56
      %62 = dma.hbm_to_vmem [thread:$0]  %s3, 65536, %s57, [#allocation9], 512, 512, 32
    $region17: #{tpu_custom_call.1} parent=1 // pred_fallthru
      _
    // Predicated region
    $region18: #{tpu_custom_call.1} parent=1 // pred_check
      _
    $region19: #{tpu_custom_call.1} parent=1 // pred_check_branch
      %64 = sbr.rel (0) target = $region21
    $region20: #{tpu_custom_call.1} parent=1 // pred_region
      %s66 = ssub.s32 128, 128
      %67 = vsyncadd [#allocation9], %s66
      %s69 = sshll.u32 [#allocation10], 4
      %s70 = int_to_ptr.vmem [resolvable:$true] %s69
      %72 = dma.hbm_to_vmem [thread:$0]  %s4, 128, %s70, [#allocation9]
    $region21: #{tpu_custom_call.1} parent=1 // pred_fallthru
      _
    // Predicated region
    $region22: #{tpu_custom_call.1} parent=1 // pred_check
      _
    $region23: #{tpu_custom_call.1} parent=1 // pred_check_branch
      %74 = sbr.rel (0) target = $region25
    $region24: #{tpu_custom_call.1} parent=1 // pred_region
      %s76 = ssub.s32 49152, 49152
      %77 = vsyncadd [#allocation12], %s76
      %s78 = sshll.u32 [#allocation11], 4
      %s79 = int_to_ptr.vmem [resolvable:$true] %s78
      %84 = dma.hbm_to_vmem [thread:$0]  %s5, 49152, %s79, [#allocation12], 384, 384, 24
    $region25: #{tpu_custom_call.1} parent=1 // pred_fallthru
      _
    // Predicated region
    $region26: #{tpu_custom_call.1} parent=1 // pred_check
      _
    $region27: #{tpu_custom_call.1} parent=1 // pred_check_branch
      %86 = sbr.rel (0) target = $region29
    $region28: #{tpu_custom_call.1} parent=1 // pred_region
      %s88 = ssub.s32 96, 96
      %89 = vsyncadd [#allocation12], %s88
      %s91 = sshll.u32 [#allocation13], 4
      %s92 = int_to_ptr.vmem [resolvable:$true] %s91
      %94 = dma.hbm_to_vmem [thread:$0]  %s6, 96, %s92, [#allocation12]
    $region29: #{tpu_custom_call.1} parent=1 // pred_fallthru
      _
    // Predicated region
    $region30: #{tpu_custom_call.1} parent=1 // pred_check
      _
    $region31: #{tpu_custom_call.1} parent=1 // pred_check_branch
      %96 = sbr.rel (0) target = $region33
    $region32: #{tpu_custom_call.1} parent=1 // pred_region
      %97 = dma.done [#allocation3], 8192
    $region33: #{tpu_custom_call.1} parent=1 // pred_fallthru
      _
    // Predicated region
    $region34: #{tpu_custom_call.1} parent=1 // pred_check
      _
    $region35: #{tpu_custom_call.1} parent=1 // pred_check_branch
      %99 = sbr.rel (0) target = $region37
    $region36: #{tpu_custom_call.1} parent=1 // pred_region
      %100 = dma.done [#allocation6], 65536
    $region37: #{tpu_custom_call.1} parent=1 // pred_fallthru
      _
    // Predicated region
    $region38: #{tpu_custom_call.1} parent=1 // pred_check
      _
    $region39: #{tpu_custom_call.1} parent=1 // pred_check_branch
      %102 = sbr.rel (0) target = $region41
    $region40: #{tpu_custom_call.1} parent=1 // pred_region
      %103 = dma.done [#allocation6], 128
    $region41: #{tpu_custom_call.1} parent=1 // pred_fallthru
      _
    // Predicated region
    $region42: #{tpu_custom_call.1} parent=1 // pred_check
      _
    $region43: #{tpu_custom_call.1} parent=1 // pred_check_branch
      %105 = sbr.rel (0) target = $region45
    $region44: #{tpu_custom_call.1} parent=1 // pred_region
      %106 = dma.done [#allocation9], 65536
    $region45: #{tpu_custom_call.1} parent=1 // pred_fallthru
      _
    // Predicated region
    $region46: #{tpu_custom_call.1} parent=1 // pred_check
      _
    $region47: #{tpu_custom_call.1} parent=1 // pred_check_branch
      %108 = sbr.rel (0) target = $region49
    $region48: #{tpu_custom_call.1} parent=1 // pred_region
      %109 = dma.done [#allocation9], 128
    $region49: #{tpu_custom_call.1} parent=1 // pred_fallthru
      _
    // Predicated region
    $region50: #{tpu_custom_call.1} parent=1 // pred_check
      _
    $region51: #{tpu_custom_call.1} parent=1 // pred_check_branch
      %111 = sbr.rel (0) target = $region53
    $region52: #{tpu_custom_call.1} parent=1 // pred_region
      %112 = dma.done [#allocation12], 49152
    $region53: #{tpu_custom_call.1} parent=1 // pred_fallthru
      _
    // Predicated region
    $region54: #{tpu_custom_call.1} parent=1 // pred_check
      _
    $region55: #{tpu_custom_call.1} parent=1 // pred_check_branch
      %114 = sbr.rel (0) target = $region57
    $region56: #{tpu_custom_call.1} parent=1 // pred_region
      %115 = dma.done [#allocation12], 96
    $region57: #{tpu_custom_call.1} parent=1 // pred_fallthru
      _
    %v116 = vld [vmem:[#allocation2] sm:$0xff]
    %v117 = vld [vmem:[#allocation2 + $0x8] sm:$0xff]
    %v118 = vld [vmem:[#allocation2 + $0x10] sm:$0xff]
    %v119 = vld [vmem:[#allocation2 + $0x18] sm:$0xff]
    %v120 = vld [vmem:[#allocation2 + $0x20] sm:$0xff]
    %v121 = vld [vmem:[#allocation2 + $0x28] sm:$0xff]
    %v122 = vld [vmem:[#allocation2 + $0x30] sm:$0xff]
    %v123 = vld [vmem:[#allocation2 + $0x38] sm:$0xff]
    %v124 = vld [vmem:[#allocation2 + $0x40] sm:$0xff]
    %v125 = vld [vmem:[#allocation2 + $0x48] sm:$0xff]
    %v126 = vld [vmem:[#allocation2 + $0x50] sm:$0xff]
    %v127 = vld [vmem:[#allocation2 + $0x58] sm:$0xff]
    %v128 = vld [vmem:[#allocation2 + $0x60] sm:$0xff]
    %v129 = vld [vmem:[#allocation2 + $0x68] sm:$0xff]
    %v130 = vld [vmem:[#allocation2 + $0x70] sm:$0xff]
    %v131 = vld [vmem:[#allocation2 + $0x78] sm:$0xff]
    %v132 = vld [vmem:[#allocation2 + $0x80] sm:$0xff]
    %v133 = vld [vmem:[#allocation2 + $0x88] sm:$0xff]
    %v134 = vld [vmem:[#allocation2 + $0x90] sm:$0xff]
    %v135 = vld [vmem:[#allocation2 + $0x98] sm:$0xff]
    %v136 = vld [vmem:[#allocation2 + $0xa0] sm:$0xff]
    %v137 = vld [vmem:[#allocation2 + $0xa8] sm:$0xff]
    %v138 = vld [vmem:[#allocation2 + $0xb0] sm:$0xff]
    %v139 = vld [vmem:[#allocation2 + $0xb8] sm:$0xff]
    %v140 = vld [vmem:[#allocation2 + $0xc0] sm:$0xff]
    %v141 = vld [vmem:[#allocation2 + $0xc8] sm:$0xff]
    %v142 = vld [vmem:[#allocation2 + $0xd0] sm:$0xff]
    %v143 = vld [vmem:[#allocation2 + $0xd8] sm:$0xff]
    %v144 = vld [vmem:[#allocation2 + $0xe0] sm:$0xff]
    %v145 = vld [vmem:[#allocation2 + $0xe8] sm:$0xff]
    %v146 = vld [vmem:[#allocation2 + $0xf0] sm:$0xff]
    %v147 = vld [vmem:[#allocation2 + $0xf8] sm:$0xff]
    %v148 = vld [vmem:[#allocation2 + $0x100] sm:$0xff]
    %v149 = vld [vmem:[#allocation2 + $0x108] sm:$0xff]
    %v150 = vld [vmem:[#allocation2 + $0x110] sm:$0xff]
    %v151 = vld [vmem:[#allocation2 + $0x118] sm:$0xff]
    %v152 = vld [vmem:[#allocation2 + $0x120] sm:$0xff]
    %v153 = vld [vmem:[#allocation2 + $0x128] sm:$0xff]
    %v154 = vld [vmem:[#allocation2 + $0x130] sm:$0xff]
    %v155 = vld [vmem:[#allocation2 + $0x138] sm:$0xff]
    %v156 = vld [vmem:[#allocation2 + $0x140] sm:$0xff]
    %v157 = vld [vmem:[#allocation2 + $0x148] sm:$0xff]
    %v158 = vld [vmem:[#allocation2 + $0x150] sm:$0xff]
    %v159 = vld [vmem:[#allocation2 + $0x158] sm:$0xff]
    %v160 = vld [vmem:[#allocation2 + $0x160] sm:$0xff]
    %v161 = vld [vmem:[#allocation2 + $0x168] sm:$0xff]
    %v162 = vld [vmem:[#allocation2 + $0x170] sm:$0xff]
    %v163 = vld [vmem:[#allocation2 + $0x178] sm:$0xff]
    %v164 = vld [vmem:[#allocation2 + $0x180] sm:$0xff]
    %v165 = vld [vmem:[#allocation2 + $0x188] sm:$0xff]
    %v166 = vld [vmem:[#allocation2 + $0x190] sm:$0xff]
    %v167 = vld [vmem:[#allocation2 + $0x198] sm:$0xff]
    %v168 = vld [vmem:[#allocation2 + $0x1a0] sm:$0xff]
    %v169 = vld [vmem:[#allocation2 + $0x1a8] sm:$0xff]
    %v170 = vld [vmem:[#allocation2 + $0x1b0] sm:$0xff]
    %v171 = vld [vmem:[#allocation2 + $0x1b8] sm:$0xff]
    %v172 = vld [vmem:[#allocation2 + $0x1c0] sm:$0xff]
    %v173 = vld [vmem:[#allocation2 + $0x1c8] sm:$0xff]
    %v174 = vld [vmem:[#allocation2 + $0x1d0] sm:$0xff]
    %v175 = vld [vmem:[#allocation2 + $0x1d8] sm:$0xff]
    %v176 = vld [vmem:[#allocation2 + $0x1e0] sm:$0xff]
    %v177 = vld [vmem:[#allocation2 + $0x1e8] sm:$0xff]
    %v178 = vld [vmem:[#allocation2 + $0x1f0] sm:$0xff]
    %v179 = vld [vmem:[#allocation2 + $0x1f8] sm:$0xff]
    %v180 = vrot.slane %v116, 4
    %v181 = vadd.f32 %v116, %v180
    %v182 = vrot.slane %v181, 2
    %v183 = vadd.f32 %v181, %v182
    %v184 = vrot.slane %v183, 1
    %v185 = vadd.f32 %v183, %v184
    %v186 = vrot.slane %v117, 4
    %v187 = vadd.f32 %v117, %v186
    %v188 = vrot.slane %v187, 2
    %v189 = vadd.f32 %v187, %v188
    %v190 = vrot.slane %v189, 1
    %v191 = vadd.f32 %v189, %v190
    %v192 = vrot.slane %v118, 4
    %v193 = vadd.f32 %v118, %v192
    %v194 = vrot.slane %v193, 2
    %v195 = vadd.f32 %v193, %v194
    %v196 = vrot.slane %v195, 1
    %v197 = vadd.f32 %v195, %v196
    %v198 = vrot.slane %v119, 4
    %v199 = vadd.f32 %v119, %v198
    %v200 = vrot.slane %v199, 2
    %v201 = vadd.f32 %v199, %v200
    %v202 = vrot.slane %v201, 1
    %v203 = vadd.f32 %v201, %v202
    %v204 = vrot.slane %v120, 4
    %v205 = vadd.f32 %v120, %v204
    %v206 = vrot.slane %v205, 2
    %v207 = vadd.f32 %v205, %v206
    %v208 = vrot.slane %v207, 1
    %v209 = vadd.f32 %v207, %v208
    %v210 = vrot.slane %v121, 4
    %v211 = vadd.f32 %v121, %v210
    %v212 = vrot.slane %v211, 2
    %v213 = vadd.f32 %v211, %v212
    %v214 = vrot.slane %v213, 1
    %v215 = vadd.f32 %v213, %v214
    %v216 = vrot.slane %v122, 4
    %v217 = vadd.f32 %v122, %v216
    %v218 = vrot.slane %v217, 2
    %v219 = vadd.f32 %v217, %v218
    %v220 = vrot.slane %v219, 1
    %v221 = vadd.f32 %v219, %v220
    %v222 = vrot.slane %v123, 4
    %v223 = vadd.f32 %v123, %v222
    %v224 = vrot.slane %v223, 2
    %v225 = vadd.f32 %v223, %v224
    %v226 = vrot.slane %v225, 1
    %v227 = vadd.f32 %v225, %v226
    %v228 = vrot.slane %v124, 4
    %v229 = vadd.f32 %v124, %v228
    %v230 = vrot.slane %v229, 2
    %v231 = vadd.f32 %v229, %v230
    %v232 = vrot.slane %v231, 1
    %v233 = vadd.f32 %v231, %v232
    %v234 = vrot.slane %v125, 4
    %v235 = vadd.f32 %v125, %v234
    %v236 = vrot.slane %v235, 2
    %v237 = vadd.f32 %v235, %v236
    %v238 = vrot.slane %v237, 1
    %v239 = vadd.f32 %v237, %v238
    %v240 = vrot.slane %v126, 4
    %v241 = vadd.f32 %v126, %v240
    %v242 = vrot.slane %v241, 2
    %v243 = vadd.f32 %v241, %v242
    %v244 = vrot.slane %v243, 1
    %v245 = vadd.f32 %v243, %v244
    %v246 = vrot.slane %v127, 4
    %v247 = vadd.f32 %v127, %v246
    %v248 = vrot.slane %v247, 2
    %v249 = vadd.f32 %v247, %v248
    %v250 = vrot.slane %v249, 1
    %v251 = vadd.f32 %v249, %v250
    %v252 = vrot.slane %v128, 4
    %v253 = vadd.f32 %v128, %v252
    %v254 = vrot.slane %v253, 2
    %v255 = vadd.f32 %v253, %v254
    %v256 = vrot.slane %v255, 1
    %v257 = vadd.f32 %v255, %v256
    %v258 = vrot.slane %v129, 4
    %v259 = vadd.f32 %v129, %v258
    %v260 = vrot.slane %v259, 2
    %v261 = vadd.f32 %v259, %v260
    %v262 = vrot.slane %v261, 1
    %v263 = vadd.f32 %v261, %v262
    %v264 = vrot.slane %v130, 4
    %v265 = vadd.f32 %v130, %v264
    %v266 = vrot.slane %v265, 2
    %v267 = vadd.f32 %v265, %v266
    %v268 = vrot.slane %v267, 1
    %v269 = vadd.f32 %v267, %v268
    %v270 = vrot.slane %v131, 4
    %v271 = vadd.f32 %v131, %v270
    %v272 = vrot.slane %v271, 2
    %v273 = vadd.f32 %v271, %v272
    %v274 = vrot.slane %v273, 1
    %v275 = vadd.f32 %v273, %v274
    %v276 = vrot.slane %v132, 4
    %v277 = vadd.f32 %v132, %v276
    %v278 = vrot.slane %v277, 2
    %v279 = vadd.f32 %v277, %v278
    %v280 = vrot.slane %v279, 1
    %v281 = vadd.f32 %v279, %v280
    %v282 = vrot.slane %v133, 4
    %v283 = vadd.f32 %v133, %v282
    %v284 = vrot.slane %v283, 2
    %v285 = vadd.f32 %v283, %v284
    %v286 = vrot.slane %v285, 1
    %v287 = vadd.f32 %v285, %v286
    %v288 = vrot.slane %v134, 4
    %v289 = vadd.f32 %v134, %v288
    %v290 = vrot.slane %v289, 2
    %v291 = vadd.f32 %v289, %v290
    %v292 = vrot.slane %v291, 1
    %v293 = vadd.f32 %v291, %v292
    %v294 = vrot.slane %v135, 4
    %v295 = vadd.f32 %v135, %v294
    %v296 = vrot.slane %v295, 2
    %v297 = vadd.f32 %v295, %v296
    %v298 = vrot.slane %v297, 1
    %v299 = vadd.f32 %v297, %v298
    %v300 = vrot.slane %v136, 4
    %v301 = vadd.f32 %v136, %v300
    %v302 = vrot.slane %v301, 2
    %v303 = vadd.f32 %v301, %v302
    %v304 = vrot.slane %v303, 1
    %v305 = vadd.f32 %v303, %v304
    %v306 = vrot.slane %v137, 4
    %v307 = vadd.f32 %v137, %v306
    %v308 = vrot.slane %v307, 2
    %v309 = vadd.f32 %v307, %v308
    %v310 = vrot.slane %v309, 1
    %v311 = vadd.f32 %v309, %v310
    %v312 = vrot.slane %v138, 4
    %v313 = vadd.f32 %v138, %v312
    %v314 = vrot.slane %v313, 2
    %v315 = vadd.f32 %v313, %v314
    %v316 = vrot.slane %v315, 1
    %v317 = vadd.f32 %v315, %v316
    %v318 = vrot.slane %v139, 4
    %v319 = vadd.f32 %v139, %v318
    %v320 = vrot.slane %v319, 2
    %v321 = vadd.f32 %v319, %v320
    %v322 = vrot.slane %v321, 1
    %v323 = vadd.f32 %v321, %v322
    %v324 = vrot.slane %v140, 4
    %v325 = vadd.f32 %v140, %v324
    %v326 = vrot.slane %v325, 2
    %v327 = vadd.f32 %v325, %v326
    %v328 = vrot.slane %v327, 1
    %v329 = vadd.f32 %v327, %v328
    %v330 = vrot.slane %v141, 4
    %v331 = vadd.f32 %v141, %v330
    %v332 = vrot.slane %v331, 2
    %v333 = vadd.f32 %v331, %v332
    %v334 = vrot.slane %v333, 1
    %v335 = vadd.f32 %v333, %v334
    %v336 = vrot.slane %v142, 4
    %v337 = vadd.f32 %v142, %v336
    %v338 = vrot.slane %v337, 2
    %v339 = vadd.f32 %v337, %v338
    %v340 = vrot.slane %v339, 1
    %v341 = vadd.f32 %v339, %v340
    %v342 = vrot.slane %v143, 4
    %v343 = vadd.f32 %v143, %v342
    %v344 = vrot.slane %v343, 2
    %v345 = vadd.f32 %v343, %v344
    %v346 = vrot.slane %v345, 1
    %v347 = vadd.f32 %v345, %v346
    %v348 = vrot.slane %v144, 4
    %v349 = vadd.f32 %v144, %v348
    %v350 = vrot.slane %v349, 2
    %v351 = vadd.f32 %v349, %v350
    %v352 = vrot.slane %v351, 1
    %v353 = vadd.f32 %v351, %v352
    %v354 = vrot.slane %v145, 4
    %v355 = vadd.f32 %v145, %v354
    %v356 = vrot.slane %v355, 2
    %v357 = vadd.f32 %v355, %v356
    %v358 = vrot.slane %v357, 1
    %v359 = vadd.f32 %v357, %v358
    %v360 = vrot.slane %v146, 4
    %v361 = vadd.f32 %v146, %v360
    %v362 = vrot.slane %v361, 2
    %v363 = vadd.f32 %v361, %v362
    %v364 = vrot.slane %v363, 1
    %v365 = vadd.f32 %v363, %v364
    %v366 = vrot.slane %v147, 4
    %v367 = vadd.f32 %v147, %v366
    %v368 = vrot.slane %v367, 2
    %v369 = vadd.f32 %v367, %v368
    %v370 = vrot.slane %v369, 1
    %v371 = vadd.f32 %v369, %v370
    %v372 = vrot.slane %v148, 4
    %v373 = vadd.f32 %v148, %v372
    %v374 = vrot.slane %v373, 2
    %v375 = vadd.f32 %v373, %v374
    %v376 = vrot.slane %v375, 1
    %v377 = vadd.f32 %v375, %v376
    %v378 = vrot.slane %v149, 4
    %v379 = vadd.f32 %v149, %v378
    %v380 = vrot.slane %v379, 2
    %v381 = vadd.f32 %v379, %v380
    %v382 = vrot.slane %v381, 1
    %v383 = vadd.f32 %v381, %v382
    %v384 = vrot.slane %v150, 4
    %v385 = vadd.f32 %v150, %v384
    %v386 = vrot.slane %v385, 2
    %v387 = vadd.f32 %v385, %v386
    %v388 = vrot.slane %v387, 1
    %v389 = vadd.f32 %v387, %v388
    %v390 = vrot.slane %v151, 4
    %v391 = vadd.f32 %v151, %v390
    %v392 = vrot.slane %v391, 2
    %v393 = vadd.f32 %v391, %v392
    %v394 = vrot.slane %v393, 1
    %v395 = vadd.f32 %v393, %v394
    %v396 = vrot.slane %v152, 4
    %v397 = vadd.f32 %v152, %v396
    %v398 = vrot.slane %v397, 2
    %v399 = vadd.f32 %v397, %v398
    %v400 = vrot.slane %v399, 1
    %v401 = vadd.f32 %v399, %v400
    %v402 = vrot.slane %v153, 4
    %v403 = vadd.f32 %v153, %v402
    %v404 = vrot.slane %v403, 2
    %v405 = vadd.f32 %v403, %v404
    %v406 = vrot.slane %v405, 1
    %v407 = vadd.f32 %v405, %v406
    %v408 = vrot.slane %v154, 4
    %v409 = vadd.f32 %v154, %v408
    %v410 = vrot.slane %v409, 2
    %v411 = vadd.f32 %v409, %v410
    %v412 = vrot.slane %v411, 1
    %v413 = vadd.f32 %v411, %v412
    %v414 = vrot.slane %v155, 4
    %v415 = vadd.f32 %v155, %v414
    %v416 = vrot.slane %v415, 2
    %v417 = vadd.f32 %v415, %v416
    %v418 = vrot.slane %v417, 1
    %v419 = vadd.f32 %v417, %v418
    %v420 = vrot.slane %v156, 4
    %v421 = vadd.f32 %v156, %v420
    %v422 = vrot.slane %v421, 2
    %v423 = vadd.f32 %v421, %v422
    %v424 = vrot.slane %v423, 1
    %v425 = vadd.f32 %v423, %v424
    %v426 = vrot.slane %v157, 4
    %v427 = vadd.f32 %v157, %v426
    %v428 = vrot.slane %v427, 2
    %v429 = vadd.f32 %v427, %v428
    %v430 = vrot.slane %v429, 1
    %v431 = vadd.f32 %v429, %v430
    %v432 = vrot.slane %v158, 4
    %v433 = vadd.f32 %v158, %v432
    %v434 = vrot.slane %v433, 2
    %v435 = vadd.f32 %v433, %v434
    %v436 = vrot.slane %v435, 1
    %v437 = vadd.f32 %v435, %v436
    %v438 = vrot.slane %v159, 4
    %v439 = vadd.f32 %v159, %v438
    %v440 = vrot.slane %v439, 2
    %v441 = vadd.f32 %v439, %v440
    %v442 = vrot.slane %v441, 1
    %v443 = vadd.f32 %v441, %v442
    %v444 = vrot.slane %v160, 4
    %v445 = vadd.f32 %v160, %v444
    %v446 = vrot.slane %v445, 2
    %v447 = vadd.f32 %v445, %v446
    %v448 = vrot.slane %v447, 1
    %v449 = vadd.f32 %v447, %v448
    %v450 = vrot.slane %v161, 4
    %v451 = vadd.f32 %v161, %v450
    %v452 = vrot.slane %v451, 2
    %v453 = vadd.f32 %v451, %v452
    %v454 = vrot.slane %v453, 1
    %v455 = vadd.f32 %v453, %v454
    %v456 = vrot.slane %v162, 4
    %v457 = vadd.f32 %v162, %v456
    %v458 = vrot.slane %v457, 2
    %v459 = vadd.f32 %v457, %v458
    %v460 = vrot.slane %v459, 1
    %v461 = vadd.f32 %v459, %v460
    %v462 = vrot.slane %v163, 4
    %v463 = vadd.f32 %v163, %v462
    %v464 = vrot.slane %v463, 2
    %v465 = vadd.f32 %v463, %v464
    %v466 = vrot.slane %v465, 1
    %v467 = vadd.f32 %v465, %v466
    %v468 = vrot.slane %v164, 4
    %v469 = vadd.f32 %v164, %v468
    %v470 = vrot.slane %v469, 2
    %v471 = vadd.f32 %v469, %v470
    %v472 = vrot.slane %v471, 1
    %v473 = vadd.f32 %v471, %v472
    %v474 = vrot.slane %v165, 4
    %v475 = vadd.f32 %v165, %v474
    %v476 = vrot.slane %v475, 2
    %v477 = vadd.f32 %v475, %v476
    %v478 = vrot.slane %v477, 1
    %v479 = vadd.f32 %v477, %v478
    %v480 = vrot.slane %v166, 4
    %v481 = vadd.f32 %v166, %v480
    %v482 = vrot.slane %v481, 2
    %v483 = vadd.f32 %v481, %v482
    %v484 = vrot.slane %v483, 1
    %v485 = vadd.f32 %v483, %v484
    %v486 = vrot.slane %v167, 4
    %v487 = vadd.f32 %v167, %v486
    %v488 = vrot.slane %v487, 2
    %v489 = vadd.f32 %v487, %v488
    %v490 = vrot.slane %v489, 1
    %v491 = vadd.f32 %v489, %v490
    %v492 = vrot.slane %v168, 4
    %v493 = vadd.f32 %v168, %v492
    %v494 = vrot.slane %v493, 2
    %v495 = vadd.f32 %v493, %v494
    %v496 = vrot.slane %v495, 1
    %v497 = vadd.f32 %v495, %v496
    %v498 = vrot.slane %v169, 4
    %v499 = vadd.f32 %v169, %v498
    %v500 = vrot.slane %v499, 2
    %v501 = vadd.f32 %v499, %v500
    %v502 = vrot.slane %v501, 1
    %v503 = vadd.f32 %v501, %v502
    %v504 = vrot.slane %v170, 4
    %v505 = vadd.f32 %v170, %v504
    %v506 = vrot.slane %v505, 2
    %v507 = vadd.f32 %v505, %v506
    %v508 = vrot.slane %v507, 1
    %v509 = vadd.f32 %v507, %v508
    %v510 = vrot.slane %v171, 4
    %v511 = vadd.f32 %v171, %v510
    %v512 = vrot.slane %v511, 2
    %v513 = vadd.f32 %v511, %v512
    %v514 = vrot.slane %v513, 1
    %v515 = vadd.f32 %v513, %v514
    %v516 = vrot.slane %v172, 4
    %v517 = vadd.f32 %v172, %v516
    %v518 = vrot.slane %v517, 2
    %v519 = vadd.f32 %v517, %v518
    %v520 = vrot.slane %v519, 1
    %v521 = vadd.f32 %v519, %v520
    %v522 = vrot.slane %v173, 4
    %v523 = vadd.f32 %v173, %v522
    %v524 = vrot.slane %v523, 2
    %v525 = vadd.f32 %v523, %v524
    %v526 = vrot.slane %v525, 1
    %v527 = vadd.f32 %v525, %v526
    %v528 = vrot.slane %v174, 4
    %v529 = vadd.f32 %v174, %v528
    %v530 = vrot.slane %v529, 2
    %v531 = vadd.f32 %v529, %v530
    %v532 = vrot.slane %v531, 1
    %v533 = vadd.f32 %v531, %v532
    %v534 = vrot.slane %v175, 4
    %v535 = vadd.f32 %v175, %v534
    %v536 = vrot.slane %v535, 2
    %v537 = vadd.f32 %v535, %v536
    %v538 = vrot.slane %v537, 1
    %v539 = vadd.f32 %v537, %v538
    %v540 = vrot.slane %v176, 4
    %v541 = vadd.f32 %v176, %v540
    %v542 = vrot.slane %v541, 2
    %v543 = vadd.f32 %v541, %v542
    %v544 = vrot.slane %v543, 1
    %v545 = vadd.f32 %v543, %v544
    %v546 = vrot.slane %v177, 4
    %v547 = vadd.f32 %v177, %v546
    %v548 = vrot.slane %v547, 2
    %v549 = vadd.f32 %v547, %v548
    %v550 = vrot.slane %v549, 1
    %v551 = vadd.f32 %v549, %v550
    %v552 = vrot.slane %v178, 4
    %v553 = vadd.f32 %v178, %v552
    %v554 = vrot.slane %v553, 2
    %v555 = vadd.f32 %v553, %v554
    %v556 = vrot.slane %v555, 1
    %v557 = vadd.f32 %v555, %v556
    %v558 = vrot.slane %v179, 4
    %v559 = vadd.f32 %v179, %v558
    %v560 = vrot.slane %v559, 2
    %v561 = vadd.f32 %v559, %v560
    %v562 = vrot.slane %v561, 1
    %v563 = vadd.f32 %v561, %v562
    %v564 = vrcp.pop 8.0
    %v565 = vmul.f32 %v185, %v564
    %v566 = vmul.f32 %v191, %v564
    %v567 = vmul.f32 %v197, %v564
    %v568 = vmul.f32 %v203, %v564
    %v569 = vmul.f32 %v209, %v564
    %v570 = vmul.f32 %v215, %v564
    %v571 = vmul.f32 %v221, %v564
    %v572 = vmul.f32 %v227, %v564
    %v573 = vmul.f32 %v233, %v564
    %v574 = vmul.f32 %v239, %v564
    %v575 = vmul.f32 %v245, %v564
    %v576 = vmul.f32 %v251, %v564
    %v577 = vmul.f32 %v257, %v564
    %v578 = vmul.f32 %v263, %v564
    %v579 = vmul.f32 %v269, %v564
    %v580 = vmul.f32 %v275, %v564
    %v581 = vmul.f32 %v281, %v564
    %v582 = vmul.f32 %v287, %v564
    %v583 = vmul.f32 %v293, %v564
    %v584 = vmul.f32 %v299, %v564
    %v585 = vmul.f32 %v305, %v564
    %v586 = vmul.f32 %v311, %v564
    %v587 = vmul.f32 %v317, %v564
    %v588 = vmul.f32 %v323, %v564
    %v589 = vmul.f32 %v329, %v564
    %v590 = vmul.f32 %v335, %v564
    %v591 = vmul.f32 %v341, %v564
    %v592 = vmul.f32 %v347, %v564
    %v593 = vmul.f32 %v353, %v564
    %v594 = vmul.f32 %v359, %v564
    %v595 = vmul.f32 %v365, %v564
    %v596 = vmul.f32 %v371, %v564
    %v597 = vmul.f32 %v377, %v564
    %v598 = vmul.f32 %v383, %v564
    %v599 = vmul.f32 %v389, %v564
    %v600 = vmul.f32 %v395, %v564
    %v601 = vmul.f32 %v401, %v564
    %v602 = vmul.f32 %v407, %v564
    %v603 = vmul.f32 %v413, %v564
    %v604 = vmul.f32 %v419, %v564
    %v605 = vmul.f32 %v425, %v564
    %v606 = vmul.f32 %v431, %v564
    %v607 = vmul.f32 %v437, %v564
    %v608 = vmul.f32 %v443, %v564
    %v609 = vmul.f32 %v449, %v564
    %v610 = vmul.f32 %v455, %v564
    %v611 = vmul.f32 %v461, %v564
    %v612 = vmul.f32 %v467, %v564
    %v613 = vmul.f32 %v473, %v564
    %v614 = vmul.f32 %v479, %v564
    %v615 = vmul.f32 %v485, %v564
    %v616 = vmul.f32 %v491, %v564
    %v617 = vmul.f32 %v497, %v564
    %v618 = vmul.f32 %v503, %v564
    %v619 = vmul.f32 %v509, %v564
    %v620 = vmul.f32 %v515, %v564
    %v621 = vmul.f32 %v521, %v564
    %v622 = vmul.f32 %v527, %v564
    %v623 = vmul.f32 %v533, %v564
    %v624 = vmul.f32 %v539, %v564
    %v625 = vmul.f32 %v545, %v564
    %v626 = vmul.f32 %v551, %v564
    %v627 = vmul.f32 %v557, %v564
    %v628 = vmul.f32 %v563, %v564
    %v693 = vcombine.low %v565, %v566
    %v694 = vcombine.low %v567, %v568
    %v696 = vunpack.c.l.s4 1983009808
    %v697 = vunpack.c.0.s8 %v696
    %v698 = vlaneseq
    %v699 = vshrl.u32 %v698, 7
    %v700 = vsub.s32 %v697, %v699
    %v701 = vrot.slane %v693, %v700
    %v703 = vunpack.c.l.s4 1983009808
    %v704 = vunpack.c.0.s8 %v703
    %v705 = vlaneseq
    %v706 = vshrl.u32 %v705, 7
    %v707 = vsub.s32 %v704, %v706
    %v708 = vrot.slane %v694, %v707
    %v709 = vcombine.low %v701, %v708
    %v710 = vcombine.low %v569, %v570
    %v711 = vcombine.low %v571, %v572
    %v713 = vunpack.c.l.s4 1983009808
    %v714 = vunpack.c.0.s8 %v713
    %v715 = vlaneseq
    %v716 = vshrl.u32 %v715, 7
    %v717 = vsub.s32 %v714, %v716
    %v718 = vrot.slane %v710, %v717
    %v720 = vunpack.c.l.s4 1983009808
    %v721 = vunpack.c.0.s8 %v720
    %v722 = vlaneseq
    %v723 = vshrl.u32 %v722, 7
    %v724 = vsub.s32 %v721, %v723
    %v725 = vrot.slane %v711, %v724
    %v726 = vcombine.low %v718, %v725
    %v727 = vcombine.low %v573, %v574
    %v728 = vcombine.low %v575, %v576
    %v730 = vunpack.c.l.s4 1983009808
    %v731 = vunpack.c.0.s8 %v730
    %v732 = vlaneseq
    %v733 = vshrl.u32 %v732, 7
    %v734 = vsub.s32 %v731, %v733
    %v735 = vrot.slane %v727, %v734
    %v737 = vunpack.c.l.s4 1983009808
    %v738 = vunpack.c.0.s8 %v737
    %v739 = vlaneseq
    %v740 = vshrl.u32 %v739, 7
    %v741 = vsub.s32 %v738, %v740
    %v742 = vrot.slane %v728, %v741
    %v743 = vcombine.low %v735, %v742
    %v744 = vcombine.low %v577, %v578
    %v745 = vcombine.low %v579, %v580
    %v747 = vunpack.c.l.s4 1983009808
    %v748 = vunpack.c.0.s8 %v747
    %v749 = vlaneseq
    %v750 = vshrl.u32 %v749, 7
    %v751 = vsub.s32 %v748, %v750
    %v752 = vrot.slane %v744, %v751
    %v754 = vunpack.c.l.s4 1983009808
    %v755 = vunpack.c.0.s8 %v754
    %v756 = vlaneseq
    %v757 = vshrl.u32 %v756, 7
    %v758 = vsub.s32 %v755, %v757
    %v759 = vrot.slane %v745, %v758
    %v760 = vcombine.low %v752, %v759
    %v761 = vcombine.low %v581, %v582
    %v762 = vcombine.low %v583, %v584
    %v764 = vunpack.c.l.s4 1983009808
    %v765 = vunpack.c.0.s8 %v764
    %v766 = vlaneseq
    %v767 = vshrl.u32 %v766, 7
    %v768 = vsub.s32 %v765, %v767
    %v769 = vrot.slane %v761, %v768
    %v771 = vunpack.c.l.s4 1983009808
    %v772 = vunpack.c.0.s8 %v771
    %v773 = vlaneseq
    %v774 = vshrl.u32 %v773, 7
    %v775 = vsub.s32 %v772, %v774
    %v776 = vrot.slane %v762, %v775
    %v777 = vcombine.low %v769, %v776
    %v778 = vcombine.low %v585, %v586
    %v779 = vcombine.low %v587, %v588
    %v781 = vunpack.c.l.s4 1983009808
    %v782 = vunpack.c.0.s8 %v781
    %v783 = vlaneseq
    %v784 = vshrl.u32 %v783, 7
    %v785 = vsub.s32 %v782, %v784
    %v786 = vrot.slane %v778, %v785
    %v788 = vunpack.c.l.s4 1983009808
    %v789 = vunpack.c.0.s8 %v788
    %v790 = vlaneseq
    %v791 = vshrl.u32 %v790, 7
    %v792 = vsub.s32 %v789, %v791
    %v793 = vrot.slane %v779, %v792
    %v794 = vcombine.low %v786, %v793
    %v795 = vcombine.low %v589, %v590
    %v796 = vcombine.low %v591, %v592
    %v798 = vunpack.c.l.s4 1983009808
    %v799 = vunpack.c.0.s8 %v798
    %v800 = vlaneseq
    %v801 = vshrl.u32 %v800, 7
    %v802 = vsub.s32 %v799, %v801
    %v803 = vrot.slane %v795, %v802
    %v805 = vunpack.c.l.s4 1983009808
    %v806 = vunpack.c.0.s8 %v805
    %v807 = vlaneseq
    %v808 = vshrl.u32 %v807, 7
    %v809 = vsub.s32 %v806, %v808
    %v810 = vrot.slane %v796, %v809
    %v811 = vcombine.low %v803, %v810
    %v812 = vcombine.low %v593, %v594
    %v813 = vcombine.low %v595, %v596
    %v815 = vunpack.c.l.s4 1983009808
    %v816 = vunpack.c.0.s8 %v815
    %v817 = vlaneseq
    %v818 = vshrl.u32 %v817, 7
    %v819 = vsub.s32 %v816, %v818
    %v820 = vrot.slane %v812, %v819
    %v822 = vunpack.c.l.s4 1983009808
    %v823 = vunpack.c.0.s8 %v822
    %v824 = vlaneseq
    %v825 = vshrl.u32 %v824, 7
    %v826 = vsub.s32 %v823, %v825
    %v827 = vrot.slane %v813, %v826
    %v828 = vcombine.low %v820, %v827
    %v829 = vcombine.low %v597, %v598
    %v830 = vcombine.low %v599, %v600
    %v832 = vunpack.c.l.s4 1983009808
    %v833 = vunpack.c.0.s8 %v832
    %v834 = vlaneseq
    %v835 = vshrl.u32 %v834, 7
    %v836 = vsub.s32 %v833, %v835
    %v837 = vrot.slane %v829, %v836
    %v839 = vunpack.c.l.s4 1983009808
    %v840 = vunpack.c.0.s8 %v839
    %v841 = vlaneseq
    %v842 = vshrl.u32 %v841, 7
    %v843 = vsub.s32 %v840, %v842
    %v844 = vrot.slane %v830, %v843
    %v845 = vcombine.low %v837, %v844
    %v846 = vcombine.low %v601, %v602
    %v847 = vcombine.low %v603, %v604
    %v849 = vunpack.c.l.s4 1983009808
    %v850 = vunpack.c.0.s8 %v849
    %v851 = vlaneseq
    %v852 = vshrl.u32 %v851, 7
    %v853 = vsub.s32 %v850, %v852
    %v854 = vrot.slane %v846, %v853
    %v856 = vunpack.c.l.s4 1983009808
    %v857 = vunpack.c.0.s8 %v856
    %v858 = vlaneseq
    %v859 = vshrl.u32 %v858, 7
    %v860 = vsub.s32 %v857, %v859
    %v861 = vrot.slane %v847, %v860
    %v862 = vcombine.low %v854, %v861
    %v863 = vcombine.low %v605, %v606
    %v864 = vcombine.low %v607, %v608
    %v866 = vunpack.c.l.s4 1983009808
    %v867 = vunpack.c.0.s8 %v866
    %v868 = vlaneseq
    %v869 = vshrl.u32 %v868, 7
    %v870 = vsub.s32 %v867, %v869
    %v871 = vrot.slane %v863, %v870
    %v873 = vunpack.c.l.s4 1983009808
    %v874 = vunpack.c.0.s8 %v873
    %v875 = vlaneseq
    %v876 = vshrl.u32 %v875, 7
    %v877 = vsub.s32 %v874, %v876
    %v878 = vrot.slane %v864, %v877
    %v879 = vcombine.low %v871, %v878
    %v880 = vcombine.low %v609, %v610
    %v881 = vcombine.low %v611, %v612
    %v883 = vunpack.c.l.s4 1983009808
    %v884 = vunpack.c.0.s8 %v883
    %v885 = vlaneseq
    %v886 = vshrl.u32 %v885, 7
    %v887 = vsub.s32 %v884, %v886
    %v888 = vrot.slane %v880, %v887
    %v890 = vunpack.c.l.s4 1983009808
    %v891 = vunpack.c.0.s8 %v890
    %v892 = vlaneseq
    %v893 = vshrl.u32 %v892, 7
    %v894 = vsub.s32 %v891, %v893
    %v895 = vrot.slane %v881, %v894
    %v896 = vcombine.low %v888, %v895
    %v897 = vcombine.low %v613, %v614
    %v898 = vcombine.low %v615, %v616
    %v900 = vunpack.c.l.s4 1983009808
    %v901 = vunpack.c.0.s8 %v900
    %v902 = vlaneseq
    %v903 = vshrl.u32 %v902, 7
    %v904 = vsub.s32 %v901, %v903
    %v905 = vrot.slane %v897, %v904
    %v907 = vunpack.c.l.s4 1983009808
    %v908 = vunpack.c.0.s8 %v907
    %v909 = vlaneseq
    %v910 = vshrl.u32 %v909, 7
    %v911 = vsub.s32 %v908, %v910
    %v912 = vrot.slane %v898, %v911
    %v913 = vcombine.low %v905, %v912
    %v914 = vcombine.low %v617, %v618
    %v915 = vcombine.low %v619, %v620
    %v917 = vunpack.c.l.s4 1983009808
    %v918 = vunpack.c.0.s8 %v917
    %v919 = vlaneseq
    %v920 = vshrl.u32 %v919, 7
    %v921 = vsub.s32 %v918, %v920
    %v922 = vrot.slane %v914, %v921
    %v924 = vunpack.c.l.s4 1983009808
    %v925 = vunpack.c.0.s8 %v924
    %v926 = vlaneseq
    %v927 = vshrl.u32 %v926, 7
    %v928 = vsub.s32 %v925, %v927
    %v929 = vrot.slane %v915, %v928
    %v930 = vcombine.low %v922, %v929
    %v931 = vcombine.low %v621, %v622
    %v932 = vcombine.low %v623, %v624
    %v934 = vunpack.c.l.s4 1983009808
    %v935 = vunpack.c.0.s8 %v934
    %v936 = vlaneseq
    %v937 = vshrl.u32 %v936, 7
    %v938 = vsub.s32 %v935, %v937
    %v939 = vrot.slane %v931, %v938
    %v941 = vunpack.c.l.s4 1983009808
    %v942 = vunpack.c.0.s8 %v941
    %v943 = vlaneseq
    %v944 = vshrl.u32 %v943, 7
    %v945 = vsub.s32 %v942, %v944
    %v946 = vrot.slane %v932, %v945
    %v947 = vcombine.low %v939, %v946
    %v948 = vcombine.low %v625, %v626
    %v949 = vcombine.low %v627, %v628
    %v951 = vunpack.c.l.s4 1983009808
    %v952 = vunpack.c.0.s8 %v951
    %v953 = vlaneseq
    %v954 = vshrl.u32 %v953, 7
    %v955 = vsub.s32 %v952, %v954
    %v956 = vrot.slane %v948, %v955
    %v958 = vunpack.c.l.s4 1983009808
    %v959 = vunpack.c.0.s8 %v958
    %v960 = vlaneseq
    %v961 = vshrl.u32 %v960, 7
    %v962 = vsub.s32 %v959, %v961
    %v963 = vrot.slane %v949, %v962
    %v964 = vcombine.low %v956, %v963
    %vm965 = vcmask 1044484
    %v966 = vsel %vm965, %v709, %v709
    %vm967 = vcmask 1046534
    %v968 = vsel %vm967, %v709, %v966
    %v969 = vrot.slane %v726, 7
    %vm970 = vcmask 1041409
    %v971 = vsel %vm970, %v969, %v968
    %vm972 = vcmask 1043459
    %v973 = vsel %vm972, %v969, %v971
    %vm974 = vcmask 1045509
    %v975 = vsel %vm974, %v969, %v973
    %vm976 = vcmask 1047559
    %v977 = vsel %vm976, %v969, %v975
    %v978 = vsel %vm965, %v743, %v743
    %v979 = vsel %vm967, %v743, %v978
    %v980 = vrot.slane %v760, 7
    %v981 = vsel %vm970, %v980, %v979
    %v982 = vsel %vm972, %v980, %v981
    %v983 = vsel %vm974, %v980, %v982
    %v984 = vsel %vm976, %v980, %v983
    %v985 = vsel %vm965, %v777, %v777
    %v986 = vsel %vm967, %v777, %v985
    %v987 = vrot.slane %v794, 7
    %v988 = vsel %vm970, %v987, %v986
    %v989 = vsel %vm972, %v987, %v988
    %v990 = vsel %vm974, %v987, %v989
    %v991 = vsel %vm976, %v987, %v990
    %v992 = vsel %vm965, %v811, %v811
    %v993 = vsel %vm967, %v811, %v992
    %v994 = vrot.slane %v828, 7
    %v995 = vsel %vm970, %v994, %v993
    %v996 = vsel %vm972, %v994, %v995
    %v997 = vsel %vm974, %v994, %v996
    %v998 = vsel %vm976, %v994, %v997
    %v999 = vsel %vm965, %v845, %v845
    %v1000 = vsel %vm967, %v845, %v999
    %v1001 = vrot.slane %v862, 7
    %v1002 = vsel %vm970, %v1001, %v1000
    %v1003 = vsel %vm972, %v1001, %v1002
    %v1004 = vsel %vm974, %v1001, %v1003
    %v1005 = vsel %vm976, %v1001, %v1004
    %v1006 = vsel %vm965, %v879, %v879
    %v1007 = vsel %vm967, %v879, %v1006
    %v1008 = vrot.slane %v896, 7
    %v1009 = vsel %vm970, %v1008, %v1007
    %v1010 = vsel %vm972, %v1008, %v1009
    %v1011 = vsel %vm974, %v1008, %v1010
    %v1012 = vsel %vm976, %v1008, %v1011
    %v1013 = vsel %vm965, %v913, %v913
    %v1014 = vsel %vm967, %v913, %v1013
    %v1015 = vrot.slane %v930, 7
    %v1016 = vsel %vm970, %v1015, %v1014
    %v1017 = vsel %vm972, %v1015, %v1016
    %v1018 = vsel %vm974, %v1015, %v1017
    %v1019 = vsel %vm976, %v1015, %v1018
    %v1020 = vsel %vm965, %v947, %v947
    %v1021 = vsel %vm967, %v947, %v1020
    %v1022 = vrot.slane %v964, 7
    %v1023 = vsel %vm970, %v1022, %v1021
    %v1024 = vsel %vm972, %v1022, %v1023
    %v1025 = vsel %vm974, %v1022, %v1024
    %v1026 = vsel %vm976, %v1022, %v1025
    %v1036 = vunpack.c.l.s4 1966171168
    %v1037 = vunpack.c.0.s8 %v1036
    %v1038 = vlaneseq
    %v1039 = vshrl.u32 %v1038, 7
    %v1040 = vsub.s32 %v1037, %v1039
    %v1041 = vrot.slane %v977, %v1040
    %v1043 = vunpack.c.l.s4 1966171168
    %v1044 = vunpack.c.0.s8 %v1043
    %v1045 = vlaneseq
    %v1046 = vshrl.u32 %v1045, 7
    %v1047 = vsub.s32 %v1044, %v1046
    %v1048 = vrot.slane %v984, %v1047
    %v1050 = vunpack.c.l.s4 1966171168
    %v1051 = vunpack.c.0.s8 %v1050
    %v1052 = vlaneseq
    %v1053 = vshrl.u32 %v1052, 7
    %v1054 = vsub.s32 %v1051, %v1053
    %v1055 = vrot.slane %v991, %v1054
    %v1057 = vunpack.c.l.s4 1966171168
    %v1058 = vunpack.c.0.s8 %v1057
    %v1059 = vlaneseq
    %v1060 = vshrl.u32 %v1059, 7
    %v1061 = vsub.s32 %v1058, %v1060
    %v1062 = vrot.slane %v998, %v1061
    %v1064 = vunpack.c.l.s4 1966171168
    %v1065 = vunpack.c.0.s8 %v1064
    %v1066 = vlaneseq
    %v1067 = vshrl.u32 %v1066, 7
    %v1068 = vsub.s32 %v1065, %v1067
    %v1069 = vrot.slane %v1005, %v1068
    %v1071 = vunpack.c.l.s4 1966171168
    %v1072 = vunpack.c.0.s8 %v1071
    %v1073 = vlaneseq
    %v1074 = vshrl.u32 %v1073, 7
    %v1075 = vsub.s32 %v1072, %v1074
    %v1076 = vrot.slane %v1012, %v1075
    %v1078 = vunpack.c.l.s4 1966171168
    %v1079 = vunpack.c.0.s8 %v1078
    %v1080 = vlaneseq
    %v1081 = vshrl.u32 %v1080, 7
    %v1082 = vsub.s32 %v1079, %v1081
    %v1083 = vrot.slane %v1019, %v1082
    %v1085 = vunpack.c.l.s4 1966171168
    %v1086 = vunpack.c.0.s8 %v1085
    %v1087 = vlaneseq
    %v1088 = vshrl.u32 %v1087, 7
    %v1089 = vsub.s32 %v1086, %v1088
    %v1090 = vrot.slane %v1026, %v1089
    %v1099 = vcombine.low %v1041, %v1048
    %v1100 = vcombine.high %v1041, %v1048
    %v1101 = vcombine.low %v1055, %v1062
    %v1102 = vcombine.high %v1055, %v1062
    %v1103 = vcombine.low %v1069, %v1076
    %v1104 = vcombine.high %v1069, %v1076
    %v1105 = vcombine.low %v1083, %v1090
    %v1106 = vcombine.high %v1083, %v1090
    %v1108 = vunpack.c.l.s4 1966171168
    %v1109 = vunpack.c.0.s8 %v1108
    %v1110 = vlaneseq
    %v1111 = vshrl.u32 %v1110, 7
    %v1112 = vsub.s32 %v1109, %v1111
    %v1113 = vrot.slane %v1099, %v1112
    %v1115 = vunpack.c.l.s4 1966171168
    %v1116 = vunpack.c.0.s8 %v1115
    %v1117 = vlaneseq
    %v1118 = vshrl.u32 %v1117, 7
    %v1119 = vsub.s32 %v1116, %v1118
    %v1120 = vrot.slane %v1100, %v1119
    %v1122 = vunpack.c.l.s4 1966171168
    %v1123 = vunpack.c.0.s8 %v1122
    %v1124 = vlaneseq
    %v1125 = vshrl.u32 %v1124, 7
    %v1126 = vsub.s32 %v1123, %v1125
    %v1127 = vrot.slane %v1101, %v1126
    %v1129 = vunpack.c.l.s4 1966171168
    %v1130 = vunpack.c.0.s8 %v1129
    %v1131 = vlaneseq
    %v1132 = vshrl.u32 %v1131, 7
    %v1133 = vsub.s32 %v1130, %v1132
    %v1134 = vrot.slane %v1102, %v1133
    %v1136 = vunpack.c.l.s4 1966171168
    %v1137 = vunpack.c.0.s8 %v1136
    %v1138 = vlaneseq
    %v1139 = vshrl.u32 %v1138, 7
    %v1140 = vsub.s32 %v1137, %v1139
    %v1141 = vrot.slane %v1103, %v1140
    %v1143 = vunpack.c.l.s4 1966171168
    %v1144 = vunpack.c.0.s8 %v1143
    %v1145 = vlaneseq
    %v1146 = vshrl.u32 %v1145, 7
    %v1147 = vsub.s32 %v1144, %v1146
    %v1148 = vrot.slane %v1104, %v1147
    %v1150 = vunpack.c.l.s4 1966171168
    %v1151 = vunpack.c.0.s8 %v1150
    %v1152 = vlaneseq
    %v1153 = vshrl.u32 %v1152, 7
    %v1154 = vsub.s32 %v1151, %v1153
    %v1155 = vrot.slane %v1105, %v1154
    %v1157 = vunpack.c.l.s4 1966171168
    %v1158 = vunpack.c.0.s8 %v1157
    %v1159 = vlaneseq
    %v1160 = vshrl.u32 %v1159, 7
    %v1161 = vsub.s32 %v1158, %v1160
    %v1162 = vrot.slane %v1106, %v1161
    %v1163 = vcombine.low %v1113, %v1127
    %v1164 = vcombine.high %v1113, %v1127
    %v1165 = vcombine.low %v1120, %v1134
    %v1166 = vcombine.high %v1120, %v1134
    %v1167 = vcombine.low %v1141, %v1155
    %v1168 = vcombine.high %v1141, %v1155
    %v1169 = vcombine.low %v1148, %v1162
    %v1170 = vcombine.high %v1148, %v1162
    %v1172 = vunpack.c.l.s4 1966171168
    %v1173 = vunpack.c.0.s8 %v1172
    %v1174 = vlaneseq
    %v1175 = vshrl.u32 %v1174, 7
    %v1176 = vsub.s32 %v1173, %v1175
    %v1177 = vrot.slane %v1163, %v1176
    %v1179 = vunpack.c.l.s4 1966171168
    %v1180 = vunpack.c.0.s8 %v1179
    %v1181 = vlaneseq
    %v1182 = vshrl.u32 %v1181, 7
    %v1183 = vsub.s32 %v1180, %v1182
    %v1184 = vrot.slane %v1165, %v1183
    %v1186 = vunpack.c.l.s4 1966171168
    %v1187 = vunpack.c.0.s8 %v1186
    %v1188 = vlaneseq
    %v1189 = vshrl.u32 %v1188, 7
    %v1190 = vsub.s32 %v1187, %v1189
    %v1191 = vrot.slane %v1164, %v1190
    %v1193 = vunpack.c.l.s4 1966171168
    %v1194 = vunpack.c.0.s8 %v1193
    %v1195 = vlaneseq
    %v1196 = vshrl.u32 %v1195, 7
    %v1197 = vsub.s32 %v1194, %v1196
    %v1198 = vrot.slane %v1166, %v1197
    %v1200 = vunpack.c.l.s4 1966171168
    %v1201 = vunpack.c.0.s8 %v1200
    %v1202 = vlaneseq
    %v1203 = vshrl.u32 %v1202, 7
    %v1204 = vsub.s32 %v1201, %v1203
    %v1205 = vrot.slane %v1167, %v1204
    %v1207 = vunpack.c.l.s4 1966171168
    %v1208 = vunpack.c.0.s8 %v1207
    %v1209 = vlaneseq
    %v1210 = vshrl.u32 %v1209, 7
    %v1211 = vsub.s32 %v1208, %v1210
    %v1212 = vrot.slane %v1169, %v1211
    %v1214 = vunpack.c.l.s4 1966171168
    %v1215 = vunpack.c.0.s8 %v1214
    %v1216 = vlaneseq
    %v1217 = vshrl.u32 %v1216, 7
    %v1218 = vsub.s32 %v1215, %v1217
    %v1219 = vrot.slane %v1168, %v1218
    %v1221 = vunpack.c.l.s4 1966171168
    %v1222 = vunpack.c.0.s8 %v1221
    %v1223 = vlaneseq
    %v1224 = vshrl.u32 %v1223, 7
    %v1225 = vsub.s32 %v1222, %v1224
    %v1226 = vrot.slane %v1170, %v1225
    %v1227 = vcombine.low %v1177, %v1205
    %v1228 = vcombine.high %v1177, %v1205
    %v1229 = vcombine.low %v1184, %v1212
    %v1230 = vcombine.high %v1184, %v1212
    %v1231 = vcombine.low %v1191, %v1219
    %v1232 = vcombine.high %v1191, %v1219
    %v1233 = vcombine.low %v1198, %v1226
    %v1234 = vcombine.high %v1198, %v1226
    %v1243 = vpack.c.bf16 %v1227, %v1227
    %v1244 = vpack.c.bf16 %v1231, %v1231
    %v1245 = vpack.c.bf16 %v1228, %v1228
    %v1246 = vpack.c.bf16 %v1232, %v1232
    %v1247 = vpack.c.bf16 %v1229, %v1229
    %v1248 = vpack.c.bf16 %v1233, %v1233
    %v1249 = vpack.c.bf16 %v1230, %v1230
    %v1250 = vpack.c.bf16 %v1234, %v1234
    %v1251 = vld [vmem:[#allocation5] sm:$0xff]
    %v1252 = vld [vmem:[#allocation5 + $0x8] sm:$0xff]
    %v1253 = vld [vmem:[#allocation5 + $0x10] sm:$0xff]
    %v1254 = vld [vmem:[#allocation5 + $0x18] sm:$0xff]
    %v1255 = vld [vmem:[#allocation5 + $0x20] sm:$0xff]
    %v1256 = vld [vmem:[#allocation5 + $0x28] sm:$0xff]
    %v1257 = vld [vmem:[#allocation5 + $0x30] sm:$0xff]
    %v1258 = vld [vmem:[#allocation5 + $0x38] sm:$0xff]
    %v1259 = vld [vmem:[#allocation5 + $0x40] sm:$0xff]
    %v1260 = vld [vmem:[#allocation5 + $0x48] sm:$0xff]
    %v1261 = vld [vmem:[#allocation5 + $0x50] sm:$0xff]
    %v1262 = vld [vmem:[#allocation5 + $0x58] sm:$0xff]
    %v1263 = vld [vmem:[#allocation5 + $0x60] sm:$0xff]
    %v1264 = vld [vmem:[#allocation5 + $0x68] sm:$0xff]
    %v1265 = vld [vmem:[#allocation5 + $0x70] sm:$0xff]
    %v1266 = vld [vmem:[#allocation5 + $0x78] sm:$0xff]
    %v1267 = vld [vmem:[#allocation5 + $0x80] sm:$0xff]
    %v1268 = vld [vmem:[#allocation5 + $0x88] sm:$0xff]
    %v1269 = vld [vmem:[#allocation5 + $0x90] sm:$0xff]
    %v1270 = vld [vmem:[#allocation5 + $0x98] sm:$0xff]
    %v1271 = vld [vmem:[#allocation5 + $0xa0] sm:$0xff]
    %v1272 = vld [vmem:[#allocation5 + $0xa8] sm:$0xff]
    %v1273 = vld [vmem:[#allocation5 + $0xb0] sm:$0xff]
    %v1274 = vld [vmem:[#allocation5 + $0xb8] sm:$0xff]
    %v1275 = vld [vmem:[#allocation5 + $0xc0] sm:$0xff]
    %v1276 = vld [vmem:[#allocation5 + $0xc8] sm:$0xff]
    %v1277 = vld [vmem:[#allocation5 + $0xd0] sm:$0xff]
    %v1278 = vld [vmem:[#allocation5 + $0xd8] sm:$0xff]
    %v1279 = vld [vmem:[#allocation5 + $0xe0] sm:$0xff]
    %v1280 = vld [vmem:[#allocation5 + $0xe8] sm:$0xff]
    %v1281 = vld [vmem:[#allocation5 + $0xf0] sm:$0xff]
    %v1282 = vld [vmem:[#allocation5 + $0xf8] sm:$0xff]
    %v1283 = vld [vmem:[#allocation5 + $0x100] sm:$0xff]
    %v1284 = vld [vmem:[#allocation5 + $0x108] sm:$0xff]
    %v1285 = vld [vmem:[#allocation5 + $0x110] sm:$0xff]
    %v1286 = vld [vmem:[#allocation5 + $0x118] sm:$0xff]
    %v1287 = vld [vmem:[#allocation5 + $0x120] sm:$0xff]
    %v1288 = vld [vmem:[#allocation5 + $0x128] sm:$0xff]
    %v1289 = vld [vmem:[#allocation5 + $0x130] sm:$0xff]
    %v1290 = vld [vmem:[#allocation5 + $0x138] sm:$0xff]
    %v1291 = vld [vmem:[#allocation5 + $0x140] sm:$0xff]
    %v1292 = vld [vmem:[#allocation5 + $0x148] sm:$0xff]
    %v1293 = vld [vmem:[#allocation5 + $0x150] sm:$0xff]
    %v1294 = vld [vmem:[#allocation5 + $0x158] sm:$0xff]
    %v1295 = vld [vmem:[#allocation5 + $0x160] sm:$0xff]
    %v1296 = vld [vmem:[#allocation5 + $0x168] sm:$0xff]
    %v1297 = vld [vmem:[#allocation5 + $0x170] sm:$0xff]
    %v1298 = vld [vmem:[#allocation5 + $0x178] sm:$0xff]
    %v1299 = vld [vmem:[#allocation5 + $0x180] sm:$0xff]
    %v1300 = vld [vmem:[#allocation5 + $0x188] sm:$0xff]
    %v1301 = vld [vmem:[#allocation5 + $0x190] sm:$0xff]
    %v1302 = vld [vmem:[#allocation5 + $0x198] sm:$0xff]
    %v1303 = vld [vmem:[#allocation5 + $0x1a0] sm:$0xff]
    %v1304 = vld [vmem:[#allocation5 + $0x1a8] sm:$0xff]
    %v1305 = vld [vmem:[#allocation5 + $0x1b0] sm:$0xff]
    %v1306 = vld [vmem:[#allocation5 + $0x1b8] sm:$0xff]
    %v1307 = vld [vmem:[#allocation5 + $0x1c0] sm:$0xff]
    %v1308 = vld [vmem:[#allocation5 + $0x1c8] sm:$0xff]
    %v1309 = vld [vmem:[#allocation5 + $0x1d0] sm:$0xff]
    %v1310 = vld [vmem:[#allocation5 + $0x1d8] sm:$0xff]
    %v1311 = vld [vmem:[#allocation5 + $0x1e0] sm:$0xff]
    %v1312 = vld [vmem:[#allocation5 + $0x1e8] sm:$0xff]
    %v1313 = vld [vmem:[#allocation5 + $0x1f0] sm:$0xff]
    %v1314 = vld [vmem:[#allocation5 + $0x1f8] sm:$0xff]
    %v1315 = vld [vmem:[#allocation5 + $0x200] sm:$0xff]
    %v1316 = vld [vmem:[#allocation5 + $0x208] sm:$0xff]
    %v1317 = vld [vmem:[#allocation5 + $0x210] sm:$0xff]
    %v1318 = vld [vmem:[#allocation5 + $0x218] sm:$0xff]
    %v1319 = vld [vmem:[#allocation5 + $0x220] sm:$0xff]
    %v1320 = vld [vmem:[#allocation5 + $0x228] sm:$0xff]
    %v1321 = vld [vmem:[#allocation5 + $0x230] sm:$0xff]
    %v1322 = vld [vmem:[#allocation5 + $0x238] sm:$0xff]
    %v1323 = vld [vmem:[#allocation5 + $0x240] sm:$0xff]
    %v1324 = vld [vmem:[#allocation5 + $0x248] sm:$0xff]
    %v1325 = vld [vmem:[#allocation5 + $0x250] sm:$0xff]
    %v1326 = vld [vmem:[#allocation5 + $0x258] sm:$0xff]
    %v1327 = vld [vmem:[#allocation5 + $0x260] sm:$0xff]
    %v1328 = vld [vmem:[#allocation5 + $0x268] sm:$0xff]
    %v1329 = vld [vmem:[#allocation5 + $0x270] sm:$0xff]
    %v1330 = vld [vmem:[#allocation5 + $0x278] sm:$0xff]
    %v1331 = vld [vmem:[#allocation5 + $0x280] sm:$0xff]
    %v1332 = vld [vmem:[#allocation5 + $0x288] sm:$0xff]
    %v1333 = vld [vmem:[#allocation5 + $0x290] sm:$0xff]
    %v1334 = vld [vmem:[#allocation5 + $0x298] sm:$0xff]
    %v1335 = vld [vmem:[#allocation5 + $0x2a0] sm:$0xff]
    %v1336 = vld [vmem:[#allocation5 + $0x2a8] sm:$0xff]
    %v1337 = vld [vmem:[#allocation5 + $0x2b0] sm:$0xff]
    %v1338 = vld [vmem:[#allocation5 + $0x2b8] sm:$0xff]
    %v1339 = vld [vmem:[#allocation5 + $0x2c0] sm:$0xff]
    %v1340 = vld [vmem:[#allocation5 + $0x2c8] sm:$0xff]
    %v1341 = vld [vmem:[#allocation5 + $0x2d0] sm:$0xff]
    %v1342 = vld [vmem:[#allocation5 + $0x2d8] sm:$0xff]
    %v1343 = vld [vmem:[#allocation5 + $0x2e0] sm:$0xff]
    %v1344 = vld [vmem:[#allocation5 + $0x2e8] sm:$0xff]
    %v1345 = vld [vmem:[#allocation5 + $0x2f0] sm:$0xff]
    %v1346 = vld [vmem:[#allocation5 + $0x2f8] sm:$0xff]
    %v1347 = vld [vmem:[#allocation5 + $0x300] sm:$0xff]
    %v1348 = vld [vmem:[#allocation5 + $0x308] sm:$0xff]
    %v1349 = vld [vmem:[#allocation5 + $0x310] sm:$0xff]
    %v1350 = vld [vmem:[#allocation5 + $0x318] sm:$0xff]
    %v1351 = vld [vmem:[#allocation5 + $0x320] sm:$0xff]
    %v1352 = vld [vmem:[#allocation5 + $0x328] sm:$0xff]
    %v1353 = vld [vmem:[#allocation5 + $0x330] sm:$0xff]
    %v1354 = vld [vmem:[#allocation5 + $0x338] sm:$0xff]
    %v1355 = vld [vmem:[#allocation5 + $0x340] sm:$0xff]
    %v1356 = vld [vmem:[#allocation5 + $0x348] sm:$0xff]
    %v1357 = vld [vmem:[#allocation5 + $0x350] sm:$0xff]
    %v1358 = vld [vmem:[#allocation5 + $0x358] sm:$0xff]
    %v1359 = vld [vmem:[#allocation5 + $0x360] sm:$0xff]
    %v1360 = vld [vmem:[#allocation5 + $0x368] sm:$0xff]
    %v1361 = vld [vmem:[#allocation5 + $0x370] sm:$0xff]
    %v1362 = vld [vmem:[#allocation5 + $0x378] sm:$0xff]
    %v1363 = vld [vmem:[#allocation5 + $0x380] sm:$0xff]
    %v1364 = vld [vmem:[#allocation5 + $0x388] sm:$0xff]
    %v1365 = vld [vmem:[#allocation5 + $0x390] sm:$0xff]
    %v1366 = vld [vmem:[#allocation5 + $0x398] sm:$0xff]
    %v1367 = vld [vmem:[#allocation5 + $0x3a0] sm:$0xff]
    %v1368 = vld [vmem:[#allocation5 + $0x3a8] sm:$0xff]
    %v1369 = vld [vmem:[#allocation5 + $0x3b0] sm:$0xff]
    %v1370 = vld [vmem:[#allocation5 + $0x3b8] sm:$0xff]
    %v1371 = vld [vmem:[#allocation5 + $0x3c0] sm:$0xff]
    %v1372 = vld [vmem:[#allocation5 + $0x3c8] sm:$0xff]
    %v1373 = vld [vmem:[#allocation5 + $0x3d0] sm:$0xff]
    %v1374 = vld [vmem:[#allocation5 + $0x3d8] sm:$0xff]
    %v1375 = vld [vmem:[#allocation5 + $0x3e0] sm:$0xff]
    %v1376 = vld [vmem:[#allocation5 + $0x3e8] sm:$0xff]
    %v1377 = vld [vmem:[#allocation5 + $0x3f0] sm:$0xff]
    %v1378 = vld [vmem:[#allocation5 + $0x3f8] sm:$0xff]
    %v1379 = vld [vmem:[#allocation5 + $0x400] sm:$0xff]
    %v1380 = vld [vmem:[#allocation5 + $0x408] sm:$0xff]
    %v1381 = vld [vmem:[#allocation5 + $0x410] sm:$0xff]
    %v1382 = vld [vmem:[#allocation5 + $0x418] sm:$0xff]
    %v1383 = vld [vmem:[#allocation5 + $0x420] sm:$0xff]
    %v1384 = vld [vmem:[#allocation5 + $0x428] sm:$0xff]
    %v1385 = vld [vmem:[#allocation5 + $0x430] sm:$0xff]
    %v1386 = vld [vmem:[#allocation5 + $0x438] sm:$0xff]
    %v1387 = vld [vmem:[#allocation5 + $0x440] sm:$0xff]
    %v1388 = vld [vmem:[#allocation5 + $0x448] sm:$0xff]
    %v1389 = vld [vmem:[#allocation5 + $0x450] sm:$0xff]
    %v1390 = vld [vmem:[#allocation5 + $0x458] sm:$0xff]
    %v1391 = vld [vmem:[#allocation5 + $0x460] sm:$0xff]
    %v1392 = vld [vmem:[#allocation5 + $0x468] sm:$0xff]
    %v1393 = vld [vmem:[#allocation5 + $0x470] sm:$0xff]
    %v1394 = vld [vmem:[#allocation5 + $0x478] sm:$0xff]
    %v1395 = vld [vmem:[#allocation5 + $0x480] sm:$0xff]
    %v1396 = vld [vmem:[#allocation5 + $0x488] sm:$0xff]
    %v1397 = vld [vmem:[#allocation5 + $0x490] sm:$0xff]
    %v1398 = vld [vmem:[#allocation5 + $0x498] sm:$0xff]
    %v1399 = vld [vmem:[#allocation5 + $0x4a0] sm:$0xff]
    %v1400 = vld [vmem:[#allocation5 + $0x4a8] sm:$0xff]
    %v1401 = vld [vmem:[#allocation5 + $0x4b0] sm:$0xff]
    %v1402 = vld [vmem:[#allocation5 + $0x4b8] sm:$0xff]
    %v1403 = vld [vmem:[#allocation5 + $0x4c0] sm:$0xff]
    %v1404 = vld [vmem:[#allocation5 + $0x4c8] sm:$0xff]
    %v1405 = vld [vmem:[#allocation5 + $0x4d0] sm:$0xff]
    %v1406 = vld [vmem:[#allocation5 + $0x4d8] sm:$0xff]
    %v1407 = vld [vmem:[#allocation5 + $0x4e0] sm:$0xff]
    %v1408 = vld [vmem:[#allocation5 + $0x4e8] sm:$0xff]
    %v1409 = vld [vmem:[#allocation5 + $0x4f0] sm:$0xff]
    %v1410 = vld [vmem:[#allocation5 + $0x4f8] sm:$0xff]
    %v1411 = vld [vmem:[#allocation5 + $0x500] sm:$0xff]
    %v1412 = vld [vmem:[#allocation5 + $0x508] sm:$0xff]
    %v1413 = vld [vmem:[#allocation5 + $0x510] sm:$0xff]
    %v1414 = vld [vmem:[#allocation5 + $0x518] sm:$0xff]
    %v1415 = vld [vmem:[#allocation5 + $0x520] sm:$0xff]
    %v1416 = vld [vmem:[#allocation5 + $0x528] sm:$0xff]
    %v1417 = vld [vmem:[#allocation5 + $0x530] sm:$0xff]
    %v1418 = vld [vmem:[#allocation5 + $0x538] sm:$0xff]
    %v1419 = vld [vmem:[#allocation5 + $0x540] sm:$0xff]
    %v1420 = vld [vmem:[#allocation5 + $0x548] sm:$0xff]
    %v1421 = vld [vmem:[#allocation5 + $0x550] sm:$0xff]
    %v1422 = vld [vmem:[#allocation5 + $0x558] sm:$0xff]
    %v1423 = vld [vmem:[#allocation5 + $0x560] sm:$0xff]
    %v1424 = vld [vmem:[#allocation5 + $0x568] sm:$0xff]
    %v1425 = vld [vmem:[#allocation5 + $0x570] sm:$0xff]
    %v1426 = vld [vmem:[#allocation5 + $0x578] sm:$0xff]
    %v1427 = vld [vmem:[#allocation5 + $0x580] sm:$0xff]
    %v1428 = vld [vmem:[#allocation5 + $0x588] sm:$0xff]
    %v1429 = vld [vmem:[#allocation5 + $0x590] sm:$0xff]
    %v1430 = vld [vmem:[#allocation5 + $0x598] sm:$0xff]
    %v1431 = vld [vmem:[#allocation5 + $0x5a0] sm:$0xff]
    %v1432 = vld [vmem:[#allocation5 + $0x5a8] sm:$0xff]
    %v1433 = vld [vmem:[#allocation5 + $0x5b0] sm:$0xff]
    %v1434 = vld [vmem:[#allocation5 + $0x5b8] sm:$0xff]
    %v1435 = vld [vmem:[#allocation5 + $0x5c0] sm:$0xff]
    %v1436 = vld [vmem:[#allocation5 + $0x5c8] sm:$0xff]
    %v1437 = vld [vmem:[#allocation5 + $0x5d0] sm:$0xff]
    %v1438 = vld [vmem:[#allocation5 + $0x5d8] sm:$0xff]
    %v1439 = vld [vmem:[#allocation5 + $0x5e0] sm:$0xff]
    %v1440 = vld [vmem:[#allocation5 + $0x5e8] sm:$0xff]
    %v1441 = vld [vmem:[#allocation5 + $0x5f0] sm:$0xff]
    %v1442 = vld [vmem:[#allocation5 + $0x5f8] sm:$0xff]
    %v1443 = vld [vmem:[#allocation5 + $0x600] sm:$0xff]
    %v1444 = vld [vmem:[#allocation5 + $0x608] sm:$0xff]
    %v1445 = vld [vmem:[#allocation5 + $0x610] sm:$0xff]
    %v1446 = vld [vmem:[#allocation5 + $0x618] sm:$0xff]
    %v1447 = vld [vmem:[#allocation5 + $0x620] sm:$0xff]
    %v1448 = vld [vmem:[#allocation5 + $0x628] sm:$0xff]
    %v1449 = vld [vmem:[#allocation5 + $0x630] sm:$0xff]
    %v1450 = vld [vmem:[#allocation5 + $0x638] sm:$0xff]
    %v1451 = vld [vmem:[#allocation5 + $0x640] sm:$0xff]
    %v1452 = vld [vmem:[#allocation5 + $0x648] sm:$0xff]
    %v1453 = vld [vmem:[#allocation5 + $0x650] sm:$0xff]
    %v1454 = vld [vmem:[#allocation5 + $0x658] sm:$0xff]
    %v1455 = vld [vmem:[#allocation5 + $0x660] sm:$0xff]
    %v1456 = vld [vmem:[#allocation5 + $0x668] sm:$0xff]
    %v1457 = vld [vmem:[#allocation5 + $0x670] sm:$0xff]
    %v1458 = vld [vmem:[#allocation5 + $0x678] sm:$0xff]
    %v1459 = vld [vmem:[#allocation5 + $0x680] sm:$0xff]
    %v1460 = vld [vmem:[#allocation5 + $0x688] sm:$0xff]
    %v1461 = vld [vmem:[#allocation5 + $0x690] sm:$0xff]
    %v1462 = vld [vmem:[#allocation5 + $0x698] sm:$0xff]
    %v1463 = vld [vmem:[#allocation5 + $0x6a0] sm:$0xff]
    %v1464 = vld [vmem:[#allocation5 + $0x6a8] sm:$0xff]
    %v1465 = vld [vmem:[#allocation5 + $0x6b0] sm:$0xff]
    %v1466 = vld [vmem:[#allocation5 + $0x6b8] sm:$0xff]
    %v1467 = vld [vmem:[#allocation5 + $0x6c0] sm:$0xff]
    %v1468 = vld [vmem:[#allocation5 + $0x6c8] sm:$0xff]
    %v1469 = vld [vmem:[#allocation5 + $0x6d0] sm:$0xff]
    %v1470 = vld [vmem:[#allocation5 + $0x6d8] sm:$0xff]
    %v1471 = vld [vmem:[#allocation5 + $0x6e0] sm:$0xff]
    %v1472 = vld [vmem:[#allocation5 + $0x6e8] sm:$0xff]
    %v1473 = vld [vmem:[#allocation5 + $0x6f0] sm:$0xff]
    %v1474 = vld [vmem:[#allocation5 + $0x6f8] sm:$0xff]
    %v1475 = vld [vmem:[#allocation5 + $0x700] sm:$0xff]
    %v1476 = vld [vmem:[#allocation5 + $0x708] sm:$0xff]
    %v1477 = vld [vmem:[#allocation5 + $0x710] sm:$0xff]
    %v1478 = vld [vmem:[#allocation5 + $0x718] sm:$0xff]
    %v1479 = vld [vmem:[#allocation5 + $0x720] sm:$0xff]
    %v1480 = vld [vmem:[#allocation5 + $0x728] sm:$0xff]
    %v1481 = vld [vmem:[#allocation5 + $0x730] sm:$0xff]
    %v1482 = vld [vmem:[#allocation5 + $0x738] sm:$0xff]
    %v1483 = vld [vmem:[#allocation5 + $0x740] sm:$0xff]
    %v1484 = vld [vmem:[#allocation5 + $0x748] sm:$0xff]
    %v1485 = vld [vmem:[#allocation5 + $0x750] sm:$0xff]
    %v1486 = vld [vmem:[#allocation5 + $0x758] sm:$0xff]
    %v1487 = vld [vmem:[#allocation5 + $0x760] sm:$0xff]
    %v1488 = vld [vmem:[#allocation5 + $0x768] sm:$0xff]
    %v1489 = vld [vmem:[#allocation5 + $0x770] sm:$0xff]
    %v1490 = vld [vmem:[#allocation5 + $0x778] sm:$0xff]
    %v1491 = vld [vmem:[#allocation5 + $0x780] sm:$0xff]
    %v1492 = vld [vmem:[#allocation5 + $0x788] sm:$0xff]
    %v1493 = vld [vmem:[#allocation5 + $0x790] sm:$0xff]
    %v1494 = vld [vmem:[#allocation5 + $0x798] sm:$0xff]
    %v1495 = vld [vmem:[#allocation5 + $0x7a0] sm:$0xff]
    %v1496 = vld [vmem:[#allocation5 + $0x7a8] sm:$0xff]
    %v1497 = vld [vmem:[#allocation5 + $0x7b0] sm:$0xff]
    %v1498 = vld [vmem:[#allocation5 + $0x7b8] sm:$0xff]
    %v1499 = vld [vmem:[#allocation5 + $0x7c0] sm:$0xff]
    %v1500 = vld [vmem:[#allocation5 + $0x7c8] sm:$0xff]
    %v1501 = vld [vmem:[#allocation5 + $0x7d0] sm:$0xff]
    %v1502 = vld [vmem:[#allocation5 + $0x7d8] sm:$0xff]
    %v1503 = vld [vmem:[#allocation5 + $0x7e0] sm:$0xff]
    %v1504 = vld [vmem:[#allocation5 + $0x7e8] sm:$0xff]
    %v1505 = vld [vmem:[#allocation5 + $0x7f0] sm:$0xff]
    %v1506 = vld [vmem:[#allocation5 + $0x7f8] sm:$0xff]
    %v1507 = vld [vmem:[#allocation5 + $0x800] sm:$0xff]
    %v1508 = vld [vmem:[#allocation5 + $0x808] sm:$0xff]
    %v1509 = vld [vmem:[#allocation5 + $0x810] sm:$0xff]
    %v1510 = vld [vmem:[#allocation5 + $0x818] sm:$0xff]
    %v1511 = vld [vmem:[#allocation5 + $0x820] sm:$0xff]
    %v1512 = vld [vmem:[#allocation5 + $0x828] sm:$0xff]
    %v1513 = vld [vmem:[#allocation5 + $0x830] sm:$0xff]
    %v1514 = vld [vmem:[#allocation5 + $0x838] sm:$0xff]
    %v1515 = vld [vmem:[#allocation5 + $0x840] sm:$0xff]
    %v1516 = vld [vmem:[#allocation5 + $0x848] sm:$0xff]
    %v1517 = vld [vmem:[#allocation5 + $0x850] sm:$0xff]
    %v1518 = vld [vmem:[#allocation5 + $0x858] sm:$0xff]
    %v1519 = vld [vmem:[#allocation5 + $0x860] sm:$0xff]
    %v1520 = vld [vmem:[#allocation5 + $0x868] sm:$0xff]
    %v1521 = vld [vmem:[#allocation5 + $0x870] sm:$0xff]
    %v1522 = vld [vmem:[#allocation5 + $0x878] sm:$0xff]
    %v1523 = vld [vmem:[#allocation5 + $0x880] sm:$0xff]
    %v1524 = vld [vmem:[#allocation5 + $0x888] sm:$0xff]
    %v1525 = vld [vmem:[#allocation5 + $0x890] sm:$0xff]
    %v1526 = vld [vmem:[#allocation5 + $0x898] sm:$0xff]
    %v1527 = vld [vmem:[#allocation5 + $0x8a0] sm:$0xff]
    %v1528 = vld [vmem:[#allocation5 + $0x8a8] sm:$0xff]
    %v1529 = vld [vmem:[#allocation5 + $0x8b0] sm:$0xff]
    %v1530 = vld [vmem:[#allocation5 + $0x8b8] sm:$0xff]
    %v1531 = vld [vmem:[#allocation5 + $0x8c0] sm:$0xff]
    %v1532 = vld [vmem:[#allocation5 + $0x8c8] sm:$0xff]
    %v1533 = vld [vmem:[#allocation5 + $0x8d0] sm:$0xff]
    %v1534 = vld [vmem:[#allocation5 + $0x8d8] sm:$0xff]
    %v1535 = vld [vmem:[#allocation5 + $0x8e0] sm:$0xff]
    %v1536 = vld [vmem:[#allocation5 + $0x8e8] sm:$0xff]
    %v1537 = vld [vmem:[#allocation5 + $0x8f0] sm:$0xff]
    %v1538 = vld [vmem:[#allocation5 + $0x8f8] sm:$0xff]
    %v1539 = vld [vmem:[#allocation5 + $0x900] sm:$0xff]
    %v1540 = vld [vmem:[#allocation5 + $0x908] sm:$0xff]
    %v1541 = vld [vmem:[#allocation5 + $0x910] sm:$0xff]
    %v1542 = vld [vmem:[#allocation5 + $0x918] sm:$0xff]
    %v1543 = vld [vmem:[#allocation5 + $0x920] sm:$0xff]
    %v1544 = vld [vmem:[#allocation5 + $0x928] sm:$0xff]
    %v1545 = vld [vmem:[#allocation5 + $0x930] sm:$0xff]
    %v1546 = vld [vmem:[#allocation5 + $0x938] sm:$0xff]
    %v1547 = vld [vmem:[#allocation5 + $0x940] sm:$0xff]
    %v1548 = vld [vmem:[#allocation5 + $0x948] sm:$0xff]
    %v1549 = vld [vmem:[#allocation5 + $0x950] sm:$0xff]
    %v1550 = vld [vmem:[#allocation5 + $0x958] sm:$0xff]
    %v1551 = vld [vmem:[#allocation5 + $0x960] sm:$0xff]
    %v1552 = vld [vmem:[#allocation5 + $0x968] sm:$0xff]
    %v1553 = vld [vmem:[#allocation5 + $0x970] sm:$0xff]
    %v1554 = vld [vmem:[#allocation5 + $0x978] sm:$0xff]
    %v1555 = vld [vmem:[#allocation5 + $0x980] sm:$0xff]
    %v1556 = vld [vmem:[#allocation5 + $0x988] sm:$0xff]
    %v1557 = vld [vmem:[#allocation5 + $0x990] sm:$0xff]
    %v1558 = vld [vmem:[#allocation5 + $0x998] sm:$0xff]
    %v1559 = vld [vmem:[#allocation5 + $0x9a0] sm:$0xff]
    %v1560 = vld [vmem:[#allocation5 + $0x9a8] sm:$0xff]
    %v1561 = vld [vmem:[#allocation5 + $0x9b0] sm:$0xff]
    %v1562 = vld [vmem:[#allocation5 + $0x9b8] sm:$0xff]
    %v1563 = vld [vmem:[#allocation5 + $0x9c0] sm:$0xff]
    %v1564 = vld [vmem:[#allocation5 + $0x9c8] sm:$0xff]
    %v1565 = vld [vmem:[#allocation5 + $0x9d0] sm:$0xff]
    %v1566 = vld [vmem:[#allocation5 + $0x9d8] sm:$0xff]
    %v1567 = vld [vmem:[#allocation5 + $0x9e0] sm:$0xff]
    %v1568 = vld [vmem:[#allocation5 + $0x9e8] sm:$0xff]
    %v1569 = vld [vmem:[#allocation5 + $0x9f0] sm:$0xff]
    %v1570 = vld [vmem:[#allocation5 + $0x9f8] sm:$0xff]
    %v1571 = vld [vmem:[#allocation5 + $0xa00] sm:$0xff]
    %v1572 = vld [vmem:[#allocation5 + $0xa08] sm:$0xff]
    %v1573 = vld [vmem:[#allocation5 + $0xa10] sm:$0xff]
    %v1574 = vld [vmem:[#allocation5 + $0xa18] sm:$0xff]
    %v1575 = vld [vmem:[#allocation5 + $0xa20] sm:$0xff]
    %v1576 = vld [vmem:[#allocation5 + $0xa28] sm:$0xff]
    %v1577 = vld [vmem:[#allocation5 + $0xa30] sm:$0xff]
    %v1578 = vld [vmem:[#allocation5 + $0xa38] sm:$0xff]
    %v1579 = vld [vmem:[#allocation5 + $0xa40] sm:$0xff]
    %v1580 = vld [vmem:[#allocation5 + $0xa48] sm:$0xff]
    %v1581 = vld [vmem:[#allocation5 + $0xa50] sm:$0xff]
    %v1582 = vld [vmem:[#allocation5 + $0xa58] sm:$0xff]
    %v1583 = vld [vmem:[#allocation5 + $0xa60] sm:$0xff]
    %v1584 = vld [vmem:[#allocation5 + $0xa68] sm:$0xff]
    %v1585 = vld [vmem:[#allocation5 + $0xa70] sm:$0xff]
    %v1586 = vld [vmem:[#allocation5 + $0xa78] sm:$0xff]
    %v1587 = vld [vmem:[#allocation5 + $0xa80] sm:$0xff]
    %v1588 = vld [vmem:[#allocation5 + $0xa88] sm:$0xff]
    %v1589 = vld [vmem:[#allocation5 + $0xa90] sm:$0xff]
    %v1590 = vld [vmem:[#allocation5 + $0xa98] sm:$0xff]
    %v1591 = vld [vmem:[#allocation5 + $0xaa0] sm:$0xff]
    %v1592 = vld [vmem:[#allocation5 + $0xaa8] sm:$0xff]
    %v1593 = vld [vmem:[#allocation5 + $0xab0] sm:$0xff]
    %v1594 = vld [vmem:[#allocation5 + $0xab8] sm:$0xff]
    %v1595 = vld [vmem:[#allocation5 + $0xac0] sm:$0xff]
    %v1596 = vld [vmem:[#allocation5 + $0xac8] sm:$0xff]
    %v1597 = vld [vmem:[#allocation5 + $0xad0] sm:$0xff]
    %v1598 = vld [vmem:[#allocation5 + $0xad8] sm:$0xff]
    %v1599 = vld [vmem:[#allocation5 + $0xae0] sm:$0xff]
    %v1600 = vld [vmem:[#allocation5 + $0xae8] sm:$0xff]
    %v1601 = vld [vmem:[#allocation5 + $0xaf0] sm:$0xff]
    %v1602 = vld [vmem:[#allocation5 + $0xaf8] sm:$0xff]
    %v1603 = vld [vmem:[#allocation5 + $0xb00] sm:$0xff]
    %v1604 = vld [vmem:[#allocation5 + $0xb08] sm:$0xff]
    %v1605 = vld [vmem:[#allocation5 + $0xb10] sm:$0xff]
    %v1606 = vld [vmem:[#allocation5 + $0xb18] sm:$0xff]
    %v1607 = vld [vmem:[#allocation5 + $0xb20] sm:$0xff]
    %v1608 = vld [vmem:[#allocation5 + $0xb28] sm:$0xff]
    %v1609 = vld [vmem:[#allocation5 + $0xb30] sm:$0xff]
    %v1610 = vld [vmem:[#allocation5 + $0xb38] sm:$0xff]
    %v1611 = vld [vmem:[#allocation5 + $0xb40] sm:$0xff]
    %v1612 = vld [vmem:[#allocation5 + $0xb48] sm:$0xff]
    %v1613 = vld [vmem:[#allocation5 + $0xb50] sm:$0xff]
    %v1614 = vld [vmem:[#allocation5 + $0xb58] sm:$0xff]
    %v1615 = vld [vmem:[#allocation5 + $0xb60] sm:$0xff]
    %v1616 = vld [vmem:[#allocation5 + $0xb68] sm:$0xff]
    %v1617 = vld [vmem:[#allocation5 + $0xb70] sm:$0xff]
    %v1618 = vld [vmem:[#allocation5 + $0xb78] sm:$0xff]
    %v1619 = vld [vmem:[#allocation5 + $0xb80] sm:$0xff]
    %v1620 = vld [vmem:[#allocation5 + $0xb88] sm:$0xff]
    %v1621 = vld [vmem:[#allocation5 + $0xb90] sm:$0xff]
    %v1622 = vld [vmem:[#allocation5 + $0xb98] sm:$0xff]
    %v1623 = vld [vmem:[#allocation5 + $0xba0] sm:$0xff]
    %v1624 = vld [vmem:[#allocation5 + $0xba8] sm:$0xff]
    %v1625 = vld [vmem:[#allocation5 + $0xbb0] sm:$0xff]
    %v1626 = vld [vmem:[#allocation5 + $0xbb8] sm:$0xff]
    %v1627 = vld [vmem:[#allocation5 + $0xbc0] sm:$0xff]
    %v1628 = vld [vmem:[#allocation5 + $0xbc8] sm:$0xff]
    %v1629 = vld [vmem:[#allocation5 + $0xbd0] sm:$0xff]
    %v1630 = vld [vmem:[#allocation5 + $0xbd8] sm:$0xff]
    %v1631 = vld [vmem:[#allocation5 + $0xbe0] sm:$0xff]
    %v1632 = vld [vmem:[#allocation5 + $0xbe8] sm:$0xff]
    %v1633 = vld [vmem:[#allocation5 + $0xbf0] sm:$0xff]
    %v1634 = vld [vmem:[#allocation5 + $0xbf8] sm:$0xff]
    %v1635 = vld [vmem:[#allocation5 + $0xc00] sm:$0xff]
    %v1636 = vld [vmem:[#allocation5 + $0xc08] sm:$0xff]
    %v1637 = vld [vmem:[#allocation5 + $0xc10] sm:$0xff]
    %v1638 = vld [vmem:[#allocation5 + $0xc18] sm:$0xff]
    %v1639 = vld [vmem:[#allocation5 + $0xc20] sm:$0xff]
    %v1640 = vld [vmem:[#allocation5 + $0xc28] sm:$0xff]
    %v1641 = vld [vmem:[#allocation5 + $0xc30] sm:$0xff]
    %v1642 = vld [vmem:[#allocation5 + $0xc38] sm:$0xff]
    %v1643 = vld [vmem:[#allocation5 + $0xc40] sm:$0xff]
    %v1644 = vld [vmem:[#allocation5 + $0xc48] sm:$0xff]
    %v1645 = vld [vmem:[#allocation5 + $0xc50] sm:$0xff]
    %v1646 = vld [vmem:[#allocation5 + $0xc58] sm:$0xff]
    %v1647 = vld [vmem:[#allocation5 + $0xc60] sm:$0xff]
    %v1648 = vld [vmem:[#allocation5 + $0xc68] sm:$0xff]
    %v1649 = vld [vmem:[#allocation5 + $0xc70] sm:$0xff]
    %v1650 = vld [vmem:[#allocation5 + $0xc78] sm:$0xff]
    %v1651 = vld [vmem:[#allocation5 + $0xc80] sm:$0xff]
    %v1652 = vld [vmem:[#allocation5 + $0xc88] sm:$0xff]
    %v1653 = vld [vmem:[#allocation5 + $0xc90] sm:$0xff]
    %v1654 = vld [vmem:[#allocation5 + $0xc98] sm:$0xff]
    %v1655 = vld [vmem:[#allocation5 + $0xca0] sm:$0xff]
    %v1656 = vld [vmem:[#allocation5 + $0xca8] sm:$0xff]
    %v1657 = vld [vmem:[#allocation5 + $0xcb0] sm:$0xff]
    %v1658 = vld [vmem:[#allocation5 + $0xcb8] sm:$0xff]
    %v1659 = vld [vmem:[#allocation5 + $0xcc0] sm:$0xff]
    %v1660 = vld [vmem:[#allocation5 + $0xcc8] sm:$0xff]
    %v1661 = vld [vmem:[#allocation5 + $0xcd0] sm:$0xff]
    %v1662 = vld [vmem:[#allocation5 + $0xcd8] sm:$0xff]
    %v1663 = vld [vmem:[#allocation5 + $0xce0] sm:$0xff]
    %v1664 = vld [vmem:[#allocation5 + $0xce8] sm:$0xff]
    %v1665 = vld [vmem:[#allocation5 + $0xcf0] sm:$0xff]
    %v1666 = vld [vmem:[#allocation5 + $0xcf8] sm:$0xff]
    %v1667 = vld [vmem:[#allocation5 + $0xd00] sm:$0xff]
    %v1668 = vld [vmem:[#allocation5 + $0xd08] sm:$0xff]
    %v1669 = vld [vmem:[#allocation5 + $0xd10] sm:$0xff]
    %v1670 = vld [vmem:[#allocation5 + $0xd18] sm:$0xff]
    %v1671 = vld [vmem:[#allocation5 + $0xd20] sm:$0xff]
    %v1672 = vld [vmem:[#allocation5 + $0xd28] sm:$0xff]
    %v1673 = vld [vmem:[#allocation5 + $0xd30] sm:$0xff]
    %v1674 = vld [vmem:[#allocation5 + $0xd38] sm:$0xff]
    %v1675 = vld [vmem:[#allocation5 + $0xd40] sm:$0xff]
    %v1676 = vld [vmem:[#allocation5 + $0xd48] sm:$0xff]
    %v1677 = vld [vmem:[#allocation5 + $0xd50] sm:$0xff]
    %v1678 = vld [vmem:[#allocation5 + $0xd58] sm:$0xff]
    %v1679 = vld [vmem:[#allocation5 + $0xd60] sm:$0xff]
    %v1680 = vld [vmem:[#allocation5 + $0xd68] sm:$0xff]
    %v1681 = vld [vmem:[#allocation5 + $0xd70] sm:$0xff]
    %v1682 = vld [vmem:[#allocation5 + $0xd78] sm:$0xff]
    %v1683 = vld [vmem:[#allocation5 + $0xd80] sm:$0xff]
    %v1684 = vld [vmem:[#allocation5 + $0xd88] sm:$0xff]
    %v1685 = vld [vmem:[#allocation5 + $0xd90] sm:$0xff]
    %v1686 = vld [vmem:[#allocation5 + $0xd98] sm:$0xff]
    %v1687 = vld [vmem:[#allocation5 + $0xda0] sm:$0xff]
    %v1688 = vld [vmem:[#allocation5 + $0xda8] sm:$0xff]
    %v1689 = vld [vmem:[#allocation5 + $0xdb0] sm:$0xff]
    %v1690 = vld [vmem:[#allocation5 + $0xdb8] sm:$0xff]
    %v1691 = vld [vmem:[#allocation5 + $0xdc0] sm:$0xff]
    %v1692 = vld [vmem:[#allocation5 + $0xdc8] sm:$0xff]
    %v1693 = vld [vmem:[#allocation5 + $0xdd0] sm:$0xff]
    %v1694 = vld [vmem:[#allocation5 + $0xdd8] sm:$0xff]
    %v1695 = vld [vmem:[#allocation5 + $0xde0] sm:$0xff]
    %v1696 = vld [vmem:[#allocation5 + $0xde8] sm:$0xff]
    %v1697 = vld [vmem:[#allocation5 + $0xdf0] sm:$0xff]
    %v1698 = vld [vmem:[#allocation5 + $0xdf8] sm:$0xff]
    %v1699 = vld [vmem:[#allocation5 + $0xe00] sm:$0xff]
    %v1700 = vld [vmem:[#allocation5 + $0xe08] sm:$0xff]
    %v1701 = vld [vmem:[#allocation5 + $0xe10] sm:$0xff]
    %v1702 = vld [vmem:[#allocation5 + $0xe18] sm:$0xff]
    %v1703 = vld [vmem:[#allocation5 + $0xe20] sm:$0xff]
    %v1704 = vld [vmem:[#allocation5 + $0xe28] sm:$0xff]
    %v1705 = vld [vmem:[#allocation5 + $0xe30] sm:$0xff]
    %v1706 = vld [vmem:[#allocation5 + $0xe38] sm:$0xff]
    %v1707 = vld [vmem:[#allocation5 + $0xe40] sm:$0xff]
    %v1708 = vld [vmem:[#allocation5 + $0xe48] sm:$0xff]
    %v1709 = vld [vmem:[#allocation5 + $0xe50] sm:$0xff]
    %v1710 = vld [vmem:[#allocation5 + $0xe58] sm:$0xff]
    %v1711 = vld [vmem:[#allocation5 + $0xe60] sm:$0xff]
    %v1712 = vld [vmem:[#allocation5 + $0xe68] sm:$0xff]
    %v1713 = vld [vmem:[#allocation5 + $0xe70] sm:$0xff]
    %v1714 = vld [vmem:[#allocation5 + $0xe78] sm:$0xff]
    %v1715 = vld [vmem:[#allocation5 + $0xe80] sm:$0xff]
    %v1716 = vld [vmem:[#allocation5 + $0xe88] sm:$0xff]
    %v1717 = vld [vmem:[#allocation5 + $0xe90] sm:$0xff]
    %v1718 = vld [vmem:[#allocation5 + $0xe98] sm:$0xff]
    %v1719 = vld [vmem:[#allocation5 + $0xea0] sm:$0xff]
    %v1720 = vld [vmem:[#allocation5 + $0xea8] sm:$0xff]
    %v1721 = vld [vmem:[#allocation5 + $0xeb0] sm:$0xff]
    %v1722 = vld [vmem:[#allocation5 + $0xeb8] sm:$0xff]
    %v1723 = vld [vmem:[#allocation5 + $0xec0] sm:$0xff]
    %v1724 = vld [vmem:[#allocation5 + $0xec8] sm:$0xff]
    %v1725 = vld [vmem:[#allocation5 + $0xed0] sm:$0xff]
    %v1726 = vld [vmem:[#allocation5 + $0xed8] sm:$0xff]
    %v1727 = vld [vmem:[#allocation5 + $0xee0] sm:$0xff]
    %v1728 = vld [vmem:[#allocation5 + $0xee8] sm:$0xff]
    %v1729 = vld [vmem:[#allocation5 + $0xef0] sm:$0xff]
    %v1730 = vld [vmem:[#allocation5 + $0xef8] sm:$0xff]
    %v1731 = vld [vmem:[#allocation5 + $0xf00] sm:$0xff]
    %v1732 = vld [vmem:[#allocation5 + $0xf08] sm:$0xff]
    %v1733 = vld [vmem:[#allocation5 + $0xf10] sm:$0xff]
    %v1734 = vld [vmem:[#allocation5 + $0xf18] sm:$0xff]
    %v1735 = vld [vmem:[#allocation5 + $0xf20] sm:$0xff]
    %v1736 = vld [vmem:[#allocation5 + $0xf28] sm:$0xff]
    %v1737 = vld [vmem:[#allocation5 + $0xf30] sm:$0xff]
    %v1738 = vld [vmem:[#allocation5 + $0xf38] sm:$0xff]
    %v1739 = vld [vmem:[#allocation5 + $0xf40] sm:$0xff]
    %v1740 = vld [vmem:[#allocation5 + $0xf48] sm:$0xff]
    %v1741 = vld [vmem:[#allocation5 + $0xf50] sm:$0xff]
    %v1742 = vld [vmem:[#allocation5 + $0xf58] sm:$0xff]
    %v1743 = vld [vmem:[#allocation5 + $0xf60] sm:$0xff]
    %v1744 = vld [vmem:[#allocation5 + $0xf68] sm:$0xff]
    %v1745 = vld [vmem:[#allocation5 + $0xf70] sm:$0xff]
    %v1746 = vld [vmem:[#allocation5 + $0xf78] sm:$0xff]
    %v1747 = vld [vmem:[#allocation5 + $0xf80] sm:$0xff]
    %v1748 = vld [vmem:[#allocation5 + $0xf88] sm:$0xff]
    %v1749 = vld [vmem:[#allocation5 + $0xf90] sm:$0xff]
    %v1750 = vld [vmem:[#allocation5 + $0xf98] sm:$0xff]
    %v1751 = vld [vmem:[#allocation5 + $0xfa0] sm:$0xff]
    %v1752 = vld [vmem:[#allocation5 + $0xfa8] sm:$0xff]
    %v1753 = vld [vmem:[#allocation5 + $0xfb0] sm:$0xff]
    %v1754 = vld [vmem:[#allocation5 + $0xfb8] sm:$0xff]
    %v1755 = vld [vmem:[#allocation5 + $0xfc0] sm:$0xff]
    %v1756 = vld [vmem:[#allocation5 + $0xfc8] sm:$0xff]
    %v1757 = vld [vmem:[#allocation5 + $0xfd0] sm:$0xff]
    %v1758 = vld [vmem:[#allocation5 + $0xfd8] sm:$0xff]
    %v1759 = vld [vmem:[#allocation5 + $0xfe0] sm:$0xff]
    %v1760 = vld [vmem:[#allocation5 + $0xfe8] sm:$0xff]
    %v1761 = vld [vmem:[#allocation5 + $0xff0] sm:$0xff]
    %v1762 = vld [vmem:[#allocation5 + $0xff8] sm:$0xff]
    %v1763 = vld [vmem:[#allocation7] sm:$0xff]
    %v1765 = vlaneseq
    %v1766 = vshrl.u32 %v1765, 7
    %v1767 = vsub.s32 0, %v1766
    %v1768 = vrot.slane %v1763, %v1767
    %v1769 = vlaneseq
    %v1770 = vshrl.u32 %v1769, 7
    %v1771 = vsub.s32 1, %v1770
    %v1772 = vrot.slane %v1763, %v1771
    %v1773 = vlaneseq
    %v1774 = vshrl.u32 %v1773, 7
    %v1775 = vsub.s32 2, %v1774
    %v1776 = vrot.slane %v1763, %v1775
    %v1777 = vlaneseq
    %v1778 = vshrl.u32 %v1777, 7
    %v1779 = vsub.s32 3, %v1778
    %v1780 = vrot.slane %v1763, %v1779
    %v1781 = vlaneseq
    %v1782 = vshrl.u32 %v1781, 7
    %v1783 = vsub.s32 4, %v1782
    %v1784 = vrot.slane %v1763, %v1783
    %v1785 = vlaneseq
    %v1786 = vshrl.u32 %v1785, 7
    %v1787 = vsub.s32 5, %v1786
    %v1788 = vrot.slane %v1763, %v1787
    %v1789 = vlaneseq
    %v1790 = vshrl.u32 %v1789, 7
    %v1791 = vsub.s32 6, %v1790
    %v1792 = vrot.slane %v1763, %v1791
    %v1793 = vlaneseq
    %v1794 = vshrl.u32 %v1793, 7
    %v1795 = vsub.s32 7, %v1794
    %v1796 = vrot.slane %v1763, %v1795
    %v2317 = vunpack.c.l.b16 %v1251
    %v2318 = vunpack.c.h.b16 %v1251
    %v2319 = vunpack.c.l.b16 %v1252
    %v2320 = vunpack.c.h.b16 %v1252
    %v2321 = vunpack.c.l.b16 %v1253
    %v2322 = vunpack.c.h.b16 %v1253
    %v2323 = vunpack.c.l.b16 %v1254
    %v2324 = vunpack.c.h.b16 %v1254
    %v2325 = vunpack.c.l.b16 %v1255
    %v2326 = vunpack.c.h.b16 %v1255
    %v2327 = vunpack.c.l.b16 %v1256
    %v2328 = vunpack.c.h.b16 %v1256
    %v2329 = vunpack.c.l.b16 %v1257
    %v2330 = vunpack.c.h.b16 %v1257
    %v2331 = vunpack.c.l.b16 %v1258
    %v2332 = vunpack.c.h.b16 %v1258
    %v2333 = vunpack.c.l.b16 %v1259
    %v2334 = vunpack.c.h.b16 %v1259
    %v2335 = vunpack.c.l.b16 %v1260
    %v2336 = vunpack.c.h.b16 %v1260
    %v2337 = vunpack.c.l.b16 %v1261
    %v2338 = vunpack.c.h.b16 %v1261
    %v2339 = vunpack.c.l.b16 %v1262
    %v2340 = vunpack.c.h.b16 %v1262
    %v2341 = vunpack.c.l.b16 %v1263
    %v2342 = vunpack.c.h.b16 %v1263
    %v2343 = vunpack.c.l.b16 %v1264
    %v2344 = vunpack.c.h.b16 %v1264
    %v2345 = vunpack.c.l.b16 %v1265
    %v2346 = vunpack.c.h.b16 %v1265
    %v2347 = vunpack.c.l.b16 %v1266
    %v2348 = vunpack.c.h.b16 %v1266
    %v2349 = vunpack.c.l.b16 %v1267
    %v2350 = vunpack.c.h.b16 %v1267
    %v2351 = vunpack.c.l.b16 %v1268
    %v2352 = vunpack.c.h.b16 %v1268
    %v2353 = vunpack.c.l.b16 %v1269
    %v2354 = vunpack.c.h.b16 %v1269
    %v2355 = vunpack.c.l.b16 %v1270
    %v2356 = vunpack.c.h.b16 %v1270
    %v2357 = vunpack.c.l.b16 %v1271
    %v2358 = vunpack.c.h.b16 %v1271
    %v2359 = vunpack.c.l.b16 %v1272
    %v2360 = vunpack.c.h.b16 %v1272
    %v2361 = vunpack.c.l.b16 %v1273
    %v2362 = vunpack.c.h.b16 %v1273
    %v2363 = vunpack.c.l.b16 %v1274
    %v2364 = vunpack.c.h.b16 %v1274
    %v2365 = vunpack.c.l.b16 %v1275
    %v2366 = vunpack.c.h.b16 %v1275
    %v2367 = vunpack.c.l.b16 %v1276
    %v2368 = vunpack.c.h.b16 %v1276
    %v2369 = vunpack.c.l.b16 %v1277
    %v2370 = vunpack.c.h.b16 %v1277
    %v2371 = vunpack.c.l.b16 %v1278
    %v2372 = vunpack.c.h.b16 %v1278
    %v2373 = vunpack.c.l.b16 %v1279
    %v2374 = vunpack.c.h.b16 %v1279
    %v2375 = vunpack.c.l.b16 %v1280
    %v2376 = vunpack.c.h.b16 %v1280
    %v2377 = vunpack.c.l.b16 %v1281
    %v2378 = vunpack.c.h.b16 %v1281
    %v2379 = vunpack.c.l.b16 %v1282
    %v2380 = vunpack.c.h.b16 %v1282
    %v2381 = vunpack.c.l.b16 %v1283
    %v2382 = vunpack.c.h.b16 %v1283
    %v2383 = vunpack.c.l.b16 %v1284
    %v2384 = vunpack.c.h.b16 %v1284
    %v2385 = vunpack.c.l.b16 %v1285
    %v2386 = vunpack.c.h.b16 %v1285
    %v2387 = vunpack.c.l.b16 %v1286
    %v2388 = vunpack.c.h.b16 %v1286
    %v2389 = vunpack.c.l.b16 %v1287
    %v2390 = vunpack.c.h.b16 %v1287
    %v2391 = vunpack.c.l.b16 %v1288
    %v2392 = vunpack.c.h.b16 %v1288
    %v2393 = vunpack.c.l.b16 %v1289
    %v2394 = vunpack.c.h.b16 %v1289
    %v2395 = vunpack.c.l.b16 %v1290
    %v2396 = vunpack.c.h.b16 %v1290
    %v2397 = vunpack.c.l.b16 %v1291
    %v2398 = vunpack.c.h.b16 %v1291
    %v2399 = vunpack.c.l.b16 %v1292
    %v2400 = vunpack.c.h.b16 %v1292
    %v2401 = vunpack.c.l.b16 %v1293
    %v2402 = vunpack.c.h.b16 %v1293
    %v2403 = vunpack.c.l.b16 %v1294
    %v2404 = vunpack.c.h.b16 %v1294
    %v2405 = vunpack.c.l.b16 %v1295
    %v2406 = vunpack.c.h.b16 %v1295
    %v2407 = vunpack.c.l.b16 %v1296
    %v2408 = vunpack.c.h.b16 %v1296
    %v2409 = vunpack.c.l.b16 %v1297
    %v2410 = vunpack.c.h.b16 %v1297
    %v2411 = vunpack.c.l.b16 %v1298
    %v2412 = vunpack.c.h.b16 %v1298
    %v2413 = vunpack.c.l.b16 %v1299
    %v2414 = vunpack.c.h.b16 %v1299
    %v2415 = vunpack.c.l.b16 %v1300
    %v2416 = vunpack.c.h.b16 %v1300
    %v2417 = vunpack.c.l.b16 %v1301
    %v2418 = vunpack.c.h.b16 %v1301
    %v2419 = vunpack.c.l.b16 %v1302
    %v2420 = vunpack.c.h.b16 %v1302
    %v2421 = vunpack.c.l.b16 %v1303
    %v2422 = vunpack.c.h.b16 %v1303
    %v2423 = vunpack.c.l.b16 %v1304
    %v2424 = vunpack.c.h.b16 %v1304
    %v2425 = vunpack.c.l.b16 %v1305
    %v2426 = vunpack.c.h.b16 %v1305
    %v2427 = vunpack.c.l.b16 %v1306
    %v2428 = vunpack.c.h.b16 %v1306
    %v2429 = vunpack.c.l.b16 %v1307
    %v2430 = vunpack.c.h.b16 %v1307
    %v2431 = vunpack.c.l.b16 %v1308
    %v2432 = vunpack.c.h.b16 %v1308
    %v2433 = vunpack.c.l.b16 %v1309
    %v2434 = vunpack.c.h.b16 %v1309
    %v2435 = vunpack.c.l.b16 %v1310
    %v2436 = vunpack.c.h.b16 %v1310
    %v2437 = vunpack.c.l.b16 %v1311
    %v2438 = vunpack.c.h.b16 %v1311
    %v2439 = vunpack.c.l.b16 %v1312
    %v2440 = vunpack.c.h.b16 %v1312
    %v2441 = vunpack.c.l.b16 %v1313
    %v2442 = vunpack.c.h.b16 %v1313
    %v2443 = vunpack.c.l.b16 %v1314
    %v2444 = vunpack.c.h.b16 %v1314
    %v2445 = vunpack.c.l.b16 %v1315
    %v2446 = vunpack.c.h.b16 %v1315
    %v2447 = vunpack.c.l.b16 %v1316
    %v2448 = vunpack.c.h.b16 %v1316
    %v2449 = vunpack.c.l.b16 %v1317
    %v2450 = vunpack.c.h.b16 %v1317
    %v2451 = vunpack.c.l.b16 %v1318
    %v2452 = vunpack.c.h.b16 %v1318
    %v2453 = vunpack.c.l.b16 %v1319
    %v2454 = vunpack.c.h.b16 %v1319
    %v2455 = vunpack.c.l.b16 %v1320
    %v2456 = vunpack.c.h.b16 %v1320
    %v2457 = vunpack.c.l.b16 %v1321
    %v2458 = vunpack.c.h.b16 %v1321
    %v2459 = vunpack.c.l.b16 %v1322
    %v2460 = vunpack.c.h.b16 %v1322
    %v2461 = vunpack.c.l.b16 %v1323
    %v2462 = vunpack.c.h.b16 %v1323
    %v2463 = vunpack.c.l.b16 %v1324
    %v2464 = vunpack.c.h.b16 %v1324
    %v2465 = vunpack.c.l.b16 %v1325
    %v2466 = vunpack.c.h.b16 %v1325
    %v2467 = vunpack.c.l.b16 %v1326
    %v2468 = vunpack.c.h.b16 %v1326
    %v2469 = vunpack.c.l.b16 %v1327
    %v2470 = vunpack.c.h.b16 %v1327
    %v2471 = vunpack.c.l.b16 %v1328
    %v2472 = vunpack.c.h.b16 %v1328
    %v2473 = vunpack.c.l.b16 %v1329
    %v2474 = vunpack.c.h.b16 %v1329
    %v2475 = vunpack.c.l.b16 %v1330
    %v2476 = vunpack.c.h.b16 %v1330
    %v2477 = vunpack.c.l.b16 %v1331
    %v2478 = vunpack.c.h.b16 %v1331
    %v2479 = vunpack.c.l.b16 %v1332
    %v2480 = vunpack.c.h.b16 %v1332
    %v2481 = vunpack.c.l.b16 %v1333
    %v2482 = vunpack.c.h.b16 %v1333
    %v2483 = vunpack.c.l.b16 %v1334
    %v2484 = vunpack.c.h.b16 %v1334
    %v2485 = vunpack.c.l.b16 %v1335
    %v2486 = vunpack.c.h.b16 %v1335
    %v2487 = vunpack.c.l.b16 %v1336
    %v2488 = vunpack.c.h.b16 %v1336
    %v2489 = vunpack.c.l.b16 %v1337
    %v2490 = vunpack.c.h.b16 %v1337
    %v2491 = vunpack.c.l.b16 %v1338
    %v2492 = vunpack.c.h.b16 %v1338
    %v2493 = vunpack.c.l.b16 %v1339
    %v2494 = vunpack.c.h.b16 %v1339
    %v2495 = vunpack.c.l.b16 %v1340
    %v2496 = vunpack.c.h.b16 %v1340
    %v2497 = vunpack.c.l.b16 %v1341
    %v2498 = vunpack.c.h.b16 %v1341
    %v2499 = vunpack.c.l.b16 %v1342
    %v2500 = vunpack.c.h.b16 %v1342
    %v2501 = vunpack.c.l.b16 %v1343
    %v2502 = vunpack.c.h.b16 %v1343
    %v2503 = vunpack.c.l.b16 %v1344
    %v2504 = vunpack.c.h.b16 %v1344
    %v2505 = vunpack.c.l.b16 %v1345
    %v2506 = vunpack.c.h.b16 %v1345
    %v2507 = vunpack.c.l.b16 %v1346
    %v2508 = vunpack.c.h.b16 %v1346
    %v2509 = vunpack.c.l.b16 %v1347
    %v2510 = vunpack.c.h.b16 %v1347
    %v2511 = vunpack.c.l.b16 %v1348
    %v2512 = vunpack.c.h.b16 %v1348
    %v2513 = vunpack.c.l.b16 %v1349
    %v2514 = vunpack.c.h.b16 %v1349
    %v2515 = vunpack.c.l.b16 %v1350
    %v2516 = vunpack.c.h.b16 %v1350
    %v2517 = vunpack.c.l.b16 %v1351
    %v2518 = vunpack.c.h.b16 %v1351
    %v2519 = vunpack.c.l.b16 %v1352
    %v2520 = vunpack.c.h.b16 %v1352
    %v2521 = vunpack.c.l.b16 %v1353
    %v2522 = vunpack.c.h.b16 %v1353
    %v2523 = vunpack.c.l.b16 %v1354
    %v2524 = vunpack.c.h.b16 %v1354
    %v2525 = vunpack.c.l.b16 %v1355
    %v2526 = vunpack.c.h.b16 %v1355
    %v2527 = vunpack.c.l.b16 %v1356
    %v2528 = vunpack.c.h.b16 %v1356
    %v2529 = vunpack.c.l.b16 %v1357
    %v2530 = vunpack.c.h.b16 %v1357
    %v2531 = vunpack.c.l.b16 %v1358
    %v2532 = vunpack.c.h.b16 %v1358
    %v2533 = vunpack.c.l.b16 %v1359
    %v2534 = vunpack.c.h.b16 %v1359
    %v2535 = vunpack.c.l.b16 %v1360
    %v2536 = vunpack.c.h.b16 %v1360
    %v2537 = vunpack.c.l.b16 %v1361
    %v2538 = vunpack.c.h.b16 %v1361
    %v2539 = vunpack.c.l.b16 %v1362
    %v2540 = vunpack.c.h.b16 %v1362
    %v2541 = vunpack.c.l.b16 %v1363
    %v2542 = vunpack.c.h.b16 %v1363
    %v2543 = vunpack.c.l.b16 %v1364
    %v2544 = vunpack.c.h.b16 %v1364
    %v2545 = vunpack.c.l.b16 %v1365
    %v2546 = vunpack.c.h.b16 %v1365
    %v2547 = vunpack.c.l.b16 %v1366
    %v2548 = vunpack.c.h.b16 %v1366
    %v2549 = vunpack.c.l.b16 %v1367
    %v2550 = vunpack.c.h.b16 %v1367
    %v2551 = vunpack.c.l.b16 %v1368
    %v2552 = vunpack.c.h.b16 %v1368
    %v2553 = vunpack.c.l.b16 %v1369
    %v2554 = vunpack.c.h.b16 %v1369
    %v2555 = vunpack.c.l.b16 %v1370
    %v2556 = vunpack.c.h.b16 %v1370
    %v2557 = vunpack.c.l.b16 %v1371
    %v2558 = vunpack.c.h.b16 %v1371
    %v2559 = vunpack.c.l.b16 %v1372
    %v2560 = vunpack.c.h.b16 %v1372
    %v2561 = vunpack.c.l.b16 %v1373
    %v2562 = vunpack.c.h.b16 %v1373
    %v2563 = vunpack.c.l.b16 %v1374
    %v2564 = vunpack.c.h.b16 %v1374
    %v2565 = vunpack.c.l.b16 %v1375
    %v2566 = vunpack.c.h.b16 %v1375
    %v2567 = vunpack.c.l.b16 %v1376
    %v2568 = vunpack.c.h.b16 %v1376
    %v2569 = vunpack.c.l.b16 %v1377
    %v2570 = vunpack.c.h.b16 %v1377
    %v2571 = vunpack.c.l.b16 %v1378
    %v2572 = vunpack.c.h.b16 %v1378
    %v2573 = vunpack.c.l.b16 %v1379
    %v2574 = vunpack.c.h.b16 %v1379
    %v2575 = vunpack.c.l.b16 %v1380
    %v2576 = vunpack.c.h.b16 %v1380
    %v2577 = vunpack.c.l.b16 %v1381
    %v2578 = vunpack.c.h.b16 %v1381
    %v2579 = vunpack.c.l.b16 %v1382
    %v2580 = vunpack.c.h.b16 %v1382
    %v2581 = vunpack.c.l.b16 %v1383
    %v2582 = vunpack.c.h.b16 %v1383
    %v2583 = vunpack.c.l.b16 %v1384
    %v2584 = vunpack.c.h.b16 %v1384
    %v2585 = vunpack.c.l.b16 %v1385
    %v2586 = vunpack.c.h.b16 %v1385
    %v2587 = vunpack.c.l.b16 %v1386
    %v2588 = vunpack.c.h.b16 %v1386
    %v2589 = vunpack.c.l.b16 %v1387
    %v2590 = vunpack.c.h.b16 %v1387
    %v2591 = vunpack.c.l.b16 %v1388
    %v2592 = vunpack.c.h.b16 %v1388
    %v2593 = vunpack.c.l.b16 %v1389
    %v2594 = vunpack.c.h.b16 %v1389
    %v2595 = vunpack.c.l.b16 %v1390
    %v2596 = vunpack.c.h.b16 %v1390
    %v2597 = vunpack.c.l.b16 %v1391
    %v2598 = vunpack.c.h.b16 %v1391
    %v2599 = vunpack.c.l.b16 %v1392
    %v2600 = vunpack.c.h.b16 %v1392
    %v2601 = vunpack.c.l.b16 %v1393
    %v2602 = vunpack.c.h.b16 %v1393
    %v2603 = vunpack.c.l.b16 %v1394
    %v2604 = vunpack.c.h.b16 %v1394
    %v2605 = vunpack.c.l.b16 %v1395
    %v2606 = vunpack.c.h.b16 %v1395
    %v2607 = vunpack.c.l.b16 %v1396
    %v2608 = vunpack.c.h.b16 %v1396
    %v2609 = vunpack.c.l.b16 %v1397
    %v2610 = vunpack.c.h.b16 %v1397
    %v2611 = vunpack.c.l.b16 %v1398
    %v2612 = vunpack.c.h.b16 %v1398
    %v2613 = vunpack.c.l.b16 %v1399
    %v2614 = vunpack.c.h.b16 %v1399
    %v2615 = vunpack.c.l.b16 %v1400
    %v2616 = vunpack.c.h.b16 %v1400
    %v2617 = vunpack.c.l.b16 %v1401
    %v2618 = vunpack.c.h.b16 %v1401
    %v2619 = vunpack.c.l.b16 %v1402
    %v2620 = vunpack.c.h.b16 %v1402
    %v2621 = vunpack.c.l.b16 %v1403
    %v2622 = vunpack.c.h.b16 %v1403
    %v2623 = vunpack.c.l.b16 %v1404
    %v2624 = vunpack.c.h.b16 %v1404
    %v2625 = vunpack.c.l.b16 %v1405
    %v2626 = vunpack.c.h.b16 %v1405
    %v2627 = vunpack.c.l.b16 %v1406
    %v2628 = vunpack.c.h.b16 %v1406
    %v2629 = vunpack.c.l.b16 %v1407
    %v2630 = vunpack.c.h.b16 %v1407
    %v2631 = vunpack.c.l.b16 %v1408
    %v2632 = vunpack.c.h.b16 %v1408
    %v2633 = vunpack.c.l.b16 %v1409
    %v2634 = vunpack.c.h.b16 %v1409
    %v2635 = vunpack.c.l.b16 %v1410
    %v2636 = vunpack.c.h.b16 %v1410
    %v2637 = vunpack.c.l.b16 %v1411
    %v2638 = vunpack.c.h.b16 %v1411
    %v2639 = vunpack.c.l.b16 %v1412
    %v2640 = vunpack.c.h.b16 %v1412
    %v2641 = vunpack.c.l.b16 %v1413
    %v2642 = vunpack.c.h.b16 %v1413
    %v2643 = vunpack.c.l.b16 %v1414
    %v2644 = vunpack.c.h.b16 %v1414
    %v2645 = vunpack.c.l.b16 %v1415
    %v2646 = vunpack.c.h.b16 %v1415
    %v2647 = vunpack.c.l.b16 %v1416
    %v2648 = vunpack.c.h.b16 %v1416
    %v2649 = vunpack.c.l.b16 %v1417
    %v2650 = vunpack.c.h.b16 %v1417
    %v2651 = vunpack.c.l.b16 %v1418
    %v2652 = vunpack.c.h.b16 %v1418
    %v2653 = vunpack.c.l.b16 %v1419
    %v2654 = vunpack.c.h.b16 %v1419
    %v2655 = vunpack.c.l.b16 %v1420
    %v2656 = vunpack.c.h.b16 %v1420
    %v2657 = vunpack.c.l.b16 %v1421
    %v2658 = vunpack.c.h.b16 %v1421
    %v2659 = vunpack.c.l.b16 %v1422
    %v2660 = vunpack.c.h.b16 %v1422
    %v2661 = vunpack.c.l.b16 %v1423
    %v2662 = vunpack.c.h.b16 %v1423
    %v2663 = vunpack.c.l.b16 %v1424
    %v2664 = vunpack.c.h.b16 %v1424
    %v2665 = vunpack.c.l.b16 %v1425
    %v2666 = vunpack.c.h.b16 %v1425
    %v2667 = vunpack.c.l.b16 %v1426
    %v2668 = vunpack.c.h.b16 %v1426
    %v2669 = vunpack.c.l.b16 %v1427
    %v2670 = vunpack.c.h.b16 %v1427
    %v2671 = vunpack.c.l.b16 %v1428
    %v2672 = vunpack.c.h.b16 %v1428
    %v2673 = vunpack.c.l.b16 %v1429
    %v2674 = vunpack.c.h.b16 %v1429
    %v2675 = vunpack.c.l.b16 %v1430
    %v2676 = vunpack.c.h.b16 %v1430
    %v2677 = vunpack.c.l.b16 %v1431
    %v2678 = vunpack.c.h.b16 %v1431
    %v2679 = vunpack.c.l.b16 %v1432
    %v2680 = vunpack.c.h.b16 %v1432
    %v2681 = vunpack.c.l.b16 %v1433
    %v2682 = vunpack.c.h.b16 %v1433
    %v2683 = vunpack.c.l.b16 %v1434
    %v2684 = vunpack.c.h.b16 %v1434
    %v2685 = vunpack.c.l.b16 %v1435
    %v2686 = vunpack.c.h.b16 %v1435
    %v2687 = vunpack.c.l.b16 %v1436
    %v2688 = vunpack.c.h.b16 %v1436
    %v2689 = vunpack.c.l.b16 %v1437
    %v2690 = vunpack.c.h.b16 %v1437
    %v2691 = vunpack.c.l.b16 %v1438
    %v2692 = vunpack.c.h.b16 %v1438
    %v2693 = vunpack.c.l.b16 %v1439
    %v2694 = vunpack.c.h.b16 %v1439
    %v2695 = vunpack.c.l.b16 %v1440
    %v2696 = vunpack.c.h.b16 %v1440
    %v2697 = vunpack.c.l.b16 %v1441
    %v2698 = vunpack.c.h.b16 %v1441
    %v2699 = vunpack.c.l.b16 %v1442
    %v2700 = vunpack.c.h.b16 %v1442
    %v2701 = vunpack.c.l.b16 %v1443
    %v2702 = vunpack.c.h.b16 %v1443
    %v2703 = vunpack.c.l.b16 %v1444
    %v2704 = vunpack.c.h.b16 %v1444
    %v2705 = vunpack.c.l.b16 %v1445
    %v2706 = vunpack.c.h.b16 %v1445
    %v2707 = vunpack.c.l.b16 %v1446
    %v2708 = vunpack.c.h.b16 %v1446
    %v2709 = vunpack.c.l.b16 %v1447
    %v2710 = vunpack.c.h.b16 %v1447
    %v2711 = vunpack.c.l.b16 %v1448
    %v2712 = vunpack.c.h.b16 %v1448
    %v2713 = vunpack.c.l.b16 %v1449
    %v2714 = vunpack.c.h.b16 %v1449
    %v2715 = vunpack.c.l.b16 %v1450
    %v2716 = vunpack.c.h.b16 %v1450
    %v2717 = vunpack.c.l.b16 %v1451
    %v2718 = vunpack.c.h.b16 %v1451
    %v2719 = vunpack.c.l.b16 %v1452
    %v2720 = vunpack.c.h.b16 %v1452
    %v2721 = vunpack.c.l.b16 %v1453
    %v2722 = vunpack.c.h.b16 %v1453
    %v2723 = vunpack.c.l.b16 %v1454
    %v2724 = vunpack.c.h.b16 %v1454
    %v2725 = vunpack.c.l.b16 %v1455
    %v2726 = vunpack.c.h.b16 %v1455
    %v2727 = vunpack.c.l.b16 %v1456
    %v2728 = vunpack.c.h.b16 %v1456
    %v2729 = vunpack.c.l.b16 %v1457
    %v2730 = vunpack.c.h.b16 %v1457
    %v2731 = vunpack.c.l.b16 %v1458
    %v2732 = vunpack.c.h.b16 %v1458
    %v2733 = vunpack.c.l.b16 %v1459
    %v2734 = vunpack.c.h.b16 %v1459
    %v2735 = vunpack.c.l.b16 %v1460
    %v2736 = vunpack.c.h.b16 %v1460
    %v2737 = vunpack.c.l.b16 %v1461
    %v2738 = vunpack.c.h.b16 %v1461
    %v2739 = vunpack.c.l.b16 %v1462
    %v2740 = vunpack.c.h.b16 %v1462
    %v2741 = vunpack.c.l.b16 %v1463
    %v2742 = vunpack.c.h.b16 %v1463
    %v2743 = vunpack.c.l.b16 %v1464
    %v2744 = vunpack.c.h.b16 %v1464
    %v2745 = vunpack.c.l.b16 %v1465
    %v2746 = vunpack.c.h.b16 %v1465
    %v2747 = vunpack.c.l.b16 %v1466
    %v2748 = vunpack.c.h.b16 %v1466
    %v2749 = vunpack.c.l.b16 %v1467
    %v2750 = vunpack.c.h.b16 %v1467
    %v2751 = vunpack.c.l.b16 %v1468
    %v2752 = vunpack.c.h.b16 %v1468
    %v2753 = vunpack.c.l.b16 %v1469
    %v2754 = vunpack.c.h.b16 %v1469
    %v2755 = vunpack.c.l.b16 %v1470
    %v2756 = vunpack.c.h.b16 %v1470
    %v2757 = vunpack.c.l.b16 %v1471
    %v2758 = vunpack.c.h.b16 %v1471
    %v2759 = vunpack.c.l.b16 %v1472
    %v2760 = vunpack.c.h.b16 %v1472
    %v2761 = vunpack.c.l.b16 %v1473
    %v2762 = vunpack.c.h.b16 %v1473
    %v2763 = vunpack.c.l.b16 %v1474
    %v2764 = vunpack.c.h.b16 %v1474
    %v2765 = vunpack.c.l.b16 %v1475
    %v2766 = vunpack.c.h.b16 %v1475
    %v2767 = vunpack.c.l.b16 %v1476
    %v2768 = vunpack.c.h.b16 %v1476
    %v2769 = vunpack.c.l.b16 %v1477
    %v2770 = vunpack.c.h.b16 %v1477
    %v2771 = vunpack.c.l.b16 %v1478
    %v2772 = vunpack.c.h.b16 %v1478
    %v2773 = vunpack.c.l.b16 %v1479
    %v2774 = vunpack.c.h.b16 %v1479
    %v2775 = vunpack.c.l.b16 %v1480
    %v2776 = vunpack.c.h.b16 %v1480
    %v2777 = vunpack.c.l.b16 %v1481
    %v2778 = vunpack.c.h.b16 %v1481
    %v2779 = vunpack.c.l.b16 %v1482
    %v2780 = vunpack.c.h.b16 %v1482
    %v2781 = vunpack.c.l.b16 %v1483
    %v2782 = vunpack.c.h.b16 %v1483
    %v2783 = vunpack.c.l.b16 %v1484
    %v2784 = vunpack.c.h.b16 %v1484
    %v2785 = vunpack.c.l.b16 %v1485
    %v2786 = vunpack.c.h.b16 %v1485
    %v2787 = vunpack.c.l.b16 %v1486
    %v2788 = vunpack.c.h.b16 %v1486
    %v2789 = vunpack.c.l.b16 %v1487
    %v2790 = vunpack.c.h.b16 %v1487
    %v2791 = vunpack.c.l.b16 %v1488
    %v2792 = vunpack.c.h.b16 %v1488
    %v2793 = vunpack.c.l.b16 %v1489
    %v2794 = vunpack.c.h.b16 %v1489
    %v2795 = vunpack.c.l.b16 %v1490
    %v2796 = vunpack.c.h.b16 %v1490
    %v2797 = vunpack.c.l.b16 %v1491
    %v2798 = vunpack.c.h.b16 %v1491
    %v2799 = vunpack.c.l.b16 %v1492
    %v2800 = vunpack.c.h.b16 %v1492
    %v2801 = vunpack.c.l.b16 %v1493
    %v2802 = vunpack.c.h.b16 %v1493
    %v2803 = vunpack.c.l.b16 %v1494
    %v2804 = vunpack.c.h.b16 %v1494
    %v2805 = vunpack.c.l.b16 %v1495
    %v2806 = vunpack.c.h.b16 %v1495
    %v2807 = vunpack.c.l.b16 %v1496
    %v2808 = vunpack.c.h.b16 %v1496
    %v2809 = vunpack.c.l.b16 %v1497
    %v2810 = vunpack.c.h.b16 %v1497
    %v2811 = vunpack.c.l.b16 %v1498
    %v2812 = vunpack.c.h.b16 %v1498
    %v2813 = vunpack.c.l.b16 %v1499
    %v2814 = vunpack.c.h.b16 %v1499
    %v2815 = vunpack.c.l.b16 %v1500
    %v2816 = vunpack.c.h.b16 %v1500
    %v2817 = vunpack.c.l.b16 %v1501
    %v2818 = vunpack.c.h.b16 %v1501
    %v2819 = vunpack.c.l.b16 %v1502
    %v2820 = vunpack.c.h.b16 %v1502
    %v2821 = vunpack.c.l.b16 %v1503
    %v2822 = vunpack.c.h.b16 %v1503
    %v2823 = vunpack.c.l.b16 %v1504
    %v2824 = vunpack.c.h.b16 %v1504
    %v2825 = vunpack.c.l.b16 %v1505
    %v2826 = vunpack.c.h.b16 %v1505
    %v2827 = vunpack.c.l.b16 %v1506
    %v2828 = vunpack.c.h.b16 %v1506
    %v2829 = vunpack.c.l.b16 %v1507
    %v2830 = vunpack.c.h.b16 %v1507
    %v2831 = vunpack.c.l.b16 %v1508
    %v2832 = vunpack.c.h.b16 %v1508
    %v2833 = vunpack.c.l.b16 %v1509
    %v2834 = vunpack.c.h.b16 %v1509
    %v2835 = vunpack.c.l.b16 %v1510
    %v2836 = vunpack.c.h.b16 %v1510
    %v2837 = vunpack.c.l.b16 %v1511
    %v2838 = vunpack.c.h.b16 %v1511
    %v2839 = vunpack.c.l.b16 %v1512
    %v2840 = vunpack.c.h.b16 %v1512
    %v2841 = vunpack.c.l.b16 %v1513
    %v2842 = vunpack.c.h.b16 %v1513
    %v2843 = vunpack.c.l.b16 %v1514
    %v2844 = vunpack.c.h.b16 %v1514
    %v2845 = vunpack.c.l.b16 %v1515
    %v2846 = vunpack.c.h.b16 %v1515
    %v2847 = vunpack.c.l.b16 %v1516
    %v2848 = vunpack.c.h.b16 %v1516
    %v2849 = vunpack.c.l.b16 %v1517
    %v2850 = vunpack.c.h.b16 %v1517
    %v2851 = vunpack.c.l.b16 %v1518
    %v2852 = vunpack.c.h.b16 %v1518
    %v2853 = vunpack.c.l.b16 %v1519
    %v2854 = vunpack.c.h.b16 %v1519
    %v2855 = vunpack.c.l.b16 %v1520
    %v2856 = vunpack.c.h.b16 %v1520
    %v2857 = vunpack.c.l.b16 %v1521
    %v2858 = vunpack.c.h.b16 %v1521
    %v2859 = vunpack.c.l.b16 %v1522
    %v2860 = vunpack.c.h.b16 %v1522
    %v2861 = vunpack.c.l.b16 %v1523
    %v2862 = vunpack.c.h.b16 %v1523
    %v2863 = vunpack.c.l.b16 %v1524
    %v2864 = vunpack.c.h.b16 %v1524
    %v2865 = vunpack.c.l.b16 %v1525
    %v2866 = vunpack.c.h.b16 %v1525
    %v2867 = vunpack.c.l.b16 %v1526
    %v2868 = vunpack.c.h.b16 %v1526
    %v2869 = vunpack.c.l.b16 %v1527
    %v2870 = vunpack.c.h.b16 %v1527
    %v2871 = vunpack.c.l.b16 %v1528
    %v2872 = vunpack.c.h.b16 %v1528
    %v2873 = vunpack.c.l.b16 %v1529
    %v2874 = vunpack.c.h.b16 %v1529
    %v2875 = vunpack.c.l.b16 %v1530
    %v2876 = vunpack.c.h.b16 %v1530
    %v2877 = vunpack.c.l.b16 %v1531
    %v2878 = vunpack.c.h.b16 %v1531
    %v2879 = vunpack.c.l.b16 %v1532
    %v2880 = vunpack.c.h.b16 %v1532
    %v2881 = vunpack.c.l.b16 %v1533
    %v2882 = vunpack.c.h.b16 %v1533
    %v2883 = vunpack.c.l.b16 %v1534
    %v2884 = vunpack.c.h.b16 %v1534
    %v2885 = vunpack.c.l.b16 %v1535
    %v2886 = vunpack.c.h.b16 %v1535
    %v2887 = vunpack.c.l.b16 %v1536
    %v2888 = vunpack.c.h.b16 %v1536
    %v2889 = vunpack.c.l.b16 %v1537
    %v2890 = vunpack.c.h.b16 %v1537
    %v2891 = vunpack.c.l.b16 %v1538
    %v2892 = vunpack.c.h.b16 %v1538
    %v2893 = vunpack.c.l.b16 %v1539
    %v2894 = vunpack.c.h.b16 %v1539
    %v2895 = vunpack.c.l.b16 %v1540
    %v2896 = vunpack.c.h.b16 %v1540
    %v2897 = vunpack.c.l.b16 %v1541
    %v2898 = vunpack.c.h.b16 %v1541
    %v2899 = vunpack.c.l.b16 %v1542
    %v2900 = vunpack.c.h.b16 %v1542
    %v2901 = vunpack.c.l.b16 %v1543
    %v2902 = vunpack.c.h.b16 %v1543
    %v2903 = vunpack.c.l.b16 %v1544
    %v2904 = vunpack.c.h.b16 %v1544
    %v2905 = vunpack.c.l.b16 %v1545
    %v2906 = vunpack.c.h.b16 %v1545
    %v2907 = vunpack.c.l.b16 %v1546
    %v2908 = vunpack.c.h.b16 %v1546
    %v2909 = vunpack.c.l.b16 %v1547
    %v2910 = vunpack.c.h.b16 %v1547
    %v2911 = vunpack.c.l.b16 %v1548
    %v2912 = vunpack.c.h.b16 %v1548
    %v2913 = vunpack.c.l.b16 %v1549
    %v2914 = vunpack.c.h.b16 %v1549
    %v2915 = vunpack.c.l.b16 %v1550
    %v2916 = vunpack.c.h.b16 %v1550
    %v2917 = vunpack.c.l.b16 %v1551
    %v2918 = vunpack.c.h.b16 %v1551
    %v2919 = vunpack.c.l.b16 %v1552
    %v2920 = vunpack.c.h.b16 %v1552
    %v2921 = vunpack.c.l.b16 %v1553
    %v2922 = vunpack.c.h.b16 %v1553
    %v2923 = vunpack.c.l.b16 %v1554
    %v2924 = vunpack.c.h.b16 %v1554
    %v2925 = vunpack.c.l.b16 %v1555
    %v2926 = vunpack.c.h.b16 %v1555
    %v2927 = vunpack.c.l.b16 %v1556
    %v2928 = vunpack.c.h.b16 %v1556
    %v2929 = vunpack.c.l.b16 %v1557
    %v2930 = vunpack.c.h.b16 %v1557
    %v2931 = vunpack.c.l.b16 %v1558
    %v2932 = vunpack.c.h.b16 %v1558
    %v2933 = vunpack.c.l.b16 %v1559
    %v2934 = vunpack.c.h.b16 %v1559
    %v2935 = vunpack.c.l.b16 %v1560
    %v2936 = vunpack.c.h.b16 %v1560
    %v2937 = vunpack.c.l.b16 %v1561
    %v2938 = vunpack.c.h.b16 %v1561
    %v2939 = vunpack.c.l.b16 %v1562
    %v2940 = vunpack.c.h.b16 %v1562
    %v2941 = vunpack.c.l.b16 %v1563
    %v2942 = vunpack.c.h.b16 %v1563
    %v2943 = vunpack.c.l.b16 %v1564
    %v2944 = vunpack.c.h.b16 %v1564
    %v2945 = vunpack.c.l.b16 %v1565
    %v2946 = vunpack.c.h.b16 %v1565
    %v2947 = vunpack.c.l.b16 %v1566
    %v2948 = vunpack.c.h.b16 %v1566
    %v2949 = vunpack.c.l.b16 %v1567
    %v2950 = vunpack.c.h.b16 %v1567
    %v2951 = vunpack.c.l.b16 %v1568
    %v2952 = vunpack.c.h.b16 %v1568
    %v2953 = vunpack.c.l.b16 %v1569
    %v2954 = vunpack.c.h.b16 %v1569
    %v2955 = vunpack.c.l.b16 %v1570
    %v2956 = vunpack.c.h.b16 %v1570
    %v2957 = vunpack.c.l.b16 %v1571
    %v2958 = vunpack.c.h.b16 %v1571
    %v2959 = vunpack.c.l.b16 %v1572
    %v2960 = vunpack.c.h.b16 %v1572
    %v2961 = vunpack.c.l.b16 %v1573
    %v2962 = vunpack.c.h.b16 %v1573
    %v2963 = vunpack.c.l.b16 %v1574
    %v2964 = vunpack.c.h.b16 %v1574
    %v2965 = vunpack.c.l.b16 %v1575
    %v2966 = vunpack.c.h.b16 %v1575
    %v2967 = vunpack.c.l.b16 %v1576
    %v2968 = vunpack.c.h.b16 %v1576
    %v2969 = vunpack.c.l.b16 %v1577
    %v2970 = vunpack.c.h.b16 %v1577
    %v2971 = vunpack.c.l.b16 %v1578
    %v2972 = vunpack.c.h.b16 %v1578
    %v2973 = vunpack.c.l.b16 %v1579
    %v2974 = vunpack.c.h.b16 %v1579
    %v2975 = vunpack.c.l.b16 %v1580
    %v2976 = vunpack.c.h.b16 %v1580
    %v2977 = vunpack.c.l.b16 %v1581
    %v2978 = vunpack.c.h.b16 %v1581
    %v2979 = vunpack.c.l.b16 %v1582
    %v2980 = vunpack.c.h.b16 %v1582
    %v2981 = vunpack.c.l.b16 %v1583
    %v2982 = vunpack.c.h.b16 %v1583
    %v2983 = vunpack.c.l.b16 %v1584
    %v2984 = vunpack.c.h.b16 %v1584
    %v2985 = vunpack.c.l.b16 %v1585
    %v2986 = vunpack.c.h.b16 %v1585
    %v2987 = vunpack.c.l.b16 %v1586
    %v2988 = vunpack.c.h.b16 %v1586
    %v2989 = vunpack.c.l.b16 %v1587
    %v2990 = vunpack.c.h.b16 %v1587
    %v2991 = vunpack.c.l.b16 %v1588
    %v2992 = vunpack.c.h.b16 %v1588
    %v2993 = vunpack.c.l.b16 %v1589
    %v2994 = vunpack.c.h.b16 %v1589
    %v2995 = vunpack.c.l.b16 %v1590
    %v2996 = vunpack.c.h.b16 %v1590
    %v2997 = vunpack.c.l.b16 %v1591
    %v2998 = vunpack.c.h.b16 %v1591
    %v2999 = vunpack.c.l.b16 %v1592
    %v3000 = vunpack.c.h.b16 %v1592
    %v3001 = vunpack.c.l.b16 %v1593
    %v3002 = vunpack.c.h.b16 %v1593
    %v3003 = vunpack.c.l.b16 %v1594
    %v3004 = vunpack.c.h.b16 %v1594
    %v3005 = vunpack.c.l.b16 %v1595
    %v3006 = vunpack.c.h.b16 %v1595
    %v3007 = vunpack.c.l.b16 %v1596
    %v3008 = vunpack.c.h.b16 %v1596
    %v3009 = vunpack.c.l.b16 %v1597
    %v3010 = vunpack.c.h.b16 %v1597
    %v3011 = vunpack.c.l.b16 %v1598
    %v3012 = vunpack.c.h.b16 %v1598
    %v3013 = vunpack.c.l.b16 %v1599
    %v3014 = vunpack.c.h.b16 %v1599
    %v3015 = vunpack.c.l.b16 %v1600
    %v3016 = vunpack.c.h.b16 %v1600
    %v3017 = vunpack.c.l.b16 %v1601
    %v3018 = vunpack.c.h.b16 %v1601
    %v3019 = vunpack.c.l.b16 %v1602
    %v3020 = vunpack.c.h.b16 %v1602
    %v3021 = vunpack.c.l.b16 %v1603
    %v3022 = vunpack.c.h.b16 %v1603
    %v3023 = vunpack.c.l.b16 %v1604
    %v3024 = vunpack.c.h.b16 %v1604
    %v3025 = vunpack.c.l.b16 %v1605
    %v3026 = vunpack.c.h.b16 %v1605
    %v3027 = vunpack.c.l.b16 %v1606
    %v3028 = vunpack.c.h.b16 %v1606
    %v3029 = vunpack.c.l.b16 %v1607
    %v3030 = vunpack.c.h.b16 %v1607
    %v3031 = vunpack.c.l.b16 %v1608
    %v3032 = vunpack.c.h.b16 %v1608
    %v3033 = vunpack.c.l.b16 %v1609
    %v3034 = vunpack.c.h.b16 %v1609
    %v3035 = vunpack.c.l.b16 %v1610
    %v3036 = vunpack.c.h.b16 %v1610
    %v3037 = vunpack.c.l.b16 %v1611
    %v3038 = vunpack.c.h.b16 %v1611
    %v3039 = vunpack.c.l.b16 %v1612
    %v3040 = vunpack.c.h.b16 %v1612
    %v3041 = vunpack.c.l.b16 %v1613
    %v3042 = vunpack.c.h.b16 %v1613
    %v3043 = vunpack.c.l.b16 %v1614
    %v3044 = vunpack.c.h.b16 %v1614
    %v3045 = vunpack.c.l.b16 %v1615
    %v3046 = vunpack.c.h.b16 %v1615
    %v3047 = vunpack.c.l.b16 %v1616
    %v3048 = vunpack.c.h.b16 %v1616
    %v3049 = vunpack.c.l.b16 %v1617
    %v3050 = vunpack.c.h.b16 %v1617
    %v3051 = vunpack.c.l.b16 %v1618
    %v3052 = vunpack.c.h.b16 %v1618
    %v3053 = vunpack.c.l.b16 %v1619
    %v3054 = vunpack.c.h.b16 %v1619
    %v3055 = vunpack.c.l.b16 %v1620
    %v3056 = vunpack.c.h.b16 %v1620
    %v3057 = vunpack.c.l.b16 %v1621
    %v3058 = vunpack.c.h.b16 %v1621
    %v3059 = vunpack.c.l.b16 %v1622
    %v3060 = vunpack.c.h.b16 %v1622
    %v3061 = vunpack.c.l.b16 %v1623
    %v3062 = vunpack.c.h.b16 %v1623
    %v3063 = vunpack.c.l.b16 %v1624
    %v3064 = vunpack.c.h.b16 %v1624
    %v3065 = vunpack.c.l.b16 %v1625
    %v3066 = vunpack.c.h.b16 %v1625
    %v3067 = vunpack.c.l.b16 %v1626
    %v3068 = vunpack.c.h.b16 %v1626
    %v3069 = vunpack.c.l.b16 %v1627
    %v3070 = vunpack.c.h.b16 %v1627
    %v3071 = vunpack.c.l.b16 %v1628
    %v3072 = vunpack.c.h.b16 %v1628
    %v3073 = vunpack.c.l.b16 %v1629
    %v3074 = vunpack.c.h.b16 %v1629
    %v3075 = vunpack.c.l.b16 %v1630
    %v3076 = vunpack.c.h.b16 %v1630
    %v3077 = vunpack.c.l.b16 %v1631
    %v3078 = vunpack.c.h.b16 %v1631
    %v3079 = vunpack.c.l.b16 %v1632
    %v3080 = vunpack.c.h.b16 %v1632
    %v3081 = vunpack.c.l.b16 %v1633
    %v3082 = vunpack.c.h.b16 %v1633
    %v3083 = vunpack.c.l.b16 %v1634
    %v3084 = vunpack.c.h.b16 %v1634
    %v3085 = vunpack.c.l.b16 %v1635
    %v3086 = vunpack.c.h.b16 %v1635
    %v3087 = vunpack.c.l.b16 %v1636
    %v3088 = vunpack.c.h.b16 %v1636
    %v3089 = vunpack.c.l.b16 %v1637
    %v3090 = vunpack.c.h.b16 %v1637
    %v3091 = vunpack.c.l.b16 %v1638
    %v3092 = vunpack.c.h.b16 %v1638
    %v3093 = vunpack.c.l.b16 %v1639
    %v3094 = vunpack.c.h.b16 %v1639
    %v3095 = vunpack.c.l.b16 %v1640
    %v3096 = vunpack.c.h.b16 %v1640
    %v3097 = vunpack.c.l.b16 %v1641
    %v3098 = vunpack.c.h.b16 %v1641
    %v3099 = vunpack.c.l.b16 %v1642
    %v3100 = vunpack.c.h.b16 %v1642
    %v3101 = vunpack.c.l.b16 %v1643
    %v3102 = vunpack.c.h.b16 %v1643
    %v3103 = vunpack.c.l.b16 %v1644
    %v3104 = vunpack.c.h.b16 %v1644
    %v3105 = vunpack.c.l.b16 %v1645
    %v3106 = vunpack.c.h.b16 %v1645
    %v3107 = vunpack.c.l.b16 %v1646
    %v3108 = vunpack.c.h.b16 %v1646
    %v3109 = vunpack.c.l.b16 %v1647
    %v3110 = vunpack.c.h.b16 %v1647
    %v3111 = vunpack.c.l.b16 %v1648
    %v3112 = vunpack.c.h.b16 %v1648
    %v3113 = vunpack.c.l.b16 %v1649
    %v3114 = vunpack.c.h.b16 %v1649
    %v3115 = vunpack.c.l.b16 %v1650
    %v3116 = vunpack.c.h.b16 %v1650
    %v3117 = vunpack.c.l.b16 %v1651
    %v3118 = vunpack.c.h.b16 %v1651
    %v3119 = vunpack.c.l.b16 %v1652
    %v3120 = vunpack.c.h.b16 %v1652
    %v3121 = vunpack.c.l.b16 %v1653
    %v3122 = vunpack.c.h.b16 %v1653
    %v3123 = vunpack.c.l.b16 %v1654
    %v3124 = vunpack.c.h.b16 %v1654
    %v3125 = vunpack.c.l.b16 %v1655
    %v3126 = vunpack.c.h.b16 %v1655
    %v3127 = vunpack.c.l.b16 %v1656
    %v3128 = vunpack.c.h.b16 %v1656
    %v3129 = vunpack.c.l.b16 %v1657
    %v3130 = vunpack.c.h.b16 %v1657
    %v3131 = vunpack.c.l.b16 %v1658
    %v3132 = vunpack.c.h.b16 %v1658
    %v3133 = vunpack.c.l.b16 %v1659
    %v3134 = vunpack.c.h.b16 %v1659
    %v3135 = vunpack.c.l.b16 %v1660
    %v3136 = vunpack.c.h.b16 %v1660
    %v3137 = vunpack.c.l.b16 %v1661
    %v3138 = vunpack.c.h.b16 %v1661
    %v3139 = vunpack.c.l.b16 %v1662
    %v3140 = vunpack.c.h.b16 %v1662
    %v3141 = vunpack.c.l.b16 %v1663
    %v3142 = vunpack.c.h.b16 %v1663
    %v3143 = vunpack.c.l.b16 %v1664
    %v3144 = vunpack.c.h.b16 %v1664
    %v3145 = vunpack.c.l.b16 %v1665
    %v3146 = vunpack.c.h.b16 %v1665
    %v3147 = vunpack.c.l.b16 %v1666
    %v3148 = vunpack.c.h.b16 %v1666
    %v3149 = vunpack.c.l.b16 %v1667
    %v3150 = vunpack.c.h.b16 %v1667
    %v3151 = vunpack.c.l.b16 %v1668
    %v3152 = vunpack.c.h.b16 %v1668
    %v3153 = vunpack.c.l.b16 %v1669
    %v3154 = vunpack.c.h.b16 %v1669
    %v3155 = vunpack.c.l.b16 %v1670
    %v3156 = vunpack.c.h.b16 %v1670
    %v3157 = vunpack.c.l.b16 %v1671
    %v3158 = vunpack.c.h.b16 %v1671
    %v3159 = vunpack.c.l.b16 %v1672
    %v3160 = vunpack.c.h.b16 %v1672
    %v3161 = vunpack.c.l.b16 %v1673
    %v3162 = vunpack.c.h.b16 %v1673
    %v3163 = vunpack.c.l.b16 %v1674
    %v3164 = vunpack.c.h.b16 %v1674
    %v3165 = vunpack.c.l.b16 %v1675
    %v3166 = vunpack.c.h.b16 %v1675
    %v3167 = vunpack.c.l.b16 %v1676
    %v3168 = vunpack.c.h.b16 %v1676
    %v3169 = vunpack.c.l.b16 %v1677
    %v3170 = vunpack.c.h.b16 %v1677
    %v3171 = vunpack.c.l.b16 %v1678
    %v3172 = vunpack.c.h.b16 %v1678
    %v3173 = vunpack.c.l.b16 %v1679
    %v3174 = vunpack.c.h.b16 %v1679
    %v3175 = vunpack.c.l.b16 %v1680
    %v3176 = vunpack.c.h.b16 %v1680
    %v3177 = vunpack.c.l.b16 %v1681
    %v3178 = vunpack.c.h.b16 %v1681
    %v3179 = vunpack.c.l.b16 %v1682
    %v3180 = vunpack.c.h.b16 %v1682
    %v3181 = vunpack.c.l.b16 %v1683
    %v3182 = vunpack.c.h.b16 %v1683
    %v3183 = vunpack.c.l.b16 %v1684
    %v3184 = vunpack.c.h.b16 %v1684
    %v3185 = vunpack.c.l.b16 %v1685
    %v3186 = vunpack.c.h.b16 %v1685
    %v3187 = vunpack.c.l.b16 %v1686
    %v3188 = vunpack.c.h.b16 %v1686
    %v3189 = vunpack.c.l.b16 %v1687
    %v3190 = vunpack.c.h.b16 %v1687
    %v3191 = vunpack.c.l.b16 %v1688
    %v3192 = vunpack.c.h.b16 %v1688
    %v3193 = vunpack.c.l.b16 %v1689
    %v3194 = vunpack.c.h.b16 %v1689
    %v3195 = vunpack.c.l.b16 %v1690
    %v3196 = vunpack.c.h.b16 %v1690
    %v3197 = vunpack.c.l.b16 %v1691
    %v3198 = vunpack.c.h.b16 %v1691
    %v3199 = vunpack.c.l.b16 %v1692
    %v3200 = vunpack.c.h.b16 %v1692
    %v3201 = vunpack.c.l.b16 %v1693
    %v3202 = vunpack.c.h.b16 %v1693
    %v3203 = vunpack.c.l.b16 %v1694
    %v3204 = vunpack.c.h.b16 %v1694
    %v3205 = vunpack.c.l.b16 %v1695
    %v3206 = vunpack.c.h.b16 %v1695
    %v3207 = vunpack.c.l.b16 %v1696
    %v3208 = vunpack.c.h.b16 %v1696
    %v3209 = vunpack.c.l.b16 %v1697
    %v3210 = vunpack.c.h.b16 %v1697
    %v3211 = vunpack.c.l.b16 %v1698
    %v3212 = vunpack.c.h.b16 %v1698
    %v3213 = vunpack.c.l.b16 %v1699
    %v3214 = vunpack.c.h.b16 %v1699
    %v3215 = vunpack.c.l.b16 %v1700
    %v3216 = vunpack.c.h.b16 %v1700
    %v3217 = vunpack.c.l.b16 %v1701
    %v3218 = vunpack.c.h.b16 %v1701
    %v3219 = vunpack.c.l.b16 %v1702
    %v3220 = vunpack.c.h.b16 %v1702
    %v3221 = vunpack.c.l.b16 %v1703
    %v3222 = vunpack.c.h.b16 %v1703
    %v3223 = vunpack.c.l.b16 %v1704
    %v3224 = vunpack.c.h.b16 %v1704
    %v3225 = vunpack.c.l.b16 %v1705
    %v3226 = vunpack.c.h.b16 %v1705
    %v3227 = vunpack.c.l.b16 %v1706
    %v3228 = vunpack.c.h.b16 %v1706
    %v3229 = vunpack.c.l.b16 %v1707
    %v3230 = vunpack.c.h.b16 %v1707
    %v3231 = vunpack.c.l.b16 %v1708
    %v3232 = vunpack.c.h.b16 %v1708
    %v3233 = vunpack.c.l.b16 %v1709
    %v3234 = vunpack.c.h.b16 %v1709
    %v3235 = vunpack.c.l.b16 %v1710
    %v3236 = vunpack.c.h.b16 %v1710
    %v3237 = vunpack.c.l.b16 %v1711
    %v3238 = vunpack.c.h.b16 %v1711
    %v3239 = vunpack.c.l.b16 %v1712
    %v3240 = vunpack.c.h.b16 %v1712
    %v3241 = vunpack.c.l.b16 %v1713
    %v3242 = vunpack.c.h.b16 %v1713
    %v3243 = vunpack.c.l.b16 %v1714
    %v3244 = vunpack.c.h.b16 %v1714
    %v3245 = vunpack.c.l.b16 %v1715
    %v3246 = vunpack.c.h.b16 %v1715
    %v3247 = vunpack.c.l.b16 %v1716
    %v3248 = vunpack.c.h.b16 %v1716
    %v3249 = vunpack.c.l.b16 %v1717
    %v3250 = vunpack.c.h.b16 %v1717
    %v3251 = vunpack.c.l.b16 %v1718
    %v3252 = vunpack.c.h.b16 %v1718
    %v3253 = vunpack.c.l.b16 %v1719
    %v3254 = vunpack.c.h.b16 %v1719
    %v3255 = vunpack.c.l.b16 %v1720
    %v3256 = vunpack.c.h.b16 %v1720
    %v3257 = vunpack.c.l.b16 %v1721
    %v3258 = vunpack.c.h.b16 %v1721
    %v3259 = vunpack.c.l.b16 %v1722
    %v3260 = vunpack.c.h.b16 %v1722
    %v3261 = vunpack.c.l.b16 %v1723
    %v3262 = vunpack.c.h.b16 %v1723
    %v3263 = vunpack.c.l.b16 %v1724
    %v3264 = vunpack.c.h.b16 %v1724
    %v3265 = vunpack.c.l.b16 %v1725
    %v3266 = vunpack.c.h.b16 %v1725
    %v3267 = vunpack.c.l.b16 %v1726
    %v3268 = vunpack.c.h.b16 %v1726
    %v3269 = vunpack.c.l.b16 %v1727
    %v3270 = vunpack.c.h.b16 %v1727
    %v3271 = vunpack.c.l.b16 %v1728
    %v3272 = vunpack.c.h.b16 %v1728
    %v3273 = vunpack.c.l.b16 %v1729
    %v3274 = vunpack.c.h.b16 %v1729
    %v3275 = vunpack.c.l.b16 %v1730
    %v3276 = vunpack.c.h.b16 %v1730
    %v3277 = vunpack.c.l.b16 %v1731
    %v3278 = vunpack.c.h.b16 %v1731
    %v3279 = vunpack.c.l.b16 %v1732
    %v3280 = vunpack.c.h.b16 %v1732
    %v3281 = vunpack.c.l.b16 %v1733
    %v3282 = vunpack.c.h.b16 %v1733
    %v3283 = vunpack.c.l.b16 %v1734
    %v3284 = vunpack.c.h.b16 %v1734
    %v3285 = vunpack.c.l.b16 %v1735
    %v3286 = vunpack.c.h.b16 %v1735
    %v3287 = vunpack.c.l.b16 %v1736
    %v3288 = vunpack.c.h.b16 %v1736
    %v3289 = vunpack.c.l.b16 %v1737
    %v3290 = vunpack.c.h.b16 %v1737
    %v3291 = vunpack.c.l.b16 %v1738
    %v3292 = vunpack.c.h.b16 %v1738
    %v3293 = vunpack.c.l.b16 %v1739
    %v3294 = vunpack.c.h.b16 %v1739
    %v3295 = vunpack.c.l.b16 %v1740
    %v3296 = vunpack.c.h.b16 %v1740
    %v3297 = vunpack.c.l.b16 %v1741
    %v3298 = vunpack.c.h.b16 %v1741
    %v3299 = vunpack.c.l.b16 %v1742
    %v3300 = vunpack.c.h.b16 %v1742
    %v3301 = vunpack.c.l.b16 %v1743
    %v3302 = vunpack.c.h.b16 %v1743
    %v3303 = vunpack.c.l.b16 %v1744
    %v3304 = vunpack.c.h.b16 %v1744
    %v3305 = vunpack.c.l.b16 %v1745
    %v3306 = vunpack.c.h.b16 %v1745
    %v3307 = vunpack.c.l.b16 %v1746
    %v3308 = vunpack.c.h.b16 %v1746
    %v3309 = vunpack.c.l.b16 %v1747
    %v3310 = vunpack.c.h.b16 %v1747
    %v3311 = vunpack.c.l.b16 %v1748
    %v3312 = vunpack.c.h.b16 %v1748
    %v3313 = vunpack.c.l.b16 %v1749
    %v3314 = vunpack.c.h.b16 %v1749
    %v3315 = vunpack.c.l.b16 %v1750
    %v3316 = vunpack.c.h.b16 %v1750
    %v3317 = vunpack.c.l.b16 %v1751
    %v3318 = vunpack.c.h.b16 %v1751
    %v3319 = vunpack.c.l.b16 %v1752
    %v3320 = vunpack.c.h.b16 %v1752
    %v3321 = vunpack.c.l.b16 %v1753
    %v3322 = vunpack.c.h.b16 %v1753
    %v3323 = vunpack.c.l.b16 %v1754
    %v3324 = vunpack.c.h.b16 %v1754
    %v3325 = vunpack.c.l.b16 %v1755
    %v3326 = vunpack.c.h.b16 %v1755
    %v3327 = vunpack.c.l.b16 %v1756
    %v3328 = vunpack.c.h.b16 %v1756
    %v3329 = vunpack.c.l.b16 %v1757
    %v3330 = vunpack.c.h.b16 %v1757
    %v3331 = vunpack.c.l.b16 %v1758
    %v3332 = vunpack.c.h.b16 %v1758
    %v3333 = vunpack.c.l.b16 %v1759
    %v3334 = vunpack.c.h.b16 %v1759
    %v3335 = vunpack.c.l.b16 %v1760
    %v3336 = vunpack.c.h.b16 %v1760
    %v3337 = vunpack.c.l.b16 %v1761
    %v3338 = vunpack.c.h.b16 %v1761
    %v3339 = vunpack.c.l.b16 %v1762
    %v3340 = vunpack.c.h.b16 %v1762
    %v3341 = vpack.c.b16 %v2325, %v2317
    %v3342 = vpack.c.b16 %v2326, %v2318
    %v3343 = vpack.c.b16 %v2327, %v2319
    %v3344 = vpack.c.b16 %v2328, %v2320
    %v3345 = vpack.c.b16 %v2329, %v2321
    %v3346 = vpack.c.b16 %v2330, %v2322
    %v3347 = vpack.c.b16 %v2331, %v2323
    %v3348 = vpack.c.b16 %v2332, %v2324
    %v3349 = vpack.c.b16 %v2341, %v2333
    %v3350 = vpack.c.b16 %v2342, %v2334
    %v3351 = vpack.c.b16 %v2343, %v2335
    %v3352 = vpack.c.b16 %v2344, %v2336
    %v3353 = vpack.c.b16 %v2345, %v2337
    %v3354 = vpack.c.b16 %v2346, %v2338
    %v3355 = vpack.c.b16 %v2347, %v2339
    %v3356 = vpack.c.b16 %v2348, %v2340
    %v3357 = vpack.c.b16 %v2357, %v2349
    %v3358 = vpack.c.b16 %v2358, %v2350
    %v3359 = vpack.c.b16 %v2359, %v2351
    %v3360 = vpack.c.b16 %v2360, %v2352
    %v3361 = vpack.c.b16 %v2361, %v2353
    %v3362 = vpack.c.b16 %v2362, %v2354
    %v3363 = vpack.c.b16 %v2363, %v2355
    %v3364 = vpack.c.b16 %v2364, %v2356
    %v3365 = vpack.c.b16 %v2373, %v2365
    %v3366 = vpack.c.b16 %v2374, %v2366
    %v3367 = vpack.c.b16 %v2375, %v2367
    %v3368 = vpack.c.b16 %v2376, %v2368
    %v3369 = vpack.c.b16 %v2377, %v2369
    %v3370 = vpack.c.b16 %v2378, %v2370
    %v3371 = vpack.c.b16 %v2379, %v2371
    %v3372 = vpack.c.b16 %v2380, %v2372
    %v3373 = vpack.c.b16 %v2389, %v2381
    %v3374 = vpack.c.b16 %v2390, %v2382
    %v3375 = vpack.c.b16 %v2391, %v2383
    %v3376 = vpack.c.b16 %v2392, %v2384
    %v3377 = vpack.c.b16 %v2393, %v2385
    %v3378 = vpack.c.b16 %v2394, %v2386
    %v3379 = vpack.c.b16 %v2395, %v2387
    %v3380 = vpack.c.b16 %v2396, %v2388
    %v3381 = vpack.c.b16 %v2405, %v2397
    %v3382 = vpack.c.b16 %v2406, %v2398
    %v3383 = vpack.c.b16 %v2407, %v2399
    %v3384 = vpack.c.b16 %v2408, %v2400
    %v3385 = vpack.c.b16 %v2409, %v2401
    %v3386 = vpack.c.b16 %v2410, %v2402
    %v3387 = vpack.c.b16 %v2411, %v2403
    %v3388 = vpack.c.b16 %v2412, %v2404
    %v3389 = vpack.c.b16 %v2421, %v2413
    %v3390 = vpack.c.b16 %v2422, %v2414
    %v3391 = vpack.c.b16 %v2423, %v2415
    %v3392 = vpack.c.b16 %v2424, %v2416
    %v3393 = vpack.c.b16 %v2425, %v2417
    %v3394 = vpack.c.b16 %v2426, %v2418
    %v3395 = vpack.c.b16 %v2427, %v2419
    %v3396 = vpack.c.b16 %v2428, %v2420
    %v3397 = vpack.c.b16 %v2437, %v2429
    %v3398 = vpack.c.b16 %v2438, %v2430
    %v3399 = vpack.c.b16 %v2439, %v2431
    %v3400 = vpack.c.b16 %v2440, %v2432
    %v3401 = vpack.c.b16 %v2441, %v2433
    %v3402 = vpack.c.b16 %v2442, %v2434
    %v3403 = vpack.c.b16 %v2443, %v2435
    %v3404 = vpack.c.b16 %v2444, %v2436
    %v3405 = vpack.c.b16 %v2453, %v2445
    %v3406 = vpack.c.b16 %v2454, %v2446
    %v3407 = vpack.c.b16 %v2455, %v2447
    %v3408 = vpack.c.b16 %v2456, %v2448
    %v3409 = vpack.c.b16 %v2457, %v2449
    %v3410 = vpack.c.b16 %v2458, %v2450
    %v3411 = vpack.c.b16 %v2459, %v2451
    %v3412 = vpack.c.b16 %v2460, %v2452
    %v3413 = vpack.c.b16 %v2469, %v2461
    %v3414 = vpack.c.b16 %v2470, %v2462
    %v3415 = vpack.c.b16 %v2471, %v2463
    %v3416 = vpack.c.b16 %v2472, %v2464
    %v3417 = vpack.c.b16 %v2473, %v2465
    %v3418 = vpack.c.b16 %v2474, %v2466
    %v3419 = vpack.c.b16 %v2475, %v2467
    %v3420 = vpack.c.b16 %v2476, %v2468
    %v3421 = vpack.c.b16 %v2485, %v2477
    %v3422 = vpack.c.b16 %v2486, %v2478
    %v3423 = vpack.c.b16 %v2487, %v2479
    %v3424 = vpack.c.b16 %v2488, %v2480
    %v3425 = vpack.c.b16 %v2489, %v2481
    %v3426 = vpack.c.b16 %v2490, %v2482
    %v3427 = vpack.c.b16 %v2491, %v2483
    %v3428 = vpack.c.b16 %v2492, %v2484
    %v3429 = vpack.c.b16 %v2501, %v2493
    %v3430 = vpack.c.b16 %v2502, %v2494
    %v3431 = vpack.c.b16 %v2503, %v2495
    %v3432 = vpack.c.b16 %v2504, %v2496
    %v3433 = vpack.c.b16 %v2505, %v2497
    %v3434 = vpack.c.b16 %v2506, %v2498
    %v3435 = vpack.c.b16 %v2507, %v2499
    %v3436 = vpack.c.b16 %v2508, %v2500
    %v3437 = vpack.c.b16 %v2517, %v2509
    %v3438 = vpack.c.b16 %v2518, %v2510
    %v3439 = vpack.c.b16 %v2519, %v2511
    %v3440 = vpack.c.b16 %v2520, %v2512
    %v3441 = vpack.c.b16 %v2521, %v2513
    %v3442 = vpack.c.b16 %v2522, %v2514
    %v3443 = vpack.c.b16 %v2523, %v2515
    %v3444 = vpack.c.b16 %v2524, %v2516
    %v3445 = vpack.c.b16 %v2533, %v2525
    %v3446 = vpack.c.b16 %v2534, %v2526
    %v3447 = vpack.c.b16 %v2535, %v2527
    %v3448 = vpack.c.b16 %v2536, %v2528
    %v3449 = vpack.c.b16 %v2537, %v2529
    %v3450 = vpack.c.b16 %v2538, %v2530
    %v3451 = vpack.c.b16 %v2539, %v2531
    %v3452 = vpack.c.b16 %v2540, %v2532
    %v3453 = vpack.c.b16 %v2549, %v2541
    %v3454 = vpack.c.b16 %v2550, %v2542
    %v3455 = vpack.c.b16 %v2551, %v2543
    %v3456 = vpack.c.b16 %v2552, %v2544
    %v3457 = vpack.c.b16 %v2553, %v2545
    %v3458 = vpack.c.b16 %v2554, %v2546
    %v3459 = vpack.c.b16 %v2555, %v2547
    %v3460 = vpack.c.b16 %v2556, %v2548
    %v3461 = vpack.c.b16 %v2565, %v2557
    %v3462 = vpack.c.b16 %v2566, %v2558
    %v3463 = vpack.c.b16 %v2567, %v2559
    %v3464 = vpack.c.b16 %v2568, %v2560
    %v3465 = vpack.c.b16 %v2569, %v2561
    %v3466 = vpack.c.b16 %v2570, %v2562
    %v3467 = vpack.c.b16 %v2571, %v2563
    %v3468 = vpack.c.b16 %v2572, %v2564
    %v3469 = vpack.c.b16 %v2581, %v2573
    %v3470 = vpack.c.b16 %v2582, %v2574
    %v3471 = vpack.c.b16 %v2583, %v2575
    %v3472 = vpack.c.b16 %v2584, %v2576
    %v3473 = vpack.c.b16 %v2585, %v2577
    %v3474 = vpack.c.b16 %v2586, %v2578
    %v3475 = vpack.c.b16 %v2587, %v2579
    %v3476 = vpack.c.b16 %v2588, %v2580
    %v3477 = vpack.c.b16 %v2597, %v2589
    %v3478 = vpack.c.b16 %v2598, %v2590
    %v3479 = vpack.c.b16 %v2599, %v2591
    %v3480 = vpack.c.b16 %v2600, %v2592
    %v3481 = vpack.c.b16 %v2601, %v2593
    %v3482 = vpack.c.b16 %v2602, %v2594
    %v3483 = vpack.c.b16 %v2603, %v2595
    %v3484 = vpack.c.b16 %v2604, %v2596
    %v3485 = vpack.c.b16 %v2613, %v2605
    %v3486 = vpack.c.b16 %v2614, %v2606
    %v3487 = vpack.c.b16 %v2615, %v2607
    %v3488 = vpack.c.b16 %v2616, %v2608
    %v3489 = vpack.c.b16 %v2617, %v2609
    %v3490 = vpack.c.b16 %v2618, %v2610
    %v3491 = vpack.c.b16 %v2619, %v2611
    %v3492 = vpack.c.b16 %v2620, %v2612
    %v3493 = vpack.c.b16 %v2629, %v2621
    %v3494 = vpack.c.b16 %v2630, %v2622
    %v3495 = vpack.c.b16 %v2631, %v2623
    %v3496 = vpack.c.b16 %v2632, %v2624
    %v3497 = vpack.c.b16 %v2633, %v2625
    %v3498 = vpack.c.b16 %v2634, %v2626
    %v3499 = vpack.c.b16 %v2635, %v2627
    %v3500 = vpack.c.b16 %v2636, %v2628
    %v3501 = vpack.c.b16 %v2645, %v2637
    %v3502 = vpack.c.b16 %v2646, %v2638
    %v3503 = vpack.c.b16 %v2647, %v2639
    %v3504 = vpack.c.b16 %v2648, %v2640
    %v3505 = vpack.c.b16 %v2649, %v2641
    %v3506 = vpack.c.b16 %v2650, %v2642
    %v3507 = vpack.c.b16 %v2651, %v2643
    %v3508 = vpack.c.b16 %v2652, %v2644
    %v3509 = vpack.c.b16 %v2661, %v2653
    %v3510 = vpack.c.b16 %v2662, %v2654
    %v3511 = vpack.c.b16 %v2663, %v2655
    %v3512 = vpack.c.b16 %v2664, %v2656
    %v3513 = vpack.c.b16 %v2665, %v2657
    %v3514 = vpack.c.b16 %v2666, %v2658
    %v3515 = vpack.c.b16 %v2667, %v2659
    %v3516 = vpack.c.b16 %v2668, %v2660
    %v3517 = vpack.c.b16 %v2677, %v2669
    %v3518 = vpack.c.b16 %v2678, %v2670
    %v3519 = vpack.c.b16 %v2679, %v2671
    %v3520 = vpack.c.b16 %v2680, %v2672
    %v3521 = vpack.c.b16 %v2681, %v2673
    %v3522 = vpack.c.b16 %v2682, %v2674
    %v3523 = vpack.c.b16 %v2683, %v2675
    %v3524 = vpack.c.b16 %v2684, %v2676
    %v3525 = vpack.c.b16 %v2693, %v2685
    %v3526 = vpack.c.b16 %v2694, %v2686
    %v3527 = vpack.c.b16 %v2695, %v2687
    %v3528 = vpack.c.b16 %v2696, %v2688
    %v3529 = vpack.c.b16 %v2697, %v2689
    %v3530 = vpack.c.b16 %v2698, %v2690
    %v3531 = vpack.c.b16 %v2699, %v2691
    %v3532 = vpack.c.b16 %v2700, %v2692
    %v3533 = vpack.c.b16 %v2709, %v2701
    %v3534 = vpack.c.b16 %v2710, %v2702
    %v3535 = vpack.c.b16 %v2711, %v2703
    %v3536 = vpack.c.b16 %v2712, %v2704
    %v3537 = vpack.c.b16 %v2713, %v2705
    %v3538 = vpack.c.b16 %v2714, %v2706
    %v3539 = vpack.c.b16 %v2715, %v2707
    %v3540 = vpack.c.b16 %v2716, %v2708
    %v3541 = vpack.c.b16 %v2725, %v2717
    %v3542 = vpack.c.b16 %v2726, %v2718
    %v3543 = vpack.c.b16 %v2727, %v2719
    %v3544 = vpack.c.b16 %v2728, %v2720
    %v3545 = vpack.c.b16 %v2729, %v2721
    %v3546 = vpack.c.b16 %v2730, %v2722
    %v3547 = vpack.c.b16 %v2731, %v2723
    %v3548 = vpack.c.b16 %v2732, %v2724
    %v3549 = vpack.c.b16 %v2741, %v2733
    %v3550 = vpack.c.b16 %v2742, %v2734
    %v3551 = vpack.c.b16 %v2743, %v2735
    %v3552 = vpack.c.b16 %v2744, %v2736
    %v3553 = vpack.c.b16 %v2745, %v2737
    %v3554 = vpack.c.b16 %v2746, %v2738
    %v3555 = vpack.c.b16 %v2747, %v2739
    %v3556 = vpack.c.b16 %v2748, %v2740
    %v3557 = vpack.c.b16 %v2757, %v2749
    %v3558 = vpack.c.b16 %v2758, %v2750
    %v3559 = vpack.c.b16 %v2759, %v2751
    %v3560 = vpack.c.b16 %v2760, %v2752
    %v3561 = vpack.c.b16 %v2761, %v2753
    %v3562 = vpack.c.b16 %v2762, %v2754
    %v3563 = vpack.c.b16 %v2763, %v2755
    %v3564 = vpack.c.b16 %v2764, %v2756
    %v3565 = vpack.c.b16 %v2773, %v2765
    %v3566 = vpack.c.b16 %v2774, %v2766
    %v3567 = vpack.c.b16 %v2775, %v2767
    %v3568 = vpack.c.b16 %v2776, %v2768
    %v3569 = vpack.c.b16 %v2777, %v2769
    %v3570 = vpack.c.b16 %v2778, %v2770
    %v3571 = vpack.c.b16 %v2779, %v2771
    %v3572 = vpack.c.b16 %v2780, %v2772
    %v3573 = vpack.c.b16 %v2789, %v2781
    %v3574 = vpack.c.b16 %v2790, %v2782
    %v3575 = vpack.c.b16 %v2791, %v2783
    %v3576 = vpack.c.b16 %v2792, %v2784
    %v3577 = vpack.c.b16 %v2793, %v2785
    %v3578 = vpack.c.b16 %v2794, %v2786
    %v3579 = vpack.c.b16 %v2795, %v2787
    %v3580 = vpack.c.b16 %v2796, %v2788
    %v3581 = vpack.c.b16 %v2805, %v2797
    %v3582 = vpack.c.b16 %v2806, %v2798
    %v3583 = vpack.c.b16 %v2807, %v2799
    %v3584 = vpack.c.b16 %v2808, %v2800
    %v3585 = vpack.c.b16 %v2809, %v2801
    %v3586 = vpack.c.b16 %v2810, %v2802
    %v3587 = vpack.c.b16 %v2811, %v2803
    %v3588 = vpack.c.b16 %v2812, %v2804
    %v3589 = vpack.c.b16 %v2821, %v2813
    %v3590 = vpack.c.b16 %v2822, %v2814
    %v3591 = vpack.c.b16 %v2823, %v2815
    %v3592 = vpack.c.b16 %v2824, %v2816
    %v3593 = vpack.c.b16 %v2825, %v2817
    %v3594 = vpack.c.b16 %v2826, %v2818
    %v3595 = vpack.c.b16 %v2827, %v2819
    %v3596 = vpack.c.b16 %v2828, %v2820
    %v3597 = vpack.c.b16 %v2837, %v2829
    %v3598 = vpack.c.b16 %v2838, %v2830
    %v3599 = vpack.c.b16 %v2839, %v2831
    %v3600 = vpack.c.b16 %v2840, %v2832
    %v3601 = vpack.c.b16 %v2841, %v2833
    %v3602 = vpack.c.b16 %v2842, %v2834
    %v3603 = vpack.c.b16 %v2843, %v2835
    %v3604 = vpack.c.b16 %v2844, %v2836
    %v3605 = vpack.c.b16 %v2853, %v2845
    %v3606 = vpack.c.b16 %v2854, %v2846
    %v3607 = vpack.c.b16 %v2855, %v2847
    %v3608 = vpack.c.b16 %v2856, %v2848
    %v3609 = vpack.c.b16 %v2857, %v2849
    %v3610 = vpack.c.b16 %v2858, %v2850
    %v3611 = vpack.c.b16 %v2859, %v2851
    %v3612 = vpack.c.b16 %v2860, %v2852
    %v3613 = vpack.c.b16 %v2869, %v2861
    %v3614 = vpack.c.b16 %v2870, %v2862
    %v3615 = vpack.c.b16 %v2871, %v2863
    %v3616 = vpack.c.b16 %v2872, %v2864
    %v3617 = vpack.c.b16 %v2873, %v2865
    %v3618 = vpack.c.b16 %v2874, %v2866
    %v3619 = vpack.c.b16 %v2875, %v2867
    %v3620 = vpack.c.b16 %v2876, %v2868
    %v3621 = vpack.c.b16 %v2885, %v2877
    %v3622 = vpack.c.b16 %v2886, %v2878
    %v3623 = vpack.c.b16 %v2887, %v2879
    %v3624 = vpack.c.b16 %v2888, %v2880
    %v3625 = vpack.c.b16 %v2889, %v2881
    %v3626 = vpack.c.b16 %v2890, %v2882
    %v3627 = vpack.c.b16 %v2891, %v2883
    %v3628 = vpack.c.b16 %v2892, %v2884
    %v3629 = vpack.c.b16 %v2901, %v2893
    %v3630 = vpack.c.b16 %v2902, %v2894
    %v3631 = vpack.c.b16 %v2903, %v2895
    %v3632 = vpack.c.b16 %v2904, %v2896
    %v3633 = vpack.c.b16 %v2905, %v2897
    %v3634 = vpack.c.b16 %v2906, %v2898
    %v3635 = vpack.c.b16 %v2907, %v2899
    %v3636 = vpack.c.b16 %v2908, %v2900
    %v3637 = vpack.c.b16 %v2917, %v2909
    %v3638 = vpack.c.b16 %v2918, %v2910
    %v3639 = vpack.c.b16 %v2919, %v2911
    %v3640 = vpack.c.b16 %v2920, %v2912
    %v3641 = vpack.c.b16 %v2921, %v2913
    %v3642 = vpack.c.b16 %v2922, %v2914
    %v3643 = vpack.c.b16 %v2923, %v2915
    %v3644 = vpack.c.b16 %v2924, %v2916
    %v3645 = vpack.c.b16 %v2933, %v2925
    %v3646 = vpack.c.b16 %v2934, %v2926
    %v3647 = vpack.c.b16 %v2935, %v2927
    %v3648 = vpack.c.b16 %v2936, %v2928
    %v3649 = vpack.c.b16 %v2937, %v2929
    %v3650 = vpack.c.b16 %v2938, %v2930
    %v3651 = vpack.c.b16 %v2939, %v2931
    %v3652 = vpack.c.b16 %v2940, %v2932
    %v3653 = vpack.c.b16 %v2949, %v2941
    %v3654 = vpack.c.b16 %v2950, %v2942
    %v3655 = vpack.c.b16 %v2951, %v2943
    %v3656 = vpack.c.b16 %v2952, %v2944
    %v3657 = vpack.c.b16 %v2953, %v2945
    %v3658 = vpack.c.b16 %v2954, %v2946
    %v3659 = vpack.c.b16 %v2955, %v2947
    %v3660 = vpack.c.b16 %v2956, %v2948
    %v3661 = vpack.c.b16 %v2965, %v2957
    %v3662 = vpack.c.b16 %v2966, %v2958
    %v3663 = vpack.c.b16 %v2967, %v2959
    %v3664 = vpack.c.b16 %v2968, %v2960
    %v3665 = vpack.c.b16 %v2969, %v2961
    %v3666 = vpack.c.b16 %v2970, %v2962
    %v3667 = vpack.c.b16 %v2971, %v2963
    %v3668 = vpack.c.b16 %v2972, %v2964
    %v3669 = vpack.c.b16 %v2981, %v2973
    %v3670 = vpack.c.b16 %v2982, %v2974
    %v3671 = vpack.c.b16 %v2983, %v2975
    %v3672 = vpack.c.b16 %v2984, %v2976
    %v3673 = vpack.c.b16 %v2985, %v2977
    %v3674 = vpack.c.b16 %v2986, %v2978
    %v3675 = vpack.c.b16 %v2987, %v2979
    %v3676 = vpack.c.b16 %v2988, %v2980
    %v3677 = vpack.c.b16 %v2997, %v2989
    %v3678 = vpack.c.b16 %v2998, %v2990
    %v3679 = vpack.c.b16 %v2999, %v2991
    %v3680 = vpack.c.b16 %v3000, %v2992
    %v3681 = vpack.c.b16 %v3001, %v2993
    %v3682 = vpack.c.b16 %v3002, %v2994
    %v3683 = vpack.c.b16 %v3003, %v2995
    %v3684 = vpack.c.b16 %v3004, %v2996
    %v3685 = vpack.c.b16 %v3013, %v3005
    %v3686 = vpack.c.b16 %v3014, %v3006
    %v3687 = vpack.c.b16 %v3015, %v3007
    %v3688 = vpack.c.b16 %v3016, %v3008
    %v3689 = vpack.c.b16 %v3017, %v3009
    %v3690 = vpack.c.b16 %v3018, %v3010
    %v3691 = vpack.c.b16 %v3019, %v3011
    %v3692 = vpack.c.b16 %v3020, %v3012
    %v3693 = vpack.c.b16 %v3029, %v3021
    %v3694 = vpack.c.b16 %v3030, %v3022
    %v3695 = vpack.c.b16 %v3031, %v3023
    %v3696 = vpack.c.b16 %v3032, %v3024
    %v3697 = vpack.c.b16 %v3033, %v3025
    %v3698 = vpack.c.b16 %v3034, %v3026
    %v3699 = vpack.c.b16 %v3035, %v3027
    %v3700 = vpack.c.b16 %v3036, %v3028
    %v3701 = vpack.c.b16 %v3045, %v3037
    %v3702 = vpack.c.b16 %v3046, %v3038
    %v3703 = vpack.c.b16 %v3047, %v3039
    %v3704 = vpack.c.b16 %v3048, %v3040
    %v3705 = vpack.c.b16 %v3049, %v3041
    %v3706 = vpack.c.b16 %v3050, %v3042
    %v3707 = vpack.c.b16 %v3051, %v3043
    %v3708 = vpack.c.b16 %v3052, %v3044
    %v3709 = vpack.c.b16 %v3061, %v3053
    %v3710 = vpack.c.b16 %v3062, %v3054
    %v3711 = vpack.c.b16 %v3063, %v3055
    %v3712 = vpack.c.b16 %v3064, %v3056
    %v3713 = vpack.c.b16 %v3065, %v3057
    %v3714 = vpack.c.b16 %v3066, %v3058
    %v3715 = vpack.c.b16 %v3067, %v3059
    %v3716 = vpack.c.b16 %v3068, %v3060
    %v3717 = vpack.c.b16 %v3077, %v3069
    %v3718 = vpack.c.b16 %v3078, %v3070
    %v3719 = vpack.c.b16 %v3079, %v3071
    %v3720 = vpack.c.b16 %v3080, %v3072
    %v3721 = vpack.c.b16 %v3081, %v3073
    %v3722 = vpack.c.b16 %v3082, %v3074
    %v3723 = vpack.c.b16 %v3083, %v3075
    %v3724 = vpack.c.b16 %v3084, %v3076
    %v3725 = vpack.c.b16 %v3093, %v3085
    %v3726 = vpack.c.b16 %v3094, %v3086
    %v3727 = vpack.c.b16 %v3095, %v3087
    %v3728 = vpack.c.b16 %v3096, %v3088
    %v3729 = vpack.c.b16 %v3097, %v3089
    %v3730 = vpack.c.b16 %v3098, %v3090
    %v3731 = vpack.c.b16 %v3099, %v3091
    %v3732 = vpack.c.b16 %v3100, %v3092
    %v3733 = vpack.c.b16 %v3109, %v3101
    %v3734 = vpack.c.b16 %v3110, %v3102
    %v3735 = vpack.c.b16 %v3111, %v3103
    %v3736 = vpack.c.b16 %v3112, %v3104
    %v3737 = vpack.c.b16 %v3113, %v3105
    %v3738 = vpack.c.b16 %v3114, %v3106
    %v3739 = vpack.c.b16 %v3115, %v3107
    %v3740 = vpack.c.b16 %v3116, %v3108
    %v3741 = vpack.c.b16 %v3125, %v3117
    %v3742 = vpack.c.b16 %v3126, %v3118
    %v3743 = vpack.c.b16 %v3127, %v3119
    %v3744 = vpack.c.b16 %v3128, %v3120
    %v3745 = vpack.c.b16 %v3129, %v3121
    %v3746 = vpack.c.b16 %v3130, %v3122
    %v3747 = vpack.c.b16 %v3131, %v3123
    %v3748 = vpack.c.b16 %v3132, %v3124
    %v3749 = vpack.c.b16 %v3141, %v3133
    %v3750 = vpack.c.b16 %v3142, %v3134
    %v3751 = vpack.c.b16 %v3143, %v3135
    %v3752 = vpack.c.b16 %v3144, %v3136
    %v3753 = vpack.c.b16 %v3145, %v3137
    %v3754 = vpack.c.b16 %v3146, %v3138
    %v3755 = vpack.c.b16 %v3147, %v3139
    %v3756 = vpack.c.b16 %v3148, %v3140
    %v3757 = vpack.c.b16 %v3157, %v3149
    %v3758 = vpack.c.b16 %v3158, %v3150
    %v3759 = vpack.c.b16 %v3159, %v3151
    %v3760 = vpack.c.b16 %v3160, %v3152
    %v3761 = vpack.c.b16 %v3161, %v3153
    %v3762 = vpack.c.b16 %v3162, %v3154
    %v3763 = vpack.c.b16 %v3163, %v3155
    %v3764 = vpack.c.b16 %v3164, %v3156
    %v3765 = vpack.c.b16 %v3173, %v3165
    %v3766 = vpack.c.b16 %v3174, %v3166
    %v3767 = vpack.c.b16 %v3175, %v3167
    %v3768 = vpack.c.b16 %v3176, %v3168
    %v3769 = vpack.c.b16 %v3177, %v3169
    %v3770 = vpack.c.b16 %v3178, %v3170
    %v3771 = vpack.c.b16 %v3179, %v3171
    %v3772 = vpack.c.b16 %v3180, %v3172
    %v3773 = vpack.c.b16 %v3189, %v3181
    %v3774 = vpack.c.b16 %v3190, %v3182
    %v3775 = vpack.c.b16 %v3191, %v3183
    %v3776 = vpack.c.b16 %v3192, %v3184
    %v3777 = vpack.c.b16 %v3193, %v3185
    %v3778 = vpack.c.b16 %v3194, %v3186
    %v3779 = vpack.c.b16 %v3195, %v3187
    %v3780 = vpack.c.b16 %v3196, %v3188
    %v3781 = vpack.c.b16 %v3205, %v3197
    %v3782 = vpack.c.b16 %v3206, %v3198
    %v3783 = vpack.c.b16 %v3207, %v3199
    %v3784 = vpack.c.b16 %v3208, %v3200
    %v3785 = vpack.c.b16 %v3209, %v3201
    %v3786 = vpack.c.b16 %v3210, %v3202
    %v3787 = vpack.c.b16 %v3211, %v3203
    %v3788 = vpack.c.b16 %v3212, %v3204
    %v3789 = vpack.c.b16 %v3221, %v3213
    %v3790 = vpack.c.b16 %v3222, %v3214
    %v3791 = vpack.c.b16 %v3223, %v3215
    %v3792 = vpack.c.b16 %v3224, %v3216
    %v3793 = vpack.c.b16 %v3225, %v3217
    %v3794 = vpack.c.b16 %v3226, %v3218
    %v3795 = vpack.c.b16 %v3227, %v3219
    %v3796 = vpack.c.b16 %v3228, %v3220
    %v3797 = vpack.c.b16 %v3237, %v3229
    %v3798 = vpack.c.b16 %v3238, %v3230
    %v3799 = vpack.c.b16 %v3239, %v3231
    %v3800 = vpack.c.b16 %v3240, %v3232
    %v3801 = vpack.c.b16 %v3241, %v3233
    %v3802 = vpack.c.b16 %v3242, %v3234
    %v3803 = vpack.c.b16 %v3243, %v3235
    %v3804 = vpack.c.b16 %v3244, %v3236
    %v3805 = vpack.c.b16 %v3253, %v3245
    %v3806 = vpack.c.b16 %v3254, %v3246
    %v3807 = vpack.c.b16 %v3255, %v3247
    %v3808 = vpack.c.b16 %v3256, %v3248
    %v3809 = vpack.c.b16 %v3257, %v3249
    %v3810 = vpack.c.b16 %v3258, %v3250
    %v3811 = vpack.c.b16 %v3259, %v3251
    %v3812 = vpack.c.b16 %v3260, %v3252
    %v3813 = vpack.c.b16 %v3269, %v3261
    %v3814 = vpack.c.b16 %v3270, %v3262
    %v3815 = vpack.c.b16 %v3271, %v3263
    %v3816 = vpack.c.b16 %v3272, %v3264
    %v3817 = vpack.c.b16 %v3273, %v3265
    %v3818 = vpack.c.b16 %v3274, %v3266
    %v3819 = vpack.c.b16 %v3275, %v3267
    %v3820 = vpack.c.b16 %v3276, %v3268
    %v3821 = vpack.c.b16 %v3285, %v3277
    %v3822 = vpack.c.b16 %v3286, %v3278
    %v3823 = vpack.c.b16 %v3287, %v3279
    %v3824 = vpack.c.b16 %v3288, %v3280
    %v3825 = vpack.c.b16 %v3289, %v3281
    %v3826 = vpack.c.b16 %v3290, %v3282
    %v3827 = vpack.c.b16 %v3291, %v3283
    %v3828 = vpack.c.b16 %v3292, %v3284
    %v3829 = vpack.c.b16 %v3301, %v3293
    %v3830 = vpack.c.b16 %v3302, %v3294
    %v3831 = vpack.c.b16 %v3303, %v3295
    %v3832 = vpack.c.b16 %v3304, %v3296
    %v3833 = vpack.c.b16 %v3305, %v3297
    %v3834 = vpack.c.b16 %v3306, %v3298
    %v3835 = vpack.c.b16 %v3307, %v3299
    %v3836 = vpack.c.b16 %v3308, %v3300
    %v3837 = vpack.c.b16 %v3317, %v3309
    %v3838 = vpack.c.b16 %v3318, %v3310
    %v3839 = vpack.c.b16 %v3319, %v3311
    %v3840 = vpack.c.b16 %v3320, %v3312
    %v3841 = vpack.c.b16 %v3321, %v3313
    %v3842 = vpack.c.b16 %v3322, %v3314
    %v3843 = vpack.c.b16 %v3323, %v3315
    %v3844 = vpack.c.b16 %v3324, %v3316
    %v3845 = vpack.c.b16 %v3333, %v3325
    %v3846 = vpack.c.b16 %v3334, %v3326
    %v3847 = vpack.c.b16 %v3335, %v3327
    %v3848 = vpack.c.b16 %v3336, %v3328
    %v3849 = vpack.c.b16 %v3337, %v3329
    %v3850 = vpack.c.b16 %v3338, %v3330
    %v3851 = vpack.c.b16 %v3339, %v3331
    %v3852 = vpack.c.b16 %v3340, %v3332
    %4365 = vmatprep.subr.bf16.mxu0 %v3398
    %4366 = vmatpush1.bf16.msra.mxu0 %v3397
    %4367 = vmatprep.subr.bf16.mxu0 %v3390
    %4368 = vmatpush1.bf16.msra.mxu0 %v3389
    %4369 = vmatprep.subr.bf16.mxu0 %v3382
    %4370 = vmatpush1.bf16.msra.mxu0 %v3381
    %4371 = vmatprep.subr.bf16.mxu0 %v3374
    %4372 = vmatpush1.bf16.msra.mxu0 %v3373
    %4373 = vmatprep.subr.bf16.mxu0 %v3366
    %4374 = vmatpush1.bf16.msra.mxu0 %v3365
    %4375 = vmatprep.subr.bf16.mxu0 %v3358
    %4376 = vmatpush1.bf16.msra.mxu0 %v3357
    %4377 = vmatprep.subr.bf16.mxu0 %v3350
    %4378 = vmatpush1.bf16.msra.mxu0 %v3349
    %4379 = vmatprep.subr.bf16.mxu0 %v3342
    %4380 = vmatpush1.bf16.msra.mxu0 %v3341
    %4381 = vmatprep.subr.bf16.mxu0 %v3462
    %4382 = vmatpush2.bf16.msra.mxu0 %v3461
    %4383 = vmatprep.subr.bf16.mxu0 %v3454
    %4384 = vmatpush2.bf16.msra.mxu0 %v3453
    %4385 = vmatprep.subr.bf16.mxu0 %v3446
    %4386 = vmatpush2.bf16.msra.mxu0 %v3445
    %4387 = vmatprep.subr.bf16.mxu0 %v3438
    %4388 = vmatpush2.bf16.msra.mxu0 %v3437
    %4389 = vmatprep.subr.bf16.mxu0 %v3430
    %4390 = vmatpush2.bf16.msra.mxu0 %v3429
    %4391 = vmatprep.subr.bf16.mxu0 %v3422
    %4392 = vmatpush2.bf16.msra.mxu0 %v3421
    %4393 = vmatprep.subr.bf16.mxu0 %v3414
    %4394 = vmatpush2.bf16.msra.mxu0 %v3413
    %4395 = vmatprep.subr.bf16.mxu0 %v3406
    %4396 = vmatpush2.bf16.msra.mxu0 %v3405
    %4397 = vmatprep.mubr.bf16.mxu0 %v1244
    %4398 = vmatmul.mubr.bf16.gmra.mxu0 %v1243
    %v4399 = vpop.f32.mrf.mxu0
    %v4400 = vadd.f32 %v1768, %v4399
    %v4401 = vpop.f32.mrf.mxu0
    %v4402 = vadd.f32 %v1772, %v4401
    %v4403 = vpop.f32.mrf.mxu0
    %v4404 = vpop.f32.mrf.mxu0
    %4405 = vdwg.mxu0
    %4406 = vmatprep.subr.bf16.mxu0 %v3526
    %4407 = vmatpush1.bf16.msra.mxu0 %v3525
    %4408 = vmatprep.subr.bf16.mxu0 %v3518
    %4409 = vmatpush1.bf16.msra.mxu0 %v3517
    %4410 = vmatprep.subr.bf16.mxu0 %v3510
    %4411 = vmatpush1.bf16.msra.mxu0 %v3509
    %4412 = vmatprep.subr.bf16.mxu0 %v3502
    %4413 = vmatpush1.bf16.msra.mxu0 %v3501
    %4414 = vmatprep.subr.bf16.mxu0 %v3494
    %4415 = vmatpush1.bf16.msra.mxu0 %v3493
    %4416 = vmatprep.subr.bf16.mxu0 %v3486
    %4417 = vmatpush1.bf16.msra.mxu0 %v3485
    %4418 = vmatprep.subr.bf16.mxu0 %v3478
    %4419 = vmatpush1.bf16.msra.mxu0 %v3477
    %4420 = vmatprep.subr.bf16.mxu0 %v3470
    %4421 = vmatpush1.bf16.msra.mxu0 %v3469
    %4422 = vmatprep.subr.bf16.mxu0 %v3590
    %4423 = vmatpush2.bf16.msra.mxu0 %v3589
    %4424 = vmatprep.subr.bf16.mxu0 %v3582
    %4425 = vmatpush2.bf16.msra.mxu0 %v3581
    %4426 = vmatprep.subr.bf16.mxu0 %v3574
    %4427 = vmatpush2.bf16.msra.mxu0 %v3573
    %4428 = vmatprep.subr.bf16.mxu0 %v3566
    %4429 = vmatpush2.bf16.msra.mxu0 %v3565
    %4430 = vmatprep.subr.bf16.mxu0 %v3558
    %4431 = vmatpush2.bf16.msra.mxu0 %v3557
    %4432 = vmatprep.subr.bf16.mxu0 %v3550
    %4433 = vmatpush2.bf16.msra.mxu0 %v3549
    %4434 = vmatprep.subr.bf16.mxu0 %v3542
    %4435 = vmatpush2.bf16.msra.mxu0 %v3541
    %4436 = vmatprep.subr.bf16.mxu0 %v3534
    %4437 = vmatpush2.bf16.msra.mxu0 %v3533
    %4438 = vmatprep.mubr.bf16.mxu0 %v1246
    %4439 = vmatmul.mubr.bf16.gmra.mxu0 %v1245
    %v4440 = vpop.f32.mrf.mxu0
    %v4441 = vadd.f32 %v4400, %v4440
    %v4442 = vpop.f32.mrf.mxu0
    %v4443 = vadd.f32 %v4402, %v4442
    %v4444 = vpop.f32.mrf.mxu0
    %v4445 = vpop.f32.mrf.mxu0
    %4446 = vdwg.mxu0
    %4447 = vmatprep.subr.bf16.mxu0 %v3654
    %4448 = vmatpush1.bf16.msra.mxu0 %v3653
    %4449 = vmatprep.subr.bf16.mxu0 %v3646
    %4450 = vmatpush1.bf16.msra.mxu0 %v3645
    %4451 = vmatprep.subr.bf16.mxu0 %v3638
    %4452 = vmatpush1.bf16.msra.mxu0 %v3637
    %4453 = vmatprep.subr.bf16.mxu0 %v3630
    %4454 = vmatpush1.bf16.msra.mxu0 %v3629
    %4455 = vmatprep.subr.bf16.mxu0 %v3622
    %4456 = vmatpush1.bf16.msra.mxu0 %v3621
    %4457 = vmatprep.subr.bf16.mxu0 %v3614
    %4458 = vmatpush1.bf16.msra.mxu0 %v3613
    %4459 = vmatprep.subr.bf16.mxu0 %v3606
    %4460 = vmatpush1.bf16.msra.mxu0 %v3605
    %4461 = vmatprep.subr.bf16.mxu0 %v3598
    %4462 = vmatpush1.bf16.msra.mxu0 %v3597
    %4463 = vmatprep.subr.bf16.mxu0 %v3718
    %4464 = vmatpush2.bf16.msra.mxu0 %v3717
    %4465 = vmatprep.subr.bf16.mxu0 %v3710
    %4466 = vmatpush2.bf16.msra.mxu0 %v3709
    %4467 = vmatprep.subr.bf16.mxu0 %v3702
    %4468 = vmatpush2.bf16.msra.mxu0 %v3701
    %4469 = vmatprep.subr.bf16.mxu0 %v3694
    %4470 = vmatpush2.bf16.msra.mxu0 %v3693
    %4471 = vmatprep.subr.bf16.mxu0 %v3686
    %4472 = vmatpush2.bf16.msra.mxu0 %v3685
    %4473 = vmatprep.subr.bf16.mxu0 %v3678
    %4474 = vmatpush2.bf16.msra.mxu0 %v3677
    %4475 = vmatprep.subr.bf16.mxu0 %v3670
    %4476 = vmatpush2.bf16.msra.mxu0 %v3669
    %4477 = vmatprep.subr.bf16.mxu0 %v3662
    %4478 = vmatpush2.bf16.msra.mxu0 %v3661
    %4479 = vmatprep.mubr.bf16.mxu0 %v1248
    %4480 = vmatmul.mubr.bf16.gmra.mxu0 %v1247
    %v4481 = vpop.f32.mrf.mxu0
    %v4482 = vadd.f32 %v4441, %v4481
    %v4483 = vpop.f32.mrf.mxu0
    %v4484 = vadd.f32 %v4443, %v4483
    %v4485 = vpop.f32.mrf.mxu0
    %v4486 = vpop.f32.mrf.mxu0
    %4487 = vdwg.mxu0
    %4488 = vmatprep.subr.bf16.mxu0 %v3782
    %4489 = vmatpush1.bf16.msra.mxu0 %v3781
    %4490 = vmatprep.subr.bf16.mxu0 %v3774
    %4491 = vmatpush1.bf16.msra.mxu0 %v3773
    %4492 = vmatprep.subr.bf16.mxu0 %v3766
    %4493 = vmatpush1.bf16.msra.mxu0 %v3765
    %4494 = vmatprep.subr.bf16.mxu0 %v3758
    %4495 = vmatpush1.bf16.msra.mxu0 %v3757
    %4496 = vmatprep.subr.bf16.mxu0 %v3750
    %4497 = vmatpush1.bf16.msra.mxu0 %v3749
    %4498 = vmatprep.subr.bf16.mxu0 %v3742
    %4499 = vmatpush1.bf16.msra.mxu0 %v3741
    %4500 = vmatprep.subr.bf16.mxu0 %v3734
    %4501 = vmatpush1.bf16.msra.mxu0 %v3733
    %4502 = vmatprep.subr.bf16.mxu0 %v3726
    %4503 = vmatpush1.bf16.msra.mxu0 %v3725
    %4504 = vmatprep.subr.bf16.mxu0 %v3846
    %4505 = vmatpush2.bf16.msra.mxu0 %v3845
    %4506 = vmatprep.subr.bf16.mxu0 %v3838
    %4507 = vmatpush2.bf16.msra.mxu0 %v3837
    %4508 = vmatprep.subr.bf16.mxu0 %v3830
    %4509 = vmatpush2.bf16.msra.mxu0 %v3829
    %4510 = vmatprep.subr.bf16.mxu0 %v3822
    %4511 = vmatpush2.bf16.msra.mxu0 %v3821
    %4512 = vmatprep.subr.bf16.mxu0 %v3814
    %4513 = vmatpush2.bf16.msra.mxu0 %v3813
    %4514 = vmatprep.subr.bf16.mxu0 %v3806
    %4515 = vmatpush2.bf16.msra.mxu0 %v3805
    %4516 = vmatprep.subr.bf16.mxu0 %v3798
    %4517 = vmatpush2.bf16.msra.mxu0 %v3797
    %4518 = vmatprep.subr.bf16.mxu0 %v3790
    %4519 = vmatpush2.bf16.msra.mxu0 %v3789
    %4520 = vmatprep.mubr.bf16.mxu0 %v1250
    %4521 = vmatmul.mubr.bf16.gmra.mxu0 %v1249
    %v4522 = vpop.f32.mrf.mxu0
    %v4523 = vadd.f32 %v4482, %v4522
    %v4524 = vpop.f32.mrf.mxu0
    %v4525 = vadd.f32 %v4484, %v4524
    %v4526 = vpop.f32.mrf.mxu0
    %v4527 = vpop.f32.mrf.mxu0
    %4528 = vdwg.mxu0
    %4529 = vmatprep.subr.bf16.mxu0 %v3400
    %4530 = vmatpush1.bf16.msra.mxu0 %v3399
    %4531 = vmatprep.subr.bf16.mxu0 %v3392
    %4532 = vmatpush1.bf16.msra.mxu0 %v3391
    %4533 = vmatprep.subr.bf16.mxu0 %v3384
    %4534 = vmatpush1.bf16.msra.mxu0 %v3383
    %4535 = vmatprep.subr.bf16.mxu0 %v3376
    %4536 = vmatpush1.bf16.msra.mxu0 %v3375
    %4537 = vmatprep.subr.bf16.mxu0 %v3368
    %4538 = vmatpush1.bf16.msra.mxu0 %v3367
    %4539 = vmatprep.subr.bf16.mxu0 %v3360
    %4540 = vmatpush1.bf16.msra.mxu0 %v3359
    %4541 = vmatprep.subr.bf16.mxu0 %v3352
    %4542 = vmatpush1.bf16.msra.mxu0 %v3351
    %4543 = vmatprep.subr.bf16.mxu0 %v3344
    %4544 = vmatpush1.bf16.msra.mxu0 %v3343
    %4545 = vmatprep.subr.bf16.mxu0 %v3464
    %4546 = vmatpush2.bf16.msra.mxu0 %v3463
    %4547 = vmatprep.subr.bf16.mxu0 %v3456
    %4548 = vmatpush2.bf16.msra.mxu0 %v3455
    %4549 = vmatprep.subr.bf16.mxu0 %v3448
    %4550 = vmatpush2.bf16.msra.mxu0 %v3447
    %4551 = vmatprep.subr.bf16.mxu0 %v3440
    %4552 = vmatpush2.bf16.msra.mxu0 %v3439
    %4553 = vmatprep.subr.bf16.mxu0 %v3432
    %4554 = vmatpush2.bf16.msra.mxu0 %v3431
    %4555 = vmatprep.subr.bf16.mxu0 %v3424
    %4556 = vmatpush2.bf16.msra.mxu0 %v3423
    %4557 = vmatprep.subr.bf16.mxu0 %v3416
    %4558 = vmatpush2.bf16.msra.mxu0 %v3415
    %4559 = vmatprep.subr.bf16.mxu0 %v3408
    %4560 = vmatpush2.bf16.msra.mxu0 %v3407
    %4561 = vmatprep.mubr.bf16.mxu0 %v1244
    %4562 = vmatmul.mubr.bf16.gmra.mxu0 %v1243
    %v4563 = vpop.f32.mrf.mxu0
    %v4564 = vadd.f32 %v1776, %v4563
    %v4565 = vpop.f32.mrf.mxu0
    %v4566 = vadd.f32 %v1780, %v4565
    %v4567 = vpop.f32.mrf.mxu0
    %v4568 = vpop.f32.mrf.mxu0
    %4569 = vdwg.mxu0
    %4570 = vmatprep.subr.bf16.mxu0 %v3528
    %4571 = vmatpush1.bf16.msra.mxu0 %v3527
    %4572 = vmatprep.subr.bf16.mxu0 %v3520
    %4573 = vmatpush1.bf16.msra.mxu0 %v3519
    %4574 = vmatprep.subr.bf16.mxu0 %v3512
    %4575 = vmatpush1.bf16.msra.mxu0 %v3511
    %4576 = vmatprep.subr.bf16.mxu0 %v3504
    %4577 = vmatpush1.bf16.msra.mxu0 %v3503
    %4578 = vmatprep.subr.bf16.mxu0 %v3496
    %4579 = vmatpush1.bf16.msra.mxu0 %v3495
    %4580 = vmatprep.subr.bf16.mxu0 %v3488
    %4581 = vmatpush1.bf16.msra.mxu0 %v3487
    %4582 = vmatprep.subr.bf16.mxu0 %v3480
    %4583 = vmatpush1.bf16.msra.mxu0 %v3479
    %4584 = vmatprep.subr.bf16.mxu0 %v3472
    %4585 = vmatpush1.bf16.msra.mxu0 %v3471
    %4586 = vmatprep.subr.bf16.mxu0 %v3592
    %4587 = vmatpush2.bf16.msra.mxu0 %v3591
    %4588 = vmatprep.subr.bf16.mxu0 %v3584
    %4589 = vmatpush2.bf16.msra.mxu0 %v3583
    %4590 = vmatprep.subr.bf16.mxu0 %v3576
    %4591 = vmatpush2.bf16.msra.mxu0 %v3575
    %4592 = vmatprep.subr.bf16.mxu0 %v3568
    %4593 = vmatpush2.bf16.msra.mxu0 %v3567
    %4594 = vmatprep.subr.bf16.mxu0 %v3560
    %4595 = vmatpush2.bf16.msra.mxu0 %v3559
    %4596 = vmatprep.subr.bf16.mxu0 %v3552
    %4597 = vmatpush2.bf16.msra.mxu0 %v3551
    %4598 = vmatprep.subr.bf16.mxu0 %v3544
    %4599 = vmatpush2.bf16.msra.mxu0 %v3543
    %4600 = vmatprep.subr.bf16.mxu0 %v3536
    %4601 = vmatpush2.bf16.msra.mxu0 %v3535
    %4602 = vmatprep.mubr.bf16.mxu0 %v1246
    %4603 = vmatmul.mubr.bf16.gmra.mxu0 %v1245
    %v4604 = vpop.f32.mrf.mxu0
    %v4605 = vadd.f32 %v4564, %v4604
    %v4606 = vpop.f32.mrf.mxu0
    %v4607 = vadd.f32 %v4566, %v4606
    %v4608 = vpop.f32.mrf.mxu0
    %v4609 = vpop.f32.mrf.mxu0
    %4610 = vdwg.mxu0
    %4611 = vmatprep.subr.bf16.mxu0 %v3656
    %4612 = vmatpush1.bf16.msra.mxu0 %v3655
    %4613 = vmatprep.subr.bf16.mxu0 %v3648
    %4614 = vmatpush1.bf16.msra.mxu0 %v3647
    %4615 = vmatprep.subr.bf16.mxu0 %v3640
    %4616 = vmatpush1.bf16.msra.mxu0 %v3639
    %4617 = vmatprep.subr.bf16.mxu0 %v3632
    %4618 = vmatpush1.bf16.msra.mxu0 %v3631
    %4619 = vmatprep.subr.bf16.mxu0 %v3624
    %4620 = vmatpush1.bf16.msra.mxu0 %v3623
    %4621 = vmatprep.subr.bf16.mxu0 %v3616
    %4622 = vmatpush1.bf16.msra.mxu0 %v3615
    %4623 = vmatprep.subr.bf16.mxu0 %v3608
    %4624 = vmatpush1.bf16.msra.mxu0 %v3607
    %4625 = vmatprep.subr.bf16.mxu0 %v3600
    %4626 = vmatpush1.bf16.msra.mxu0 %v3599
    %4627 = vmatprep.subr.bf16.mxu0 %v3720
    %4628 = vmatpush2.bf16.msra.mxu0 %v3719
    %4629 = vmatprep.subr.bf16.mxu0 %v3712
    %4630 = vmatpush2.bf16.msra.mxu0 %v3711
    %4631 = vmatprep.subr.bf16.mxu0 %v3704
    %4632 = vmatpush2.bf16.msra.mxu0 %v3703
    %4633 = vmatprep.subr.bf16.mxu0 %v3696
    %4634 = vmatpush2.bf16.msra.mxu0 %v3695
    %4635 = vmatprep.subr.bf16.mxu0 %v3688
    %4636 = vmatpush2.bf16.msra.mxu0 %v3687
    %4637 = vmatprep.subr.bf16.mxu0 %v3680
    %4638 = vmatpush2.bf16.msra.mxu0 %v3679
    %4639 = vmatprep.subr.bf16.mxu0 %v3672
    %4640 = vmatpush2.bf16.msra.mxu0 %v3671
    %4641 = vmatprep.subr.bf16.mxu0 %v3664
    %4642 = vmatpush2.bf16.msra.mxu0 %v3663
    %4643 = vmatprep.mubr.bf16.mxu0 %v1248
    %4644 = vmatmul.mubr.bf16.gmra.mxu0 %v1247
    %v4645 = vpop.f32.mrf.mxu0
    %v4646 = vadd.f32 %v4605, %v4645
    %v4647 = vpop.f32.mrf.mxu0
    %v4648 = vadd.f32 %v4607, %v4647
    %v4649 = vpop.f32.mrf.mxu0
    %v4650 = vpop.f32.mrf.mxu0
    %4651 = vdwg.mxu0
    %4652 = vmatprep.subr.bf16.mxu0 %v3784
    %4653 = vmatpush1.bf16.msra.mxu0 %v3783
    %4654 = vmatprep.subr.bf16.mxu0 %v3776
    %4655 = vmatpush1.bf16.msra.mxu0 %v3775
    %4656 = vmatprep.subr.bf16.mxu0 %v3768
    %4657 = vmatpush1.bf16.msra.mxu0 %v3767
    %4658 = vmatprep.subr.bf16.mxu0 %v3760
    %4659 = vmatpush1.bf16.msra.mxu0 %v3759
    %4660 = vmatprep.subr.bf16.mxu0 %v3752
    %4661 = vmatpush1.bf16.msra.mxu0 %v3751
    %4662 = vmatprep.subr.bf16.mxu0 %v3744
    %4663 = vmatpush1.bf16.msra.mxu0 %v3743
    %4664 = vmatprep.subr.bf16.mxu0 %v3736
    %4665 = vmatpush1.bf16.msra.mxu0 %v3735
    %4666 = vmatprep.subr.bf16.mxu0 %v3728
    %4667 = vmatpush1.bf16.msra.mxu0 %v3727
    %4668 = vmatprep.subr.bf16.mxu0 %v3848
    %4669 = vmatpush2.bf16.msra.mxu0 %v3847
    %4670 = vmatprep.subr.bf16.mxu0 %v3840
    %4671 = vmatpush2.bf16.msra.mxu0 %v3839
    %4672 = vmatprep.subr.bf16.mxu0 %v3832
    %4673 = vmatpush2.bf16.msra.mxu0 %v3831
    %4674 = vmatprep.subr.bf16.mxu0 %v3824
    %4675 = vmatpush2.bf16.msra.mxu0 %v3823
    %4676 = vmatprep.subr.bf16.mxu0 %v3816
    %4677 = vmatpush2.bf16.msra.mxu0 %v3815
    %4678 = vmatprep.subr.bf16.mxu0 %v3808
    %4679 = vmatpush2.bf16.msra.mxu0 %v3807
    %4680 = vmatprep.subr.bf16.mxu0 %v3800
    %4681 = vmatpush2.bf16.msra.mxu0 %v3799
    %4682 = vmatprep.subr.bf16.mxu0 %v3792
    %4683 = vmatpush2.bf16.msra.mxu0 %v3791
    %4684 = vmatprep.mubr.bf16.mxu0 %v1250
    %4685 = vmatmul.mubr.bf16.gmra.mxu0 %v1249
    %v4686 = vpop.f32.mrf.mxu0
    %v4687 = vadd.f32 %v4646, %v4686
    %v4688 = vpop.f32.mrf.mxu0
    %v4689 = vadd.f32 %v4648, %v4688
    %v4690 = vpop.f32.mrf.mxu0
    %v4691 = vpop.f32.mrf.mxu0
    %4692 = vdwg.mxu0
    %4693 = vmatprep.subr.bf16.mxu0 %v3402
    %4694 = vmatpush1.bf16.msra.mxu0 %v3401
    %4695 = vmatprep.subr.bf16.mxu0 %v3394
    %4696 = vmatpush1.bf16.msra.mxu0 %v3393
    %4697 = vmatprep.subr.bf16.mxu0 %v3386
    %4698 = vmatpush1.bf16.msra.mxu0 %v3385
    %4699 = vmatprep.subr.bf16.mxu0 %v3378
    %4700 = vmatpush1.bf16.msra.mxu0 %v3377
    %4701 = vmatprep.subr.bf16.mxu0 %v3370
    %4702 = vmatpush1.bf16.msra.mxu0 %v3369
    %4703 = vmatprep.subr.bf16.mxu0 %v3362
    %4704 = vmatpush1.bf16.msra.mxu0 %v3361
    %4705 = vmatprep.subr.bf16.mxu0 %v3354
    %4706 = vmatpush1.bf16.msra.mxu0 %v3353
    %4707 = vmatprep.subr.bf16.mxu0 %v3346
    %4708 = vmatpush1.bf16.msra.mxu0 %v3345
    %4709 = vmatprep.subr.bf16.mxu0 %v3466
    %4710 = vmatpush2.bf16.msra.mxu0 %v3465
    %4711 = vmatprep.subr.bf16.mxu0 %v3458
    %4712 = vmatpush2.bf16.msra.mxu0 %v3457
    %4713 = vmatprep.subr.bf16.mxu0 %v3450
    %4714 = vmatpush2.bf16.msra.mxu0 %v3449
    %4715 = vmatprep.subr.bf16.mxu0 %v3442
    %4716 = vmatpush2.bf16.msra.mxu0 %v3441
    %4717 = vmatprep.subr.bf16.mxu0 %v3434
    %4718 = vmatpush2.bf16.msra.mxu0 %v3433
    %4719 = vmatprep.subr.bf16.mxu0 %v3426
    %4720 = vmatpush2.bf16.msra.mxu0 %v3425
    %4721 = vmatprep.subr.bf16.mxu0 %v3418
    %4722 = vmatpush2.bf16.msra.mxu0 %v3417
    %4723 = vmatprep.subr.bf16.mxu0 %v3410
    %4724 = vmatpush2.bf16.msra.mxu0 %v3409
    %4725 = vmatprep.mubr.bf16.mxu0 %v1244
    %4726 = vmatmul.mubr.bf16.gmra.mxu0 %v1243
    %v4727 = vpop.f32.mrf.mxu0
    %v4728 = vadd.f32 %v1784, %v4727
    %v4729 = vpop.f32.mrf.mxu0
    %v4730 = vadd.f32 %v1788, %v4729
    %v4731 = vpop.f32.mrf.mxu0
    %v4732 = vpop.f32.mrf.mxu0
    %4733 = vdwg.mxu0
    %4734 = vmatprep.subr.bf16.mxu0 %v3530
    %4735 = vmatpush1.bf16.msra.mxu0 %v3529
    %4736 = vmatprep.subr.bf16.mxu0 %v3522
    %4737 = vmatpush1.bf16.msra.mxu0 %v3521
    %4738 = vmatprep.subr.bf16.mxu0 %v3514
    %4739 = vmatpush1.bf16.msra.mxu0 %v3513
    %4740 = vmatprep.subr.bf16.mxu0 %v3506
    %4741 = vmatpush1.bf16.msra.mxu0 %v3505
    %4742 = vmatprep.subr.bf16.mxu0 %v3498
    %4743 = vmatpush1.bf16.msra.mxu0 %v3497
    %4744 = vmatprep.subr.bf16.mxu0 %v3490
    %4745 = vmatpush1.bf16.msra.mxu0 %v3489
    %4746 = vmatprep.subr.bf16.mxu0 %v3482
    %4747 = vmatpush1.bf16.msra.mxu0 %v3481
    %4748 = vmatprep.subr.bf16.mxu0 %v3474
    %4749 = vmatpush1.bf16.msra.mxu0 %v3473
    %4750 = vmatprep.subr.bf16.mxu0 %v3594
    %4751 = vmatpush2.bf16.msra.mxu0 %v3593
    %4752 = vmatprep.subr.bf16.mxu0 %v3586
    %4753 = vmatpush2.bf16.msra.mxu0 %v3585
    %4754 = vmatprep.subr.bf16.mxu0 %v3578
    %4755 = vmatpush2.bf16.msra.mxu0 %v3577
    %4756 = vmatprep.subr.bf16.mxu0 %v3570
    %4757 = vmatpush2.bf16.msra.mxu0 %v3569
    %4758 = vmatprep.subr.bf16.mxu0 %v3562
    %4759 = vmatpush2.bf16.msra.mxu0 %v3561
    %4760 = vmatprep.subr.bf16.mxu0 %v3554
    %4761 = vmatpush2.bf16.msra.mxu0 %v3553
    %4762 = vmatprep.subr.bf16.mxu0 %v3546
    %4763 = vmatpush2.bf16.msra.mxu0 %v3545
    %4764 = vmatprep.subr.bf16.mxu0 %v3538
    %4765 = vmatpush2.bf16.msra.mxu0 %v3537
    %4766 = vmatprep.mubr.bf16.mxu0 %v1246
    %4767 = vmatmul.mubr.bf16.gmra.mxu0 %v1245
    %v4768 = vpop.f32.mrf.mxu0
    %v4769 = vadd.f32 %v4728, %v4768
    %v4770 = vpop.f32.mrf.mxu0
    %v4771 = vadd.f32 %v4730, %v4770
    %v4772 = vpop.f32.mrf.mxu0
    %v4773 = vpop.f32.mrf.mxu0
    %4774 = vdwg.mxu0
    %4775 = vmatprep.subr.bf16.mxu0 %v3658
    %4776 = vmatpush1.bf16.msra.mxu0 %v3657
    %4777 = vmatprep.subr.bf16.mxu0 %v3650
    %4778 = vmatpush1.bf16.msra.mxu0 %v3649
    %4779 = vmatprep.subr.bf16.mxu0 %v3642
    %4780 = vmatpush1.bf16.msra.mxu0 %v3641
    %4781 = vmatprep.subr.bf16.mxu0 %v3634
    %4782 = vmatpush1.bf16.msra.mxu0 %v3633
    %4783 = vmatprep.subr.bf16.mxu0 %v3626
    %4784 = vmatpush1.bf16.msra.mxu0 %v3625
    %4785 = vmatprep.subr.bf16.mxu0 %v3618
    %4786 = vmatpush1.bf16.msra.mxu0 %v3617
    %4787 = vmatprep.subr.bf16.mxu0 %v3610
    %4788 = vmatpush1.bf16.msra.mxu0 %v3609
    %4789 = vmatprep.subr.bf16.mxu0 %v3602
    %4790 = vmatpush1.bf16.msra.mxu0 %v3601
    %4791 = vmatprep.subr.bf16.mxu0 %v3722
    %4792 = vmatpush2.bf16.msra.mxu0 %v3721
    %4793 = vmatprep.subr.bf16.mxu0 %v3714
    %4794 = vmatpush2.bf16.msra.mxu0 %v3713
    %4795 = vmatprep.subr.bf16.mxu0 %v3706
    %4796 = vmatpush2.bf16.msra.mxu0 %v3705
    %4797 = vmatprep.subr.bf16.mxu0 %v3698
    %4798 = vmatpush2.bf16.msra.mxu0 %v3697
    %4799 = vmatprep.subr.bf16.mxu0 %v3690
    %4800 = vmatpush2.bf16.msra.mxu0 %v3689
    %4801 = vmatprep.subr.bf16.mxu0 %v3682
    %4802 = vmatpush2.bf16.msra.mxu0 %v3681
    %4803 = vmatprep.subr.bf16.mxu0 %v3674
    %4804 = vmatpush2.bf16.msra.mxu0 %v3673
    %4805 = vmatprep.subr.bf16.mxu0 %v3666
    %4806 = vmatpush2.bf16.msra.mxu0 %v3665
    %4807 = vmatprep.mubr.bf16.mxu0 %v1248
    %4808 = vmatmul.mubr.bf16.gmra.mxu0 %v1247
    %v4809 = vpop.f32.mrf.mxu0
    %v4810 = vadd.f32 %v4769, %v4809
    %v4811 = vpop.f32.mrf.mxu0
    %v4812 = vadd.f32 %v4771, %v4811
    %v4813 = vpop.f32.mrf.mxu0
    %v4814 = vpop.f32.mrf.mxu0
    %4815 = vdwg.mxu0
    %4816 = vmatprep.subr.bf16.mxu0 %v3786
    %4817 = vmatpush1.bf16.msra.mxu0 %v3785
    %4818 = vmatprep.subr.bf16.mxu0 %v3778
    %4819 = vmatpush1.bf16.msra.mxu0 %v3777
    %4820 = vmatprep.subr.bf16.mxu0 %v3770
    %4821 = vmatpush1.bf16.msra.mxu0 %v3769
    %4822 = vmatprep.subr.bf16.mxu0 %v3762
    %4823 = vmatpush1.bf16.msra.mxu0 %v3761
    %4824 = vmatprep.subr.bf16.mxu0 %v3754
    %4825 = vmatpush1.bf16.msra.mxu0 %v3753
    %4826 = vmatprep.subr.bf16.mxu0 %v3746
    %4827 = vmatpush1.bf16.msra.mxu0 %v3745
    %4828 = vmatprep.subr.bf16.mxu0 %v3738
    %4829 = vmatpush1.bf16.msra.mxu0 %v3737
    %4830 = vmatprep.subr.bf16.mxu0 %v3730
    %4831 = vmatpush1.bf16.msra.mxu0 %v3729
    %4832 = vmatprep.subr.bf16.mxu0 %v3850
    %4833 = vmatpush2.bf16.msra.mxu0 %v3849
    %4834 = vmatprep.subr.bf16.mxu0 %v3842
    %4835 = vmatpush2.bf16.msra.mxu0 %v3841
    %4836 = vmatprep.subr.bf16.mxu0 %v3834
    %4837 = vmatpush2.bf16.msra.mxu0 %v3833
    %4838 = vmatprep.subr.bf16.mxu0 %v3826
    %4839 = vmatpush2.bf16.msra.mxu0 %v3825
    %4840 = vmatprep.subr.bf16.mxu0 %v3818
    %4841 = vmatpush2.bf16.msra.mxu0 %v3817
    %4842 = vmatprep.subr.bf16.mxu0 %v3810
    %4843 = vmatpush2.bf16.msra.mxu0 %v3809
    %4844 = vmatprep.subr.bf16.mxu0 %v3802
    %4845 = vmatpush2.bf16.msra.mxu0 %v3801
    %4846 = vmatprep.subr.bf16.mxu0 %v3794
    %4847 = vmatpush2.bf16.msra.mxu0 %v3793
    %4848 = vmatprep.mubr.bf16.mxu0 %v1250
    %4849 = vmatmul.mubr.bf16.gmra.mxu0 %v1249
    %v4850 = vpop.f32.mrf.mxu0
    %v4851 = vadd.f32 %v4810, %v4850
    %v4852 = vpop.f32.mrf.mxu0
    %v4853 = vadd.f32 %v4812, %v4852
    %v4854 = vpop.f32.mrf.mxu0
    %v4855 = vpop.f32.mrf.mxu0
    %4856 = vdwg.mxu0
    %4857 = vmatprep.subr.bf16.mxu0 %v3404
    %4858 = vmatpush1.bf16.msra.mxu0 %v3403
    %4859 = vmatprep.subr.bf16.mxu0 %v3396
    %4860 = vmatpush1.bf16.msra.mxu0 %v3395
    %4861 = vmatprep.subr.bf16.mxu0 %v3388
    %4862 = vmatpush1.bf16.msra.mxu0 %v3387
    %4863 = vmatprep.subr.bf16.mxu0 %v3380
    %4864 = vmatpush1.bf16.msra.mxu0 %v3379
    %4865 = vmatprep.subr.bf16.mxu0 %v3372
    %4866 = vmatpush1.bf16.msra.mxu0 %v3371
    %4867 = vmatprep.subr.bf16.mxu0 %v3364
    %4868 = vmatpush1.bf16.msra.mxu0 %v3363
    %4869 = vmatprep.subr.bf16.mxu0 %v3356
    %4870 = vmatpush1.bf16.msra.mxu0 %v3355
    %4871 = vmatprep.subr.bf16.mxu0 %v3348
    %4872 = vmatpush1.bf16.msra.mxu0 %v3347
    %4873 = vmatprep.subr.bf16.mxu0 %v3468
    %4874 = vmatpush2.bf16.msra.mxu0 %v3467
    %4875 = vmatprep.subr.bf16.mxu0 %v3460
    %4876 = vmatpush2.bf16.msra.mxu0 %v3459
    %4877 = vmatprep.subr.bf16.mxu0 %v3452
    %4878 = vmatpush2.bf16.msra.mxu0 %v3451
    %4879 = vmatprep.subr.bf16.mxu0 %v3444
    %4880 = vmatpush2.bf16.msra.mxu0 %v3443
    %4881 = vmatprep.subr.bf16.mxu0 %v3436
    %4882 = vmatpush2.bf16.msra.mxu0 %v3435
    %4883 = vmatprep.subr.bf16.mxu0 %v3428
    %4884 = vmatpush2.bf16.msra.mxu0 %v3427
    %4885 = vmatprep.subr.bf16.mxu0 %v3420
    %4886 = vmatpush2.bf16.msra.mxu0 %v3419
    %4887 = vmatprep.subr.bf16.mxu0 %v3412
    %4888 = vmatpush2.bf16.msra.mxu0 %v3411
    %4889 = vmatprep.mubr.bf16.mxu0 %v1244
    %4890 = vmatmul.mubr.bf16.gmra.mxu0 %v1243
    %v4891 = vpop.f32.mrf.mxu0
    %v4892 = vadd.f32 %v1792, %v4891
    %v4893 = vpop.f32.mrf.mxu0
    %v4894 = vadd.f32 %v1796, %v4893
    %v4895 = vpop.f32.mrf.mxu0
    %v4896 = vpop.f32.mrf.mxu0
    %4897 = vdwg.mxu0
    %4898 = vmatprep.subr.bf16.mxu0 %v3532
    %4899 = vmatpush1.bf16.msra.mxu0 %v3531
    %4900 = vmatprep.subr.bf16.mxu0 %v3524
    %4901 = vmatpush1.bf16.msra.mxu0 %v3523
    %4902 = vmatprep.subr.bf16.mxu0 %v3516
    %4903 = vmatpush1.bf16.msra.mxu0 %v3515
    %4904 = vmatprep.subr.bf16.mxu0 %v3508
    %4905 = vmatpush1.bf16.msra.mxu0 %v3507
    %4906 = vmatprep.subr.bf16.mxu0 %v3500
    %4907 = vmatpush1.bf16.msra.mxu0 %v3499
    %4908 = vmatprep.subr.bf16.mxu0 %v3492
    %4909 = vmatpush1.bf16.msra.mxu0 %v3491
    %4910 = vmatprep.subr.bf16.mxu0 %v3484
    %4911 = vmatpush1.bf16.msra.mxu0 %v3483
    %4912 = vmatprep.subr.bf16.mxu0 %v3476
    %4913 = vmatpush1.bf16.msra.mxu0 %v3475
    %4914 = vmatprep.subr.bf16.mxu0 %v3596
    %4915 = vmatpush2.bf16.msra.mxu0 %v3595
    %4916 = vmatprep.subr.bf16.mxu0 %v3588
    %4917 = vmatpush2.bf16.msra.mxu0 %v3587
    %4918 = vmatprep.subr.bf16.mxu0 %v3580
    %4919 = vmatpush2.bf16.msra.mxu0 %v3579
    %4920 = vmatprep.subr.bf16.mxu0 %v3572
    %4921 = vmatpush2.bf16.msra.mxu0 %v3571
    %4922 = vmatprep.subr.bf16.mxu0 %v3564
    %4923 = vmatpush2.bf16.msra.mxu0 %v3563
    %4924 = vmatprep.subr.bf16.mxu0 %v3556
    %4925 = vmatpush2.bf16.msra.mxu0 %v3555
    %4926 = vmatprep.subr.bf16.mxu0 %v3548
    %4927 = vmatpush2.bf16.msra.mxu0 %v3547
    %4928 = vmatprep.subr.bf16.mxu0 %v3540
    %4929 = vmatpush2.bf16.msra.mxu0 %v3539
    %4930 = vmatprep.mubr.bf16.mxu0 %v1246
    %4931 = vmatmul.mubr.bf16.gmra.mxu0 %v1245
    %v4932 = vpop.f32.mrf.mxu0
    %v4933 = vadd.f32 %v4892, %v4932
    %v4934 = vpop.f32.mrf.mxu0
    %v4935 = vadd.f32 %v4894, %v4934
    %v4936 = vpop.f32.mrf.mxu0
    %v4937 = vpop.f32.mrf.mxu0
    %4938 = vdwg.mxu0
    %4939 = vmatprep.subr.bf16.mxu0 %v3660
    %4940 = vmatpush1.bf16.msra.mxu0 %v3659
    %4941 = vmatprep.subr.bf16.mxu0 %v3652
    %4942 = vmatpush1.bf16.msra.mxu0 %v3651
    %4943 = vmatprep.subr.bf16.mxu0 %v3644
    %4944 = vmatpush1.bf16.msra.mxu0 %v3643
    %4945 = vmatprep.subr.bf16.mxu0 %v3636
    %4946 = vmatpush1.bf16.msra.mxu0 %v3635
    %4947 = vmatprep.subr.bf16.mxu0 %v3628
    %4948 = vmatpush1.bf16.msra.mxu0 %v3627
    %4949 = vmatprep.subr.bf16.mxu0 %v3620
    %4950 = vmatpush1.bf16.msra.mxu0 %v3619
    %4951 = vmatprep.subr.bf16.mxu0 %v3612
    %4952 = vmatpush1.bf16.msra.mxu0 %v3611
    %4953 = vmatprep.subr.bf16.mxu0 %v3604
    %4954 = vmatpush1.bf16.msra.mxu0 %v3603
    %4955 = vmatprep.subr.bf16.mxu0 %v3724
    %4956 = vmatpush2.bf16.msra.mxu0 %v3723
    %4957 = vmatprep.subr.bf16.mxu0 %v3716
    %4958 = vmatpush2.bf16.msra.mxu0 %v3715
    %4959 = vmatprep.subr.bf16.mxu0 %v3708
    %4960 = vmatpush2.bf16.msra.mxu0 %v3707
    %4961 = vmatprep.subr.bf16.mxu0 %v3700
    %4962 = vmatpush2.bf16.msra.mxu0 %v3699
    %4963 = vmatprep.subr.bf16.mxu0 %v3692
    %4964 = vmatpush2.bf16.msra.mxu0 %v3691
    %4965 = vmatprep.subr.bf16.mxu0 %v3684
    %4966 = vmatpush2.bf16.msra.mxu0 %v3683
    %4967 = vmatprep.subr.bf16.mxu0 %v3676
    %4968 = vmatpush2.bf16.msra.mxu0 %v3675
    %4969 = vmatprep.subr.bf16.mxu0 %v3668
    %4970 = vmatpush2.bf16.msra.mxu0 %v3667
    %4971 = vmatprep.mubr.bf16.mxu0 %v1248
    %4972 = vmatmul.mubr.bf16.gmra.mxu0 %v1247
    %v4973 = vpop.f32.mrf.mxu0
    %v4974 = vadd.f32 %v4933, %v4973
    %v4975 = vpop.f32.mrf.mxu0
    %v4976 = vadd.f32 %v4935, %v4975
    %v4977 = vpop.f32.mrf.mxu0
    %v4978 = vpop.f32.mrf.mxu0
    %4979 = vdwg.mxu0
    %4980 = vmatprep.subr.bf16.mxu0 %v3788
    %4981 = vmatpush1.bf16.msra.mxu0 %v3787
    %4982 = vmatprep.subr.bf16.mxu0 %v3780
    %4983 = vmatpush1.bf16.msra.mxu0 %v3779
    %4984 = vmatprep.subr.bf16.mxu0 %v3772
    %4985 = vmatpush1.bf16.msra.mxu0 %v3771
    %4986 = vmatprep.subr.bf16.mxu0 %v3764
    %4987 = vmatpush1.bf16.msra.mxu0 %v3763
    %4988 = vmatprep.subr.bf16.mxu0 %v3756
    %4989 = vmatpush1.bf16.msra.mxu0 %v3755
    %4990 = vmatprep.subr.bf16.mxu0 %v3748
    %4991 = vmatpush1.bf16.msra.mxu0 %v3747
    %4992 = vmatprep.subr.bf16.mxu0 %v3740
    %4993 = vmatpush1.bf16.msra.mxu0 %v3739
    %4994 = vmatprep.subr.bf16.mxu0 %v3732
    %4995 = vmatpush1.bf16.msra.mxu0 %v3731
    %4996 = vmatprep.subr.bf16.mxu0 %v3852
    %4997 = vmatpush2.bf16.msra.mxu0 %v3851
    %4998 = vmatprep.subr.bf16.mxu0 %v3844
    %4999 = vmatpush2.bf16.msra.mxu0 %v3843
    %5000 = vmatprep.subr.bf16.mxu0 %v3836
    %5001 = vmatpush2.bf16.msra.mxu0 %v3835
    %5002 = vmatprep.subr.bf16.mxu0 %v3828
    %5003 = vmatpush2.bf16.msra.mxu0 %v3827
    %5004 = vmatprep.subr.bf16.mxu0 %v3820
    %5005 = vmatpush2.bf16.msra.mxu0 %v3819
    %5006 = vmatprep.subr.bf16.mxu0 %v3812
    %5007 = vmatpush2.bf16.msra.mxu0 %v3811
    %5008 = vmatprep.subr.bf16.mxu0 %v3804
    %5009 = vmatpush2.bf16.msra.mxu0 %v3803
    %5010 = vmatprep.subr.bf16.mxu0 %v3796
    %5011 = vmatpush2.bf16.msra.mxu0 %v3795
    %5012 = vmatprep.mubr.bf16.mxu0 %v1250
    %5013 = vmatmul.mubr.bf16.gmra.mxu0 %v1249
    %v5014 = vpop.f32.mrf.mxu0
    %v5015 = vadd.f32 %v4974, %v5014
    %v5016 = vpop.f32.mrf.mxu0
    %v5017 = vadd.f32 %v4976, %v5016
    %v5018 = vpop.f32.mrf.mxu0
    %v5019 = vpop.f32.mrf.mxu0
    %5020 = vdwg.mxu0
    %v5021 = vmax.f32 %v4523, 0.0
    %v5022 = vmax.f32 %v4525, 0.0
    %v5023 = vmax.f32 %v4687, 0.0
    %v5024 = vmax.f32 %v4689, 0.0
    %v5025 = vmax.f32 %v4851, 0.0
    %v5026 = vmax.f32 %v4853, 0.0
    %v5027 = vmax.f32 %v5015, 0.0
    %v5028 = vmax.f32 %v5017, 0.0
    %v5029 = vpack.c.bf16 %v5021, %v5021
    %v5030 = vpack.c.bf16 %v5022, %v5022
    %v5031 = vpack.c.bf16 %v5023, %v5023
    %v5032 = vpack.c.bf16 %v5024, %v5024
    %v5033 = vpack.c.bf16 %v5025, %v5025
    %v5034 = vpack.c.bf16 %v5026, %v5026
    %v5035 = vpack.c.bf16 %v5027, %v5027
    %v5036 = vpack.c.bf16 %v5028, %v5028
    %v5037 = vld [vmem:[#allocation8] sm:$0xff]
    %v5038 = vld [vmem:[#allocation8 + $0x8] sm:$0xff]
    %v5039 = vld [vmem:[#allocation8 + $0x10] sm:$0xff]
    %v5040 = vld [vmem:[#allocation8 + $0x18] sm:$0xff]
    %v5041 = vld [vmem:[#allocation8 + $0x20] sm:$0xff]
    %v5042 = vld [vmem:[#allocation8 + $0x28] sm:$0xff]
    %v5043 = vld [vmem:[#allocation8 + $0x30] sm:$0xff]
    %v5044 = vld [vmem:[#allocation8 + $0x38] sm:$0xff]
    %v5045 = vld [vmem:[#allocation8 + $0x40] sm:$0xff]
    %v5046 = vld [vmem:[#allocation8 + $0x48] sm:$0xff]
    %v5047 = vld [vmem:[#allocation8 + $0x50] sm:$0xff]
    %v5048 = vld [vmem:[#allocation8 + $0x58] sm:$0xff]
    %v5049 = vld [vmem:[#allocation8 + $0x60] sm:$0xff]
    %v5050 = vld [vmem:[#allocation8 + $0x68] sm:$0xff]
    %v5051 = vld [vmem:[#allocation8 + $0x70] sm:$0xff]
    %v5052 = vld [vmem:[#allocation8 + $0x78] sm:$0xff]
    %v5053 = vld [vmem:[#allocation8 + $0x80] sm:$0xff]
    %v5054 = vld [vmem:[#allocation8 + $0x88] sm:$0xff]
    %v5055 = vld [vmem:[#allocation8 + $0x90] sm:$0xff]
    %v5056 = vld [vmem:[#allocation8 + $0x98] sm:$0xff]
    %v5057 = vld [vmem:[#allocation8 + $0xa0] sm:$0xff]
    %v5058 = vld [vmem:[#allocation8 + $0xa8] sm:$0xff]
    %v5059 = vld [vmem:[#allocation8 + $0xb0] sm:$0xff]
    %v5060 = vld [vmem:[#allocation8 + $0xb8] sm:$0xff]
    %v5061 = vld [vmem:[#allocation8 + $0xc0] sm:$0xff]
    %v5062 = vld [vmem:[#allocation8 + $0xc8] sm:$0xff]
    %v5063 = vld [vmem:[#allocation8 + $0xd0] sm:$0xff]
    %v5064 = vld [vmem:[#allocation8 + $0xd8] sm:$0xff]
    %v5065 = vld [vmem:[#allocation8 + $0xe0] sm:$0xff]
    %v5066 = vld [vmem:[#allocation8 + $0xe8] sm:$0xff]
    %v5067 = vld [vmem:[#allocation8 + $0xf0] sm:$0xff]
    %v5068 = vld [vmem:[#allocation8 + $0xf8] sm:$0xff]
    %v5069 = vld [vmem:[#allocation8 + $0x100] sm:$0xff]
    %v5070 = vld [vmem:[#allocation8 + $0x108] sm:$0xff]
    %v5071 = vld [vmem:[#allocation8 + $0x110] sm:$0xff]
    %v5072 = vld [vmem:[#allocation8 + $0x118] sm:$0xff]
    %v5073 = vld [vmem:[#allocation8 + $0x120] sm:$0xff]
    %v5074 = vld [vmem:[#allocation8 + $0x128] sm:$0xff]
    %v5075 = vld [vmem:[#allocation8 + $0x130] sm:$0xff]
    %v5076 = vld [vmem:[#allocation8 + $0x138] sm:$0xff]
    %v5077 = vld [vmem:[#allocation8 + $0x140] sm:$0xff]
    %v5078 = vld [vmem:[#allocation8 + $0x148] sm:$0xff]
    %v5079 = vld [vmem:[#allocation8 + $0x150] sm:$0xff]
    %v5080 = vld [vmem:[#allocation8 + $0x158] sm:$0xff]
    %v5081 = vld [vmem:[#allocation8 + $0x160] sm:$0xff]
    %v5082 = vld [vmem:[#allocation8 + $0x168] sm:$0xff]
    %v5083 = vld [vmem:[#allocation8 + $0x170] sm:$0xff]
    %v5084 = vld [vmem:[#allocation8 + $0x178] sm:$0xff]
    %v5085 = vld [vmem:[#allocation8 + $0x180] sm:$0xff]
    %v5086 = vld [vmem:[#allocation8 + $0x188] sm:$0xff]
    %v5087 = vld [vmem:[#allocation8 + $0x190] sm:$0xff]
    %v5088 = vld [vmem:[#allocation8 + $0x198] sm:$0xff]
    %v5089 = vld [vmem:[#allocation8 + $0x1a0] sm:$0xff]
    %v5090 = vld [vmem:[#allocation8 + $0x1a8] sm:$0xff]
    %v5091 = vld [vmem:[#allocation8 + $0x1b0] sm:$0xff]
    %v5092 = vld [vmem:[#allocation8 + $0x1b8] sm:$0xff]
    %v5093 = vld [vmem:[#allocation8 + $0x1c0] sm:$0xff]
    %v5094 = vld [vmem:[#allocation8 + $0x1c8] sm:$0xff]
    %v5095 = vld [vmem:[#allocation8 + $0x1d0] sm:$0xff]
    %v5096 = vld [vmem:[#allocation8 + $0x1d8] sm:$0xff]
    %v5097 = vld [vmem:[#allocation8 + $0x1e0] sm:$0xff]
    %v5098 = vld [vmem:[#allocation8 + $0x1e8] sm:$0xff]
    %v5099 = vld [vmem:[#allocation8 + $0x1f0] sm:$0xff]
    %v5100 = vld [vmem:[#allocation8 + $0x1f8] sm:$0xff]
    %v5101 = vld [vmem:[#allocation8 + $0x200] sm:$0xff]
    %v5102 = vld [vmem:[#allocation8 + $0x208] sm:$0xff]
    %v5103 = vld [vmem:[#allocation8 + $0x210] sm:$0xff]
    %v5104 = vld [vmem:[#allocation8 + $0x218] sm:$0xff]
    %v5105 = vld [vmem:[#allocation8 + $0x220] sm:$0xff]
    %v5106 = vld [vmem:[#allocation8 + $0x228] sm:$0xff]
    %v5107 = vld [vmem:[#allocation8 + $0x230] sm:$0xff]
    %v5108 = vld [vmem:[#allocation8 + $0x238] sm:$0xff]
    %v5109 = vld [vmem:[#allocation8 + $0x240] sm:$0xff]
    %v5110 = vld [vmem:[#allocation8 + $0x248] sm:$0xff]
    %v5111 = vld [vmem:[#allocation8 + $0x250] sm:$0xff]
    %v5112 = vld [vmem:[#allocation8 + $0x258] sm:$0xff]
    %v5113 = vld [vmem:[#allocation8 + $0x260] sm:$0xff]
    %v5114 = vld [vmem:[#allocation8 + $0x268] sm:$0xff]
    %v5115 = vld [vmem:[#allocation8 + $0x270] sm:$0xff]
    %v5116 = vld [vmem:[#allocation8 + $0x278] sm:$0xff]
    %v5117 = vld [vmem:[#allocation8 + $0x280] sm:$0xff]
    %v5118 = vld [vmem:[#allocation8 + $0x288] sm:$0xff]
    %v5119 = vld [vmem:[#allocation8 + $0x290] sm:$0xff]
    %v5120 = vld [vmem:[#allocation8 + $0x298] sm:$0xff]
    %v5121 = vld [vmem:[#allocation8 + $0x2a0] sm:$0xff]
    %v5122 = vld [vmem:[#allocation8 + $0x2a8] sm:$0xff]
    %v5123 = vld [vmem:[#allocation8 + $0x2b0] sm:$0xff]
    %v5124 = vld [vmem:[#allocation8 + $0x2b8] sm:$0xff]
    %v5125 = vld [vmem:[#allocation8 + $0x2c0] sm:$0xff]
    %v5126 = vld [vmem:[#allocation8 + $0x2c8] sm:$0xff]
    %v5127 = vld [vmem:[#allocation8 + $0x2d0] sm:$0xff]
    %v5128 = vld [vmem:[#allocation8 + $0x2d8] sm:$0xff]
    %v5129 = vld [vmem:[#allocation8 + $0x2e0] sm:$0xff]
    %v5130 = vld [vmem:[#allocation8 + $0x2e8] sm:$0xff]
    %v5131 = vld [vmem:[#allocation8 + $0x2f0] sm:$0xff]
    %v5132 = vld [vmem:[#allocation8 + $0x2f8] sm:$0xff]
    %v5133 = vld [vmem:[#allocation8 + $0x300] sm:$0xff]
    %v5134 = vld [vmem:[#allocation8 + $0x308] sm:$0xff]
    %v5135 = vld [vmem:[#allocation8 + $0x310] sm:$0xff]
    %v5136 = vld [vmem:[#allocation8 + $0x318] sm:$0xff]
    %v5137 = vld [vmem:[#allocation8 + $0x320] sm:$0xff]
    %v5138 = vld [vmem:[#allocation8 + $0x328] sm:$0xff]
    %v5139 = vld [vmem:[#allocation8 + $0x330] sm:$0xff]
    %v5140 = vld [vmem:[#allocation8 + $0x338] sm:$0xff]
    %v5141 = vld [vmem:[#allocation8 + $0x340] sm:$0xff]
    %v5142 = vld [vmem:[#allocation8 + $0x348] sm:$0xff]
    %v5143 = vld [vmem:[#allocation8 + $0x350] sm:$0xff]
    %v5144 = vld [vmem:[#allocation8 + $0x358] sm:$0xff]
    %v5145 = vld [vmem:[#allocation8 + $0x360] sm:$0xff]
    %v5146 = vld [vmem:[#allocation8 + $0x368] sm:$0xff]
    %v5147 = vld [vmem:[#allocation8 + $0x370] sm:$0xff]
    %v5148 = vld [vmem:[#allocation8 + $0x378] sm:$0xff]
    %v5149 = vld [vmem:[#allocation8 + $0x380] sm:$0xff]
    %v5150 = vld [vmem:[#allocation8 + $0x388] sm:$0xff]
    %v5151 = vld [vmem:[#allocation8 + $0x390] sm:$0xff]
    %v5152 = vld [vmem:[#allocation8 + $0x398] sm:$0xff]
    %v5153 = vld [vmem:[#allocation8 + $0x3a0] sm:$0xff]
    %v5154 = vld [vmem:[#allocation8 + $0x3a8] sm:$0xff]
    %v5155 = vld [vmem:[#allocation8 + $0x3b0] sm:$0xff]
    %v5156 = vld [vmem:[#allocation8 + $0x3b8] sm:$0xff]
    %v5157 = vld [vmem:[#allocation8 + $0x3c0] sm:$0xff]
    %v5158 = vld [vmem:[#allocation8 + $0x3c8] sm:$0xff]
    %v5159 = vld [vmem:[#allocation8 + $0x3d0] sm:$0xff]
    %v5160 = vld [vmem:[#allocation8 + $0x3d8] sm:$0xff]
    %v5161 = vld [vmem:[#allocation8 + $0x3e0] sm:$0xff]
    %v5162 = vld [vmem:[#allocation8 + $0x3e8] sm:$0xff]
    %v5163 = vld [vmem:[#allocation8 + $0x3f0] sm:$0xff]
    %v5164 = vld [vmem:[#allocation8 + $0x3f8] sm:$0xff]
    %v5165 = vld [vmem:[#allocation8 + $0x400] sm:$0xff]
    %v5166 = vld [vmem:[#allocation8 + $0x408] sm:$0xff]
    %v5167 = vld [vmem:[#allocation8 + $0x410] sm:$0xff]
    %v5168 = vld [vmem:[#allocation8 + $0x418] sm:$0xff]
    %v5169 = vld [vmem:[#allocation8 + $0x420] sm:$0xff]
    %v5170 = vld [vmem:[#allocation8 + $0x428] sm:$0xff]
    %v5171 = vld [vmem:[#allocation8 + $0x430] sm:$0xff]
    %v5172 = vld [vmem:[#allocation8 + $0x438] sm:$0xff]
    %v5173 = vld [vmem:[#allocation8 + $0x440] sm:$0xff]
    %v5174 = vld [vmem:[#allocation8 + $0x448] sm:$0xff]
    %v5175 = vld [vmem:[#allocation8 + $0x450] sm:$0xff]
    %v5176 = vld [vmem:[#allocation8 + $0x458] sm:$0xff]
    %v5177 = vld [vmem:[#allocation8 + $0x460] sm:$0xff]
    %v5178 = vld [vmem:[#allocation8 + $0x468] sm:$0xff]
    %v5179 = vld [vmem:[#allocation8 + $0x470] sm:$0xff]
    %v5180 = vld [vmem:[#allocation8 + $0x478] sm:$0xff]
    %v5181 = vld [vmem:[#allocation8 + $0x480] sm:$0xff]
    %v5182 = vld [vmem:[#allocation8 + $0x488] sm:$0xff]
    %v5183 = vld [vmem:[#allocation8 + $0x490] sm:$0xff]
    %v5184 = vld [vmem:[#allocation8 + $0x498] sm:$0xff]
    %v5185 = vld [vmem:[#allocation8 + $0x4a0] sm:$0xff]
    %v5186 = vld [vmem:[#allocation8 + $0x4a8] sm:$0xff]
    %v5187 = vld [vmem:[#allocation8 + $0x4b0] sm:$0xff]
    %v5188 = vld [vmem:[#allocation8 + $0x4b8] sm:$0xff]
    %v5189 = vld [vmem:[#allocation8 + $0x4c0] sm:$0xff]
    %v5190 = vld [vmem:[#allocation8 + $0x4c8] sm:$0xff]
    %v5191 = vld [vmem:[#allocation8 + $0x4d0] sm:$0xff]
    %v5192 = vld [vmem:[#allocation8 + $0x4d8] sm:$0xff]
    %v5193 = vld [vmem:[#allocation8 + $0x4e0] sm:$0xff]
    %v5194 = vld [vmem:[#allocation8 + $0x4e8] sm:$0xff]
    %v5195 = vld [vmem:[#allocation8 + $0x4f0] sm:$0xff]
    %v5196 = vld [vmem:[#allocation8 + $0x4f8] sm:$0xff]
    %v5197 = vld [vmem:[#allocation8 + $0x500] sm:$0xff]
    %v5198 = vld [vmem:[#allocation8 + $0x508] sm:$0xff]
    %v5199 = vld [vmem:[#allocation8 + $0x510] sm:$0xff]
    %v5200 = vld [vmem:[#allocation8 + $0x518] sm:$0xff]
    %v5201 = vld [vmem:[#allocation8 + $0x520] sm:$0xff]
    %v5202 = vld [vmem:[#allocation8 + $0x528] sm:$0xff]
    %v5203 = vld [vmem:[#allocation8 + $0x530] sm:$0xff]
    %v5204 = vld [vmem:[#allocation8 + $0x538] sm:$0xff]
    %v5205 = vld [vmem:[#allocation8 + $0x540] sm:$0xff]
    %v5206 = vld [vmem:[#allocation8 + $0x548] sm:$0xff]
    %v5207 = vld [vmem:[#allocation8 + $0x550] sm:$0xff]
    %v5208 = vld [vmem:[#allocation8 + $0x558] sm:$0xff]
    %v5209 = vld [vmem:[#allocation8 + $0x560] sm:$0xff]
    %v5210 = vld [vmem:[#allocation8 + $0x568] sm:$0xff]
    %v5211 = vld [vmem:[#allocation8 + $0x570] sm:$0xff]
    %v5212 = vld [vmem:[#allocation8 + $0x578] sm:$0xff]
    %v5213 = vld [vmem:[#allocation8 + $0x580] sm:$0xff]
    %v5214 = vld [vmem:[#allocation8 + $0x588] sm:$0xff]
    %v5215 = vld [vmem:[#allocation8 + $0x590] sm:$0xff]
    %v5216 = vld [vmem:[#allocation8 + $0x598] sm:$0xff]
    %v5217 = vld [vmem:[#allocation8 + $0x5a0] sm:$0xff]
    %v5218 = vld [vmem:[#allocation8 + $0x5a8] sm:$0xff]
    %v5219 = vld [vmem:[#allocation8 + $0x5b0] sm:$0xff]
    %v5220 = vld [vmem:[#allocation8 + $0x5b8] sm:$0xff]
    %v5221 = vld [vmem:[#allocation8 + $0x5c0] sm:$0xff]
    %v5222 = vld [vmem:[#allocation8 + $0x5c8] sm:$0xff]
    %v5223 = vld [vmem:[#allocation8 + $0x5d0] sm:$0xff]
    %v5224 = vld [vmem:[#allocation8 + $0x5d8] sm:$0xff]
    %v5225 = vld [vmem:[#allocation8 + $0x5e0] sm:$0xff]
    %v5226 = vld [vmem:[#allocation8 + $0x5e8] sm:$0xff]
    %v5227 = vld [vmem:[#allocation8 + $0x5f0] sm:$0xff]
    %v5228 = vld [vmem:[#allocation8 + $0x5f8] sm:$0xff]
    %v5229 = vld [vmem:[#allocation8 + $0x600] sm:$0xff]
    %v5230 = vld [vmem:[#allocation8 + $0x608] sm:$0xff]
    %v5231 = vld [vmem:[#allocation8 + $0x610] sm:$0xff]
    %v5232 = vld [vmem:[#allocation8 + $0x618] sm:$0xff]
    %v5233 = vld [vmem:[#allocation8 + $0x620] sm:$0xff]
    %v5234 = vld [vmem:[#allocation8 + $0x628] sm:$0xff]
    %v5235 = vld [vmem:[#allocation8 + $0x630] sm:$0xff]
    %v5236 = vld [vmem:[#allocation8 + $0x638] sm:$0xff]
    %v5237 = vld [vmem:[#allocation8 + $0x640] sm:$0xff]
    %v5238 = vld [vmem:[#allocation8 + $0x648] sm:$0xff]
    %v5239 = vld [vmem:[#allocation8 + $0x650] sm:$0xff]
    %v5240 = vld [vmem:[#allocation8 + $0x658] sm:$0xff]
    %v5241 = vld [vmem:[#allocation8 + $0x660] sm:$0xff]
    %v5242 = vld [vmem:[#allocation8 + $0x668] sm:$0xff]
    %v5243 = vld [vmem:[#allocation8 + $0x670] sm:$0xff]
    %v5244 = vld [vmem:[#allocation8 + $0x678] sm:$0xff]
    %v5245 = vld [vmem:[#allocation8 + $0x680] sm:$0xff]
    %v5246 = vld [vmem:[#allocation8 + $0x688] sm:$0xff]
    %v5247 = vld [vmem:[#allocation8 + $0x690] sm:$0xff]
    %v5248 = vld [vmem:[#allocation8 + $0x698] sm:$0xff]
    %v5249 = vld [vmem:[#allocation8 + $0x6a0] sm:$0xff]
    %v5250 = vld [vmem:[#allocation8 + $0x6a8] sm:$0xff]
    %v5251 = vld [vmem:[#allocation8 + $0x6b0] sm:$0xff]
    %v5252 = vld [vmem:[#allocation8 + $0x6b8] sm:$0xff]
    %v5253 = vld [vmem:[#allocation8 + $0x6c0] sm:$0xff]
    %v5254 = vld [vmem:[#allocation8 + $0x6c8] sm:$0xff]
    %v5255 = vld [vmem:[#allocation8 + $0x6d0] sm:$0xff]
    %v5256 = vld [vmem:[#allocation8 + $0x6d8] sm:$0xff]
    %v5257 = vld [vmem:[#allocation8 + $0x6e0] sm:$0xff]
    %v5258 = vld [vmem:[#allocation8 + $0x6e8] sm:$0xff]
    %v5259 = vld [vmem:[#allocation8 + $0x6f0] sm:$0xff]
    %v5260 = vld [vmem:[#allocation8 + $0x6f8] sm:$0xff]
    %v5261 = vld [vmem:[#allocation8 + $0x700] sm:$0xff]
    %v5262 = vld [vmem:[#allocation8 + $0x708] sm:$0xff]
    %v5263 = vld [vmem:[#allocation8 + $0x710] sm:$0xff]
    %v5264 = vld [vmem:[#allocation8 + $0x718] sm:$0xff]
    %v5265 = vld [vmem:[#allocation8 + $0x720] sm:$0xff]
    %v5266 = vld [vmem:[#allocation8 + $0x728] sm:$0xff]
    %v5267 = vld [vmem:[#allocation8 + $0x730] sm:$0xff]
    %v5268 = vld [vmem:[#allocation8 + $0x738] sm:$0xff]
    %v5269 = vld [vmem:[#allocation8 + $0x740] sm:$0xff]
    %v5270 = vld [vmem:[#allocation8 + $0x748] sm:$0xff]
    %v5271 = vld [vmem:[#allocation8 + $0x750] sm:$0xff]
    %v5272 = vld [vmem:[#allocation8 + $0x758] sm:$0xff]
    %v5273 = vld [vmem:[#allocation8 + $0x760] sm:$0xff]
    %v5274 = vld [vmem:[#allocation8 + $0x768] sm:$0xff]
    %v5275 = vld [vmem:[#allocation8 + $0x770] sm:$0xff]
    %v5276 = vld [vmem:[#allocation8 + $0x778] sm:$0xff]
    %v5277 = vld [vmem:[#allocation8 + $0x780] sm:$0xff]
    %v5278 = vld [vmem:[#allocation8 + $0x788] sm:$0xff]
    %v5279 = vld [vmem:[#allocation8 + $0x790] sm:$0xff]
    %v5280 = vld [vmem:[#allocation8 + $0x798] sm:$0xff]
    %v5281 = vld [vmem:[#allocation8 + $0x7a0] sm:$0xff]
    %v5282 = vld [vmem:[#allocation8 + $0x7a8] sm:$0xff]
    %v5283 = vld [vmem:[#allocation8 + $0x7b0] sm:$0xff]
    %v5284 = vld [vmem:[#allocation8 + $0x7b8] sm:$0xff]
    %v5285 = vld [vmem:[#allocation8 + $0x7c0] sm:$0xff]
    %v5286 = vld [vmem:[#allocation8 + $0x7c8] sm:$0xff]
    %v5287 = vld [vmem:[#allocation8 + $0x7d0] sm:$0xff]
    %v5288 = vld [vmem:[#allocation8 + $0x7d8] sm:$0xff]
    %v5289 = vld [vmem:[#allocation8 + $0x7e0] sm:$0xff]
    %v5290 = vld [vmem:[#allocation8 + $0x7e8] sm:$0xff]
    %v5291 = vld [vmem:[#allocation8 + $0x7f0] sm:$0xff]
    %v5292 = vld [vmem:[#allocation8 + $0x7f8] sm:$0xff]
    %v5293 = vld [vmem:[#allocation8 + $0x800] sm:$0xff]
    %v5294 = vld [vmem:[#allocation8 + $0x808] sm:$0xff]
    %v5295 = vld [vmem:[#allocation8 + $0x810] sm:$0xff]
    %v5296 = vld [vmem:[#allocation8 + $0x818] sm:$0xff]
    %v5297 = vld [vmem:[#allocation8 + $0x820] sm:$0xff]
    %v5298 = vld [vmem:[#allocation8 + $0x828] sm:$0xff]
    %v5299 = vld [vmem:[#allocation8 + $0x830] sm:$0xff]
    %v5300 = vld [vmem:[#allocation8 + $0x838] sm:$0xff]
    %v5301 = vld [vmem:[#allocation8 + $0x840] sm:$0xff]
    %v5302 = vld [vmem:[#allocation8 + $0x848] sm:$0xff]
    %v5303 = vld [vmem:[#allocation8 + $0x850] sm:$0xff]
    %v5304 = vld [vmem:[#allocation8 + $0x858] sm:$0xff]
    %v5305 = vld [vmem:[#allocation8 + $0x860] sm:$0xff]
    %v5306 = vld [vmem:[#allocation8 + $0x868] sm:$0xff]
    %v5307 = vld [vmem:[#allocation8 + $0x870] sm:$0xff]
    %v5308 = vld [vmem:[#allocation8 + $0x878] sm:$0xff]
    %v5309 = vld [vmem:[#allocation8 + $0x880] sm:$0xff]
    %v5310 = vld [vmem:[#allocation8 + $0x888] sm:$0xff]
    %v5311 = vld [vmem:[#allocation8 + $0x890] sm:$0xff]
    %v5312 = vld [vmem:[#allocation8 + $0x898] sm:$0xff]
    %v5313 = vld [vmem:[#allocation8 + $0x8a0] sm:$0xff]
    %v5314 = vld [vmem:[#allocation8 + $0x8a8] sm:$0xff]
    %v5315 = vld [vmem:[#allocation8 + $0x8b0] sm:$0xff]
    %v5316 = vld [vmem:[#allocation8 + $0x8b8] sm:$0xff]
    %v5317 = vld [vmem:[#allocation8 + $0x8c0] sm:$0xff]
    %v5318 = vld [vmem:[#allocation8 + $0x8c8] sm:$0xff]
    %v5319 = vld [vmem:[#allocation8 + $0x8d0] sm:$0xff]
    %v5320 = vld [vmem:[#allocation8 + $0x8d8] sm:$0xff]
    %v5321 = vld [vmem:[#allocation8 + $0x8e0] sm:$0xff]
    %v5322 = vld [vmem:[#allocation8 + $0x8e8] sm:$0xff]
    %v5323 = vld [vmem:[#allocation8 + $0x8f0] sm:$0xff]
    %v5324 = vld [vmem:[#allocation8 + $0x8f8] sm:$0xff]
    %v5325 = vld [vmem:[#allocation8 + $0x900] sm:$0xff]
    %v5326 = vld [vmem:[#allocation8 + $0x908] sm:$0xff]
    %v5327 = vld [vmem:[#allocation8 + $0x910] sm:$0xff]
    %v5328 = vld [vmem:[#allocation8 + $0x918] sm:$0xff]
    %v5329 = vld [vmem:[#allocation8 + $0x920] sm:$0xff]
    %v5330 = vld [vmem:[#allocation8 + $0x928] sm:$0xff]
    %v5331 = vld [vmem:[#allocation8 + $0x930] sm:$0xff]
    %v5332 = vld [vmem:[#allocation8 + $0x938] sm:$0xff]
    %v5333 = vld [vmem:[#allocation8 + $0x940] sm:$0xff]
    %v5334 = vld [vmem:[#allocation8 + $0x948] sm:$0xff]
    %v5335 = vld [vmem:[#allocation8 + $0x950] sm:$0xff]
    %v5336 = vld [vmem:[#allocation8 + $0x958] sm:$0xff]
    %v5337 = vld [vmem:[#allocation8 + $0x960] sm:$0xff]
    %v5338 = vld [vmem:[#allocation8 + $0x968] sm:$0xff]
    %v5339 = vld [vmem:[#allocation8 + $0x970] sm:$0xff]
    %v5340 = vld [vmem:[#allocation8 + $0x978] sm:$0xff]
    %v5341 = vld [vmem:[#allocation8 + $0x980] sm:$0xff]
    %v5342 = vld [vmem:[#allocation8 + $0x988] sm:$0xff]
    %v5343 = vld [vmem:[#allocation8 + $0x990] sm:$0xff]
    %v5344 = vld [vmem:[#allocation8 + $0x998] sm:$0xff]
    %v5345 = vld [vmem:[#allocation8 + $0x9a0] sm:$0xff]
    %v5346 = vld [vmem:[#allocation8 + $0x9a8] sm:$0xff]
    %v5347 = vld [vmem:[#allocation8 + $0x9b0] sm:$0xff]
    %v5348 = vld [vmem:[#allocation8 + $0x9b8] sm:$0xff]
    %v5349 = vld [vmem:[#allocation8 + $0x9c0] sm:$0xff]
    %v5350 = vld [vmem:[#allocation8 + $0x9c8] sm:$0xff]
    %v5351 = vld [vmem:[#allocation8 + $0x9d0] sm:$0xff]
    %v5352 = vld [vmem:[#allocation8 + $0x9d8] sm:$0xff]
    %v5353 = vld [vmem:[#allocation8 + $0x9e0] sm:$0xff]
    %v5354 = vld [vmem:[#allocation8 + $0x9e8] sm:$0xff]
    %v5355 = vld [vmem:[#allocation8 + $0x9f0] sm:$0xff]
    %v5356 = vld [vmem:[#allocation8 + $0x9f8] sm:$0xff]
    %v5357 = vld [vmem:[#allocation8 + $0xa00] sm:$0xff]
    %v5358 = vld [vmem:[#allocation8 + $0xa08] sm:$0xff]
    %v5359 = vld [vmem:[#allocation8 + $0xa10] sm:$0xff]
    %v5360 = vld [vmem:[#allocation8 + $0xa18] sm:$0xff]
    %v5361 = vld [vmem:[#allocation8 + $0xa20] sm:$0xff]
    %v5362 = vld [vmem:[#allocation8 + $0xa28] sm:$0xff]
    %v5363 = vld [vmem:[#allocation8 + $0xa30] sm:$0xff]
    %v5364 = vld [vmem:[#allocation8 + $0xa38] sm:$0xff]
    %v5365 = vld [vmem:[#allocation8 + $0xa40] sm:$0xff]
    %v5366 = vld [vmem:[#allocation8 + $0xa48] sm:$0xff]
    %v5367 = vld [vmem:[#allocation8 + $0xa50] sm:$0xff]
    %v5368 = vld [vmem:[#allocation8 + $0xa58] sm:$0xff]
    %v5369 = vld [vmem:[#allocation8 + $0xa60] sm:$0xff]
    %v5370 = vld [vmem:[#allocation8 + $0xa68] sm:$0xff]
    %v5371 = vld [vmem:[#allocation8 + $0xa70] sm:$0xff]
    %v5372 = vld [vmem:[#allocation8 + $0xa78] sm:$0xff]
    %v5373 = vld [vmem:[#allocation8 + $0xa80] sm:$0xff]
    %v5374 = vld [vmem:[#allocation8 + $0xa88] sm:$0xff]
    %v5375 = vld [vmem:[#allocation8 + $0xa90] sm:$0xff]
    %v5376 = vld [vmem:[#allocation8 + $0xa98] sm:$0xff]
    %v5377 = vld [vmem:[#allocation8 + $0xaa0] sm:$0xff]
    %v5378 = vld [vmem:[#allocation8 + $0xaa8] sm:$0xff]
    %v5379 = vld [vmem:[#allocation8 + $0xab0] sm:$0xff]
    %v5380 = vld [vmem:[#allocation8 + $0xab8] sm:$0xff]
    %v5381 = vld [vmem:[#allocation8 + $0xac0] sm:$0xff]
    %v5382 = vld [vmem:[#allocation8 + $0xac8] sm:$0xff]
    %v5383 = vld [vmem:[#allocation8 + $0xad0] sm:$0xff]
    %v5384 = vld [vmem:[#allocation8 + $0xad8] sm:$0xff]
    %v5385 = vld [vmem:[#allocation8 + $0xae0] sm:$0xff]
    %v5386 = vld [vmem:[#allocation8 + $0xae8] sm:$0xff]
    %v5387 = vld [vmem:[#allocation8 + $0xaf0] sm:$0xff]
    %v5388 = vld [vmem:[#allocation8 + $0xaf8] sm:$0xff]
    %v5389 = vld [vmem:[#allocation8 + $0xb00] sm:$0xff]
    %v5390 = vld [vmem:[#allocation8 + $0xb08] sm:$0xff]
    %v5391 = vld [vmem:[#allocation8 + $0xb10] sm:$0xff]
    %v5392 = vld [vmem:[#allocation8 + $0xb18] sm:$0xff]
    %v5393 = vld [vmem:[#allocation8 + $0xb20] sm:$0xff]
    %v5394 = vld [vmem:[#allocation8 + $0xb28] sm:$0xff]
    %v5395 = vld [vmem:[#allocation8 + $0xb30] sm:$0xff]
    %v5396 = vld [vmem:[#allocation8 + $0xb38] sm:$0xff]
    %v5397 = vld [vmem:[#allocation8 + $0xb40] sm:$0xff]
    %v5398 = vld [vmem:[#allocation8 + $0xb48] sm:$0xff]
    %v5399 = vld [vmem:[#allocation8 + $0xb50] sm:$0xff]
    %v5400 = vld [vmem:[#allocation8 + $0xb58] sm:$0xff]
    %v5401 = vld [vmem:[#allocation8 + $0xb60] sm:$0xff]
    %v5402 = vld [vmem:[#allocation8 + $0xb68] sm:$0xff]
    %v5403 = vld [vmem:[#allocation8 + $0xb70] sm:$0xff]
    %v5404 = vld [vmem:[#allocation8 + $0xb78] sm:$0xff]
    %v5405 = vld [vmem:[#allocation8 + $0xb80] sm:$0xff]
    %v5406 = vld [vmem:[#allocation8 + $0xb88] sm:$0xff]
    %v5407 = vld [vmem:[#allocation8 + $0xb90] sm:$0xff]
    %v5408 = vld [vmem:[#allocation8 + $0xb98] sm:$0xff]
    %v5409 = vld [vmem:[#allocation8 + $0xba0] sm:$0xff]
    %v5410 = vld [vmem:[#allocation8 + $0xba8] sm:$0xff]
    %v5411 = vld [vmem:[#allocation8 + $0xbb0] sm:$0xff]
    %v5412 = vld [vmem:[#allocation8 + $0xbb8] sm:$0xff]
    %v5413 = vld [vmem:[#allocation8 + $0xbc0] sm:$0xff]
    %v5414 = vld [vmem:[#allocation8 + $0xbc8] sm:$0xff]
    %v5415 = vld [vmem:[#allocation8 + $0xbd0] sm:$0xff]
    %v5416 = vld [vmem:[#allocation8 + $0xbd8] sm:$0xff]
    %v5417 = vld [vmem:[#allocation8 + $0xbe0] sm:$0xff]
    %v5418 = vld [vmem:[#allocation8 + $0xbe8] sm:$0xff]
    %v5419 = vld [vmem:[#allocation8 + $0xbf0] sm:$0xff]
    %v5420 = vld [vmem:[#allocation8 + $0xbf8] sm:$0xff]
    %v5421 = vld [vmem:[#allocation8 + $0xc00] sm:$0xff]
    %v5422 = vld [vmem:[#allocation8 + $0xc08] sm:$0xff]
    %v5423 = vld [vmem:[#allocation8 + $0xc10] sm:$0xff]
    %v5424 = vld [vmem:[#allocation8 + $0xc18] sm:$0xff]
    %v5425 = vld [vmem:[#allocation8 + $0xc20] sm:$0xff]
    %v5426 = vld [vmem:[#allocation8 + $0xc28] sm:$0xff]
    %v5427 = vld [vmem:[#allocation8 + $0xc30] sm:$0xff]
    %v5428 = vld [vmem:[#allocation8 + $0xc38] sm:$0xff]
    %v5429 = vld [vmem:[#allocation8 + $0xc40] sm:$0xff]
    %v5430 = vld [vmem:[#allocation8 + $0xc48] sm:$0xff]
    %v5431 = vld [vmem:[#allocation8 + $0xc50] sm:$0xff]
    %v5432 = vld [vmem:[#allocation8 + $0xc58] sm:$0xff]
    %v5433 = vld [vmem:[#allocation8 + $0xc60] sm:$0xff]
    %v5434 = vld [vmem:[#allocation8 + $0xc68] sm:$0xff]
    %v5435 = vld [vmem:[#allocation8 + $0xc70] sm:$0xff]
    %v5436 = vld [vmem:[#allocation8 + $0xc78] sm:$0xff]
    %v5437 = vld [vmem:[#allocation8 + $0xc80] sm:$0xff]
    %v5438 = vld [vmem:[#allocation8 + $0xc88] sm:$0xff]
    %v5439 = vld [vmem:[#allocation8 + $0xc90] sm:$0xff]
    %v5440 = vld [vmem:[#allocation8 + $0xc98] sm:$0xff]
    %v5441 = vld [vmem:[#allocation8 + $0xca0] sm:$0xff]
    %v5442 = vld [vmem:[#allocation8 + $0xca8] sm:$0xff]
    %v5443 = vld [vmem:[#allocation8 + $0xcb0] sm:$0xff]
    %v5444 = vld [vmem:[#allocation8 + $0xcb8] sm:$0xff]
    %v5445 = vld [vmem:[#allocation8 + $0xcc0] sm:$0xff]
    %v5446 = vld [vmem:[#allocation8 + $0xcc8] sm:$0xff]
    %v5447 = vld [vmem:[#allocation8 + $0xcd0] sm:$0xff]
    %v5448 = vld [vmem:[#allocation8 + $0xcd8] sm:$0xff]
    %v5449 = vld [vmem:[#allocation8 + $0xce0] sm:$0xff]
    %v5450 = vld [vmem:[#allocation8 + $0xce8] sm:$0xff]
    %v5451 = vld [vmem:[#allocation8 + $0xcf0] sm:$0xff]
    %v5452 = vld [vmem:[#allocation8 + $0xcf8] sm:$0xff]
    %v5453 = vld [vmem:[#allocation8 + $0xd00] sm:$0xff]
    %v5454 = vld [vmem:[#allocation8 + $0xd08] sm:$0xff]
    %v5455 = vld [vmem:[#allocation8 + $0xd10] sm:$0xff]
    %v5456 = vld [vmem:[#allocation8 + $0xd18] sm:$0xff]
    %v5457 = vld [vmem:[#allocation8 + $0xd20] sm:$0xff]
    %v5458 = vld [vmem:[#allocation8 + $0xd28] sm:$0xff]
    %v5459 = vld [vmem:[#allocation8 + $0xd30] sm:$0xff]
    %v5460 = vld [vmem:[#allocation8 + $0xd38] sm:$0xff]
    %v5461 = vld [vmem:[#allocation8 + $0xd40] sm:$0xff]
    %v5462 = vld [vmem:[#allocation8 + $0xd48] sm:$0xff]
    %v5463 = vld [vmem:[#allocation8 + $0xd50] sm:$0xff]
    %v5464 = vld [vmem:[#allocation8 + $0xd58] sm:$0xff]
    %v5465 = vld [vmem:[#allocation8 + $0xd60] sm:$0xff]
    %v5466 = vld [vmem:[#allocation8 + $0xd68] sm:$0xff]
    %v5467 = vld [vmem:[#allocation8 + $0xd70] sm:$0xff]
    %v5468 = vld [vmem:[#allocation8 + $0xd78] sm:$0xff]
    %v5469 = vld [vmem:[#allocation8 + $0xd80] sm:$0xff]
    %v5470 = vld [vmem:[#allocation8 + $0xd88] sm:$0xff]
    %v5471 = vld [vmem:[#allocation8 + $0xd90] sm:$0xff]
    %v5472 = vld [vmem:[#allocation8 + $0xd98] sm:$0xff]
    %v5473 = vld [vmem:[#allocation8 + $0xda0] sm:$0xff]
    %v5474 = vld [vmem:[#allocation8 + $0xda8] sm:$0xff]
    %v5475 = vld [vmem:[#allocation8 + $0xdb0] sm:$0xff]
    %v5476 = vld [vmem:[#allocation8 + $0xdb8] sm:$0xff]
    %v5477 = vld [vmem:[#allocation8 + $0xdc0] sm:$0xff]
    %v5478 = vld [vmem:[#allocation8 + $0xdc8] sm:$0xff]
    %v5479 = vld [vmem:[#allocation8 + $0xdd0] sm:$0xff]
    %v5480 = vld [vmem:[#allocation8 + $0xdd8] sm:$0xff]
    %v5481 = vld [vmem:[#allocation8 + $0xde0] sm:$0xff]
    %v5482 = vld [vmem:[#allocation8 + $0xde8] sm:$0xff]
    %v5483 = vld [vmem:[#allocation8 + $0xdf0] sm:$0xff]
    %v5484 = vld [vmem:[#allocation8 + $0xdf8] sm:$0xff]
    %v5485 = vld [vmem:[#allocation8 + $0xe00] sm:$0xff]
    %v5486 = vld [vmem:[#allocation8 + $0xe08] sm:$0xff]
    %v5487 = vld [vmem:[#allocation8 + $0xe10] sm:$0xff]
    %v5488 = vld [vmem:[#allocation8 + $0xe18] sm:$0xff]
    %v5489 = vld [vmem:[#allocation8 + $0xe20] sm:$0xff]
    %v5490 = vld [vmem:[#allocation8 + $0xe28] sm:$0xff]
    %v5491 = vld [vmem:[#allocation8 + $0xe30] sm:$0xff]
    %v5492 = vld [vmem:[#allocation8 + $0xe38] sm:$0xff]
    %v5493 = vld [vmem:[#allocation8 + $0xe40] sm:$0xff]
    %v5494 = vld [vmem:[#allocation8 + $0xe48] sm:$0xff]
    %v5495 = vld [vmem:[#allocation8 + $0xe50] sm:$0xff]
    %v5496 = vld [vmem:[#allocation8 + $0xe58] sm:$0xff]
    %v5497 = vld [vmem:[#allocation8 + $0xe60] sm:$0xff]
    %v5498 = vld [vmem:[#allocation8 + $0xe68] sm:$0xff]
    %v5499 = vld [vmem:[#allocation8 + $0xe70] sm:$0xff]
    %v5500 = vld [vmem:[#allocation8 + $0xe78] sm:$0xff]
    %v5501 = vld [vmem:[#allocation8 + $0xe80] sm:$0xff]
    %v5502 = vld [vmem:[#allocation8 + $0xe88] sm:$0xff]
    %v5503 = vld [vmem:[#allocation8 + $0xe90] sm:$0xff]
    %v5504 = vld [vmem:[#allocation8 + $0xe98] sm:$0xff]
    %v5505 = vld [vmem:[#allocation8 + $0xea0] sm:$0xff]
    %v5506 = vld [vmem:[#allocation8 + $0xea8] sm:$0xff]
    %v5507 = vld [vmem:[#allocation8 + $0xeb0] sm:$0xff]
    %v5508 = vld [vmem:[#allocation8 + $0xeb8] sm:$0xff]
    %v5509 = vld [vmem:[#allocation8 + $0xec0] sm:$0xff]
    %v5510 = vld [vmem:[#allocation8 + $0xec8] sm:$0xff]
    %v5511 = vld [vmem:[#allocation8 + $0xed0] sm:$0xff]
    %v5512 = vld [vmem:[#allocation8 + $0xed8] sm:$0xff]
    %v5513 = vld [vmem:[#allocation8 + $0xee0] sm:$0xff]
    %v5514 = vld [vmem:[#allocation8 + $0xee8] sm:$0xff]
    %v5515 = vld [vmem:[#allocation8 + $0xef0] sm:$0xff]
    %v5516 = vld [vmem:[#allocation8 + $0xef8] sm:$0xff]
    %v5517 = vld [vmem:[#allocation8 + $0xf00] sm:$0xff]
    %v5518 = vld [vmem:[#allocation8 + $0xf08] sm:$0xff]
    %v5519 = vld [vmem:[#allocation8 + $0xf10] sm:$0xff]
    %v5520 = vld [vmem:[#allocation8 + $0xf18] sm:$0xff]
    %v5521 = vld [vmem:[#allocation8 + $0xf20] sm:$0xff]
    %v5522 = vld [vmem:[#allocation8 + $0xf28] sm:$0xff]
    %v5523 = vld [vmem:[#allocation8 + $0xf30] sm:$0xff]
    %v5524 = vld [vmem:[#allocation8 + $0xf38] sm:$0xff]
    %v5525 = vld [vmem:[#allocation8 + $0xf40] sm:$0xff]
    %v5526 = vld [vmem:[#allocation8 + $0xf48] sm:$0xff]
    %v5527 = vld [vmem:[#allocation8 + $0xf50] sm:$0xff]
    %v5528 = vld [vmem:[#allocation8 + $0xf58] sm:$0xff]
    %v5529 = vld [vmem:[#allocation8 + $0xf60] sm:$0xff]
    %v5530 = vld [vmem:[#allocation8 + $0xf68] sm:$0xff]
    %v5531 = vld [vmem:[#allocation8 + $0xf70] sm:$0xff]
    %v5532 = vld [vmem:[#allocation8 + $0xf78] sm:$0xff]
    %v5533 = vld [vmem:[#allocation8 + $0xf80] sm:$0xff]
    %v5534 = vld [vmem:[#allocation8 + $0xf88] sm:$0xff]
    %v5535 = vld [vmem:[#allocation8 + $0xf90] sm:$0xff]
    %v5536 = vld [vmem:[#allocation8 + $0xf98] sm:$0xff]
    %v5537 = vld [vmem:[#allocation8 + $0xfa0] sm:$0xff]
    %v5538 = vld [vmem:[#allocation8 + $0xfa8] sm:$0xff]
    %v5539 = vld [vmem:[#allocation8 + $0xfb0] sm:$0xff]
    %v5540 = vld [vmem:[#allocation8 + $0xfb8] sm:$0xff]
    %v5541 = vld [vmem:[#allocation8 + $0xfc0] sm:$0xff]
    %v5542 = vld [vmem:[#allocation8 + $0xfc8] sm:$0xff]
    %v5543 = vld [vmem:[#allocation8 + $0xfd0] sm:$0xff]
    %v5544 = vld [vmem:[#allocation8 + $0xfd8] sm:$0xff]
    %v5545 = vld [vmem:[#allocation8 + $0xfe0] sm:$0xff]
    %v5546 = vld [vmem:[#allocation8 + $0xfe8] sm:$0xff]
    %v5547 = vld [vmem:[#allocation8 + $0xff0] sm:$0xff]
    %v5548 = vld [vmem:[#allocation8 + $0xff8] sm:$0xff]
    %v5549 = vld [vmem:[#allocation10] sm:$0xff]
    %v5551 = vlaneseq
    %v5552 = vshrl.u32 %v5551, 7
    %v5553 = vsub.s32 0, %v5552
    %v5554 = vrot.slane %v5549, %v5553
    %v5555 = vlaneseq
    %v5556 = vshrl.u32 %v5555, 7
    %v5557 = vsub.s32 1, %v5556
    %v5558 = vrot.slane %v5549, %v5557
    %v5559 = vlaneseq
    %v5560 = vshrl.u32 %v5559, 7
    %v5561 = vsub.s32 2, %v5560
    %v5562 = vrot.slane %v5549, %v5561
    %v5563 = vlaneseq
    %v5564 = vshrl.u32 %v5563, 7
    %v5565 = vsub.s32 3, %v5564
    %v5566 = vrot.slane %v5549, %v5565
    %v5567 = vlaneseq
    %v5568 = vshrl.u32 %v5567, 7
    %v5569 = vsub.s32 4, %v5568
    %v5570 = vrot.slane %v5549, %v5569
    %v5571 = vlaneseq
    %v5572 = vshrl.u32 %v5571, 7
    %v5573 = vsub.s32 5, %v5572
    %v5574 = vrot.slane %v5549, %v5573
    %v5575 = vlaneseq
    %v5576 = vshrl.u32 %v5575, 7
    %v5577 = vsub.s32 6, %v5576
    %v5578 = vrot.slane %v5549, %v5577
    %v5579 = vlaneseq
    %v5580 = vshrl.u32 %v5579, 7
    %v5581 = vsub.s32 7, %v5580
    %v5582 = vrot.slane %v5549, %v5581
    %v6103 = vunpack.c.l.b16 %v5037
    %v6104 = vunpack.c.h.b16 %v5037
    %v6105 = vunpack.c.l.b16 %v5038
    %v6106 = vunpack.c.h.b16 %v5038
    %v6107 = vunpack.c.l.b16 %v5039
    %v6108 = vunpack.c.h.b16 %v5039
    %v6109 = vunpack.c.l.b16 %v5040
    %v6110 = vunpack.c.h.b16 %v5040
    %v6111 = vunpack.c.l.b16 %v5041
    %v6112 = vunpack.c.h.b16 %v5041
    %v6113 = vunpack.c.l.b16 %v5042
    %v6114 = vunpack.c.h.b16 %v5042
    %v6115 = vunpack.c.l.b16 %v5043
    %v6116 = vunpack.c.h.b16 %v5043
    %v6117 = vunpack.c.l.b16 %v5044
    %v6118 = vunpack.c.h.b16 %v5044
    %v6119 = vunpack.c.l.b16 %v5045
    %v6120 = vunpack.c.h.b16 %v5045
    %v6121 = vunpack.c.l.b16 %v5046
    %v6122 = vunpack.c.h.b16 %v5046
    %v6123 = vunpack.c.l.b16 %v5047
    %v6124 = vunpack.c.h.b16 %v5047
    %v6125 = vunpack.c.l.b16 %v5048
    %v6126 = vunpack.c.h.b16 %v5048
    %v6127 = vunpack.c.l.b16 %v5049
    %v6128 = vunpack.c.h.b16 %v5049
    %v6129 = vunpack.c.l.b16 %v5050
    %v6130 = vunpack.c.h.b16 %v5050
    %v6131 = vunpack.c.l.b16 %v5051
    %v6132 = vunpack.c.h.b16 %v5051
    %v6133 = vunpack.c.l.b16 %v5052
    %v6134 = vunpack.c.h.b16 %v5052
    %v6135 = vunpack.c.l.b16 %v5053
    %v6136 = vunpack.c.h.b16 %v5053
    %v6137 = vunpack.c.l.b16 %v5054
    %v6138 = vunpack.c.h.b16 %v5054
    %v6139 = vunpack.c.l.b16 %v5055
    %v6140 = vunpack.c.h.b16 %v5055
    %v6141 = vunpack.c.l.b16 %v5056
    %v6142 = vunpack.c.h.b16 %v5056
    %v6143 = vunpack.c.l.b16 %v5057
    %v6144 = vunpack.c.h.b16 %v5057
    %v6145 = vunpack.c.l.b16 %v5058
    %v6146 = vunpack.c.h.b16 %v5058
    %v6147 = vunpack.c.l.b16 %v5059
    %v6148 = vunpack.c.h.b16 %v5059
    %v6149 = vunpack.c.l.b16 %v5060
    %v6150 = vunpack.c.h.b16 %v5060
    %v6151 = vunpack.c.l.b16 %v5061
    %v6152 = vunpack.c.h.b16 %v5061
    %v6153 = vunpack.c.l.b16 %v5062
    %v6154 = vunpack.c.h.b16 %v5062
    %v6155 = vunpack.c.l.b16 %v5063
    %v6156 = vunpack.c.h.b16 %v5063
    %v6157 = vunpack.c.l.b16 %v5064
    %v6158 = vunpack.c.h.b16 %v5064
    %v6159 = vunpack.c.l.b16 %v5065
    %v6160 = vunpack.c.h.b16 %v5065
    %v6161 = vunpack.c.l.b16 %v5066
    %v6162 = vunpack.c.h.b16 %v5066
    %v6163 = vunpack.c.l.b16 %v5067
    %v6164 = vunpack.c.h.b16 %v5067
    %v6165 = vunpack.c.l.b16 %v5068
    %v6166 = vunpack.c.h.b16 %v5068
    %v6167 = vunpack.c.l.b16 %v5069
    %v6168 = vunpack.c.h.b16 %v5069
    %v6169 = vunpack.c.l.b16 %v5070
    %v6170 = vunpack.c.h.b16 %v5070
    %v6171 = vunpack.c.l.b16 %v5071
    %v6172 = vunpack.c.h.b16 %v5071
    %v6173 = vunpack.c.l.b16 %v5072
    %v6174 = vunpack.c.h.b16 %v5072
    %v6175 = vunpack.c.l.b16 %v5073
    %v6176 = vunpack.c.h.b16 %v5073
    %v6177 = vunpack.c.l.b16 %v5074
    %v6178 = vunpack.c.h.b16 %v5074
    %v6179 = vunpack.c.l.b16 %v5075
    %v6180 = vunpack.c.h.b16 %v5075
    %v6181 = vunpack.c.l.b16 %v5076
    %v6182 = vunpack.c.h.b16 %v5076
    %v6183 = vunpack.c.l.b16 %v5077
    %v6184 = vunpack.c.h.b16 %v5077
    %v6185 = vunpack.c.l.b16 %v5078
    %v6186 = vunpack.c.h.b16 %v5078
    %v6187 = vunpack.c.l.b16 %v5079
    %v6188 = vunpack.c.h.b16 %v5079
    %v6189 = vunpack.c.l.b16 %v5080
    %v6190 = vunpack.c.h.b16 %v5080
    %v6191 = vunpack.c.l.b16 %v5081
    %v6192 = vunpack.c.h.b16 %v5081
    %v6193 = vunpack.c.l.b16 %v5082
    %v6194 = vunpack.c.h.b16 %v5082
    %v6195 = vunpack.c.l.b16 %v5083
    %v6196 = vunpack.c.h.b16 %v5083
    %v6197 = vunpack.c.l.b16 %v5084
    %v6198 = vunpack.c.h.b16 %v5084
    %v6199 = vunpack.c.l.b16 %v5085
    %v6200 = vunpack.c.h.b16 %v5085
    %v6201 = vunpack.c.l.b16 %v5086
    %v6202 = vunpack.c.h.b16 %v5086
    %v6203 = vunpack.c.l.b16 %v5087
    %v6204 = vunpack.c.h.b16 %v5087
    %v6205 = vunpack.c.l.b16 %v5088
    %v6206 = vunpack.c.h.b16 %v5088
    %v6207 = vunpack.c.l.b16 %v5089
    %v6208 = vunpack.c.h.b16 %v5089
    %v6209 = vunpack.c.l.b16 %v5090
    %v6210 = vunpack.c.h.b16 %v5090
    %v6211 = vunpack.c.l.b16 %v5091
    %v6212 = vunpack.c.h.b16 %v5091
    %v6213 = vunpack.c.l.b16 %v5092
    %v6214 = vunpack.c.h.b16 %v5092
    %v6215 = vunpack.c.l.b16 %v5093
    %v6216 = vunpack.c.h.b16 %v5093
    %v6217 = vunpack.c.l.b16 %v5094
    %v6218 = vunpack.c.h.b16 %v5094
    %v6219 = vunpack.c.l.b16 %v5095
    %v6220 = vunpack.c.h.b16 %v5095
    %v6221 = vunpack.c.l.b16 %v5096
    %v6222 = vunpack.c.h.b16 %v5096
    %v6223 = vunpack.c.l.b16 %v5097
    %v6224 = vunpack.c.h.b16 %v5097
    %v6225 = vunpack.c.l.b16 %v5098
    %v6226 = vunpack.c.h.b16 %v5098
    %v6227 = vunpack.c.l.b16 %v5099
    %v6228 = vunpack.c.h.b16 %v5099
    %v6229 = vunpack.c.l.b16 %v5100
    %v6230 = vunpack.c.h.b16 %v5100
    %v6231 = vunpack.c.l.b16 %v5101
    %v6232 = vunpack.c.h.b16 %v5101
    %v6233 = vunpack.c.l.b16 %v5102
    %v6234 = vunpack.c.h.b16 %v5102
    %v6235 = vunpack.c.l.b16 %v5103
    %v6236 = vunpack.c.h.b16 %v5103
    %v6237 = vunpack.c.l.b16 %v5104
    %v6238 = vunpack.c.h.b16 %v5104
    %v6239 = vunpack.c.l.b16 %v5105
    %v6240 = vunpack.c.h.b16 %v5105
    %v6241 = vunpack.c.l.b16 %v5106
    %v6242 = vunpack.c.h.b16 %v5106
    %v6243 = vunpack.c.l.b16 %v5107
    %v6244 = vunpack.c.h.b16 %v5107
    %v6245 = vunpack.c.l.b16 %v5108
    %v6246 = vunpack.c.h.b16 %v5108
    %v6247 = vunpack.c.l.b16 %v5109
    %v6248 = vunpack.c.h.b16 %v5109
    %v6249 = vunpack.c.l.b16 %v5110
    %v6250 = vunpack.c.h.b16 %v5110
    %v6251 = vunpack.c.l.b16 %v5111
    %v6252 = vunpack.c.h.b16 %v5111
    %v6253 = vunpack.c.l.b16 %v5112
    %v6254 = vunpack.c.h.b16 %v5112
    %v6255 = vunpack.c.l.b16 %v5113
    %v6256 = vunpack.c.h.b16 %v5113
    %v6257 = vunpack.c.l.b16 %v5114
    %v6258 = vunpack.c.h.b16 %v5114
    %v6259 = vunpack.c.l.b16 %v5115
    %v6260 = vunpack.c.h.b16 %v5115
    %v6261 = vunpack.c.l.b16 %v5116
    %v6262 = vunpack.c.h.b16 %v5116
    %v6263 = vunpack.c.l.b16 %v5117
    %v6264 = vunpack.c.h.b16 %v5117
    %v6265 = vunpack.c.l.b16 %v5118
    %v6266 = vunpack.c.h.b16 %v5118
    %v6267 = vunpack.c.l.b16 %v5119
    %v6268 = vunpack.c.h.b16 %v5119
    %v6269 = vunpack.c.l.b16 %v5120
    %v6270 = vunpack.c.h.b16 %v5120
    %v6271 = vunpack.c.l.b16 %v5121
    %v6272 = vunpack.c.h.b16 %v5121
    %v6273 = vunpack.c.l.b16 %v5122
    %v6274 = vunpack.c.h.b16 %v5122
    %v6275 = vunpack.c.l.b16 %v5123
    %v6276 = vunpack.c.h.b16 %v5123
    %v6277 = vunpack.c.l.b16 %v5124
    %v6278 = vunpack.c.h.b16 %v5124
    %v6279 = vunpack.c.l.b16 %v5125
    %v6280 = vunpack.c.h.b16 %v5125
    %v6281 = vunpack.c.l.b16 %v5126
    %v6282 = vunpack.c.h.b16 %v5126
    %v6283 = vunpack.c.l.b16 %v5127
    %v6284 = vunpack.c.h.b16 %v5127
    %v6285 = vunpack.c.l.b16 %v5128
    %v6286 = vunpack.c.h.b16 %v5128
    %v6287 = vunpack.c.l.b16 %v5129
    %v6288 = vunpack.c.h.b16 %v5129
    %v6289 = vunpack.c.l.b16 %v5130
    %v6290 = vunpack.c.h.b16 %v5130
    %v6291 = vunpack.c.l.b16 %v5131
    %v6292 = vunpack.c.h.b16 %v5131
    %v6293 = vunpack.c.l.b16 %v5132
    %v6294 = vunpack.c.h.b16 %v5132
    %v6295 = vunpack.c.l.b16 %v5133
    %v6296 = vunpack.c.h.b16 %v5133
    %v6297 = vunpack.c.l.b16 %v5134
    %v6298 = vunpack.c.h.b16 %v5134
    %v6299 = vunpack.c.l.b16 %v5135
    %v6300 = vunpack.c.h.b16 %v5135
    %v6301 = vunpack.c.l.b16 %v5136
    %v6302 = vunpack.c.h.b16 %v5136
    %v6303 = vunpack.c.l.b16 %v5137
    %v6304 = vunpack.c.h.b16 %v5137
    %v6305 = vunpack.c.l.b16 %v5138
    %v6306 = vunpack.c.h.b16 %v5138
    %v6307 = vunpack.c.l.b16 %v5139
    %v6308 = vunpack.c.h.b16 %v5139
    %v6309 = vunpack.c.l.b16 %v5140
    %v6310 = vunpack.c.h.b16 %v5140
    %v6311 = vunpack.c.l.b16 %v5141
    %v6312 = vunpack.c.h.b16 %v5141
    %v6313 = vunpack.c.l.b16 %v5142
    %v6314 = vunpack.c.h.b16 %v5142
    %v6315 = vunpack.c.l.b16 %v5143
    %v6316 = vunpack.c.h.b16 %v5143
    %v6317 = vunpack.c.l.b16 %v5144
    %v6318 = vunpack.c.h.b16 %v5144
    %v6319 = vunpack.c.l.b16 %v5145
    %v6320 = vunpack.c.h.b16 %v5145
    %v6321 = vunpack.c.l.b16 %v5146
    %v6322 = vunpack.c.h.b16 %v5146
    %v6323 = vunpack.c.l.b16 %v5147
    %v6324 = vunpack.c.h.b16 %v5147
    %v6325 = vunpack.c.l.b16 %v5148
    %v6326 = vunpack.c.h.b16 %v5148
    %v6327 = vunpack.c.l.b16 %v5149
    %v6328 = vunpack.c.h.b16 %v5149
    %v6329 = vunpack.c.l.b16 %v5150
    %v6330 = vunpack.c.h.b16 %v5150
    %v6331 = vunpack.c.l.b16 %v5151
    %v6332 = vunpack.c.h.b16 %v5151
    %v6333 = vunpack.c.l.b16 %v5152
    %v6334 = vunpack.c.h.b16 %v5152
    %v6335 = vunpack.c.l.b16 %v5153
    %v6336 = vunpack.c.h.b16 %v5153
    %v6337 = vunpack.c.l.b16 %v5154
    %v6338 = vunpack.c.h.b16 %v5154
    %v6339 = vunpack.c.l.b16 %v5155
    %v6340 = vunpack.c.h.b16 %v5155
    %v6341 = vunpack.c.l.b16 %v5156
    %v6342 = vunpack.c.h.b16 %v5156
    %v6343 = vunpack.c.l.b16 %v5157
    %v6344 = vunpack.c.h.b16 %v5157
    %v6345 = vunpack.c.l.b16 %v5158
    %v6346 = vunpack.c.h.b16 %v5158
    %v6347 = vunpack.c.l.b16 %v5159
    %v6348 = vunpack.c.h.b16 %v5159
    %v6349 = vunpack.c.l.b16 %v5160
    %v6350 = vunpack.c.h.b16 %v5160
    %v6351 = vunpack.c.l.b16 %v5161
    %v6352 = vunpack.c.h.b16 %v5161
    %v6353 = vunpack.c.l.b16 %v5162
    %v6354 = vunpack.c.h.b16 %v5162
    %v6355 = vunpack.c.l.b16 %v5163
    %v6356 = vunpack.c.h.b16 %v5163
    %v6357 = vunpack.c.l.b16 %v5164
    %v6358 = vunpack.c.h.b16 %v5164
    %v6359 = vunpack.c.l.b16 %v5165
    %v6360 = vunpack.c.h.b16 %v5165
    %v6361 = vunpack.c.l.b16 %v5166
    %v6362 = vunpack.c.h.b16 %v5166
    %v6363 = vunpack.c.l.b16 %v5167
    %v6364 = vunpack.c.h.b16 %v5167
    %v6365 = vunpack.c.l.b16 %v5168
    %v6366 = vunpack.c.h.b16 %v5168
    %v6367 = vunpack.c.l.b16 %v5169
    %v6368 = vunpack.c.h.b16 %v5169
    %v6369 = vunpack.c.l.b16 %v5170
    %v6370 = vunpack.c.h.b16 %v5170
    %v6371 = vunpack.c.l.b16 %v5171
    %v6372 = vunpack.c.h.b16 %v5171
    %v6373 = vunpack.c.l.b16 %v5172
    %v6374 = vunpack.c.h.b16 %v5172
    %v6375 = vunpack.c.l.b16 %v5173
    %v6376 = vunpack.c.h.b16 %v5173
    %v6377 = vunpack.c.l.b16 %v5174
    %v6378 = vunpack.c.h.b16 %v5174
    %v6379 = vunpack.c.l.b16 %v5175
    %v6380 = vunpack.c.h.b16 %v5175
    %v6381 = vunpack.c.l.b16 %v5176
    %v6382 = vunpack.c.h.b16 %v5176
    %v6383 = vunpack.c.l.b16 %v5177
    %v6384 = vunpack.c.h.b16 %v5177
    %v6385 = vunpack.c.l.b16 %v5178
    %v6386 = vunpack.c.h.b16 %v5178
    %v6387 = vunpack.c.l.b16 %v5179
    %v6388 = vunpack.c.h.b16 %v5179
    %v6389 = vunpack.c.l.b16 %v5180
    %v6390 = vunpack.c.h.b16 %v5180
    %v6391 = vunpack.c.l.b16 %v5181
    %v6392 = vunpack.c.h.b16 %v5181
    %v6393 = vunpack.c.l.b16 %v5182
    %v6394 = vunpack.c.h.b16 %v5182
    %v6395 = vunpack.c.l.b16 %v5183
    %v6396 = vunpack.c.h.b16 %v5183
    %v6397 = vunpack.c.l.b16 %v5184
    %v6398 = vunpack.c.h.b16 %v5184
    %v6399 = vunpack.c.l.b16 %v5185
    %v6400 = vunpack.c.h.b16 %v5185
    %v6401 = vunpack.c.l.b16 %v5186
    %v6402 = vunpack.c.h.b16 %v5186
    %v6403 = vunpack.c.l.b16 %v5187
    %v6404 = vunpack.c.h.b16 %v5187
    %v6405 = vunpack.c.l.b16 %v5188
    %v6406 = vunpack.c.h.b16 %v5188
    %v6407 = vunpack.c.l.b16 %v5189
    %v6408 = vunpack.c.h.b16 %v5189
    %v6409 = vunpack.c.l.b16 %v5190
    %v6410 = vunpack.c.h.b16 %v5190
    %v6411 = vunpack.c.l.b16 %v5191
    %v6412 = vunpack.c.h.b16 %v5191
    %v6413 = vunpack.c.l.b16 %v5192
    %v6414 = vunpack.c.h.b16 %v5192
    %v6415 = vunpack.c.l.b16 %v5193
    %v6416 = vunpack.c.h.b16 %v5193
    %v6417 = vunpack.c.l.b16 %v5194
    %v6418 = vunpack.c.h.b16 %v5194
    %v6419 = vunpack.c.l.b16 %v5195
    %v6420 = vunpack.c.h.b16 %v5195
    %v6421 = vunpack.c.l.b16 %v5196
    %v6422 = vunpack.c.h.b16 %v5196
    %v6423 = vunpack.c.l.b16 %v5197
    %v6424 = vunpack.c.h.b16 %v5197
    %v6425 = vunpack.c.l.b16 %v5198
    %v6426 = vunpack.c.h.b16 %v5198
    %v6427 = vunpack.c.l.b16 %v5199
    %v6428 = vunpack.c.h.b16 %v5199
    %v6429 = vunpack.c.l.b16 %v5200
    %v6430 = vunpack.c.h.b16 %v5200
    %v6431 = vunpack.c.l.b16 %v5201
    %v6432 = vunpack.c.h.b16 %v5201
    %v6433 = vunpack.c.l.b16 %v5202
    %v6434 = vunpack.c.h.b16 %v5202
    %v6435 = vunpack.c.l.b16 %v5203
    %v6436 = vunpack.c.h.b16 %v5203
    %v6437 = vunpack.c.l.b16 %v5204
    %v6438 = vunpack.c.h.b16 %v5204
    %v6439 = vunpack.c.l.b16 %v5205
    %v6440 = vunpack.c.h.b16 %v5205
    %v6441 = vunpack.c.l.b16 %v5206
    %v6442 = vunpack.c.h.b16 %v5206
    %v6443 = vunpack.c.l.b16 %v5207
    %v6444 = vunpack.c.h.b16 %v5207
    %v6445 = vunpack.c.l.b16 %v5208
    %v6446 = vunpack.c.h.b16 %v5208
    %v6447 = vunpack.c.l.b16 %v5209
    %v6448 = vunpack.c.h.b16 %v5209
    %v6449 = vunpack.c.l.b16 %v5210
    %v6450 = vunpack.c.h.b16 %v5210
    %v6451 = vunpack.c.l.b16 %v5211
    %v6452 = vunpack.c.h.b16 %v5211
    %v6453 = vunpack.c.l.b16 %v5212
    %v6454 = vunpack.c.h.b16 %v5212
    %v6455 = vunpack.c.l.b16 %v5213
    %v6456 = vunpack.c.h.b16 %v5213
    %v6457 = vunpack.c.l.b16 %v5214
    %v6458 = vunpack.c.h.b16 %v5214
    %v6459 = vunpack.c.l.b16 %v5215
    %v6460 = vunpack.c.h.b16 %v5215
    %v6461 = vunpack.c.l.b16 %v5216
    %v6462 = vunpack.c.h.b16 %v5216
    %v6463 = vunpack.c.l.b16 %v5217
    %v6464 = vunpack.c.h.b16 %v5217
    %v6465 = vunpack.c.l.b16 %v5218
    %v6466 = vunpack.c.h.b16 %v5218
    %v6467 = vunpack.c.l.b16 %v5219
    %v6468 = vunpack.c.h.b16 %v5219
    %v6469 = vunpack.c.l.b16 %v5220
    %v6470 = vunpack.c.h.b16 %v5220
    %v6471 = vunpack.c.l.b16 %v5221
    %v6472 = vunpack.c.h.b16 %v5221
    %v6473 = vunpack.c.l.b16 %v5222
    %v6474 = vunpack.c.h.b16 %v5222
    %v6475 = vunpack.c.l.b16 %v5223
    %v6476 = vunpack.c.h.b16 %v5223
    %v6477 = vunpack.c.l.b16 %v5224
    %v6478 = vunpack.c.h.b16 %v5224
    %v6479 = vunpack.c.l.b16 %v5225
    %v6480 = vunpack.c.h.b16 %v5225
    %v6481 = vunpack.c.l.b16 %v5226
    %v6482 = vunpack.c.h.b16 %v5226
    %v6483 = vunpack.c.l.b16 %v5227
    %v6484 = vunpack.c.h.b16 %v5227
    %v6485 = vunpack.c.l.b16 %v5228
    %v6486 = vunpack.c.h.b16 %v5228
    %v6487 = vunpack.c.l.b16 %v5229
    %v6488 = vunpack.c.h.b16 %v5229
    %v6489 = vunpack.c.l.b16 %v5230
    %v6490 = vunpack.c.h.b16 %v5230
    %v6491 = vunpack.c.l.b16 %v5231
    %v6492 = vunpack.c.h.b16 %v5231
    %v6493 = vunpack.c.l.b16 %v5232
    %v6494 = vunpack.c.h.b16 %v5232
    %v6495 = vunpack.c.l.b16 %v5233
    %v6496 = vunpack.c.h.b16 %v5233
    %v6497 = vunpack.c.l.b16 %v5234
    %v6498 = vunpack.c.h.b16 %v5234
    %v6499 = vunpack.c.l.b16 %v5235
    %v6500 = vunpack.c.h.b16 %v5235
    %v6501 = vunpack.c.l.b16 %v5236
    %v6502 = vunpack.c.h.b16 %v5236
    %v6503 = vunpack.c.l.b16 %v5237
    %v6504 = vunpack.c.h.b16 %v5237
    %v6505 = vunpack.c.l.b16 %v5238
    %v6506 = vunpack.c.h.b16 %v5238
    %v6507 = vunpack.c.l.b16 %v5239
    %v6508 = vunpack.c.h.b16 %v5239
    %v6509 = vunpack.c.l.b16 %v5240
    %v6510 = vunpack.c.h.b16 %v5240
    %v6511 = vunpack.c.l.b16 %v5241
    %v6512 = vunpack.c.h.b16 %v5241
    %v6513 = vunpack.c.l.b16 %v5242
    %v6514 = vunpack.c.h.b16 %v5242
    %v6515 = vunpack.c.l.b16 %v5243
    %v6516 = vunpack.c.h.b16 %v5243
    %v6517 = vunpack.c.l.b16 %v5244
    %v6518 = vunpack.c.h.b16 %v5244
    %v6519 = vunpack.c.l.b16 %v5245
    %v6520 = vunpack.c.h.b16 %v5245
    %v6521 = vunpack.c.l.b16 %v5246
    %v6522 = vunpack.c.h.b16 %v5246
    %v6523 = vunpack.c.l.b16 %v5247
    %v6524 = vunpack.c.h.b16 %v5247
    %v6525 = vunpack.c.l.b16 %v5248
    %v6526 = vunpack.c.h.b16 %v5248
    %v6527 = vunpack.c.l.b16 %v5249
    %v6528 = vunpack.c.h.b16 %v5249
    %v6529 = vunpack.c.l.b16 %v5250
    %v6530 = vunpack.c.h.b16 %v5250
    %v6531 = vunpack.c.l.b16 %v5251
    %v6532 = vunpack.c.h.b16 %v5251
    %v6533 = vunpack.c.l.b16 %v5252
    %v6534 = vunpack.c.h.b16 %v5252
    %v6535 = vunpack.c.l.b16 %v5253
    %v6536 = vunpack.c.h.b16 %v5253
    %v6537 = vunpack.c.l.b16 %v5254
    %v6538 = vunpack.c.h.b16 %v5254
    %v6539 = vunpack.c.l.b16 %v5255
    %v6540 = vunpack.c.h.b16 %v5255
    %v6541 = vunpack.c.l.b16 %v5256
    %v6542 = vunpack.c.h.b16 %v5256
    %v6543 = vunpack.c.l.b16 %v5257
    %v6544 = vunpack.c.h.b16 %v5257
    %v6545 = vunpack.c.l.b16 %v5258
    %v6546 = vunpack.c.h.b16 %v5258
    %v6547 = vunpack.c.l.b16 %v5259
    %v6548 = vunpack.c.h.b16 %v5259
    %v6549 = vunpack.c.l.b16 %v5260
    %v6550 = vunpack.c.h.b16 %v5260
    %v6551 = vunpack.c.l.b16 %v5261
    %v6552 = vunpack.c.h.b16 %v5261
    %v6553 = vunpack.c.l.b16 %v5262
    %v6554 = vunpack.c.h.b16 %v5262
    %v6555 = vunpack.c.l.b16 %v5263
    %v6556 = vunpack.c.h.b16 %v5263
    %v6557 = vunpack.c.l.b16 %v5264
    %v6558 = vunpack.c.h.b16 %v5264
    %v6559 = vunpack.c.l.b16 %v5265
    %v6560 = vunpack.c.h.b16 %v5265
    %v6561 = vunpack.c.l.b16 %v5266
    %v6562 = vunpack.c.h.b16 %v5266
    %v6563 = vunpack.c.l.b16 %v5267
    %v6564 = vunpack.c.h.b16 %v5267
    %v6565 = vunpack.c.l.b16 %v5268
    %v6566 = vunpack.c.h.b16 %v5268
    %v6567 = vunpack.c.l.b16 %v5269
    %v6568 = vunpack.c.h.b16 %v5269
    %v6569 = vunpack.c.l.b16 %v5270
    %v6570 = vunpack.c.h.b16 %v5270
    %v6571 = vunpack.c.l.b16 %v5271
    %v6572 = vunpack.c.h.b16 %v5271
    %v6573 = vunpack.c.l.b16 %v5272
    %v6574 = vunpack.c.h.b16 %v5272
    %v6575 = vunpack.c.l.b16 %v5273
    %v6576 = vunpack.c.h.b16 %v5273
    %v6577 = vunpack.c.l.b16 %v5274
    %v6578 = vunpack.c.h.b16 %v5274
    %v6579 = vunpack.c.l.b16 %v5275
    %v6580 = vunpack.c.h.b16 %v5275
    %v6581 = vunpack.c.l.b16 %v5276
    %v6582 = vunpack.c.h.b16 %v5276
    %v6583 = vunpack.c.l.b16 %v5277
    %v6584 = vunpack.c.h.b16 %v5277
    %v6585 = vunpack.c.l.b16 %v5278
    %v6586 = vunpack.c.h.b16 %v5278
    %v6587 = vunpack.c.l.b16 %v5279
    %v6588 = vunpack.c.h.b16 %v5279
    %v6589 = vunpack.c.l.b16 %v5280
    %v6590 = vunpack.c.h.b16 %v5280
    %v6591 = vunpack.c.l.b16 %v5281
    %v6592 = vunpack.c.h.b16 %v5281
    %v6593 = vunpack.c.l.b16 %v5282
    %v6594 = vunpack.c.h.b16 %v5282
    %v6595 = vunpack.c.l.b16 %v5283
    %v6596 = vunpack.c.h.b16 %v5283
    %v6597 = vunpack.c.l.b16 %v5284
    %v6598 = vunpack.c.h.b16 %v5284
    %v6599 = vunpack.c.l.b16 %v5285
    %v6600 = vunpack.c.h.b16 %v5285
    %v6601 = vunpack.c.l.b16 %v5286
    %v6602 = vunpack.c.h.b16 %v5286
    %v6603 = vunpack.c.l.b16 %v5287
    %v6604 = vunpack.c.h.b16 %v5287
    %v6605 = vunpack.c.l.b16 %v5288
    %v6606 = vunpack.c.h.b16 %v5288
    %v6607 = vunpack.c.l.b16 %v5289
    %v6608 = vunpack.c.h.b16 %v5289
    %v6609 = vunpack.c.l.b16 %v5290
    %v6610 = vunpack.c.h.b16 %v5290
    %v6611 = vunpack.c.l.b16 %v5291
    %v6612 = vunpack.c.h.b16 %v5291
    %v6613 = vunpack.c.l.b16 %v5292
    %v6614 = vunpack.c.h.b16 %v5292
    %v6615 = vunpack.c.l.b16 %v5293
    %v6616 = vunpack.c.h.b16 %v5293
    %v6617 = vunpack.c.l.b16 %v5294
    %v6618 = vunpack.c.h.b16 %v5294
    %v6619 = vunpack.c.l.b16 %v5295
    %v6620 = vunpack.c.h.b16 %v5295
    %v6621 = vunpack.c.l.b16 %v5296
    %v6622 = vunpack.c.h.b16 %v5296
    %v6623 = vunpack.c.l.b16 %v5297
    %v6624 = vunpack.c.h.b16 %v5297
    %v6625 = vunpack.c.l.b16 %v5298
    %v6626 = vunpack.c.h.b16 %v5298
    %v6627 = vunpack.c.l.b16 %v5299
    %v6628 = vunpack.c.h.b16 %v5299
    %v6629 = vunpack.c.l.b16 %v5300
    %v6630 = vunpack.c.h.b16 %v5300
    %v6631 = vunpack.c.l.b16 %v5301
    %v6632 = vunpack.c.h.b16 %v5301
    %v6633 = vunpack.c.l.b16 %v5302
    %v6634 = vunpack.c.h.b16 %v5302
    %v6635 = vunpack.c.l.b16 %v5303
    %v6636 = vunpack.c.h.b16 %v5303
    %v6637 = vunpack.c.l.b16 %v5304
    %v6638 = vunpack.c.h.b16 %v5304
    %v6639 = vunpack.c.l.b16 %v5305
    %v6640 = vunpack.c.h.b16 %v5305
    %v6641 = vunpack.c.l.b16 %v5306
    %v6642 = vunpack.c.h.b16 %v5306
    %v6643 = vunpack.c.l.b16 %v5307
    %v6644 = vunpack.c.h.b16 %v5307
    %v6645 = vunpack.c.l.b16 %v5308
    %v6646 = vunpack.c.h.b16 %v5308
    %v6647 = vunpack.c.l.b16 %v5309
    %v6648 = vunpack.c.h.b16 %v5309
    %v6649 = vunpack.c.l.b16 %v5310
    %v6650 = vunpack.c.h.b16 %v5310
    %v6651 = vunpack.c.l.b16 %v5311
    %v6652 = vunpack.c.h.b16 %v5311
    %v6653 = vunpack.c.l.b16 %v5312
    %v6654 = vunpack.c.h.b16 %v5312
    %v6655 = vunpack.c.l.b16 %v5313
    %v6656 = vunpack.c.h.b16 %v5313
    %v6657 = vunpack.c.l.b16 %v5314
    %v6658 = vunpack.c.h.b16 %v5314
    %v6659 = vunpack.c.l.b16 %v5315
    %v6660 = vunpack.c.h.b16 %v5315
    %v6661 = vunpack.c.l.b16 %v5316
    %v6662 = vunpack.c.h.b16 %v5316
    %v6663 = vunpack.c.l.b16 %v5317
    %v6664 = vunpack.c.h.b16 %v5317
    %v6665 = vunpack.c.l.b16 %v5318
    %v6666 = vunpack.c.h.b16 %v5318
    %v6667 = vunpack.c.l.b16 %v5319
    %v6668 = vunpack.c.h.b16 %v5319
    %v6669 = vunpack.c.l.b16 %v5320
    %v6670 = vunpack.c.h.b16 %v5320
    %v6671 = vunpack.c.l.b16 %v5321
    %v6672 = vunpack.c.h.b16 %v5321
    %v6673 = vunpack.c.l.b16 %v5322
    %v6674 = vunpack.c.h.b16 %v5322
    %v6675 = vunpack.c.l.b16 %v5323
    %v6676 = vunpack.c.h.b16 %v5323
    %v6677 = vunpack.c.l.b16 %v5324
    %v6678 = vunpack.c.h.b16 %v5324
    %v6679 = vunpack.c.l.b16 %v5325
    %v6680 = vunpack.c.h.b16 %v5325
    %v6681 = vunpack.c.l.b16 %v5326
    %v6682 = vunpack.c.h.b16 %v5326
    %v6683 = vunpack.c.l.b16 %v5327
    %v6684 = vunpack.c.h.b16 %v5327
    %v6685 = vunpack.c.l.b16 %v5328
    %v6686 = vunpack.c.h.b16 %v5328
    %v6687 = vunpack.c.l.b16 %v5329
    %v6688 = vunpack.c.h.b16 %v5329
    %v6689 = vunpack.c.l.b16 %v5330
    %v6690 = vunpack.c.h.b16 %v5330
    %v6691 = vunpack.c.l.b16 %v5331
    %v6692 = vunpack.c.h.b16 %v5331
    %v6693 = vunpack.c.l.b16 %v5332
    %v6694 = vunpack.c.h.b16 %v5332
    %v6695 = vunpack.c.l.b16 %v5333
    %v6696 = vunpack.c.h.b16 %v5333
    %v6697 = vunpack.c.l.b16 %v5334
    %v6698 = vunpack.c.h.b16 %v5334
    %v6699 = vunpack.c.l.b16 %v5335
    %v6700 = vunpack.c.h.b16 %v5335
    %v6701 = vunpack.c.l.b16 %v5336
    %v6702 = vunpack.c.h.b16 %v5336
    %v6703 = vunpack.c.l.b16 %v5337
    %v6704 = vunpack.c.h.b16 %v5337
    %v6705 = vunpack.c.l.b16 %v5338
    %v6706 = vunpack.c.h.b16 %v5338
    %v6707 = vunpack.c.l.b16 %v5339
    %v6708 = vunpack.c.h.b16 %v5339
    %v6709 = vunpack.c.l.b16 %v5340
    %v6710 = vunpack.c.h.b16 %v5340
    %v6711 = vunpack.c.l.b16 %v5341
    %v6712 = vunpack.c.h.b16 %v5341
    %v6713 = vunpack.c.l.b16 %v5342
    %v6714 = vunpack.c.h.b16 %v5342
    %v6715 = vunpack.c.l.b16 %v5343
    %v6716 = vunpack.c.h.b16 %v5343
    %v6717 = vunpack.c.l.b16 %v5344
    %v6718 = vunpack.c.h.b16 %v5344
    %v6719 = vunpack.c.l.b16 %v5345
    %v6720 = vunpack.c.h.b16 %v5345
    %v6721 = vunpack.c.l.b16 %v5346
    %v6722 = vunpack.c.h.b16 %v5346
    %v6723 = vunpack.c.l.b16 %v5347
    %v6724 = vunpack.c.h.b16 %v5347
    %v6725 = vunpack.c.l.b16 %v5348
    %v6726 = vunpack.c.h.b16 %v5348
    %v6727 = vunpack.c.l.b16 %v5349
    %v6728 = vunpack.c.h.b16 %v5349
    %v6729 = vunpack.c.l.b16 %v5350
    %v6730 = vunpack.c.h.b16 %v5350
    %v6731 = vunpack.c.l.b16 %v5351
    %v6732 = vunpack.c.h.b16 %v5351
    %v6733 = vunpack.c.l.b16 %v5352
    %v6734 = vunpack.c.h.b16 %v5352
    %v6735 = vunpack.c.l.b16 %v5353
    %v6736 = vunpack.c.h.b16 %v5353
    %v6737 = vunpack.c.l.b16 %v5354
    %v6738 = vunpack.c.h.b16 %v5354
    %v6739 = vunpack.c.l.b16 %v5355
    %v6740 = vunpack.c.h.b16 %v5355
    %v6741 = vunpack.c.l.b16 %v5356
    %v6742 = vunpack.c.h.b16 %v5356
    %v6743 = vunpack.c.l.b16 %v5357
    %v6744 = vunpack.c.h.b16 %v5357
    %v6745 = vunpack.c.l.b16 %v5358
    %v6746 = vunpack.c.h.b16 %v5358
    %v6747 = vunpack.c.l.b16 %v5359
    %v6748 = vunpack.c.h.b16 %v5359
    %v6749 = vunpack.c.l.b16 %v5360
    %v6750 = vunpack.c.h.b16 %v5360
    %v6751 = vunpack.c.l.b16 %v5361
    %v6752 = vunpack.c.h.b16 %v5361
    %v6753 = vunpack.c.l.b16 %v5362
    %v6754 = vunpack.c.h.b16 %v5362
    %v6755 = vunpack.c.l.b16 %v5363
    %v6756 = vunpack.c.h.b16 %v5363
    %v6757 = vunpack.c.l.b16 %v5364
    %v6758 = vunpack.c.h.b16 %v5364
    %v6759 = vunpack.c.l.b16 %v5365
    %v6760 = vunpack.c.h.b16 %v5365
    %v6761 = vunpack.c.l.b16 %v5366
    %v6762 = vunpack.c.h.b16 %v5366
    %v6763 = vunpack.c.l.b16 %v5367
    %v6764 = vunpack.c.h.b16 %v5367
    %v6765 = vunpack.c.l.b16 %v5368
    %v6766 = vunpack.c.h.b16 %v5368
    %v6767 = vunpack.c.l.b16 %v5369
    %v6768 = vunpack.c.h.b16 %v5369
    %v6769 = vunpack.c.l.b16 %v5370
    %v6770 = vunpack.c.h.b16 %v5370
    %v6771 = vunpack.c.l.b16 %v5371
    %v6772 = vunpack.c.h.b16 %v5371
    %v6773 = vunpack.c.l.b16 %v5372
    %v6774 = vunpack.c.h.b16 %v5372
    %v6775 = vunpack.c.l.b16 %v5373
    %v6776 = vunpack.c.h.b16 %v5373
    %v6777 = vunpack.c.l.b16 %v5374
    %v6778 = vunpack.c.h.b16 %v5374
    %v6779 = vunpack.c.l.b16 %v5375
    %v6780 = vunpack.c.h.b16 %v5375
    %v6781 = vunpack.c.l.b16 %v5376
    %v6782 = vunpack.c.h.b16 %v5376
    %v6783 = vunpack.c.l.b16 %v5377
    %v6784 = vunpack.c.h.b16 %v5377
    %v6785 = vunpack.c.l.b16 %v5378
    %v6786 = vunpack.c.h.b16 %v5378
    %v6787 = vunpack.c.l.b16 %v5379
    %v6788 = vunpack.c.h.b16 %v5379
    %v6789 = vunpack.c.l.b16 %v5380
    %v6790 = vunpack.c.h.b16 %v5380
    %v6791 = vunpack.c.l.b16 %v5381
    %v6792 = vunpack.c.h.b16 %v5381
    %v6793 = vunpack.c.l.b16 %v5382
    %v6794 = vunpack.c.h.b16 %v5382
    %v6795 = vunpack.c.l.b16 %v5383
    %v6796 = vunpack.c.h.b16 %v5383
    %v6797 = vunpack.c.l.b16 %v5384
    %v6798 = vunpack.c.h.b16 %v5384
    %v6799 = vunpack.c.l.b16 %v5385
    %v6800 = vunpack.c.h.b16 %v5385
    %v6801 = vunpack.c.l.b16 %v5386
    %v6802 = vunpack.c.h.b16 %v5386
    %v6803 = vunpack.c.l.b16 %v5387
    %v6804 = vunpack.c.h.b16 %v5387
    %v6805 = vunpack.c.l.b16 %v5388
    %v6806 = vunpack.c.h.b16 %v5388
    %v6807 = vunpack.c.l.b16 %v5389
    %v6808 = vunpack.c.h.b16 %v5389
    %v6809 = vunpack.c.l.b16 %v5390
    %v6810 = vunpack.c.h.b16 %v5390
    %v6811 = vunpack.c.l.b16 %v5391
    %v6812 = vunpack.c.h.b16 %v5391
    %v6813 = vunpack.c.l.b16 %v5392
    %v6814 = vunpack.c.h.b16 %v5392
    %v6815 = vunpack.c.l.b16 %v5393
    %v6816 = vunpack.c.h.b16 %v5393
    %v6817 = vunpack.c.l.b16 %v5394
    %v6818 = vunpack.c.h.b16 %v5394
    %v6819 = vunpack.c.l.b16 %v5395
    %v6820 = vunpack.c.h.b16 %v5395
    %v6821 = vunpack.c.l.b16 %v5396
    %v6822 = vunpack.c.h.b16 %v5396
    %v6823 = vunpack.c.l.b16 %v5397
    %v6824 = vunpack.c.h.b16 %v5397
    %v6825 = vunpack.c.l.b16 %v5398
    %v6826 = vunpack.c.h.b16 %v5398
    %v6827 = vunpack.c.l.b16 %v5399
    %v6828 = vunpack.c.h.b16 %v5399
    %v6829 = vunpack.c.l.b16 %v5400
    %v6830 = vunpack.c.h.b16 %v5400
    %v6831 = vunpack.c.l.b16 %v5401
    %v6832 = vunpack.c.h.b16 %v5401
    %v6833 = vunpack.c.l.b16 %v5402
    %v6834 = vunpack.c.h.b16 %v5402
    %v6835 = vunpack.c.l.b16 %v5403
    %v6836 = vunpack.c.h.b16 %v5403
    %v6837 = vunpack.c.l.b16 %v5404
    %v6838 = vunpack.c.h.b16 %v5404
    %v6839 = vunpack.c.l.b16 %v5405
    %v6840 = vunpack.c.h.b16 %v5405
    %v6841 = vunpack.c.l.b16 %v5406
    %v6842 = vunpack.c.h.b16 %v5406
    %v6843 = vunpack.c.l.b16 %v5407
    %v6844 = vunpack.c.h.b16 %v5407
    %v6845 = vunpack.c.l.b16 %v5408
    %v6846 = vunpack.c.h.b16 %v5408
    %v6847 = vunpack.c.l.b16 %v5409
    %v6848 = vunpack.c.h.b16 %v5409
    %v6849 = vunpack.c.l.b16 %v5410
    %v6850 = vunpack.c.h.b16 %v5410
    %v6851 = vunpack.c.l.b16 %v5411
    %v6852 = vunpack.c.h.b16 %v5411
    %v6853 = vunpack.c.l.b16 %v5412
    %v6854 = vunpack.c.h.b16 %v5412
    %v6855 = vunpack.c.l.b16 %v5413
    %v6856 = vunpack.c.h.b16 %v5413
    %v6857 = vunpack.c.l.b16 %v5414
    %v6858 = vunpack.c.h.b16 %v5414
    %v6859 = vunpack.c.l.b16 %v5415
    %v6860 = vunpack.c.h.b16 %v5415
    %v6861 = vunpack.c.l.b16 %v5416
    %v6862 = vunpack.c.h.b16 %v5416
    %v6863 = vunpack.c.l.b16 %v5417
    %v6864 = vunpack.c.h.b16 %v5417
    %v6865 = vunpack.c.l.b16 %v5418
    %v6866 = vunpack.c.h.b16 %v5418
    %v6867 = vunpack.c.l.b16 %v5419
    %v6868 = vunpack.c.h.b16 %v5419
    %v6869 = vunpack.c.l.b16 %v5420
    %v6870 = vunpack.c.h.b16 %v5420
    %v6871 = vunpack.c.l.b16 %v5421
    %v6872 = vunpack.c.h.b16 %v5421
    %v6873 = vunpack.c.l.b16 %v5422
    %v6874 = vunpack.c.h.b16 %v5422
    %v6875 = vunpack.c.l.b16 %v5423
    %v6876 = vunpack.c.h.b16 %v5423
    %v6877 = vunpack.c.l.b16 %v5424
    %v6878 = vunpack.c.h.b16 %v5424
    %v6879 = vunpack.c.l.b16 %v5425
    %v6880 = vunpack.c.h.b16 %v5425
    %v6881 = vunpack.c.l.b16 %v5426
    %v6882 = vunpack.c.h.b16 %v5426
    %v6883 = vunpack.c.l.b16 %v5427
    %v6884 = vunpack.c.h.b16 %v5427
    %v6885 = vunpack.c.l.b16 %v5428
    %v6886 = vunpack.c.h.b16 %v5428
    %v6887 = vunpack.c.l.b16 %v5429
    %v6888 = vunpack.c.h.b16 %v5429
    %v6889 = vunpack.c.l.b16 %v5430
    %v6890 = vunpack.c.h.b16 %v5430
    %v6891 = vunpack.c.l.b16 %v5431
    %v6892 = vunpack.c.h.b16 %v5431
    %v6893 = vunpack.c.l.b16 %v5432
    %v6894 = vunpack.c.h.b16 %v5432
    %v6895 = vunpack.c.l.b16 %v5433
    %v6896 = vunpack.c.h.b16 %v5433
    %v6897 = vunpack.c.l.b16 %v5434
    %v6898 = vunpack.c.h.b16 %v5434
    %v6899 = vunpack.c.l.b16 %v5435
    %v6900 = vunpack.c.h.b16 %v5435
    %v6901 = vunpack.c.l.b16 %v5436
    %v6902 = vunpack.c.h.b16 %v5436
    %v6903 = vunpack.c.l.b16 %v5437
    %v6904 = vunpack.c.h.b16 %v5437
    %v6905 = vunpack.c.l.b16 %v5438
    %v6906 = vunpack.c.h.b16 %v5438
    %v6907 = vunpack.c.l.b16 %v5439
    %v6908 = vunpack.c.h.b16 %v5439
    %v6909 = vunpack.c.l.b16 %v5440
    %v6910 = vunpack.c.h.b16 %v5440
    %v6911 = vunpack.c.l.b16 %v5441
    %v6912 = vunpack.c.h.b16 %v5441
    %v6913 = vunpack.c.l.b16 %v5442
    %v6914 = vunpack.c.h.b16 %v5442
    %v6915 = vunpack.c.l.b16 %v5443
    %v6916 = vunpack.c.h.b16 %v5443
    %v6917 = vunpack.c.l.b16 %v5444
    %v6918 = vunpack.c.h.b16 %v5444
    %v6919 = vunpack.c.l.b16 %v5445
    %v6920 = vunpack.c.h.b16 %v5445
    %v6921 = vunpack.c.l.b16 %v5446
    %v6922 = vunpack.c.h.b16 %v5446
    %v6923 = vunpack.c.l.b16 %v5447
    %v6924 = vunpack.c.h.b16 %v5447
    %v6925 = vunpack.c.l.b16 %v5448
    %v6926 = vunpack.c.h.b16 %v5448
    %v6927 = vunpack.c.l.b16 %v5449
    %v6928 = vunpack.c.h.b16 %v5449
    %v6929 = vunpack.c.l.b16 %v5450
    %v6930 = vunpack.c.h.b16 %v5450
    %v6931 = vunpack.c.l.b16 %v5451
    %v6932 = vunpack.c.h.b16 %v5451
    %v6933 = vunpack.c.l.b16 %v5452
    %v6934 = vunpack.c.h.b16 %v5452
    %v6935 = vunpack.c.l.b16 %v5453
    %v6936 = vunpack.c.h.b16 %v5453
    %v6937 = vunpack.c.l.b16 %v5454
    %v6938 = vunpack.c.h.b16 %v5454
    %v6939 = vunpack.c.l.b16 %v5455
    %v6940 = vunpack.c.h.b16 %v5455
    %v6941 = vunpack.c.l.b16 %v5456
    %v6942 = vunpack.c.h.b16 %v5456
    %v6943 = vunpack.c.l.b16 %v5457
    %v6944 = vunpack.c.h.b16 %v5457
    %v6945 = vunpack.c.l.b16 %v5458
    %v6946 = vunpack.c.h.b16 %v5458
    %v6947 = vunpack.c.l.b16 %v5459
    %v6948 = vunpack.c.h.b16 %v5459
    %v6949 = vunpack.c.l.b16 %v5460
    %v6950 = vunpack.c.h.b16 %v5460
    %v6951 = vunpack.c.l.b16 %v5461
    %v6952 = vunpack.c.h.b16 %v5461
    %v6953 = vunpack.c.l.b16 %v5462
    %v6954 = vunpack.c.h.b16 %v5462
    %v6955 = vunpack.c.l.b16 %v5463
    %v6956 = vunpack.c.h.b16 %v5463
    %v6957 = vunpack.c.l.b16 %v5464
    %v6958 = vunpack.c.h.b16 %v5464
    %v6959 = vunpack.c.l.b16 %v5465
    %v6960 = vunpack.c.h.b16 %v5465
    %v6961 = vunpack.c.l.b16 %v5466
    %v6962 = vunpack.c.h.b16 %v5466
    %v6963 = vunpack.c.l.b16 %v5467
    %v6964 = vunpack.c.h.b16 %v5467
    %v6965 = vunpack.c.l.b16 %v5468
    %v6966 = vunpack.c.h.b16 %v5468
    %v6967 = vunpack.c.l.b16 %v5469
    %v6968 = vunpack.c.h.b16 %v5469
    %v6969 = vunpack.c.l.b16 %v5470
    %v6970 = vunpack.c.h.b16 %v5470
    %v6971 = vunpack.c.l.b16 %v5471
    %v6972 = vunpack.c.h.b16 %v5471
    %v6973 = vunpack.c.l.b16 %v5472
    %v6974 = vunpack.c.h.b16 %v5472
    %v6975 = vunpack.c.l.b16 %v5473
    %v6976 = vunpack.c.h.b16 %v5473
    %v6977 = vunpack.c.l.b16 %v5474
    %v6978 = vunpack.c.h.b16 %v5474
    %v6979 = vunpack.c.l.b16 %v5475
    %v6980 = vunpack.c.h.b16 %v5475
    %v6981 = vunpack.c.l.b16 %v5476
    %v6982 = vunpack.c.h.b16 %v5476
    %v6983 = vunpack.c.l.b16 %v5477
    %v6984 = vunpack.c.h.b16 %v5477
    %v6985 = vunpack.c.l.b16 %v5478
    %v6986 = vunpack.c.h.b16 %v5478
    %v6987 = vunpack.c.l.b16 %v5479
    %v6988 = vunpack.c.h.b16 %v5479
    %v6989 = vunpack.c.l.b16 %v5480
    %v6990 = vunpack.c.h.b16 %v5480
    %v6991 = vunpack.c.l.b16 %v5481
    %v6992 = vunpack.c.h.b16 %v5481
    %v6993 = vunpack.c.l.b16 %v5482
    %v6994 = vunpack.c.h.b16 %v5482
    %v6995 = vunpack.c.l.b16 %v5483
    %v6996 = vunpack.c.h.b16 %v5483
    %v6997 = vunpack.c.l.b16 %v5484
    %v6998 = vunpack.c.h.b16 %v5484
    %v6999 = vunpack.c.l.b16 %v5485
    %v7000 = vunpack.c.h.b16 %v5485
    %v7001 = vunpack.c.l.b16 %v5486
    %v7002 = vunpack.c.h.b16 %v5486
    %v7003 = vunpack.c.l.b16 %v5487
    %v7004 = vunpack.c.h.b16 %v5487
    %v7005 = vunpack.c.l.b16 %v5488
    %v7006 = vunpack.c.h.b16 %v5488
    %v7007 = vunpack.c.l.b16 %v5489
    %v7008 = vunpack.c.h.b16 %v5489
    %v7009 = vunpack.c.l.b16 %v5490
    %v7010 = vunpack.c.h.b16 %v5490
    %v7011 = vunpack.c.l.b16 %v5491
    %v7012 = vunpack.c.h.b16 %v5491
    %v7013 = vunpack.c.l.b16 %v5492
    %v7014 = vunpack.c.h.b16 %v5492
    %v7015 = vunpack.c.l.b16 %v5493
    %v7016 = vunpack.c.h.b16 %v5493
    %v7017 = vunpack.c.l.b16 %v5494
    %v7018 = vunpack.c.h.b16 %v5494
    %v7019 = vunpack.c.l.b16 %v5495
    %v7020 = vunpack.c.h.b16 %v5495
    %v7021 = vunpack.c.l.b16 %v5496
    %v7022 = vunpack.c.h.b16 %v5496
    %v7023 = vunpack.c.l.b16 %v5497
    %v7024 = vunpack.c.h.b16 %v5497
    %v7025 = vunpack.c.l.b16 %v5498
    %v7026 = vunpack.c.h.b16 %v5498
    %v7027 = vunpack.c.l.b16 %v5499
    %v7028 = vunpack.c.h.b16 %v5499
    %v7029 = vunpack.c.l.b16 %v5500
    %v7030 = vunpack.c.h.b16 %v5500
    %v7031 = vunpack.c.l.b16 %v5501
    %v7032 = vunpack.c.h.b16 %v5501
    %v7033 = vunpack.c.l.b16 %v5502
    %v7034 = vunpack.c.h.b16 %v5502
    %v7035 = vunpack.c.l.b16 %v5503
    %v7036 = vunpack.c.h.b16 %v5503
    %v7037 = vunpack.c.l.b16 %v5504
    %v7038 = vunpack.c.h.b16 %v5504
    %v7039 = vunpack.c.l.b16 %v5505
    %v7040 = vunpack.c.h.b16 %v5505
    %v7041 = vunpack.c.l.b16 %v5506
    %v7042 = vunpack.c.h.b16 %v5506
    %v7043 = vunpack.c.l.b16 %v5507
    %v7044 = vunpack.c.h.b16 %v5507
    %v7045 = vunpack.c.l.b16 %v5508
    %v7046 = vunpack.c.h.b16 %v5508
    %v7047 = vunpack.c.l.b16 %v5509
    %v7048 = vunpack.c.h.b16 %v5509
    %v7049 = vunpack.c.l.b16 %v5510
    %v7050 = vunpack.c.h.b16 %v5510
    %v7051 = vunpack.c.l.b16 %v5511
    %v7052 = vunpack.c.h.b16 %v5511
    %v7053 = vunpack.c.l.b16 %v5512
    %v7054 = vunpack.c.h.b16 %v5512
    %v7055 = vunpack.c.l.b16 %v5513
    %v7056 = vunpack.c.h.b16 %v5513
    %v7057 = vunpack.c.l.b16 %v5514
    %v7058 = vunpack.c.h.b16 %v5514
    %v7059 = vunpack.c.l.b16 %v5515
    %v7060 = vunpack.c.h.b16 %v5515
    %v7061 = vunpack.c.l.b16 %v5516
    %v7062 = vunpack.c.h.b16 %v5516
    %v7063 = vunpack.c.l.b16 %v5517
    %v7064 = vunpack.c.h.b16 %v5517
    %v7065 = vunpack.c.l.b16 %v5518
    %v7066 = vunpack.c.h.b16 %v5518
    %v7067 = vunpack.c.l.b16 %v5519
    %v7068 = vunpack.c.h.b16 %v5519
    %v7069 = vunpack.c.l.b16 %v5520
    %v7070 = vunpack.c.h.b16 %v5520
    %v7071 = vunpack.c.l.b16 %v5521
    %v7072 = vunpack.c.h.b16 %v5521
    %v7073 = vunpack.c.l.b16 %v5522
    %v7074 = vunpack.c.h.b16 %v5522
    %v7075 = vunpack.c.l.b16 %v5523
    %v7076 = vunpack.c.h.b16 %v5523
    %v7077 = vunpack.c.l.b16 %v5524
    %v7078 = vunpack.c.h.b16 %v5524
    %v7079 = vunpack.c.l.b16 %v5525
    %v7080 = vunpack.c.h.b16 %v5525
    %v7081 = vunpack.c.l.b16 %v5526
    %v7082 = vunpack.c.h.b16 %v5526
    %v7083 = vunpack.c.l.b16 %v5527
    %v7084 = vunpack.c.h.b16 %v5527
    %v7085 = vunpack.c.l.b16 %v5528
    %v7086 = vunpack.c.h.b16 %v5528
    %v7087 = vunpack.c.l.b16 %v5529
    %v7088 = vunpack.c.h.b16 %v5529
    %v7089 = vunpack.c.l.b16 %v5530
    %v7090 = vunpack.c.h.b16 %v5530
    %v7091 = vunpack.c.l.b16 %v5531
    %v7092 = vunpack.c.h.b16 %v5531
    %v7093 = vunpack.c.l.b16 %v5532
    %v7094 = vunpack.c.h.b16 %v5532
    %v7095 = vunpack.c.l.b16 %v5533
    %v7096 = vunpack.c.h.b16 %v5533
    %v7097 = vunpack.c.l.b16 %v5534
    %v7098 = vunpack.c.h.b16 %v5534
    %v7099 = vunpack.c.l.b16 %v5535
    %v7100 = vunpack.c.h.b16 %v5535
    %v7101 = vunpack.c.l.b16 %v5536
    %v7102 = vunpack.c.h.b16 %v5536
    %v7103 = vunpack.c.l.b16 %v5537
    %v7104 = vunpack.c.h.b16 %v5537
    %v7105 = vunpack.c.l.b16 %v5538
    %v7106 = vunpack.c.h.b16 %v5538
    %v7107 = vunpack.c.l.b16 %v5539
    %v7108 = vunpack.c.h.b16 %v5539
    %v7109 = vunpack.c.l.b16 %v5540
    %v7110 = vunpack.c.h.b16 %v5540
    %v7111 = vunpack.c.l.b16 %v5541
    %v7112 = vunpack.c.h.b16 %v5541
    %v7113 = vunpack.c.l.b16 %v5542
    %v7114 = vunpack.c.h.b16 %v5542
    %v7115 = vunpack.c.l.b16 %v5543
    %v7116 = vunpack.c.h.b16 %v5543
    %v7117 = vunpack.c.l.b16 %v5544
    %v7118 = vunpack.c.h.b16 %v5544
    %v7119 = vunpack.c.l.b16 %v5545
    %v7120 = vunpack.c.h.b16 %v5545
    %v7121 = vunpack.c.l.b16 %v5546
    %v7122 = vunpack.c.h.b16 %v5546
    %v7123 = vunpack.c.l.b16 %v5547
    %v7124 = vunpack.c.h.b16 %v5547
    %v7125 = vunpack.c.l.b16 %v5548
    %v7126 = vunpack.c.h.b16 %v5548
    %v7127 = vpack.c.b16 %v6111, %v6103
    %v7128 = vpack.c.b16 %v6112, %v6104
    %v7129 = vpack.c.b16 %v6113, %v6105
    %v7130 = vpack.c.b16 %v6114, %v6106
    %v7131 = vpack.c.b16 %v6115, %v6107
    %v7132 = vpack.c.b16 %v6116, %v6108
    %v7133 = vpack.c.b16 %v6117, %v6109
    %v7134 = vpack.c.b16 %v6118, %v6110
    %v7135 = vpack.c.b16 %v6127, %v6119
    %v7136 = vpack.c.b16 %v6128, %v6120
    %v7137 = vpack.c.b16 %v6129, %v6121
    %v7138 = vpack.c.b16 %v6130, %v6122
    %v7139 = vpack.c.b16 %v6131, %v6123
    %v7140 = vpack.c.b16 %v6132, %v6124
    %v7141 = vpack.c.b16 %v6133, %v6125
    %v7142 = vpack.c.b16 %v6134, %v6126
    %v7143 = vpack.c.b16 %v6143, %v6135
    %v7144 = vpack.c.b16 %v6144, %v6136
    %v7145 = vpack.c.b16 %v6145, %v6137
    %v7146 = vpack.c.b16 %v6146, %v6138
    %v7147 = vpack.c.b16 %v6147, %v6139
    %v7148 = vpack.c.b16 %v6148, %v6140
    %v7149 = vpack.c.b16 %v6149, %v6141
    %v7150 = vpack.c.b16 %v6150, %v6142
    %v7151 = vpack.c.b16 %v6159, %v6151
    %v7152 = vpack.c.b16 %v6160, %v6152
    %v7153 = vpack.c.b16 %v6161, %v6153
    %v7154 = vpack.c.b16 %v6162, %v6154
    %v7155 = vpack.c.b16 %v6163, %v6155
    %v7156 = vpack.c.b16 %v6164, %v6156
    %v7157 = vpack.c.b16 %v6165, %v6157
    %v7158 = vpack.c.b16 %v6166, %v6158
    %v7159 = vpack.c.b16 %v6175, %v6167
    %v7160 = vpack.c.b16 %v6176, %v6168
    %v7161 = vpack.c.b16 %v6177, %v6169
    %v7162 = vpack.c.b16 %v6178, %v6170
    %v7163 = vpack.c.b16 %v6179, %v6171
    %v7164 = vpack.c.b16 %v6180, %v6172
    %v7165 = vpack.c.b16 %v6181, %v6173
    %v7166 = vpack.c.b16 %v6182, %v6174
    %v7167 = vpack.c.b16 %v6191, %v6183
    %v7168 = vpack.c.b16 %v6192, %v6184
    %v7169 = vpack.c.b16 %v6193, %v6185
    %v7170 = vpack.c.b16 %v6194, %v6186
    %v7171 = vpack.c.b16 %v6195, %v6187
    %v7172 = vpack.c.b16 %v6196, %v6188
    %v7173 = vpack.c.b16 %v6197, %v6189
    %v7174 = vpack.c.b16 %v6198, %v6190
    %v7175 = vpack.c.b16 %v6207, %v6199
    %v7176 = vpack.c.b16 %v6208, %v6200
    %v7177 = vpack.c.b16 %v6209, %v6201
    %v7178 = vpack.c.b16 %v6210, %v6202
    %v7179 = vpack.c.b16 %v6211, %v6203
    %v7180 = vpack.c.b16 %v6212, %v6204
    %v7181 = vpack.c.b16 %v6213, %v6205
    %v7182 = vpack.c.b16 %v6214, %v6206
    %v7183 = vpack.c.b16 %v6223, %v6215
    %v7184 = vpack.c.b16 %v6224, %v6216
    %v7185 = vpack.c.b16 %v6225, %v6217
    %v7186 = vpack.c.b16 %v6226, %v6218
    %v7187 = vpack.c.b16 %v6227, %v6219
    %v7188 = vpack.c.b16 %v6228, %v6220
    %v7189 = vpack.c.b16 %v6229, %v6221
    %v7190 = vpack.c.b16 %v6230, %v6222
    %v7191 = vpack.c.b16 %v6239, %v6231
    %v7192 = vpack.c.b16 %v6240, %v6232
    %v7193 = vpack.c.b16 %v6241, %v6233
    %v7194 = vpack.c.b16 %v6242, %v6234
    %v7195 = vpack.c.b16 %v6243, %v6235
    %v7196 = vpack.c.b16 %v6244, %v6236
    %v7197 = vpack.c.b16 %v6245, %v6237
    %v7198 = vpack.c.b16 %v6246, %v6238
    %v7199 = vpack.c.b16 %v6255, %v6247
    %v7200 = vpack.c.b16 %v6256, %v6248
    %v7201 = vpack.c.b16 %v6257, %v6249
    %v7202 = vpack.c.b16 %v6258, %v6250
    %v7203 = vpack.c.b16 %v6259, %v6251
    %v7204 = vpack.c.b16 %v6260, %v6252
    %v7205 = vpack.c.b16 %v6261, %v6253
    %v7206 = vpack.c.b16 %v6262, %v6254
    %v7207 = vpack.c.b16 %v6271, %v6263
    %v7208 = vpack.c.b16 %v6272, %v6264
    %v7209 = vpack.c.b16 %v6273, %v6265
    %v7210 = vpack.c.b16 %v6274, %v6266
    %v7211 = vpack.c.b16 %v6275, %v6267
    %v7212 = vpack.c.b16 %v6276, %v6268
    %v7213 = vpack.c.b16 %v6277, %v6269
    %v7214 = vpack.c.b16 %v6278, %v6270
    %v7215 = vpack.c.b16 %v6287, %v6279
    %v7216 = vpack.c.b16 %v6288, %v6280
    %v7217 = vpack.c.b16 %v6289, %v6281
    %v7218 = vpack.c.b16 %v6290, %v6282
    %v7219 = vpack.c.b16 %v6291, %v6283
    %v7220 = vpack.c.b16 %v6292, %v6284
    %v7221 = vpack.c.b16 %v6293, %v6285
    %v7222 = vpack.c.b16 %v6294, %v6286
    %v7223 = vpack.c.b16 %v6303, %v6295
    %v7224 = vpack.c.b16 %v6304, %v6296
    %v7225 = vpack.c.b16 %v6305, %v6297
    %v7226 = vpack.c.b16 %v6306, %v6298
    %v7227 = vpack.c.b16 %v6307, %v6299
    %v7228 = vpack.c.b16 %v6308, %v6300
    %v7229 = vpack.c.b16 %v6309, %v6301
    %v7230 = vpack.c.b16 %v6310, %v6302
    %v7231 = vpack.c.b16 %v6319, %v6311
    %v7232 = vpack.c.b16 %v6320, %v6312
    %v7233 = vpack.c.b16 %v6321, %v6313
    %v7234 = vpack.c.b16 %v6322, %v6314
    %v7235 = vpack.c.b16 %v6323, %v6315
    %v7236 = vpack.c.b16 %v6324, %v6316
    %v7237 = vpack.c.b16 %v6325, %v6317
    %v7238 = vpack.c.b16 %v6326, %v6318
    %v7239 = vpack.c.b16 %v6335, %v6327
    %v7240 = vpack.c.b16 %v6336, %v6328
    %v7241 = vpack.c.b16 %v6337, %v6329
    %v7242 = vpack.c.b16 %v6338, %v6330
    %v7243 = vpack.c.b16 %v6339, %v6331
    %v7244 = vpack.c.b16 %v6340, %v6332
    %v7245 = vpack.c.b16 %v6341, %v6333
    %v7246 = vpack.c.b16 %v6342, %v6334
    %v7247 = vpack.c.b16 %v6351, %v6343
    %v7248 = vpack.c.b16 %v6352, %v6344
    %v7249 = vpack.c.b16 %v6353, %v6345
    %v7250 = vpack.c.b16 %v6354, %v6346
    %v7251 = vpack.c.b16 %v6355, %v6347
    %v7252 = vpack.c.b16 %v6356, %v6348
    %v7253 = vpack.c.b16 %v6357, %v6349
    %v7254 = vpack.c.b16 %v6358, %v6350
    %v7255 = vpack.c.b16 %v6367, %v6359
    %v7256 = vpack.c.b16 %v6368, %v6360
    %v7257 = vpack.c.b16 %v6369, %v6361
    %v7258 = vpack.c.b16 %v6370, %v6362
    %v7259 = vpack.c.b16 %v6371, %v6363
    %v7260 = vpack.c.b16 %v6372, %v6364
    %v7261 = vpack.c.b16 %v6373, %v6365
    %v7262 = vpack.c.b16 %v6374, %v6366
    %v7263 = vpack.c.b16 %v6383, %v6375
    %v7264 = vpack.c.b16 %v6384, %v6376
    %v7265 = vpack.c.b16 %v6385, %v6377
    %v7266 = vpack.c.b16 %v6386, %v6378
    %v7267 = vpack.c.b16 %v6387, %v6379
    %v7268 = vpack.c.b16 %v6388, %v6380
    %v7269 = vpack.c.b16 %v6389, %v6381
    %v7270 = vpack.c.b16 %v6390, %v6382
    %v7271 = vpack.c.b16 %v6399, %v6391
    %v7272 = vpack.c.b16 %v6400, %v6392
    %v7273 = vpack.c.b16 %v6401, %v6393
    %v7274 = vpack.c.b16 %v6402, %v6394
    %v7275 = vpack.c.b16 %v6403, %v6395
    %v7276 = vpack.c.b16 %v6404, %v6396
    %v7277 = vpack.c.b16 %v6405, %v6397
    %v7278 = vpack.c.b16 %v6406, %v6398
    %v7279 = vpack.c.b16 %v6415, %v6407
    %v7280 = vpack.c.b16 %v6416, %v6408
    %v7281 = vpack.c.b16 %v6417, %v6409
    %v7282 = vpack.c.b16 %v6418, %v6410
    %v7283 = vpack.c.b16 %v6419, %v6411
    %v7284 = vpack.c.b16 %v6420, %v6412
    %v7285 = vpack.c.b16 %v6421, %v6413
    %v7286 = vpack.c.b16 %v6422, %v6414
    %v7287 = vpack.c.b16 %v6431, %v6423
    %v7288 = vpack.c.b16 %v6432, %v6424
    %v7289 = vpack.c.b16 %v6433, %v6425
    %v7290 = vpack.c.b16 %v6434, %v6426
    %v7291 = vpack.c.b16 %v6435, %v6427
    %v7292 = vpack.c.b16 %v6436, %v6428
    %v7293 = vpack.c.b16 %v6437, %v6429
    %v7294 = vpack.c.b16 %v6438, %v6430
    %v7295 = vpack.c.b16 %v6447, %v6439
    %v7296 = vpack.c.b16 %v6448, %v6440
    %v7297 = vpack.c.b16 %v6449, %v6441
    %v7298 = vpack.c.b16 %v6450, %v6442
    %v7299 = vpack.c.b16 %v6451, %v6443
    %v7300 = vpack.c.b16 %v6452, %v6444
    %v7301 = vpack.c.b16 %v6453, %v6445
    %v7302 = vpack.c.b16 %v6454, %v6446
    %v7303 = vpack.c.b16 %v6463, %v6455
    %v7304 = vpack.c.b16 %v6464, %v6456
    %v7305 = vpack.c.b16 %v6465, %v6457
    %v7306 = vpack.c.b16 %v6466, %v6458
    %v7307 = vpack.c.b16 %v6467, %v6459
    %v7308 = vpack.c.b16 %v6468, %v6460
    %v7309 = vpack.c.b16 %v6469, %v6461
    %v7310 = vpack.c.b16 %v6470, %v6462
    %v7311 = vpack.c.b16 %v6479, %v6471
    %v7312 = vpack.c.b16 %v6480, %v6472
    %v7313 = vpack.c.b16 %v6481, %v6473
    %v7314 = vpack.c.b16 %v6482, %v6474
    %v7315 = vpack.c.b16 %v6483, %v6475
    %v7316 = vpack.c.b16 %v6484, %v6476
    %v7317 = vpack.c.b16 %v6485, %v6477
    %v7318 = vpack.c.b16 %v6486, %v6478
    %v7319 = vpack.c.b16 %v6495, %v6487
    %v7320 = vpack.c.b16 %v6496, %v6488
    %v7321 = vpack.c.b16 %v6497, %v6489
    %v7322 = vpack.c.b16 %v6498, %v6490
    %v7323 = vpack.c.b16 %v6499, %v6491
    %v7324 = vpack.c.b16 %v6500, %v6492
    %v7325 = vpack.c.b16 %v6501, %v6493
    %v7326 = vpack.c.b16 %v6502, %v6494
    %v7327 = vpack.c.b16 %v6511, %v6503
    %v7328 = vpack.c.b16 %v6512, %v6504
    %v7329 = vpack.c.b16 %v6513, %v6505
    %v7330 = vpack.c.b16 %v6514, %v6506
    %v7331 = vpack.c.b16 %v6515, %v6507
    %v7332 = vpack.c.b16 %v6516, %v6508
    %v7333 = vpack.c.b16 %v6517, %v6509
    %v7334 = vpack.c.b16 %v6518, %v6510
    %v7335 = vpack.c.b16 %v6527, %v6519
    %v7336 = vpack.c.b16 %v6528, %v6520
    %v7337 = vpack.c.b16 %v6529, %v6521
    %v7338 = vpack.c.b16 %v6530, %v6522
    %v7339 = vpack.c.b16 %v6531, %v6523
    %v7340 = vpack.c.b16 %v6532, %v6524
    %v7341 = vpack.c.b16 %v6533, %v6525
    %v7342 = vpack.c.b16 %v6534, %v6526
    %v7343 = vpack.c.b16 %v6543, %v6535
    %v7344 = vpack.c.b16 %v6544, %v6536
    %v7345 = vpack.c.b16 %v6545, %v6537
    %v7346 = vpack.c.b16 %v6546, %v6538
    %v7347 = vpack.c.b16 %v6547, %v6539
    %v7348 = vpack.c.b16 %v6548, %v6540
    %v7349 = vpack.c.b16 %v6549, %v6541
    %v7350 = vpack.c.b16 %v6550, %v6542
    %v7351 = vpack.c.b16 %v6559, %v6551
    %v7352 = vpack.c.b16 %v6560, %v6552
    %v7353 = vpack.c.b16 %v6561, %v6553
    %v7354 = vpack.c.b16 %v6562, %v6554
    %v7355 = vpack.c.b16 %v6563, %v6555
    %v7356 = vpack.c.b16 %v6564, %v6556
    %v7357 = vpack.c.b16 %v6565, %v6557
    %v7358 = vpack.c.b16 %v6566, %v6558
    %v7359 = vpack.c.b16 %v6575, %v6567
    %v7360 = vpack.c.b16 %v6576, %v6568
    %v7361 = vpack.c.b16 %v6577, %v6569
    %v7362 = vpack.c.b16 %v6578, %v6570
    %v7363 = vpack.c.b16 %v6579, %v6571
    %v7364 = vpack.c.b16 %v6580, %v6572
    %v7365 = vpack.c.b16 %v6581, %v6573
    %v7366 = vpack.c.b16 %v6582, %v6574
    %v7367 = vpack.c.b16 %v6591, %v6583
    %v7368 = vpack.c.b16 %v6592, %v6584
    %v7369 = vpack.c.b16 %v6593, %v6585
    %v7370 = vpack.c.b16 %v6594, %v6586
    %v7371 = vpack.c.b16 %v6595, %v6587
    %v7372 = vpack.c.b16 %v6596, %v6588
    %v7373 = vpack.c.b16 %v6597, %v6589
    %v7374 = vpack.c.b16 %v6598, %v6590
    %v7375 = vpack.c.b16 %v6607, %v6599
    %v7376 = vpack.c.b16 %v6608, %v6600
    %v7377 = vpack.c.b16 %v6609, %v6601
    %v7378 = vpack.c.b16 %v6610, %v6602
    %v7379 = vpack.c.b16 %v6611, %v6603
    %v7380 = vpack.c.b16 %v6612, %v6604
    %v7381 = vpack.c.b16 %v6613, %v6605
    %v7382 = vpack.c.b16 %v6614, %v6606
    %v7383 = vpack.c.b16 %v6623, %v6615
    %v7384 = vpack.c.b16 %v6624, %v6616
    %v7385 = vpack.c.b16 %v6625, %v6617
    %v7386 = vpack.c.b16 %v6626, %v6618
    %v7387 = vpack.c.b16 %v6627, %v6619
    %v7388 = vpack.c.b16 %v6628, %v6620
    %v7389 = vpack.c.b16 %v6629, %v6621
    %v7390 = vpack.c.b16 %v6630, %v6622
    %v7391 = vpack.c.b16 %v6639, %v6631
    %v7392 = vpack.c.b16 %v6640, %v6632
    %v7393 = vpack.c.b16 %v6641, %v6633
    %v7394 = vpack.c.b16 %v6642, %v6634
    %v7395 = vpack.c.b16 %v6643, %v6635
    %v7396 = vpack.c.b16 %v6644, %v6636
    %v7397 = vpack.c.b16 %v6645, %v6637
    %v7398 = vpack.c.b16 %v6646, %v6638
    %v7399 = vpack.c.b16 %v6655, %v6647
    %v7400 = vpack.c.b16 %v6656, %v6648
    %v7401 = vpack.c.b16 %v6657, %v6649
    %v7402 = vpack.c.b16 %v6658, %v6650
    %v7403 = vpack.c.b16 %v6659, %v6651
    %v7404 = vpack.c.b16 %v6660, %v6652
    %v7405 = vpack.c.b16 %v6661, %v6653
    %v7406 = vpack.c.b16 %v6662, %v6654
    %v7407 = vpack.c.b16 %v6671, %v6663
    %v7408 = vpack.c.b16 %v6672, %v6664
    %v7409 = vpack.c.b16 %v6673, %v6665
    %v7410 = vpack.c.b16 %v6674, %v6666
    %v7411 = vpack.c.b16 %v6675, %v6667
    %v7412 = vpack.c.b16 %v6676, %v6668
    %v7413 = vpack.c.b16 %v6677, %v6669
    %v7414 = vpack.c.b16 %v6678, %v6670
    %v7415 = vpack.c.b16 %v6687, %v6679
    %v7416 = vpack.c.b16 %v6688, %v6680
    %v7417 = vpack.c.b16 %v6689, %v6681
    %v7418 = vpack.c.b16 %v6690, %v6682
    %v7419 = vpack.c.b16 %v6691, %v6683
    %v7420 = vpack.c.b16 %v6692, %v6684
    %v7421 = vpack.c.b16 %v6693, %v6685
    %v7422 = vpack.c.b16 %v6694, %v6686
    %v7423 = vpack.c.b16 %v6703, %v6695
    %v7424 = vpack.c.b16 %v6704, %v6696
    %v7425 = vpack.c.b16 %v6705, %v6697
    %v7426 = vpack.c.b16 %v6706, %v6698
    %v7427 = vpack.c.b16 %v6707, %v6699
    %v7428 = vpack.c.b16 %v6708, %v6700
    %v7429 = vpack.c.b16 %v6709, %v6701
    %v7430 = vpack.c.b16 %v6710, %v6702
    %v7431 = vpack.c.b16 %v6719, %v6711
    %v7432 = vpack.c.b16 %v6720, %v6712
    %v7433 = vpack.c.b16 %v6721, %v6713
    %v7434 = vpack.c.b16 %v6722, %v6714
    %v7435 = vpack.c.b16 %v6723, %v6715
    %v7436 = vpack.c.b16 %v6724, %v6716
    %v7437 = vpack.c.b16 %v6725, %v6717
    %v7438 = vpack.c.b16 %v6726, %v6718
    %v7439 = vpack.c.b16 %v6735, %v6727
    %v7440 = vpack.c.b16 %v6736, %v6728
    %v7441 = vpack.c.b16 %v6737, %v6729
    %v7442 = vpack.c.b16 %v6738, %v6730
    %v7443 = vpack.c.b16 %v6739, %v6731
    %v7444 = vpack.c.b16 %v6740, %v6732
    %v7445 = vpack.c.b16 %v6741, %v6733
    %v7446 = vpack.c.b16 %v6742, %v6734
    %v7447 = vpack.c.b16 %v6751, %v6743
    %v7448 = vpack.c.b16 %v6752, %v6744
    %v7449 = vpack.c.b16 %v6753, %v6745
    %v7450 = vpack.c.b16 %v6754, %v6746
    %v7451 = vpack.c.b16 %v6755, %v6747
    %v7452 = vpack.c.b16 %v6756, %v6748
    %v7453 = vpack.c.b16 %v6757, %v6749
    %v7454 = vpack.c.b16 %v6758, %v6750
    %v7455 = vpack.c.b16 %v6767, %v6759
    %v7456 = vpack.c.b16 %v6768, %v6760
    %v7457 = vpack.c.b16 %v6769, %v6761
    %v7458 = vpack.c.b16 %v6770, %v6762
    %v7459 = vpack.c.b16 %v6771, %v6763
    %v7460 = vpack.c.b16 %v6772, %v6764
    %v7461 = vpack.c.b16 %v6773, %v6765
    %v7462 = vpack.c.b16 %v6774, %v6766
    %v7463 = vpack.c.b16 %v6783, %v6775
    %v7464 = vpack.c.b16 %v6784, %v6776
    %v7465 = vpack.c.b16 %v6785, %v6777
    %v7466 = vpack.c.b16 %v6786, %v6778
    %v7467 = vpack.c.b16 %v6787, %v6779
    %v7468 = vpack.c.b16 %v6788, %v6780
    %v7469 = vpack.c.b16 %v6789, %v6781
    %v7470 = vpack.c.b16 %v6790, %v6782
    %v7471 = vpack.c.b16 %v6799, %v6791
    %v7472 = vpack.c.b16 %v6800, %v6792
    %v7473 = vpack.c.b16 %v6801, %v6793
    %v7474 = vpack.c.b16 %v6802, %v6794
    %v7475 = vpack.c.b16 %v6803, %v6795
    %v7476 = vpack.c.b16 %v6804, %v6796
    %v7477 = vpack.c.b16 %v6805, %v6797
    %v7478 = vpack.c.b16 %v6806, %v6798
    %v7479 = vpack.c.b16 %v6815, %v6807
    %v7480 = vpack.c.b16 %v6816, %v6808
    %v7481 = vpack.c.b16 %v6817, %v6809
    %v7482 = vpack.c.b16 %v6818, %v6810
    %v7483 = vpack.c.b16 %v6819, %v6811
    %v7484 = vpack.c.b16 %v6820, %v6812
    %v7485 = vpack.c.b16 %v6821, %v6813
    %v7486 = vpack.c.b16 %v6822, %v6814
    %v7487 = vpack.c.b16 %v6831, %v6823
    %v7488 = vpack.c.b16 %v6832, %v6824
    %v7489 = vpack.c.b16 %v6833, %v6825
    %v7490 = vpack.c.b16 %v6834, %v6826
    %v7491 = vpack.c.b16 %v6835, %v6827
    %v7492 = vpack.c.b16 %v6836, %v6828
    %v7493 = vpack.c.b16 %v6837, %v6829
    %v7494 = vpack.c.b16 %v6838, %v6830
    %v7495 = vpack.c.b16 %v6847, %v6839
    %v7496 = vpack.c.b16 %v6848, %v6840
    %v7497 = vpack.c.b16 %v6849, %v6841
    %v7498 = vpack.c.b16 %v6850, %v6842
    %v7499 = vpack.c.b16 %v6851, %v6843
    %v7500 = vpack.c.b16 %v6852, %v6844
    %v7501 = vpack.c.b16 %v6853, %v6845
    %v7502 = vpack.c.b16 %v6854, %v6846
    %v7503 = vpack.c.b16 %v6863, %v6855
    %v7504 = vpack.c.b16 %v6864, %v6856
    %v7505 = vpack.c.b16 %v6865, %v6857
    %v7506 = vpack.c.b16 %v6866, %v6858
    %v7507 = vpack.c.b16 %v6867, %v6859
    %v7508 = vpack.c.b16 %v6868, %v6860
    %v7509 = vpack.c.b16 %v6869, %v6861
    %v7510 = vpack.c.b16 %v6870, %v6862
    %v7511 = vpack.c.b16 %v6879, %v6871
    %v7512 = vpack.c.b16 %v6880, %v6872
    %v7513 = vpack.c.b16 %v6881, %v6873
    %v7514 = vpack.c.b16 %v6882, %v6874
    %v7515 = vpack.c.b16 %v6883, %v6875
    %v7516 = vpack.c.b16 %v6884, %v6876
    %v7517 = vpack.c.b16 %v6885, %v6877
    %v7518 = vpack.c.b16 %v6886, %v6878
    %v7519 = vpack.c.b16 %v6895, %v6887
    %v7520 = vpack.c.b16 %v6896, %v6888
    %v7521 = vpack.c.b16 %v6897, %v6889
    %v7522 = vpack.c.b16 %v6898, %v6890
    %v7523 = vpack.c.b16 %v6899, %v6891
    %v7524 = vpack.c.b16 %v6900, %v6892
    %v7525 = vpack.c.b16 %v6901, %v6893
    %v7526 = vpack.c.b16 %v6902, %v6894
    %v7527 = vpack.c.b16 %v6911, %v6903
    %v7528 = vpack.c.b16 %v6912, %v6904
    %v7529 = vpack.c.b16 %v6913, %v6905
    %v7530 = vpack.c.b16 %v6914, %v6906
    %v7531 = vpack.c.b16 %v6915, %v6907
    %v7532 = vpack.c.b16 %v6916, %v6908
    %v7533 = vpack.c.b16 %v6917, %v6909
    %v7534 = vpack.c.b16 %v6918, %v6910
    %v7535 = vpack.c.b16 %v6927, %v6919
    %v7536 = vpack.c.b16 %v6928, %v6920
    %v7537 = vpack.c.b16 %v6929, %v6921
    %v7538 = vpack.c.b16 %v6930, %v6922
    %v7539 = vpack.c.b16 %v6931, %v6923
    %v7540 = vpack.c.b16 %v6932, %v6924
    %v7541 = vpack.c.b16 %v6933, %v6925
    %v7542 = vpack.c.b16 %v6934, %v6926
    %v7543 = vpack.c.b16 %v6943, %v6935
    %v7544 = vpack.c.b16 %v6944, %v6936
    %v7545 = vpack.c.b16 %v6945, %v6937
    %v7546 = vpack.c.b16 %v6946, %v6938
    %v7547 = vpack.c.b16 %v6947, %v6939
    %v7548 = vpack.c.b16 %v6948, %v6940
    %v7549 = vpack.c.b16 %v6949, %v6941
    %v7550 = vpack.c.b16 %v6950, %v6942
    %v7551 = vpack.c.b16 %v6959, %v6951
    %v7552 = vpack.c.b16 %v6960, %v6952
    %v7553 = vpack.c.b16 %v6961, %v6953
    %v7554 = vpack.c.b16 %v6962, %v6954
    %v7555 = vpack.c.b16 %v6963, %v6955
    %v7556 = vpack.c.b16 %v6964, %v6956
    %v7557 = vpack.c.b16 %v6965, %v6957
    %v7558 = vpack.c.b16 %v6966, %v6958
    %v7559 = vpack.c.b16 %v6975, %v6967
    %v7560 = vpack.c.b16 %v6976, %v6968
    %v7561 = vpack.c.b16 %v6977, %v6969
    %v7562 = vpack.c.b16 %v6978, %v6970
    %v7563 = vpack.c.b16 %v6979, %v6971
    %v7564 = vpack.c.b16 %v6980, %v6972
    %v7565 = vpack.c.b16 %v6981, %v6973
    %v7566 = vpack.c.b16 %v6982, %v6974
    %v7567 = vpack.c.b16 %v6991, %v6983
    %v7568 = vpack.c.b16 %v6992, %v6984
    %v7569 = vpack.c.b16 %v6993, %v6985
    %v7570 = vpack.c.b16 %v6994, %v6986
    %v7571 = vpack.c.b16 %v6995, %v6987
    %v7572 = vpack.c.b16 %v6996, %v6988
    %v7573 = vpack.c.b16 %v6997, %v6989
    %v7574 = vpack.c.b16 %v6998, %v6990
    %v7575 = vpack.c.b16 %v7007, %v6999
    %v7576 = vpack.c.b16 %v7008, %v7000
    %v7577 = vpack.c.b16 %v7009, %v7001
    %v7578 = vpack.c.b16 %v7010, %v7002
    %v7579 = vpack.c.b16 %v7011, %v7003
    %v7580 = vpack.c.b16 %v7012, %v7004
    %v7581 = vpack.c.b16 %v7013, %v7005
    %v7582 = vpack.c.b16 %v7014, %v7006
    %v7583 = vpack.c.b16 %v7023, %v7015
    %v7584 = vpack.c.b16 %v7024, %v7016
    %v7585 = vpack.c.b16 %v7025, %v7017
    %v7586 = vpack.c.b16 %v7026, %v7018
    %v7587 = vpack.c.b16 %v7027, %v7019
    %v7588 = vpack.c.b16 %v7028, %v7020
    %v7589 = vpack.c.b16 %v7029, %v7021
    %v7590 = vpack.c.b16 %v7030, %v7022
    %v7591 = vpack.c.b16 %v7039, %v7031
    %v7592 = vpack.c.b16 %v7040, %v7032
    %v7593 = vpack.c.b16 %v7041, %v7033
    %v7594 = vpack.c.b16 %v7042, %v7034
    %v7595 = vpack.c.b16 %v7043, %v7035
    %v7596 = vpack.c.b16 %v7044, %v7036
    %v7597 = vpack.c.b16 %v7045, %v7037
    %v7598 = vpack.c.b16 %v7046, %v7038
    %v7599 = vpack.c.b16 %v7055, %v7047
    %v7600 = vpack.c.b16 %v7056, %v7048
    %v7601 = vpack.c.b16 %v7057, %v7049
    %v7602 = vpack.c.b16 %v7058, %v7050
    %v7603 = vpack.c.b16 %v7059, %v7051
    %v7604 = vpack.c.b16 %v7060, %v7052
    %v7605 = vpack.c.b16 %v7061, %v7053
    %v7606 = vpack.c.b16 %v7062, %v7054
    %v7607 = vpack.c.b16 %v7071, %v7063
    %v7608 = vpack.c.b16 %v7072, %v7064
    %v7609 = vpack.c.b16 %v7073, %v7065
    %v7610 = vpack.c.b16 %v7074, %v7066
    %v7611 = vpack.c.b16 %v7075, %v7067
    %v7612 = vpack.c.b16 %v7076, %v7068
    %v7613 = vpack.c.b16 %v7077, %v7069
    %v7614 = vpack.c.b16 %v7078, %v7070
    %v7615 = vpack.c.b16 %v7087, %v7079
    %v7616 = vpack.c.b16 %v7088, %v7080
    %v7617 = vpack.c.b16 %v7089, %v7081
    %v7618 = vpack.c.b16 %v7090, %v7082
    %v7619 = vpack.c.b16 %v7091, %v7083
    %v7620 = vpack.c.b16 %v7092, %v7084
    %v7621 = vpack.c.b16 %v7093, %v7085
    %v7622 = vpack.c.b16 %v7094, %v7086
    %v7623 = vpack.c.b16 %v7103, %v7095
    %v7624 = vpack.c.b16 %v7104, %v7096
    %v7625 = vpack.c.b16 %v7105, %v7097
    %v7626 = vpack.c.b16 %v7106, %v7098
    %v7627 = vpack.c.b16 %v7107, %v7099
    %v7628 = vpack.c.b16 %v7108, %v7100
    %v7629 = vpack.c.b16 %v7109, %v7101
    %v7630 = vpack.c.b16 %v7110, %v7102
    %v7631 = vpack.c.b16 %v7119, %v7111
    %v7632 = vpack.c.b16 %v7120, %v7112
    %v7633 = vpack.c.b16 %v7121, %v7113
    %v7634 = vpack.c.b16 %v7122, %v7114
    %v7635 = vpack.c.b16 %v7123, %v7115
    %v7636 = vpack.c.b16 %v7124, %v7116
    %v7637 = vpack.c.b16 %v7125, %v7117
    %v7638 = vpack.c.b16 %v7126, %v7118
    %8151 = vmatprep.subr.bf16.mxu0 %v7184
    %8152 = vmatpush1.bf16.msra.mxu0 %v7183
    %8153 = vmatprep.subr.bf16.mxu0 %v7176
    %8154 = vmatpush1.bf16.msra.mxu0 %v7175
    %8155 = vmatprep.subr.bf16.mxu0 %v7168
    %8156 = vmatpush1.bf16.msra.mxu0 %v7167
    %8157 = vmatprep.subr.bf16.mxu0 %v7160
    %8158 = vmatpush1.bf16.msra.mxu0 %v7159
    %8159 = vmatprep.subr.bf16.mxu0 %v7152
    %8160 = vmatpush1.bf16.msra.mxu0 %v7151
    %8161 = vmatprep.subr.bf16.mxu0 %v7144
    %8162 = vmatpush1.bf16.msra.mxu0 %v7143
    %8163 = vmatprep.subr.bf16.mxu0 %v7136
    %8164 = vmatpush1.bf16.msra.mxu0 %v7135
    %8165 = vmatprep.subr.bf16.mxu0 %v7128
    %8166 = vmatpush1.bf16.msra.mxu0 %v7127
    %8167 = vmatprep.subr.bf16.mxu0 %v7248
    %8168 = vmatpush2.bf16.msra.mxu0 %v7247
    %8169 = vmatprep.subr.bf16.mxu0 %v7240
    %8170 = vmatpush2.bf16.msra.mxu0 %v7239
    %8171 = vmatprep.subr.bf16.mxu0 %v7232
    %8172 = vmatpush2.bf16.msra.mxu0 %v7231
    %8173 = vmatprep.subr.bf16.mxu0 %v7224
    %8174 = vmatpush2.bf16.msra.mxu0 %v7223
    %8175 = vmatprep.subr.bf16.mxu0 %v7216
    %8176 = vmatpush2.bf16.msra.mxu0 %v7215
    %8177 = vmatprep.subr.bf16.mxu0 %v7208
    %8178 = vmatpush2.bf16.msra.mxu0 %v7207
    %8179 = vmatprep.subr.bf16.mxu0 %v7200
    %8180 = vmatpush2.bf16.msra.mxu0 %v7199
    %8181 = vmatprep.subr.bf16.mxu0 %v7192
    %8182 = vmatpush2.bf16.msra.mxu0 %v7191
    %8183 = vmatprep.mubr.bf16.mxu0 %v5030
    %8184 = vmatmul.mubr.bf16.gmra.mxu0 %v5029
    %v8185 = vpop.f32.mrf.mxu0
    %v8186 = vadd.f32 %v5554, %v8185
    %v8187 = vpop.f32.mrf.mxu0
    %v8188 = vadd.f32 %v5558, %v8187
    %v8189 = vpop.f32.mrf.mxu0
    %v8190 = vpop.f32.mrf.mxu0
    %8191 = vdwg.mxu0
    %8192 = vmatprep.subr.bf16.mxu0 %v7312
    %8193 = vmatpush1.bf16.msra.mxu0 %v7311
    %8194 = vmatprep.subr.bf16.mxu0 %v7304
    %8195 = vmatpush1.bf16.msra.mxu0 %v7303
    %8196 = vmatprep.subr.bf16.mxu0 %v7296
    %8197 = vmatpush1.bf16.msra.mxu0 %v7295
    %8198 = vmatprep.subr.bf16.mxu0 %v7288
    %8199 = vmatpush1.bf16.msra.mxu0 %v7287
    %8200 = vmatprep.subr.bf16.mxu0 %v7280
    %8201 = vmatpush1.bf16.msra.mxu0 %v7279
    %8202 = vmatprep.subr.bf16.mxu0 %v7272
    %8203 = vmatpush1.bf16.msra.mxu0 %v7271
    %8204 = vmatprep.subr.bf16.mxu0 %v7264
    %8205 = vmatpush1.bf16.msra.mxu0 %v7263
    %8206 = vmatprep.subr.bf16.mxu0 %v7256
    %8207 = vmatpush1.bf16.msra.mxu0 %v7255
    %8208 = vmatprep.subr.bf16.mxu0 %v7376
    %8209 = vmatpush2.bf16.msra.mxu0 %v7375
    %8210 = vmatprep.subr.bf16.mxu0 %v7368
    %8211 = vmatpush2.bf16.msra.mxu0 %v7367
    %8212 = vmatprep.subr.bf16.mxu0 %v7360
    %8213 = vmatpush2.bf16.msra.mxu0 %v7359
    %8214 = vmatprep.subr.bf16.mxu0 %v7352
    %8215 = vmatpush2.bf16.msra.mxu0 %v7351
    %8216 = vmatprep.subr.bf16.mxu0 %v7344
    %8217 = vmatpush2.bf16.msra.mxu0 %v7343
    %8218 = vmatprep.subr.bf16.mxu0 %v7336
    %8219 = vmatpush2.bf16.msra.mxu0 %v7335
    %8220 = vmatprep.subr.bf16.mxu0 %v7328
    %8221 = vmatpush2.bf16.msra.mxu0 %v7327
    %8222 = vmatprep.subr.bf16.mxu0 %v7320
    %8223 = vmatpush2.bf16.msra.mxu0 %v7319
    %8224 = vmatprep.mubr.bf16.mxu0 %v5032
    %8225 = vmatmul.mubr.bf16.gmra.mxu0 %v5031
    %v8226 = vpop.f32.mrf.mxu0
    %v8227 = vadd.f32 %v8186, %v8226
    %v8228 = vpop.f32.mrf.mxu0
    %v8229 = vadd.f32 %v8188, %v8228
    %v8230 = vpop.f32.mrf.mxu0
    %v8231 = vpop.f32.mrf.mxu0
    %8232 = vdwg.mxu0
    %8233 = vmatprep.subr.bf16.mxu0 %v7440
    %8234 = vmatpush1.bf16.msra.mxu0 %v7439
    %8235 = vmatprep.subr.bf16.mxu0 %v7432
    %8236 = vmatpush1.bf16.msra.mxu0 %v7431
    %8237 = vmatprep.subr.bf16.mxu0 %v7424
    %8238 = vmatpush1.bf16.msra.mxu0 %v7423
    %8239 = vmatprep.subr.bf16.mxu0 %v7416
    %8240 = vmatpush1.bf16.msra.mxu0 %v7415
    %8241 = vmatprep.subr.bf16.mxu0 %v7408
    %8242 = vmatpush1.bf16.msra.mxu0 %v7407
    %8243 = vmatprep.subr.bf16.mxu0 %v7400
    %8244 = vmatpush1.bf16.msra.mxu0 %v7399
    %8245 = vmatprep.subr.bf16.mxu0 %v7392
    %8246 = vmatpush1.bf16.msra.mxu0 %v7391
    %8247 = vmatprep.subr.bf16.mxu0 %v7384
    %8248 = vmatpush1.bf16.msra.mxu0 %v7383
    %8249 = vmatprep.subr.bf16.mxu0 %v7504
    %8250 = vmatpush2.bf16.msra.mxu0 %v7503
    %8251 = vmatprep.subr.bf16.mxu0 %v7496
    %8252 = vmatpush2.bf16.msra.mxu0 %v7495
    %8253 = vmatprep.subr.bf16.mxu0 %v7488
    %8254 = vmatpush2.bf16.msra.mxu0 %v7487
    %8255 = vmatprep.subr.bf16.mxu0 %v7480
    %8256 = vmatpush2.bf16.msra.mxu0 %v7479
    %8257 = vmatprep.subr.bf16.mxu0 %v7472
    %8258 = vmatpush2.bf16.msra.mxu0 %v7471
    %8259 = vmatprep.subr.bf16.mxu0 %v7464
    %8260 = vmatpush2.bf16.msra.mxu0 %v7463
    %8261 = vmatprep.subr.bf16.mxu0 %v7456
    %8262 = vmatpush2.bf16.msra.mxu0 %v7455
    %8263 = vmatprep.subr.bf16.mxu0 %v7448
    %8264 = vmatpush2.bf16.msra.mxu0 %v7447
    %8265 = vmatprep.mubr.bf16.mxu0 %v5034
    %8266 = vmatmul.mubr.bf16.gmra.mxu0 %v5033
    %v8267 = vpop.f32.mrf.mxu0
    %v8268 = vadd.f32 %v8227, %v8267
    %v8269 = vpop.f32.mrf.mxu0
    %v8270 = vadd.f32 %v8229, %v8269
    %v8271 = vpop.f32.mrf.mxu0
    %v8272 = vpop.f32.mrf.mxu0
    %8273 = vdwg.mxu0
    %8274 = vmatprep.subr.bf16.mxu0 %v7568
    %8275 = vmatpush1.bf16.msra.mxu0 %v7567
    %8276 = vmatprep.subr.bf16.mxu0 %v7560
    %8277 = vmatpush1.bf16.msra.mxu0 %v7559
    %8278 = vmatprep.subr.bf16.mxu0 %v7552
    %8279 = vmatpush1.bf16.msra.mxu0 %v7551
    %8280 = vmatprep.subr.bf16.mxu0 %v7544
    %8281 = vmatpush1.bf16.msra.mxu0 %v7543
    %8282 = vmatprep.subr.bf16.mxu0 %v7536
    %8283 = vmatpush1.bf16.msra.mxu0 %v7535
    %8284 = vmatprep.subr.bf16.mxu0 %v7528
    %8285 = vmatpush1.bf16.msra.mxu0 %v7527
    %8286 = vmatprep.subr.bf16.mxu0 %v7520
    %8287 = vmatpush1.bf16.msra.mxu0 %v7519
    %8288 = vmatprep.subr.bf16.mxu0 %v7512
    %8289 = vmatpush1.bf16.msra.mxu0 %v7511
    %8290 = vmatprep.subr.bf16.mxu0 %v7632
    %8291 = vmatpush2.bf16.msra.mxu0 %v7631
    %8292 = vmatprep.subr.bf16.mxu0 %v7624
    %8293 = vmatpush2.bf16.msra.mxu0 %v7623
    %8294 = vmatprep.subr.bf16.mxu0 %v7616
    %8295 = vmatpush2.bf16.msra.mxu0 %v7615
    %8296 = vmatprep.subr.bf16.mxu0 %v7608
    %8297 = vmatpush2.bf16.msra.mxu0 %v7607
    %8298 = vmatprep.subr.bf16.mxu0 %v7600
    %8299 = vmatpush2.bf16.msra.mxu0 %v7599
    %8300 = vmatprep.subr.bf16.mxu0 %v7592
    %8301 = vmatpush2.bf16.msra.mxu0 %v7591
    %8302 = vmatprep.subr.bf16.mxu0 %v7584
    %8303 = vmatpush2.bf16.msra.mxu0 %v7583
    %8304 = vmatprep.subr.bf16.mxu0 %v7576
    %8305 = vmatpush2.bf16.msra.mxu0 %v7575
    %8306 = vmatprep.mubr.bf16.mxu0 %v5036
    %8307 = vmatmul.mubr.bf16.gmra.mxu0 %v5035
    %v8308 = vpop.f32.mrf.mxu0
    %v8309 = vadd.f32 %v8268, %v8308
    %v8310 = vpop.f32.mrf.mxu0
    %v8311 = vadd.f32 %v8270, %v8310
    %v8312 = vpop.f32.mrf.mxu0
    %v8313 = vpop.f32.mrf.mxu0
    %8314 = vdwg.mxu0
    %8315 = vmatprep.subr.bf16.mxu0 %v7186
    %8316 = vmatpush1.bf16.msra.mxu0 %v7185
    %8317 = vmatprep.subr.bf16.mxu0 %v7178
    %8318 = vmatpush1.bf16.msra.mxu0 %v7177
    %8319 = vmatprep.subr.bf16.mxu0 %v7170
    %8320 = vmatpush1.bf16.msra.mxu0 %v7169
    %8321 = vmatprep.subr.bf16.mxu0 %v7162
    %8322 = vmatpush1.bf16.msra.mxu0 %v7161
    %8323 = vmatprep.subr.bf16.mxu0 %v7154
    %8324 = vmatpush1.bf16.msra.mxu0 %v7153
    %8325 = vmatprep.subr.bf16.mxu0 %v7146
    %8326 = vmatpush1.bf16.msra.mxu0 %v7145
    %8327 = vmatprep.subr.bf16.mxu0 %v7138
    %8328 = vmatpush1.bf16.msra.mxu0 %v7137
    %8329 = vmatprep.subr.bf16.mxu0 %v7130
    %8330 = vmatpush1.bf16.msra.mxu0 %v7129
    %8331 = vmatprep.subr.bf16.mxu0 %v7250
    %8332 = vmatpush2.bf16.msra.mxu0 %v7249
    %8333 = vmatprep.subr.bf16.mxu0 %v7242
    %8334 = vmatpush2.bf16.msra.mxu0 %v7241
    %8335 = vmatprep.subr.bf16.mxu0 %v7234
    %8336 = vmatpush2.bf16.msra.mxu0 %v7233
    %8337 = vmatprep.subr.bf16.mxu0 %v7226
    %8338 = vmatpush2.bf16.msra.mxu0 %v7225
    %8339 = vmatprep.subr.bf16.mxu0 %v7218
    %8340 = vmatpush2.bf16.msra.mxu0 %v7217
    %8341 = vmatprep.subr.bf16.mxu0 %v7210
    %8342 = vmatpush2.bf16.msra.mxu0 %v7209
    %8343 = vmatprep.subr.bf16.mxu0 %v7202
    %8344 = vmatpush2.bf16.msra.mxu0 %v7201
    %8345 = vmatprep.subr.bf16.mxu0 %v7194
    %8346 = vmatpush2.bf16.msra.mxu0 %v7193
    %8347 = vmatprep.mubr.bf16.mxu0 %v5030
    %8348 = vmatmul.mubr.bf16.gmra.mxu0 %v5029
    %v8349 = vpop.f32.mrf.mxu0
    %v8350 = vadd.f32 %v5562, %v8349
    %v8351 = vpop.f32.mrf.mxu0
    %v8352 = vadd.f32 %v5566, %v8351
    %v8353 = vpop.f32.mrf.mxu0
    %v8354 = vpop.f32.mrf.mxu0
    %8355 = vdwg.mxu0
    %8356 = vmatprep.subr.bf16.mxu0 %v7314
    %8357 = vmatpush1.bf16.msra.mxu0 %v7313
    %8358 = vmatprep.subr.bf16.mxu0 %v7306
    %8359 = vmatpush1.bf16.msra.mxu0 %v7305
    %8360 = vmatprep.subr.bf16.mxu0 %v7298
    %8361 = vmatpush1.bf16.msra.mxu0 %v7297
    %8362 = vmatprep.subr.bf16.mxu0 %v7290
    %8363 = vmatpush1.bf16.msra.mxu0 %v7289
    %8364 = vmatprep.subr.bf16.mxu0 %v7282
    %8365 = vmatpush1.bf16.msra.mxu0 %v7281
    %8366 = vmatprep.subr.bf16.mxu0 %v7274
    %8367 = vmatpush1.bf16.msra.mxu0 %v7273
    %8368 = vmatprep.subr.bf16.mxu0 %v7266
    %8369 = vmatpush1.bf16.msra.mxu0 %v7265
    %8370 = vmatprep.subr.bf16.mxu0 %v7258
    %8371 = vmatpush1.bf16.msra.mxu0 %v7257
    %8372 = vmatprep.subr.bf16.mxu0 %v7378
    %8373 = vmatpush2.bf16.msra.mxu0 %v7377
    %8374 = vmatprep.subr.bf16.mxu0 %v7370
    %8375 = vmatpush2.bf16.msra.mxu0 %v7369
    %8376 = vmatprep.subr.bf16.mxu0 %v7362
    %8377 = vmatpush2.bf16.msra.mxu0 %v7361
    %8378 = vmatprep.subr.bf16.mxu0 %v7354
    %8379 = vmatpush2.bf16.msra.mxu0 %v7353
    %8380 = vmatprep.subr.bf16.mxu0 %v7346
    %8381 = vmatpush2.bf16.msra.mxu0 %v7345
    %8382 = vmatprep.subr.bf16.mxu0 %v7338
    %8383 = vmatpush2.bf16.msra.mxu0 %v7337
    %8384 = vmatprep.subr.bf16.mxu0 %v7330
    %8385 = vmatpush2.bf16.msra.mxu0 %v7329
    %8386 = vmatprep.subr.bf16.mxu0 %v7322
    %8387 = vmatpush2.bf16.msra.mxu0 %v7321
    %8388 = vmatprep.mubr.bf16.mxu0 %v5032
    %8389 = vmatmul.mubr.bf16.gmra.mxu0 %v5031
    %v8390 = vpop.f32.mrf.mxu0
    %v8391 = vadd.f32 %v8350, %v8390
    %v8392 = vpop.f32.mrf.mxu0
    %v8393 = vadd.f32 %v8352, %v8392
    %v8394 = vpop.f32.mrf.mxu0
    %v8395 = vpop.f32.mrf.mxu0
    %8396 = vdwg.mxu0
    %8397 = vmatprep.subr.bf16.mxu0 %v7442
    %8398 = vmatpush1.bf16.msra.mxu0 %v7441
    %8399 = vmatprep.subr.bf16.mxu0 %v7434
    %8400 = vmatpush1.bf16.msra.mxu0 %v7433
    %8401 = vmatprep.subr.bf16.mxu0 %v7426
    %8402 = vmatpush1.bf16.msra.mxu0 %v7425
    %8403 = vmatprep.subr.bf16.mxu0 %v7418
    %8404 = vmatpush1.bf16.msra.mxu0 %v7417
    %8405 = vmatprep.subr.bf16.mxu0 %v7410
    %8406 = vmatpush1.bf16.msra.mxu0 %v7409
    %8407 = vmatprep.subr.bf16.mxu0 %v7402
    %8408 = vmatpush1.bf16.msra.mxu0 %v7401
    %8409 = vmatprep.subr.bf16.mxu0 %v7394
    %8410 = vmatpush1.bf16.msra.mxu0 %v7393
    %8411 = vmatprep.subr.bf16.mxu0 %v7386
    %8412 = vmatpush1.bf16.msra.mxu0 %v7385
    %8413 = vmatprep.subr.bf16.mxu0 %v7506
    %8414 = vmatpush2.bf16.msra.mxu0 %v7505
    %8415 = vmatprep.subr.bf16.mxu0 %v7498
    %8416 = vmatpush2.bf16.msra.mxu0 %v7497
    %8417 = vmatprep.subr.bf16.mxu0 %v7490
    %8418 = vmatpush2.bf16.msra.mxu0 %v7489
    %8419 = vmatprep.subr.bf16.mxu0 %v7482
    %8420 = vmatpush2.bf16.msra.mxu0 %v7481
    %8421 = vmatprep.subr.bf16.mxu0 %v7474
    %8422 = vmatpush2.bf16.msra.mxu0 %v7473
    %8423 = vmatprep.subr.bf16.mxu0 %v7466
    %8424 = vmatpush2.bf16.msra.mxu0 %v7465
    %8425 = vmatprep.subr.bf16.mxu0 %v7458
    %8426 = vmatpush2.bf16.msra.mxu0 %v7457
    %8427 = vmatprep.subr.bf16.mxu0 %v7450
    %8428 = vmatpush2.bf16.msra.mxu0 %v7449
    %8429 = vmatprep.mubr.bf16.mxu0 %v5034
    %8430 = vmatmul.mubr.bf16.gmra.mxu0 %v5033
    %v8431 = vpop.f32.mrf.mxu0
    %v8432 = vadd.f32 %v8391, %v8431
    %v8433 = vpop.f32.mrf.mxu0
    %v8434 = vadd.f32 %v8393, %v8433
    %v8435 = vpop.f32.mrf.mxu0
    %v8436 = vpop.f32.mrf.mxu0
    %8437 = vdwg.mxu0
    %8438 = vmatprep.subr.bf16.mxu0 %v7570
    %8439 = vmatpush1.bf16.msra.mxu0 %v7569
    %8440 = vmatprep.subr.bf16.mxu0 %v7562
    %8441 = vmatpush1.bf16.msra.mxu0 %v7561
    %8442 = vmatprep.subr.bf16.mxu0 %v7554
    %8443 = vmatpush1.bf16.msra.mxu0 %v7553
    %8444 = vmatprep.subr.bf16.mxu0 %v7546
    %8445 = vmatpush1.bf16.msra.mxu0 %v7545
    %8446 = vmatprep.subr.bf16.mxu0 %v7538
    %8447 = vmatpush1.bf16.msra.mxu0 %v7537
    %8448 = vmatprep.subr.bf16.mxu0 %v7530
    %8449 = vmatpush1.bf16.msra.mxu0 %v7529
    %8450 = vmatprep.subr.bf16.mxu0 %v7522
    %8451 = vmatpush1.bf16.msra.mxu0 %v7521
    %8452 = vmatprep.subr.bf16.mxu0 %v7514
    %8453 = vmatpush1.bf16.msra.mxu0 %v7513
    %8454 = vmatprep.subr.bf16.mxu0 %v7634
    %8455 = vmatpush2.bf16.msra.mxu0 %v7633
    %8456 = vmatprep.subr.bf16.mxu0 %v7626
    %8457 = vmatpush2.bf16.msra.mxu0 %v7625
    %8458 = vmatprep.subr.bf16.mxu0 %v7618
    %8459 = vmatpush2.bf16.msra.mxu0 %v7617
    %8460 = vmatprep.subr.bf16.mxu0 %v7610
    %8461 = vmatpush2.bf16.msra.mxu0 %v7609
    %8462 = vmatprep.subr.bf16.mxu0 %v7602
    %8463 = vmatpush2.bf16.msra.mxu0 %v7601
    %8464 = vmatprep.subr.bf16.mxu0 %v7594
    %8465 = vmatpush2.bf16.msra.mxu0 %v7593
    %8466 = vmatprep.subr.bf16.mxu0 %v7586
    %8467 = vmatpush2.bf16.msra.mxu0 %v7585
    %8468 = vmatprep.subr.bf16.mxu0 %v7578
    %8469 = vmatpush2.bf16.msra.mxu0 %v7577
    %8470 = vmatprep.mubr.bf16.mxu0 %v5036
    %8471 = vmatmul.mubr.bf16.gmra.mxu0 %v5035
    %v8472 = vpop.f32.mrf.mxu0
    %v8473 = vadd.f32 %v8432, %v8472
    %v8474 = vpop.f32.mrf.mxu0
    %v8475 = vadd.f32 %v8434, %v8474
    %v8476 = vpop.f32.mrf.mxu0
    %v8477 = vpop.f32.mrf.mxu0
    %8478 = vdwg.mxu0
    %8479 = vmatprep.subr.bf16.mxu0 %v7188
    %8480 = vmatpush1.bf16.msra.mxu0 %v7187
    %8481 = vmatprep.subr.bf16.mxu0 %v7180
    %8482 = vmatpush1.bf16.msra.mxu0 %v7179
    %8483 = vmatprep.subr.bf16.mxu0 %v7172
    %8484 = vmatpush1.bf16.msra.mxu0 %v7171
    %8485 = vmatprep.subr.bf16.mxu0 %v7164
    %8486 = vmatpush1.bf16.msra.mxu0 %v7163
    %8487 = vmatprep.subr.bf16.mxu0 %v7156
    %8488 = vmatpush1.bf16.msra.mxu0 %v7155
    %8489 = vmatprep.subr.bf16.mxu0 %v7148
    %8490 = vmatpush1.bf16.msra.mxu0 %v7147
    %8491 = vmatprep.subr.bf16.mxu0 %v7140
    %8492 = vmatpush1.bf16.msra.mxu0 %v7139
    %8493 = vmatprep.subr.bf16.mxu0 %v7132
    %8494 = vmatpush1.bf16.msra.mxu0 %v7131
    %8495 = vmatprep.subr.bf16.mxu0 %v7252
    %8496 = vmatpush2.bf16.msra.mxu0 %v7251
    %8497 = vmatprep.subr.bf16.mxu0 %v7244
    %8498 = vmatpush2.bf16.msra.mxu0 %v7243
    %8499 = vmatprep.subr.bf16.mxu0 %v7236
    %8500 = vmatpush2.bf16.msra.mxu0 %v7235
    %8501 = vmatprep.subr.bf16.mxu0 %v7228
    %8502 = vmatpush2.bf16.msra.mxu0 %v7227
    %8503 = vmatprep.subr.bf16.mxu0 %v7220
    %8504 = vmatpush2.bf16.msra.mxu0 %v7219
    %8505 = vmatprep.subr.bf16.mxu0 %v7212
    %8506 = vmatpush2.bf16.msra.mxu0 %v7211
    %8507 = vmatprep.subr.bf16.mxu0 %v7204
    %8508 = vmatpush2.bf16.msra.mxu0 %v7203
    %8509 = vmatprep.subr.bf16.mxu0 %v7196
    %8510 = vmatpush2.bf16.msra.mxu0 %v7195
    %8511 = vmatprep.mubr.bf16.mxu0 %v5030
    %8512 = vmatmul.mubr.bf16.gmra.mxu0 %v5029
    %v8513 = vpop.f32.mrf.mxu0
    %v8514 = vadd.f32 %v5570, %v8513
    %v8515 = vpop.f32.mrf.mxu0
    %v8516 = vadd.f32 %v5574, %v8515
    %v8517 = vpop.f32.mrf.mxu0
    %v8518 = vpop.f32.mrf.mxu0
    %8519 = vdwg.mxu0
    %8520 = vmatprep.subr.bf16.mxu0 %v7316
    %8521 = vmatpush1.bf16.msra.mxu0 %v7315
    %8522 = vmatprep.subr.bf16.mxu0 %v7308
    %8523 = vmatpush1.bf16.msra.mxu0 %v7307
    %8524 = vmatprep.subr.bf16.mxu0 %v7300
    %8525 = vmatpush1.bf16.msra.mxu0 %v7299
    %8526 = vmatprep.subr.bf16.mxu0 %v7292
    %8527 = vmatpush1.bf16.msra.mxu0 %v7291
    %8528 = vmatprep.subr.bf16.mxu0 %v7284
    %8529 = vmatpush1.bf16.msra.mxu0 %v7283
    %8530 = vmatprep.subr.bf16.mxu0 %v7276
    %8531 = vmatpush1.bf16.msra.mxu0 %v7275
    %8532 = vmatprep.subr.bf16.mxu0 %v7268
    %8533 = vmatpush1.bf16.msra.mxu0 %v7267
    %8534 = vmatprep.subr.bf16.mxu0 %v7260
    %8535 = vmatpush1.bf16.msra.mxu0 %v7259
    %8536 = vmatprep.subr.bf16.mxu0 %v7380
    %8537 = vmatpush2.bf16.msra.mxu0 %v7379
    %8538 = vmatprep.subr.bf16.mxu0 %v7372
    %8539 = vmatpush2.bf16.msra.mxu0 %v7371
    %8540 = vmatprep.subr.bf16.mxu0 %v7364
    %8541 = vmatpush2.bf16.msra.mxu0 %v7363
    %8542 = vmatprep.subr.bf16.mxu0 %v7356
    %8543 = vmatpush2.bf16.msra.mxu0 %v7355
    %8544 = vmatprep.subr.bf16.mxu0 %v7348
    %8545 = vmatpush2.bf16.msra.mxu0 %v7347
    %8546 = vmatprep.subr.bf16.mxu0 %v7340
    %8547 = vmatpush2.bf16.msra.mxu0 %v7339
    %8548 = vmatprep.subr.bf16.mxu0 %v7332
    %8549 = vmatpush2.bf16.msra.mxu0 %v7331
    %8550 = vmatprep.subr.bf16.mxu0 %v7324
    %8551 = vmatpush2.bf16.msra.mxu0 %v7323
    %8552 = vmatprep.mubr.bf16.mxu0 %v5032
    %8553 = vmatmul.mubr.bf16.gmra.mxu0 %v5031
    %v8554 = vpop.f32.mrf.mxu0
    %v8555 = vadd.f32 %v8514, %v8554
    %v8556 = vpop.f32.mrf.mxu0
    %v8557 = vadd.f32 %v8516, %v8556
    %v8558 = vpop.f32.mrf.mxu0
    %v8559 = vpop.f32.mrf.mxu0
    %8560 = vdwg.mxu0
    %8561 = vmatprep.subr.bf16.mxu0 %v7444
    %8562 = vmatpush1.bf16.msra.mxu0 %v7443
    %8563 = vmatprep.subr.bf16.mxu0 %v7436
    %8564 = vmatpush1.bf16.msra.mxu0 %v7435
    %8565 = vmatprep.subr.bf16.mxu0 %v7428
    %8566 = vmatpush1.bf16.msra.mxu0 %v7427
    %8567 = vmatprep.subr.bf16.mxu0 %v7420
    %8568 = vmatpush1.bf16.msra.mxu0 %v7419
    %8569 = vmatprep.subr.bf16.mxu0 %v7412
    %8570 = vmatpush1.bf16.msra.mxu0 %v7411
    %8571 = vmatprep.subr.bf16.mxu0 %v7404
    %8572 = vmatpush1.bf16.msra.mxu0 %v7403
    %8573 = vmatprep.subr.bf16.mxu0 %v7396
    %8574 = vmatpush1.bf16.msra.mxu0 %v7395
    %8575 = vmatprep.subr.bf16.mxu0 %v7388
    %8576 = vmatpush1.bf16.msra.mxu0 %v7387
    %8577 = vmatprep.subr.bf16.mxu0 %v7508
    %8578 = vmatpush2.bf16.msra.mxu0 %v7507
    %8579 = vmatprep.subr.bf16.mxu0 %v7500
    %8580 = vmatpush2.bf16.msra.mxu0 %v7499
    %8581 = vmatprep.subr.bf16.mxu0 %v7492
    %8582 = vmatpush2.bf16.msra.mxu0 %v7491
    %8583 = vmatprep.subr.bf16.mxu0 %v7484
    %8584 = vmatpush2.bf16.msra.mxu0 %v7483
    %8585 = vmatprep.subr.bf16.mxu0 %v7476
    %8586 = vmatpush2.bf16.msra.mxu0 %v7475
    %8587 = vmatprep.subr.bf16.mxu0 %v7468
    %8588 = vmatpush2.bf16.msra.mxu0 %v7467
    %8589 = vmatprep.subr.bf16.mxu0 %v7460
    %8590 = vmatpush2.bf16.msra.mxu0 %v7459
    %8591 = vmatprep.subr.bf16.mxu0 %v7452
    %8592 = vmatpush2.bf16.msra.mxu0 %v7451
    %8593 = vmatprep.mubr.bf16.mxu0 %v5034
    %8594 = vmatmul.mubr.bf16.gmra.mxu0 %v5033
    %v8595 = vpop.f32.mrf.mxu0
    %v8596 = vadd.f32 %v8555, %v8595
    %v8597 = vpop.f32.mrf.mxu0
    %v8598 = vadd.f32 %v8557, %v8597
    %v8599 = vpop.f32.mrf.mxu0
    %v8600 = vpop.f32.mrf.mxu0
    %8601 = vdwg.mxu0
    %8602 = vmatprep.subr.bf16.mxu0 %v7572
    %8603 = vmatpush1.bf16.msra.mxu0 %v7571
    %8604 = vmatprep.subr.bf16.mxu0 %v7564
    %8605 = vmatpush1.bf16.msra.mxu0 %v7563
    %8606 = vmatprep.subr.bf16.mxu0 %v7556
    %8607 = vmatpush1.bf16.msra.mxu0 %v7555
    %8608 = vmatprep.subr.bf16.mxu0 %v7548
    %8609 = vmatpush1.bf16.msra.mxu0 %v7547
    %8610 = vmatprep.subr.bf16.mxu0 %v7540
    %8611 = vmatpush1.bf16.msra.mxu0 %v7539
    %8612 = vmatprep.subr.bf16.mxu0 %v7532
    %8613 = vmatpush1.bf16.msra.mxu0 %v7531
    %8614 = vmatprep.subr.bf16.mxu0 %v7524
    %8615 = vmatpush1.bf16.msra.mxu0 %v7523
    %8616 = vmatprep.subr.bf16.mxu0 %v7516
    %8617 = vmatpush1.bf16.msra.mxu0 %v7515
    %8618 = vmatprep.subr.bf16.mxu0 %v7636
    %8619 = vmatpush2.bf16.msra.mxu0 %v7635
    %8620 = vmatprep.subr.bf16.mxu0 %v7628
    %8621 = vmatpush2.bf16.msra.mxu0 %v7627
    %8622 = vmatprep.subr.bf16.mxu0 %v7620
    %8623 = vmatpush2.bf16.msra.mxu0 %v7619
    %8624 = vmatprep.subr.bf16.mxu0 %v7612
    %8625 = vmatpush2.bf16.msra.mxu0 %v7611
    %8626 = vmatprep.subr.bf16.mxu0 %v7604
    %8627 = vmatpush2.bf16.msra.mxu0 %v7603
    %8628 = vmatprep.subr.bf16.mxu0 %v7596
    %8629 = vmatpush2.bf16.msra.mxu0 %v7595
    %8630 = vmatprep.subr.bf16.mxu0 %v7588
    %8631 = vmatpush2.bf16.msra.mxu0 %v7587
    %8632 = vmatprep.subr.bf16.mxu0 %v7580
    %8633 = vmatpush2.bf16.msra.mxu0 %v7579
    %8634 = vmatprep.mubr.bf16.mxu0 %v5036
    %8635 = vmatmul.mubr.bf16.gmra.mxu0 %v5035
    %v8636 = vpop.f32.mrf.mxu0
    %v8637 = vadd.f32 %v8596, %v8636
    %v8638 = vpop.f32.mrf.mxu0
    %v8639 = vadd.f32 %v8598, %v8638
    %v8640 = vpop.f32.mrf.mxu0
    %v8641 = vpop.f32.mrf.mxu0
    %8642 = vdwg.mxu0
    %8643 = vmatprep.subr.bf16.mxu0 %v7190
    %8644 = vmatpush1.bf16.msra.mxu0 %v7189
    %8645 = vmatprep.subr.bf16.mxu0 %v7182
    %8646 = vmatpush1.bf16.msra.mxu0 %v7181
    %8647 = vmatprep.subr.bf16.mxu0 %v7174
    %8648 = vmatpush1.bf16.msra.mxu0 %v7173
    %8649 = vmatprep.subr.bf16.mxu0 %v7166
    %8650 = vmatpush1.bf16.msra.mxu0 %v7165
    %8651 = vmatprep.subr.bf16.mxu0 %v7158
    %8652 = vmatpush1.bf16.msra.mxu0 %v7157
    %8653 = vmatprep.subr.bf16.mxu0 %v7150
    %8654 = vmatpush1.bf16.msra.mxu0 %v7149
    %8655 = vmatprep.subr.bf16.mxu0 %v7142
    %8656 = vmatpush1.bf16.msra.mxu0 %v7141
    %8657 = vmatprep.subr.bf16.mxu0 %v7134
    %8658 = vmatpush1.bf16.msra.mxu0 %v7133
    %8659 = vmatprep.subr.bf16.mxu0 %v7254
    %8660 = vmatpush2.bf16.msra.mxu0 %v7253
    %8661 = vmatprep.subr.bf16.mxu0 %v7246
    %8662 = vmatpush2.bf16.msra.mxu0 %v7245
    %8663 = vmatprep.subr.bf16.mxu0 %v7238
    %8664 = vmatpush2.bf16.msra.mxu0 %v7237
    %8665 = vmatprep.subr.bf16.mxu0 %v7230
    %8666 = vmatpush2.bf16.msra.mxu0 %v7229
    %8667 = vmatprep.subr.bf16.mxu0 %v7222
    %8668 = vmatpush2.bf16.msra.mxu0 %v7221
    %8669 = vmatprep.subr.bf16.mxu0 %v7214
    %8670 = vmatpush2.bf16.msra.mxu0 %v7213
    %8671 = vmatprep.subr.bf16.mxu0 %v7206
    %8672 = vmatpush2.bf16.msra.mxu0 %v7205
    %8673 = vmatprep.subr.bf16.mxu0 %v7198
    %8674 = vmatpush2.bf16.msra.mxu0 %v7197
    %8675 = vmatprep.mubr.bf16.mxu0 %v5030
    %8676 = vmatmul.mubr.bf16.gmra.mxu0 %v5029
    %v8677 = vpop.f32.mrf.mxu0
    %v8678 = vadd.f32 %v5578, %v8677
    %v8679 = vpop.f32.mrf.mxu0
    %v8680 = vadd.f32 %v5582, %v8679
    %v8681 = vpop.f32.mrf.mxu0
    %v8682 = vpop.f32.mrf.mxu0
    %8683 = vdwg.mxu0
    %8684 = vmatprep.subr.bf16.mxu0 %v7318
    %8685 = vmatpush1.bf16.msra.mxu0 %v7317
    %8686 = vmatprep.subr.bf16.mxu0 %v7310
    %8687 = vmatpush1.bf16.msra.mxu0 %v7309
    %8688 = vmatprep.subr.bf16.mxu0 %v7302
    %8689 = vmatpush1.bf16.msra.mxu0 %v7301
    %8690 = vmatprep.subr.bf16.mxu0 %v7294
    %8691 = vmatpush1.bf16.msra.mxu0 %v7293
    %8692 = vmatprep.subr.bf16.mxu0 %v7286
    %8693 = vmatpush1.bf16.msra.mxu0 %v7285
    %8694 = vmatprep.subr.bf16.mxu0 %v7278
    %8695 = vmatpush1.bf16.msra.mxu0 %v7277
    %8696 = vmatprep.subr.bf16.mxu0 %v7270
    %8697 = vmatpush1.bf16.msra.mxu0 %v7269
    %8698 = vmatprep.subr.bf16.mxu0 %v7262
    %8699 = vmatpush1.bf16.msra.mxu0 %v7261
    %8700 = vmatprep.subr.bf16.mxu0 %v7382
    %8701 = vmatpush2.bf16.msra.mxu0 %v7381
    %8702 = vmatprep.subr.bf16.mxu0 %v7374
    %8703 = vmatpush2.bf16.msra.mxu0 %v7373
    %8704 = vmatprep.subr.bf16.mxu0 %v7366
    %8705 = vmatpush2.bf16.msra.mxu0 %v7365
    %8706 = vmatprep.subr.bf16.mxu0 %v7358
    %8707 = vmatpush2.bf16.msra.mxu0 %v7357
    %8708 = vmatprep.subr.bf16.mxu0 %v7350
    %8709 = vmatpush2.bf16.msra.mxu0 %v7349
    %8710 = vmatprep.subr.bf16.mxu0 %v7342
    %8711 = vmatpush2.bf16.msra.mxu0 %v7341
    %8712 = vmatprep.subr.bf16.mxu0 %v7334
    %8713 = vmatpush2.bf16.msra.mxu0 %v7333
    %8714 = vmatprep.subr.bf16.mxu0 %v7326
    %8715 = vmatpush2.bf16.msra.mxu0 %v7325
    %8716 = vmatprep.mubr.bf16.mxu0 %v5032
    %8717 = vmatmul.mubr.bf16.gmra.mxu0 %v5031
    %v8718 = vpop.f32.mrf.mxu0
    %v8719 = vadd.f32 %v8678, %v8718
    %v8720 = vpop.f32.mrf.mxu0
    %v8721 = vadd.f32 %v8680, %v8720
    %v8722 = vpop.f32.mrf.mxu0
    %v8723 = vpop.f32.mrf.mxu0
    %8724 = vdwg.mxu0
    %8725 = vmatprep.subr.bf16.mxu0 %v7446
    %8726 = vmatpush1.bf16.msra.mxu0 %v7445
    %8727 = vmatprep.subr.bf16.mxu0 %v7438
    %8728 = vmatpush1.bf16.msra.mxu0 %v7437
    %8729 = vmatprep.subr.bf16.mxu0 %v7430
    %8730 = vmatpush1.bf16.msra.mxu0 %v7429
    %8731 = vmatprep.subr.bf16.mxu0 %v7422
    %8732 = vmatpush1.bf16.msra.mxu0 %v7421
    %8733 = vmatprep.subr.bf16.mxu0 %v7414
    %8734 = vmatpush1.bf16.msra.mxu0 %v7413
    %8735 = vmatprep.subr.bf16.mxu0 %v7406
    %8736 = vmatpush1.bf16.msra.mxu0 %v7405
    %8737 = vmatprep.subr.bf16.mxu0 %v7398
    %8738 = vmatpush1.bf16.msra.mxu0 %v7397
    %8739 = vmatprep.subr.bf16.mxu0 %v7390
    %8740 = vmatpush1.bf16.msra.mxu0 %v7389
    %8741 = vmatprep.subr.bf16.mxu0 %v7510
    %8742 = vmatpush2.bf16.msra.mxu0 %v7509
    %8743 = vmatprep.subr.bf16.mxu0 %v7502
    %8744 = vmatpush2.bf16.msra.mxu0 %v7501
    %8745 = vmatprep.subr.bf16.mxu0 %v7494
    %8746 = vmatpush2.bf16.msra.mxu0 %v7493
    %8747 = vmatprep.subr.bf16.mxu0 %v7486
    %8748 = vmatpush2.bf16.msra.mxu0 %v7485
    %8749 = vmatprep.subr.bf16.mxu0 %v7478
    %8750 = vmatpush2.bf16.msra.mxu0 %v7477
    %8751 = vmatprep.subr.bf16.mxu0 %v7470
    %8752 = vmatpush2.bf16.msra.mxu0 %v7469
    %8753 = vmatprep.subr.bf16.mxu0 %v7462
    %8754 = vmatpush2.bf16.msra.mxu0 %v7461
    %8755 = vmatprep.subr.bf16.mxu0 %v7454
    %8756 = vmatpush2.bf16.msra.mxu0 %v7453
    %8757 = vmatprep.mubr.bf16.mxu0 %v5034
    %8758 = vmatmul.mubr.bf16.gmra.mxu0 %v5033
    %v8759 = vpop.f32.mrf.mxu0
    %v8760 = vadd.f32 %v8719, %v8759
    %v8761 = vpop.f32.mrf.mxu0
    %v8762 = vadd.f32 %v8721, %v8761
    %v8763 = vpop.f32.mrf.mxu0
    %v8764 = vpop.f32.mrf.mxu0
    %8765 = vdwg.mxu0
    %8766 = vmatprep.subr.bf16.mxu0 %v7574
    %8767 = vmatpush1.bf16.msra.mxu0 %v7573
    %8768 = vmatprep.subr.bf16.mxu0 %v7566
    %8769 = vmatpush1.bf16.msra.mxu0 %v7565
    %8770 = vmatprep.subr.bf16.mxu0 %v7558
    %8771 = vmatpush1.bf16.msra.mxu0 %v7557
    %8772 = vmatprep.subr.bf16.mxu0 %v7550
    %8773 = vmatpush1.bf16.msra.mxu0 %v7549
    %8774 = vmatprep.subr.bf16.mxu0 %v7542
    %8775 = vmatpush1.bf16.msra.mxu0 %v7541
    %8776 = vmatprep.subr.bf16.mxu0 %v7534
    %8777 = vmatpush1.bf16.msra.mxu0 %v7533
    %8778 = vmatprep.subr.bf16.mxu0 %v7526
    %8779 = vmatpush1.bf16.msra.mxu0 %v7525
    %8780 = vmatprep.subr.bf16.mxu0 %v7518
    %8781 = vmatpush1.bf16.msra.mxu0 %v7517
    %8782 = vmatprep.subr.bf16.mxu0 %v7638
    %8783 = vmatpush2.bf16.msra.mxu0 %v7637
    %8784 = vmatprep.subr.bf16.mxu0 %v7630
    %8785 = vmatpush2.bf16.msra.mxu0 %v7629
    %8786 = vmatprep.subr.bf16.mxu0 %v7622
    %8787 = vmatpush2.bf16.msra.mxu0 %v7621
    %8788 = vmatprep.subr.bf16.mxu0 %v7614
    %8789 = vmatpush2.bf16.msra.mxu0 %v7613
    %8790 = vmatprep.subr.bf16.mxu0 %v7606
    %8791 = vmatpush2.bf16.msra.mxu0 %v7605
    %8792 = vmatprep.subr.bf16.mxu0 %v7598
    %8793 = vmatpush2.bf16.msra.mxu0 %v7597
    %8794 = vmatprep.subr.bf16.mxu0 %v7590
    %8795 = vmatpush2.bf16.msra.mxu0 %v7589
    %8796 = vmatprep.subr.bf16.mxu0 %v7582
    %8797 = vmatpush2.bf16.msra.mxu0 %v7581
    %8798 = vmatprep.mubr.bf16.mxu0 %v5036
    %8799 = vmatmul.mubr.bf16.gmra.mxu0 %v5035
    %v8800 = vpop.f32.mrf.mxu0
    %v8801 = vadd.f32 %v8760, %v8800
    %v8802 = vpop.f32.mrf.mxu0
    %v8803 = vadd.f32 %v8762, %v8802
    %v8804 = vpop.f32.mrf.mxu0
    %v8805 = vpop.f32.mrf.mxu0
    %8806 = vdwg.mxu0
    %v8807 = vmax.f32 %v8309, 0.0
    %v8808 = vmax.f32 %v8311, 0.0
    %v8809 = vmax.f32 %v8473, 0.0
    %v8810 = vmax.f32 %v8475, 0.0
    %v8811 = vmax.f32 %v8637, 0.0
    %v8812 = vmax.f32 %v8639, 0.0
    %v8813 = vmax.f32 %v8801, 0.0
    %v8814 = vmax.f32 %v8803, 0.0
    %v8815 = vpack.c.bf16 %v8807, %v8807
    %v8816 = vpack.c.bf16 %v8808, %v8808
    %v8817 = vpack.c.bf16 %v8809, %v8809
    %v8818 = vpack.c.bf16 %v8810, %v8810
    %v8819 = vpack.c.bf16 %v8811, %v8811
    %v8820 = vpack.c.bf16 %v8812, %v8812
    %v8821 = vpack.c.bf16 %v8813, %v8813
    %v8822 = vpack.c.bf16 %v8814, %v8814
    %v8823 = vld [vmem:[#allocation11] sm:$0xff]
    %v8824 = vld [vmem:[#allocation11 + $0x8] sm:$0xff]
    %v8825 = vld [vmem:[#allocation11 + $0x10] sm:$0xff]
    %v8826 = vld [vmem:[#allocation11 + $0x18] sm:$0xff]
    %v8827 = vld [vmem:[#allocation11 + $0x20] sm:$0xff]
    %v8828 = vld [vmem:[#allocation11 + $0x28] sm:$0xff]
    %v8829 = vld [vmem:[#allocation11 + $0x30] sm:$0xff]
    %v8830 = vld [vmem:[#allocation11 + $0x38] sm:$0xff]
    %v8831 = vld [vmem:[#allocation11 + $0x40] sm:$0xff]
    %v8832 = vld [vmem:[#allocation11 + $0x48] sm:$0xff]
    %v8833 = vld [vmem:[#allocation11 + $0x50] sm:$0xff]
    %v8834 = vld [vmem:[#allocation11 + $0x58] sm:$0xff]
    %v8835 = vld [vmem:[#allocation11 + $0x60] sm:$0xff]
    %v8836 = vld [vmem:[#allocation11 + $0x68] sm:$0xff]
    %v8837 = vld [vmem:[#allocation11 + $0x70] sm:$0xff]
    %v8838 = vld [vmem:[#allocation11 + $0x78] sm:$0xff]
    %v8839 = vld [vmem:[#allocation11 + $0x80] sm:$0xff]
    %v8840 = vld [vmem:[#allocation11 + $0x88] sm:$0xff]
    %v8841 = vld [vmem:[#allocation11 + $0x90] sm:$0xff]
    %v8842 = vld [vmem:[#allocation11 + $0x98] sm:$0xff]
    %v8843 = vld [vmem:[#allocation11 + $0xa0] sm:$0xff]
    %v8844 = vld [vmem:[#allocation11 + $0xa8] sm:$0xff]
    %v8845 = vld [vmem:[#allocation11 + $0xb0] sm:$0xff]
    %v8846 = vld [vmem:[#allocation11 + $0xb8] sm:$0xff]
    %v8847 = vld [vmem:[#allocation11 + $0xc0] sm:$0xff]
    %v8848 = vld [vmem:[#allocation11 + $0xc8] sm:$0xff]
    %v8849 = vld [vmem:[#allocation11 + $0xd0] sm:$0xff]
    %v8850 = vld [vmem:[#allocation11 + $0xd8] sm:$0xff]
    %v8851 = vld [vmem:[#allocation11 + $0xe0] sm:$0xff]
    %v8852 = vld [vmem:[#allocation11 + $0xe8] sm:$0xff]
    %v8853 = vld [vmem:[#allocation11 + $0xf0] sm:$0xff]
    %v8854 = vld [vmem:[#allocation11 + $0xf8] sm:$0xff]
    %v8855 = vld [vmem:[#allocation11 + $0x100] sm:$0xff]
    %v8856 = vld [vmem:[#allocation11 + $0x108] sm:$0xff]
    %v8857 = vld [vmem:[#allocation11 + $0x110] sm:$0xff]
    %v8858 = vld [vmem:[#allocation11 + $0x118] sm:$0xff]
    %v8859 = vld [vmem:[#allocation11 + $0x120] sm:$0xff]
    %v8860 = vld [vmem:[#allocation11 + $0x128] sm:$0xff]
    %v8861 = vld [vmem:[#allocation11 + $0x130] sm:$0xff]
    %v8862 = vld [vmem:[#allocation11 + $0x138] sm:$0xff]
    %v8863 = vld [vmem:[#allocation11 + $0x140] sm:$0xff]
    %v8864 = vld [vmem:[#allocation11 + $0x148] sm:$0xff]
    %v8865 = vld [vmem:[#allocation11 + $0x150] sm:$0xff]
    %v8866 = vld [vmem:[#allocation11 + $0x158] sm:$0xff]
    %v8867 = vld [vmem:[#allocation11 + $0x160] sm:$0xff]
    %v8868 = vld [vmem:[#allocation11 + $0x168] sm:$0xff]
    %v8869 = vld [vmem:[#allocation11 + $0x170] sm:$0xff]
    %v8870 = vld [vmem:[#allocation11 + $0x178] sm:$0xff]
    %v8871 = vld [vmem:[#allocation11 + $0x180] sm:$0xff]
    %v8872 = vld [vmem:[#allocation11 + $0x188] sm:$0xff]
    %v8873 = vld [vmem:[#allocation11 + $0x190] sm:$0xff]
    %v8874 = vld [vmem:[#allocation11 + $0x198] sm:$0xff]
    %v8875 = vld [vmem:[#allocation11 + $0x1a0] sm:$0xff]
    %v8876 = vld [vmem:[#allocation11 + $0x1a8] sm:$0xff]
    %v8877 = vld [vmem:[#allocation11 + $0x1b0] sm:$0xff]
    %v8878 = vld [vmem:[#allocation11 + $0x1b8] sm:$0xff]
    %v8879 = vld [vmem:[#allocation11 + $0x1c0] sm:$0xff]
    %v8880 = vld [vmem:[#allocation11 + $0x1c8] sm:$0xff]
    %v8881 = vld [vmem:[#allocation11 + $0x1d0] sm:$0xff]
    %v8882 = vld [vmem:[#allocation11 + $0x1d8] sm:$0xff]
    %v8883 = vld [vmem:[#allocation11 + $0x1e0] sm:$0xff]
    %v8884 = vld [vmem:[#allocation11 + $0x1e8] sm:$0xff]
    %v8885 = vld [vmem:[#allocation11 + $0x1f0] sm:$0xff]
    %v8886 = vld [vmem:[#allocation11 + $0x1f8] sm:$0xff]
    %v8887 = vld [vmem:[#allocation11 + $0x200] sm:$0xff]
    %v8888 = vld [vmem:[#allocation11 + $0x208] sm:$0xff]
    %v8889 = vld [vmem:[#allocation11 + $0x210] sm:$0xff]
    %v8890 = vld [vmem:[#allocation11 + $0x218] sm:$0xff]
    %v8891 = vld [vmem:[#allocation11 + $0x220] sm:$0xff]
    %v8892 = vld [vmem:[#allocation11 + $0x228] sm:$0xff]
    %v8893 = vld [vmem:[#allocation11 + $0x230] sm:$0xff]
    %v8894 = vld [vmem:[#allocation11 + $0x238] sm:$0xff]
    %v8895 = vld [vmem:[#allocation11 + $0x240] sm:$0xff]
    %v8896 = vld [vmem:[#allocation11 + $0x248] sm:$0xff]
    %v8897 = vld [vmem:[#allocation11 + $0x250] sm:$0xff]
    %v8898 = vld [vmem:[#allocation11 + $0x258] sm:$0xff]
    %v8899 = vld [vmem:[#allocation11 + $0x260] sm:$0xff]
    %v8900 = vld [vmem:[#allocation11 + $0x268] sm:$0xff]
    %v8901 = vld [vmem:[#allocation11 + $0x270] sm:$0xff]
    %v8902 = vld [vmem:[#allocation11 + $0x278] sm:$0xff]
    %v8903 = vld [vmem:[#allocation11 + $0x280] sm:$0xff]
    %v8904 = vld [vmem:[#allocation11 + $0x288] sm:$0xff]
    %v8905 = vld [vmem:[#allocation11 + $0x290] sm:$0xff]
    %v8906 = vld [vmem:[#allocation11 + $0x298] sm:$0xff]
    %v8907 = vld [vmem:[#allocation11 + $0x2a0] sm:$0xff]
    %v8908 = vld [vmem:[#allocation11 + $0x2a8] sm:$0xff]
    %v8909 = vld [vmem:[#allocation11 + $0x2b0] sm:$0xff]
    %v8910 = vld [vmem:[#allocation11 + $0x2b8] sm:$0xff]
    %v8911 = vld [vmem:[#allocation11 + $0x2c0] sm:$0xff]
    %v8912 = vld [vmem:[#allocation11 + $0x2c8] sm:$0xff]
    %v8913 = vld [vmem:[#allocation11 + $0x2d0] sm:$0xff]
    %v8914 = vld [vmem:[#allocation11 + $0x2d8] sm:$0xff]
    %v8915 = vld [vmem:[#allocation11 + $0x2e0] sm:$0xff]
    %v8916 = vld [vmem:[#allocation11 + $0x2e8] sm:$0xff]
    %v8917 = vld [vmem:[#allocation11 + $0x2f0] sm:$0xff]
    %v8918 = vld [vmem:[#allocation11 + $0x2f8] sm:$0xff]
    %v8919 = vld [vmem:[#allocation11 + $0x300] sm:$0xff]
    %v8920 = vld [vmem:[#allocation11 + $0x308] sm:$0xff]
    %v8921 = vld [vmem:[#allocation11 + $0x310] sm:$0xff]
    %v8922 = vld [vmem:[#allocation11 + $0x318] sm:$0xff]
    %v8923 = vld [vmem:[#allocation11 + $0x320] sm:$0xff]
    %v8924 = vld [vmem:[#allocation11 + $0x328] sm:$0xff]
    %v8925 = vld [vmem:[#allocation11 + $0x330] sm:$0xff]
    %v8926 = vld [vmem:[#allocation11 + $0x338] sm:$0xff]
    %v8927 = vld [vmem:[#allocation11 + $0x340] sm:$0xff]
    %v8928 = vld [vmem:[#allocation11 + $0x348] sm:$0xff]
    %v8929 = vld [vmem:[#allocation11 + $0x350] sm:$0xff]
    %v8930 = vld [vmem:[#allocation11 + $0x358] sm:$0xff]
    %v8931 = vld [vmem:[#allocation11 + $0x360] sm:$0xff]
    %v8932 = vld [vmem:[#allocation11 + $0x368] sm:$0xff]
    %v8933 = vld [vmem:[#allocation11 + $0x370] sm:$0xff]
    %v8934 = vld [vmem:[#allocation11 + $0x378] sm:$0xff]
    %v8935 = vld [vmem:[#allocation11 + $0x380] sm:$0xff]
    %v8936 = vld [vmem:[#allocation11 + $0x388] sm:$0xff]
    %v8937 = vld [vmem:[#allocation11 + $0x390] sm:$0xff]
    %v8938 = vld [vmem:[#allocation11 + $0x398] sm:$0xff]
    %v8939 = vld [vmem:[#allocation11 + $0x3a0] sm:$0xff]
    %v8940 = vld [vmem:[#allocation11 + $0x3a8] sm:$0xff]
    %v8941 = vld [vmem:[#allocation11 + $0x3b0] sm:$0xff]
    %v8942 = vld [vmem:[#allocation11 + $0x3b8] sm:$0xff]
    %v8943 = vld [vmem:[#allocation11 + $0x3c0] sm:$0xff]
    %v8944 = vld [vmem:[#allocation11 + $0x3c8] sm:$0xff]
    %v8945 = vld [vmem:[#allocation11 + $0x3d0] sm:$0xff]
    %v8946 = vld [vmem:[#allocation11 + $0x3d8] sm:$0xff]
    %v8947 = vld [vmem:[#allocation11 + $0x3e0] sm:$0xff]
    %v8948 = vld [vmem:[#allocation11 + $0x3e8] sm:$0xff]
    %v8949 = vld [vmem:[#allocation11 + $0x3f0] sm:$0xff]
    %v8950 = vld [vmem:[#allocation11 + $0x3f8] sm:$0xff]
    %v8951 = vld [vmem:[#allocation11 + $0x400] sm:$0xff]
    %v8952 = vld [vmem:[#allocation11 + $0x408] sm:$0xff]
    %v8953 = vld [vmem:[#allocation11 + $0x410] sm:$0xff]
    %v8954 = vld [vmem:[#allocation11 + $0x418] sm:$0xff]
    %v8955 = vld [vmem:[#allocation11 + $0x420] sm:$0xff]
    %v8956 = vld [vmem:[#allocation11 + $0x428] sm:$0xff]
    %v8957 = vld [vmem:[#allocation11 + $0x430] sm:$0xff]
    %v8958 = vld [vmem:[#allocation11 + $0x438] sm:$0xff]
    %v8959 = vld [vmem:[#allocation11 + $0x440] sm:$0xff]
    %v8960 = vld [vmem:[#allocation11 + $0x448] sm:$0xff]
    %v8961 = vld [vmem:[#allocation11 + $0x450] sm:$0xff]
    %v8962 = vld [vmem:[#allocation11 + $0x458] sm:$0xff]
    %v8963 = vld [vmem:[#allocation11 + $0x460] sm:$0xff]
    %v8964 = vld [vmem:[#allocation11 + $0x468] sm:$0xff]
    %v8965 = vld [vmem:[#allocation11 + $0x470] sm:$0xff]
    %v8966 = vld [vmem:[#allocation11 + $0x478] sm:$0xff]
    %v8967 = vld [vmem:[#allocation11 + $0x480] sm:$0xff]
    %v8968 = vld [vmem:[#allocation11 + $0x488] sm:$0xff]
    %v8969 = vld [vmem:[#allocation11 + $0x490] sm:$0xff]
    %v8970 = vld [vmem:[#allocation11 + $0x498] sm:$0xff]
    %v8971 = vld [vmem:[#allocation11 + $0x4a0] sm:$0xff]
    %v8972 = vld [vmem:[#allocation11 + $0x4a8] sm:$0xff]
    %v8973 = vld [vmem:[#allocation11 + $0x4b0] sm:$0xff]
    %v8974 = vld [vmem:[#allocation11 + $0x4b8] sm:$0xff]
    %v8975 = vld [vmem:[#allocation11 + $0x4c0] sm:$0xff]
    %v8976 = vld [vmem:[#allocation11 + $0x4c8] sm:$0xff]
    %v8977 = vld [vmem:[#allocation11 + $0x4d0] sm:$0xff]
    %v8978 = vld [vmem:[#allocation11 + $0x4d8] sm:$0xff]
    %v8979 = vld [vmem:[#allocation11 + $0x4e0] sm:$0xff]
    %v8980 = vld [vmem:[#allocation11 + $0x4e8] sm:$0xff]
    %v8981 = vld [vmem:[#allocation11 + $0x4f0] sm:$0xff]
    %v8982 = vld [vmem:[#allocation11 + $0x4f8] sm:$0xff]
    %v8983 = vld [vmem:[#allocation11 + $0x500] sm:$0xff]
    %v8984 = vld [vmem:[#allocation11 + $0x508] sm:$0xff]
    %v8985 = vld [vmem:[#allocation11 + $0x510] sm:$0xff]
    %v8986 = vld [vmem:[#allocation11 + $0x518] sm:$0xff]
    %v8987 = vld [vmem:[#allocation11 + $0x520] sm:$0xff]
    %v8988 = vld [vmem:[#allocation11 + $0x528] sm:$0xff]
    %v8989 = vld [vmem:[#allocation11 + $0x530] sm:$0xff]
    %v8990 = vld [vmem:[#allocation11 + $0x538] sm:$0xff]
    %v8991 = vld [vmem:[#allocation11 + $0x540] sm:$0xff]
    %v8992 = vld [vmem:[#allocation11 + $0x548] sm:$0xff]
    %v8993 = vld [vmem:[#allocation11 + $0x550] sm:$0xff]
    %v8994 = vld [vmem:[#allocation11 + $0x558] sm:$0xff]
    %v8995 = vld [vmem:[#allocation11 + $0x560] sm:$0xff]
    %v8996 = vld [vmem:[#allocation11 + $0x568] sm:$0xff]
    %v8997 = vld [vmem:[#allocation11 + $0x570] sm:$0xff]
    %v8998 = vld [vmem:[#allocation11 + $0x578] sm:$0xff]
    %v8999 = vld [vmem:[#allocation11 + $0x580] sm:$0xff]
    %v9000 = vld [vmem:[#allocation11 + $0x588] sm:$0xff]
    %v9001 = vld [vmem:[#allocation11 + $0x590] sm:$0xff]
    %v9002 = vld [vmem:[#allocation11 + $0x598] sm:$0xff]
    %v9003 = vld [vmem:[#allocation11 + $0x5a0] sm:$0xff]
    %v9004 = vld [vmem:[#allocation11 + $0x5a8] sm:$0xff]
    %v9005 = vld [vmem:[#allocation11 + $0x5b0] sm:$0xff]
    %v9006 = vld [vmem:[#allocation11 + $0x5b8] sm:$0xff]
    %v9007 = vld [vmem:[#allocation11 + $0x5c0] sm:$0xff]
    %v9008 = vld [vmem:[#allocation11 + $0x5c8] sm:$0xff]
    %v9009 = vld [vmem:[#allocation11 + $0x5d0] sm:$0xff]
    %v9010 = vld [vmem:[#allocation11 + $0x5d8] sm:$0xff]
    %v9011 = vld [vmem:[#allocation11 + $0x5e0] sm:$0xff]
    %v9012 = vld [vmem:[#allocation11 + $0x5e8] sm:$0xff]
    %v9013 = vld [vmem:[#allocation11 + $0x5f0] sm:$0xff]
    %v9014 = vld [vmem:[#allocation11 + $0x5f8] sm:$0xff]
    %v9015 = vld [vmem:[#allocation11 + $0x600] sm:$0xff]
    %v9016 = vld [vmem:[#allocation11 + $0x608] sm:$0xff]
    %v9017 = vld [vmem:[#allocation11 + $0x610] sm:$0xff]
    %v9018 = vld [vmem:[#allocation11 + $0x618] sm:$0xff]
    %v9019 = vld [vmem:[#allocation11 + $0x620] sm:$0xff]
    %v9020 = vld [vmem:[#allocation11 + $0x628] sm:$0xff]
    %v9021 = vld [vmem:[#allocation11 + $0x630] sm:$0xff]
    %v9022 = vld [vmem:[#allocation11 + $0x638] sm:$0xff]
    %v9023 = vld [vmem:[#allocation11 + $0x640] sm:$0xff]
    %v9024 = vld [vmem:[#allocation11 + $0x648] sm:$0xff]
    %v9025 = vld [vmem:[#allocation11 + $0x650] sm:$0xff]
    %v9026 = vld [vmem:[#allocation11 + $0x658] sm:$0xff]
    %v9027 = vld [vmem:[#allocation11 + $0x660] sm:$0xff]
    %v9028 = vld [vmem:[#allocation11 + $0x668] sm:$0xff]
    %v9029 = vld [vmem:[#allocation11 + $0x670] sm:$0xff]
    %v9030 = vld [vmem:[#allocation11 + $0x678] sm:$0xff]
    %v9031 = vld [vmem:[#allocation11 + $0x680] sm:$0xff]
    %v9032 = vld [vmem:[#allocation11 + $0x688] sm:$0xff]
    %v9033 = vld [vmem:[#allocation11 + $0x690] sm:$0xff]
    %v9034 = vld [vmem:[#allocation11 + $0x698] sm:$0xff]
    %v9035 = vld [vmem:[#allocation11 + $0x6a0] sm:$0xff]
    %v9036 = vld [vmem:[#allocation11 + $0x6a8] sm:$0xff]
    %v9037 = vld [vmem:[#allocation11 + $0x6b0] sm:$0xff]
    %v9038 = vld [vmem:[#allocation11 + $0x6b8] sm:$0xff]
    %v9039 = vld [vmem:[#allocation11 + $0x6c0] sm:$0xff]
    %v9040 = vld [vmem:[#allocation11 + $0x6c8] sm:$0xff]
    %v9041 = vld [vmem:[#allocation11 + $0x6d0] sm:$0xff]
    %v9042 = vld [vmem:[#allocation11 + $0x6d8] sm:$0xff]
    %v9043 = vld [vmem:[#allocation11 + $0x6e0] sm:$0xff]
    %v9044 = vld [vmem:[#allocation11 + $0x6e8] sm:$0xff]
    %v9045 = vld [vmem:[#allocation11 + $0x6f0] sm:$0xff]
    %v9046 = vld [vmem:[#allocation11 + $0x6f8] sm:$0xff]
    %v9047 = vld [vmem:[#allocation11 + $0x700] sm:$0xff]
    %v9048 = vld [vmem:[#allocation11 + $0x708] sm:$0xff]
    %v9049 = vld [vmem:[#allocation11 + $0x710] sm:$0xff]
    %v9050 = vld [vmem:[#allocation11 + $0x718] sm:$0xff]
    %v9051 = vld [vmem:[#allocation11 + $0x720] sm:$0xff]
    %v9052 = vld [vmem:[#allocation11 + $0x728] sm:$0xff]
    %v9053 = vld [vmem:[#allocation11 + $0x730] sm:$0xff]
    %v9054 = vld [vmem:[#allocation11 + $0x738] sm:$0xff]
    %v9055 = vld [vmem:[#allocation11 + $0x740] sm:$0xff]
    %v9056 = vld [vmem:[#allocation11 + $0x748] sm:$0xff]
    %v9057 = vld [vmem:[#allocation11 + $0x750] sm:$0xff]
    %v9058 = vld [vmem:[#allocation11 + $0x758] sm:$0xff]
    %v9059 = vld [vmem:[#allocation11 + $0x760] sm:$0xff]
    %v9060 = vld [vmem:[#allocation11 + $0x768] sm:$0xff]
    %v9061 = vld [vmem:[#allocation11 + $0x770] sm:$0xff]
    %v9062 = vld [vmem:[#allocation11 + $0x778] sm:$0xff]
    %v9063 = vld [vmem:[#allocation11 + $0x780] sm:$0xff]
    %v9064 = vld [vmem:[#allocation11 + $0x788] sm:$0xff]
    %v9065 = vld [vmem:[#allocation11 + $0x790] sm:$0xff]
    %v9066 = vld [vmem:[#allocation11 + $0x798] sm:$0xff]
    %v9067 = vld [vmem:[#allocation11 + $0x7a0] sm:$0xff]
    %v9068 = vld [vmem:[#allocation11 + $0x7a8] sm:$0xff]
    %v9069 = vld [vmem:[#allocation11 + $0x7b0] sm:$0xff]
    %v9070 = vld [vmem:[#allocation11 + $0x7b8] sm:$0xff]
    %v9071 = vld [vmem:[#allocation11 + $0x7c0] sm:$0xff]
    %v9072 = vld [vmem:[#allocation11 + $0x7c8] sm:$0xff]
    %v9073 = vld [vmem:[#allocation11 + $0x7d0] sm:$0xff]
    %v9074 = vld [vmem:[#allocation11 + $0x7d8] sm:$0xff]
    %v9075 = vld [vmem:[#allocation11 + $0x7e0] sm:$0xff]
    %v9076 = vld [vmem:[#allocation11 + $0x7e8] sm:$0xff]
    %v9077 = vld [vmem:[#allocation11 + $0x7f0] sm:$0xff]
    %v9078 = vld [vmem:[#allocation11 + $0x7f8] sm:$0xff]
    %v9079 = vld [vmem:[#allocation11 + $0x800] sm:$0xff]
    %v9080 = vld [vmem:[#allocation11 + $0x808] sm:$0xff]
    %v9081 = vld [vmem:[#allocation11 + $0x810] sm:$0xff]
    %v9082 = vld [vmem:[#allocation11 + $0x818] sm:$0xff]
    %v9083 = vld [vmem:[#allocation11 + $0x820] sm:$0xff]
    %v9084 = vld [vmem:[#allocation11 + $0x828] sm:$0xff]
    %v9085 = vld [vmem:[#allocation11 + $0x830] sm:$0xff]
    %v9086 = vld [vmem:[#allocation11 + $0x838] sm:$0xff]
    %v9087 = vld [vmem:[#allocation11 + $0x840] sm:$0xff]
    %v9088 = vld [vmem:[#allocation11 + $0x848] sm:$0xff]
    %v9089 = vld [vmem:[#allocation11 + $0x850] sm:$0xff]
    %v9090 = vld [vmem:[#allocation11 + $0x858] sm:$0xff]
    %v9091 = vld [vmem:[#allocation11 + $0x860] sm:$0xff]
    %v9092 = vld [vmem:[#allocation11 + $0x868] sm:$0xff]
    %v9093 = vld [vmem:[#allocation11 + $0x870] sm:$0xff]
    %v9094 = vld [vmem:[#allocation11 + $0x878] sm:$0xff]
    %v9095 = vld [vmem:[#allocation11 + $0x880] sm:$0xff]
    %v9096 = vld [vmem:[#allocation11 + $0x888] sm:$0xff]
    %v9097 = vld [vmem:[#allocation11 + $0x890] sm:$0xff]
    %v9098 = vld [vmem:[#allocation11 + $0x898] sm:$0xff]
    %v9099 = vld [vmem:[#allocation11 + $0x8a0] sm:$0xff]
    %v9100 = vld [vmem:[#allocation11 + $0x8a8] sm:$0xff]
    %v9101 = vld [vmem:[#allocation11 + $0x8b0] sm:$0xff]
    %v9102 = vld [vmem:[#allocation11 + $0x8b8] sm:$0xff]
    %v9103 = vld [vmem:[#allocation11 + $0x8c0] sm:$0xff]
    %v9104 = vld [vmem:[#allocation11 + $0x8c8] sm:$0xff]
    %v9105 = vld [vmem:[#allocation11 + $0x8d0] sm:$0xff]
    %v9106 = vld [vmem:[#allocation11 + $0x8d8] sm:$0xff]
    %v9107 = vld [vmem:[#allocation11 + $0x8e0] sm:$0xff]
    %v9108 = vld [vmem:[#allocation11 + $0x8e8] sm:$0xff]
    %v9109 = vld [vmem:[#allocation11 + $0x8f0] sm:$0xff]
    %v9110 = vld [vmem:[#allocation11 + $0x8f8] sm:$0xff]
    %v9111 = vld [vmem:[#allocation11 + $0x900] sm:$0xff]
    %v9112 = vld [vmem:[#allocation11 + $0x908] sm:$0xff]
    %v9113 = vld [vmem:[#allocation11 + $0x910] sm:$0xff]
    %v9114 = vld [vmem:[#allocation11 + $0x918] sm:$0xff]
    %v9115 = vld [vmem:[#allocation11 + $0x920] sm:$0xff]
    %v9116 = vld [vmem:[#allocation11 + $0x928] sm:$0xff]
    %v9117 = vld [vmem:[#allocation11 + $0x930] sm:$0xff]
    %v9118 = vld [vmem:[#allocation11 + $0x938] sm:$0xff]
    %v9119 = vld [vmem:[#allocation11 + $0x940] sm:$0xff]
    %v9120 = vld [vmem:[#allocation11 + $0x948] sm:$0xff]
    %v9121 = vld [vmem:[#allocation11 + $0x950] sm:$0xff]
    %v9122 = vld [vmem:[#allocation11 + $0x958] sm:$0xff]
    %v9123 = vld [vmem:[#allocation11 + $0x960] sm:$0xff]
    %v9124 = vld [vmem:[#allocation11 + $0x968] sm:$0xff]
    %v9125 = vld [vmem:[#allocation11 + $0x970] sm:$0xff]
    %v9126 = vld [vmem:[#allocation11 + $0x978] sm:$0xff]
    %v9127 = vld [vmem:[#allocation11 + $0x980] sm:$0xff]
    %v9128 = vld [vmem:[#allocation11 + $0x988] sm:$0xff]
    %v9129 = vld [vmem:[#allocation11 + $0x990] sm:$0xff]
    %v9130 = vld [vmem:[#allocation11 + $0x998] sm:$0xff]
    %v9131 = vld [vmem:[#allocation11 + $0x9a0] sm:$0xff]
    %v9132 = vld [vmem:[#allocation11 + $0x9a8] sm:$0xff]
    %v9133 = vld [vmem:[#allocation11 + $0x9b0] sm:$0xff]
    %v9134 = vld [vmem:[#allocation11 + $0x9b8] sm:$0xff]
    %v9135 = vld [vmem:[#allocation11 + $0x9c0] sm:$0xff]
    %v9136 = vld [vmem:[#allocation11 + $0x9c8] sm:$0xff]
    %v9137 = vld [vmem:[#allocation11 + $0x9d0] sm:$0xff]
    %v9138 = vld [vmem:[#allocation11 + $0x9d8] sm:$0xff]
    %v9139 = vld [vmem:[#allocation11 + $0x9e0] sm:$0xff]
    %v9140 = vld [vmem:[#allocation11 + $0x9e8] sm:$0xff]
    %v9141 = vld [vmem:[#allocation11 + $0x9f0] sm:$0xff]
    %v9142 = vld [vmem:[#allocation11 + $0x9f8] sm:$0xff]
    %v9143 = vld [vmem:[#allocation11 + $0xa00] sm:$0xff]
    %v9144 = vld [vmem:[#allocation11 + $0xa08] sm:$0xff]
    %v9145 = vld [vmem:[#allocation11 + $0xa10] sm:$0xff]
    %v9146 = vld [vmem:[#allocation11 + $0xa18] sm:$0xff]
    %v9147 = vld [vmem:[#allocation11 + $0xa20] sm:$0xff]
    %v9148 = vld [vmem:[#allocation11 + $0xa28] sm:$0xff]
    %v9149 = vld [vmem:[#allocation11 + $0xa30] sm:$0xff]
    %v9150 = vld [vmem:[#allocation11 + $0xa38] sm:$0xff]
    %v9151 = vld [vmem:[#allocation11 + $0xa40] sm:$0xff]
    %v9152 = vld [vmem:[#allocation11 + $0xa48] sm:$0xff]
    %v9153 = vld [vmem:[#allocation11 + $0xa50] sm:$0xff]
    %v9154 = vld [vmem:[#allocation11 + $0xa58] sm:$0xff]
    %v9155 = vld [vmem:[#allocation11 + $0xa60] sm:$0xff]
    %v9156 = vld [vmem:[#allocation11 + $0xa68] sm:$0xff]
    %v9157 = vld [vmem:[#allocation11 + $0xa70] sm:$0xff]
    %v9158 = vld [vmem:[#allocation11 + $0xa78] sm:$0xff]
    %v9159 = vld [vmem:[#allocation11 + $0xa80] sm:$0xff]
    %v9160 = vld [vmem:[#allocation11 + $0xa88] sm:$0xff]
    %v9161 = vld [vmem:[#allocation11 + $0xa90] sm:$0xff]
    %v9162 = vld [vmem:[#allocation11 + $0xa98] sm:$0xff]
    %v9163 = vld [vmem:[#allocation11 + $0xaa0] sm:$0xff]
    %v9164 = vld [vmem:[#allocation11 + $0xaa8] sm:$0xff]
    %v9165 = vld [vmem:[#allocation11 + $0xab0] sm:$0xff]
    %v9166 = vld [vmem:[#allocation11 + $0xab8] sm:$0xff]
    %v9167 = vld [vmem:[#allocation11 + $0xac0] sm:$0xff]
    %v9168 = vld [vmem:[#allocation11 + $0xac8] sm:$0xff]
    %v9169 = vld [vmem:[#allocation11 + $0xad0] sm:$0xff]
    %v9170 = vld [vmem:[#allocation11 + $0xad8] sm:$0xff]
    %v9171 = vld [vmem:[#allocation11 + $0xae0] sm:$0xff]
    %v9172 = vld [vmem:[#allocation11 + $0xae8] sm:$0xff]
    %v9173 = vld [vmem:[#allocation11 + $0xaf0] sm:$0xff]
    %v9174 = vld [vmem:[#allocation11 + $0xaf8] sm:$0xff]
    %v9175 = vld [vmem:[#allocation11 + $0xb00] sm:$0xff]
    %v9176 = vld [vmem:[#allocation11 + $0xb08] sm:$0xff]
    %v9177 = vld [vmem:[#allocation11 + $0xb10] sm:$0xff]
    %v9178 = vld [vmem:[#allocation11 + $0xb18] sm:$0xff]
    %v9179 = vld [vmem:[#allocation11 + $0xb20] sm:$0xff]
    %v9180 = vld [vmem:[#allocation11 + $0xb28] sm:$0xff]
    %v9181 = vld [vmem:[#allocation11 + $0xb30] sm:$0xff]
    %v9182 = vld [vmem:[#allocation11 + $0xb38] sm:$0xff]
    %v9183 = vld [vmem:[#allocation11 + $0xb40] sm:$0xff]
    %v9184 = vld [vmem:[#allocation11 + $0xb48] sm:$0xff]
    %v9185 = vld [vmem:[#allocation11 + $0xb50] sm:$0xff]
    %v9186 = vld [vmem:[#allocation11 + $0xb58] sm:$0xff]
    %v9187 = vld [vmem:[#allocation11 + $0xb60] sm:$0xff]
    %v9188 = vld [vmem:[#allocation11 + $0xb68] sm:$0xff]
    %v9189 = vld [vmem:[#allocation11 + $0xb70] sm:$0xff]
    %v9190 = vld [vmem:[#allocation11 + $0xb78] sm:$0xff]
    %v9191 = vld [vmem:[#allocation11 + $0xb80] sm:$0xff]
    %v9192 = vld [vmem:[#allocation11 + $0xb88] sm:$0xff]
    %v9193 = vld [vmem:[#allocation11 + $0xb90] sm:$0xff]
    %v9194 = vld [vmem:[#allocation11 + $0xb98] sm:$0xff]
    %v9195 = vld [vmem:[#allocation11 + $0xba0] sm:$0xff]
    %v9196 = vld [vmem:[#allocation11 + $0xba8] sm:$0xff]
    %v9197 = vld [vmem:[#allocation11 + $0xbb0] sm:$0xff]
    %v9198 = vld [vmem:[#allocation11 + $0xbb8] sm:$0xff]
    %v9199 = vld [vmem:[#allocation11 + $0xbc0] sm:$0xff]
    %v9200 = vld [vmem:[#allocation11 + $0xbc8] sm:$0xff]
    %v9201 = vld [vmem:[#allocation11 + $0xbd0] sm:$0xff]
    %v9202 = vld [vmem:[#allocation11 + $0xbd8] sm:$0xff]
    %v9203 = vld [vmem:[#allocation11 + $0xbe0] sm:$0xff]
    %v9204 = vld [vmem:[#allocation11 + $0xbe8] sm:$0xff]
    %v9205 = vld [vmem:[#allocation11 + $0xbf0] sm:$0xff]
    %v9206 = vld [vmem:[#allocation11 + $0xbf8] sm:$0xff]
    %v9207 = vld [vmem:[#allocation13] sm:$0x3f]
    %v9209 = vlaneseq
    %v9210 = vshrl.u32 %v9209, 7
    %v9211 = vsub.s32 0, %v9210
    %v9212 = vrot.slane %v9207, %v9211
    %v9213 = vlaneseq
    %v9214 = vshrl.u32 %v9213, 7
    %v9215 = vsub.s32 1, %v9214
    %v9216 = vrot.slane %v9207, %v9215
    %v9217 = vlaneseq
    %v9218 = vshrl.u32 %v9217, 7
    %v9219 = vsub.s32 2, %v9218
    %v9220 = vrot.slane %v9207, %v9219
    %v9221 = vlaneseq
    %v9222 = vshrl.u32 %v9221, 7
    %v9223 = vsub.s32 3, %v9222
    %v9224 = vrot.slane %v9207, %v9223
    %v9225 = vlaneseq
    %v9226 = vshrl.u32 %v9225, 7
    %v9227 = vsub.s32 4, %v9226
    %v9228 = vrot.slane %v9207, %v9227
    %v9229 = vlaneseq
    %v9230 = vshrl.u32 %v9229, 7
    %v9231 = vsub.s32 5, %v9230
    %v9232 = vrot.slane %v9207, %v9231
    %v9623 = vunpack.c.l.b16 %v8823
    %v9624 = vunpack.c.h.b16 %v8823
    %v9625 = vunpack.c.l.b16 %v8824
    %v9626 = vunpack.c.h.b16 %v8824
    %v9627 = vunpack.c.l.b16 %v8825
    %v9628 = vunpack.c.h.b16 %v8825
    %v9629 = vunpack.c.l.b16 %v8826
    %v9630 = vunpack.c.h.b16 %v8826
    %v9631 = vunpack.c.l.b16 %v8827
    %v9632 = vunpack.c.h.b16 %v8827
    %v9633 = vunpack.c.l.b16 %v8828
    %v9634 = vunpack.c.h.b16 %v8828
    %v9635 = vunpack.c.l.b16 %v8829
    %v9636 = vunpack.c.h.b16 %v8829
    %v9637 = vunpack.c.l.b16 %v8830
    %v9638 = vunpack.c.h.b16 %v8830
    %v9639 = vunpack.c.l.b16 %v8831
    %v9640 = vunpack.c.h.b16 %v8831
    %v9641 = vunpack.c.l.b16 %v8832
    %v9642 = vunpack.c.h.b16 %v8832
    %v9643 = vunpack.c.l.b16 %v8833
    %v9644 = vunpack.c.h.b16 %v8833
    %v9645 = vunpack.c.l.b16 %v8834
    %v9646 = vunpack.c.h.b16 %v8834
    %v9647 = vunpack.c.l.b16 %v8835
    %v9648 = vunpack.c.h.b16 %v8835
    %v9649 = vunpack.c.l.b16 %v8836
    %v9650 = vunpack.c.h.b16 %v8836
    %v9651 = vunpack.c.l.b16 %v8837
    %v9652 = vunpack.c.h.b16 %v8837
    %v9653 = vunpack.c.l.b16 %v8838
    %v9654 = vunpack.c.h.b16 %v8838
    %v9655 = vunpack.c.l.b16 %v8839
    %v9656 = vunpack.c.h.b16 %v8839
    %v9657 = vunpack.c.l.b16 %v8840
    %v9658 = vunpack.c.h.b16 %v8840
    %v9659 = vunpack.c.l.b16 %v8841
    %v9660 = vunpack.c.h.b16 %v8841
    %v9661 = vunpack.c.l.b16 %v8842
    %v9662 = vunpack.c.h.b16 %v8842
    %v9663 = vunpack.c.l.b16 %v8843
    %v9664 = vunpack.c.h.b16 %v8843
    %v9665 = vunpack.c.l.b16 %v8844
    %v9666 = vunpack.c.h.b16 %v8844
    %v9667 = vunpack.c.l.b16 %v8845
    %v9668 = vunpack.c.h.b16 %v8845
    %v9669 = vunpack.c.l.b16 %v8846
    %v9670 = vunpack.c.h.b16 %v8846
    %v9671 = vunpack.c.l.b16 %v8847
    %v9672 = vunpack.c.h.b16 %v8847
    %v9673 = vunpack.c.l.b16 %v8848
    %v9674 = vunpack.c.h.b16 %v8848
    %v9675 = vunpack.c.l.b16 %v8849
    %v9676 = vunpack.c.h.b16 %v8849
    %v9677 = vunpack.c.l.b16 %v8850
    %v9678 = vunpack.c.h.b16 %v8850
    %v9679 = vunpack.c.l.b16 %v8851
    %v9680 = vunpack.c.h.b16 %v8851
    %v9681 = vunpack.c.l.b16 %v8852
    %v9682 = vunpack.c.h.b16 %v8852
    %v9683 = vunpack.c.l.b16 %v8853
    %v9684 = vunpack.c.h.b16 %v8853
    %v9685 = vunpack.c.l.b16 %v8854
    %v9686 = vunpack.c.h.b16 %v8854
    %v9687 = vunpack.c.l.b16 %v8855
    %v9688 = vunpack.c.h.b16 %v8855
    %v9689 = vunpack.c.l.b16 %v8856
    %v9690 = vunpack.c.h.b16 %v8856
    %v9691 = vunpack.c.l.b16 %v8857
    %v9692 = vunpack.c.h.b16 %v8857
    %v9693 = vunpack.c.l.b16 %v8858
    %v9694 = vunpack.c.h.b16 %v8858
    %v9695 = vunpack.c.l.b16 %v8859
    %v9696 = vunpack.c.h.b16 %v8859
    %v9697 = vunpack.c.l.b16 %v8860
    %v9698 = vunpack.c.h.b16 %v8860
    %v9699 = vunpack.c.l.b16 %v8861
    %v9700 = vunpack.c.h.b16 %v8861
    %v9701 = vunpack.c.l.b16 %v8862
    %v9702 = vunpack.c.h.b16 %v8862
    %v9703 = vunpack.c.l.b16 %v8863
    %v9704 = vunpack.c.h.b16 %v8863
    %v9705 = vunpack.c.l.b16 %v8864
    %v9706 = vunpack.c.h.b16 %v8864
    %v9707 = vunpack.c.l.b16 %v8865
    %v9708 = vunpack.c.h.b16 %v8865
    %v9709 = vunpack.c.l.b16 %v8866
    %v9710 = vunpack.c.h.b16 %v8866
    %v9711 = vunpack.c.l.b16 %v8867
    %v9712 = vunpack.c.h.b16 %v8867
    %v9713 = vunpack.c.l.b16 %v8868
    %v9714 = vunpack.c.h.b16 %v8868
    %v9715 = vunpack.c.l.b16 %v8869
    %v9716 = vunpack.c.h.b16 %v8869
    %v9717 = vunpack.c.l.b16 %v8870
    %v9718 = vunpack.c.h.b16 %v8870
    %v9719 = vunpack.c.l.b16 %v8871
    %v9720 = vunpack.c.h.b16 %v8871
    %v9721 = vunpack.c.l.b16 %v8872
    %v9722 = vunpack.c.h.b16 %v8872
    %v9723 = vunpack.c.l.b16 %v8873
    %v9724 = vunpack.c.h.b16 %v8873
    %v9725 = vunpack.c.l.b16 %v8874
    %v9726 = vunpack.c.h.b16 %v8874
    %v9727 = vunpack.c.l.b16 %v8875
    %v9728 = vunpack.c.h.b16 %v8875
    %v9729 = vunpack.c.l.b16 %v8876
    %v9730 = vunpack.c.h.b16 %v8876
    %v9731 = vunpack.c.l.b16 %v8877
    %v9732 = vunpack.c.h.b16 %v8877
    %v9733 = vunpack.c.l.b16 %v8878
    %v9734 = vunpack.c.h.b16 %v8878
    %v9735 = vunpack.c.l.b16 %v8879
    %v9736 = vunpack.c.h.b16 %v8879
    %v9737 = vunpack.c.l.b16 %v8880
    %v9738 = vunpack.c.h.b16 %v8880
    %v9739 = vunpack.c.l.b16 %v8881
    %v9740 = vunpack.c.h.b16 %v8881
    %v9741 = vunpack.c.l.b16 %v8882
    %v9742 = vunpack.c.h.b16 %v8882
    %v9743 = vunpack.c.l.b16 %v8883
    %v9744 = vunpack.c.h.b16 %v8883
    %v9745 = vunpack.c.l.b16 %v8884
    %v9746 = vunpack.c.h.b16 %v8884
    %v9747 = vunpack.c.l.b16 %v8885
    %v9748 = vunpack.c.h.b16 %v8885
    %v9749 = vunpack.c.l.b16 %v8886
    %v9750 = vunpack.c.h.b16 %v8886
    %v9751 = vunpack.c.l.b16 %v8887
    %v9752 = vunpack.c.h.b16 %v8887
    %v9753 = vunpack.c.l.b16 %v8888
    %v9754 = vunpack.c.h.b16 %v8888
    %v9755 = vunpack.c.l.b16 %v8889
    %v9756 = vunpack.c.h.b16 %v8889
    %v9757 = vunpack.c.l.b16 %v8890
    %v9758 = vunpack.c.h.b16 %v8890
    %v9759 = vunpack.c.l.b16 %v8891
    %v9760 = vunpack.c.h.b16 %v8891
    %v9761 = vunpack.c.l.b16 %v8892
    %v9762 = vunpack.c.h.b16 %v8892
    %v9763 = vunpack.c.l.b16 %v8893
    %v9764 = vunpack.c.h.b16 %v8893
    %v9765 = vunpack.c.l.b16 %v8894
    %v9766 = vunpack.c.h.b16 %v8894
    %v9767 = vunpack.c.l.b16 %v8895
    %v9768 = vunpack.c.h.b16 %v8895
    %v9769 = vunpack.c.l.b16 %v8896
    %v9770 = vunpack.c.h.b16 %v8896
    %v9771 = vunpack.c.l.b16 %v8897
    %v9772 = vunpack.c.h.b16 %v8897
    %v9773 = vunpack.c.l.b16 %v8898
    %v9774 = vunpack.c.h.b16 %v8898
    %v9775 = vunpack.c.l.b16 %v8899
    %v9776 = vunpack.c.h.b16 %v8899
    %v9777 = vunpack.c.l.b16 %v8900
    %v9778 = vunpack.c.h.b16 %v8900
    %v9779 = vunpack.c.l.b16 %v8901
    %v9780 = vunpack.c.h.b16 %v8901
    %v9781 = vunpack.c.l.b16 %v8902
    %v9782 = vunpack.c.h.b16 %v8902
    %v9783 = vunpack.c.l.b16 %v8903
    %v9784 = vunpack.c.h.b16 %v8903
    %v9785 = vunpack.c.l.b16 %v8904
    %v9786 = vunpack.c.h.b16 %v8904
    %v9787 = vunpack.c.l.b16 %v8905
    %v9788 = vunpack.c.h.b16 %v8905
    %v9789 = vunpack.c.l.b16 %v8906
    %v9790 = vunpack.c.h.b16 %v8906
    %v9791 = vunpack.c.l.b16 %v8907
    %v9792 = vunpack.c.h.b16 %v8907
    %v9793 = vunpack.c.l.b16 %v8908
    %v9794 = vunpack.c.h.b16 %v8908
    %v9795 = vunpack.c.l.b16 %v8909
    %v9796 = vunpack.c.h.b16 %v8909
    %v9797 = vunpack.c.l.b16 %v8910
    %v9798 = vunpack.c.h.b16 %v8910
    %v9799 = vunpack.c.l.b16 %v8911
    %v9800 = vunpack.c.h.b16 %v8911
    %v9801 = vunpack.c.l.b16 %v8912
    %v9802 = vunpack.c.h.b16 %v8912
    %v9803 = vunpack.c.l.b16 %v8913
    %v9804 = vunpack.c.h.b16 %v8913
    %v9805 = vunpack.c.l.b16 %v8914
    %v9806 = vunpack.c.h.b16 %v8914
    %v9807 = vunpack.c.l.b16 %v8915
    %v9808 = vunpack.c.h.b16 %v8915
    %v9809 = vunpack.c.l.b16 %v8916
    %v9810 = vunpack.c.h.b16 %v8916
    %v9811 = vunpack.c.l.b16 %v8917
    %v9812 = vunpack.c.h.b16 %v8917
    %v9813 = vunpack.c.l.b16 %v8918
    %v9814 = vunpack.c.h.b16 %v8918
    %v9815 = vunpack.c.l.b16 %v8919
    %v9816 = vunpack.c.h.b16 %v8919
    %v9817 = vunpack.c.l.b16 %v8920
    %v9818 = vunpack.c.h.b16 %v8920
    %v9819 = vunpack.c.l.b16 %v8921
    %v9820 = vunpack.c.h.b16 %v8921
    %v9821 = vunpack.c.l.b16 %v8922
    %v9822 = vunpack.c.h.b16 %v8922
    %v9823 = vunpack.c.l.b16 %v8923
    %v9824 = vunpack.c.h.b16 %v8923
    %v9825 = vunpack.c.l.b16 %v8924
    %v9826 = vunpack.c.h.b16 %v8924
    %v9827 = vunpack.c.l.b16 %v8925
    %v9828 = vunpack.c.h.b16 %v8925
    %v9829 = vunpack.c.l.b16 %v8926
    %v9830 = vunpack.c.h.b16 %v8926
    %v9831 = vunpack.c.l.b16 %v8927
    %v9832 = vunpack.c.h.b16 %v8927
    %v9833 = vunpack.c.l.b16 %v8928
    %v9834 = vunpack.c.h.b16 %v8928
    %v9835 = vunpack.c.l.b16 %v8929
    %v9836 = vunpack.c.h.b16 %v8929
    %v9837 = vunpack.c.l.b16 %v8930
    %v9838 = vunpack.c.h.b16 %v8930
    %v9839 = vunpack.c.l.b16 %v8931
    %v9840 = vunpack.c.h.b16 %v8931
    %v9841 = vunpack.c.l.b16 %v8932
    %v9842 = vunpack.c.h.b16 %v8932
    %v9843 = vunpack.c.l.b16 %v8933
    %v9844 = vunpack.c.h.b16 %v8933
    %v9845 = vunpack.c.l.b16 %v8934
    %v9846 = vunpack.c.h.b16 %v8934
    %v9847 = vunpack.c.l.b16 %v8935
    %v9848 = vunpack.c.h.b16 %v8935
    %v9849 = vunpack.c.l.b16 %v8936
    %v9850 = vunpack.c.h.b16 %v8936
    %v9851 = vunpack.c.l.b16 %v8937
    %v9852 = vunpack.c.h.b16 %v8937
    %v9853 = vunpack.c.l.b16 %v8938
    %v9854 = vunpack.c.h.b16 %v8938
    %v9855 = vunpack.c.l.b16 %v8939
    %v9856 = vunpack.c.h.b16 %v8939
    %v9857 = vunpack.c.l.b16 %v8940
    %v9858 = vunpack.c.h.b16 %v8940
    %v9859 = vunpack.c.l.b16 %v8941
    %v9860 = vunpack.c.h.b16 %v8941
    %v9861 = vunpack.c.l.b16 %v8942
    %v9862 = vunpack.c.h.b16 %v8942
    %v9863 = vunpack.c.l.b16 %v8943
    %v9864 = vunpack.c.h.b16 %v8943
    %v9865 = vunpack.c.l.b16 %v8944
    %v9866 = vunpack.c.h.b16 %v8944
    %v9867 = vunpack.c.l.b16 %v8945
    %v9868 = vunpack.c.h.b16 %v8945
    %v9869 = vunpack.c.l.b16 %v8946
    %v9870 = vunpack.c.h.b16 %v8946
    %v9871 = vunpack.c.l.b16 %v8947
    %v9872 = vunpack.c.h.b16 %v8947
    %v9873 = vunpack.c.l.b16 %v8948
    %v9874 = vunpack.c.h.b16 %v8948
    %v9875 = vunpack.c.l.b16 %v8949
    %v9876 = vunpack.c.h.b16 %v8949
    %v9877 = vunpack.c.l.b16 %v8950
    %v9878 = vunpack.c.h.b16 %v8950
    %v9879 = vunpack.c.l.b16 %v8951
    %v9880 = vunpack.c.h.b16 %v8951
    %v9881 = vunpack.c.l.b16 %v8952
    %v9882 = vunpack.c.h.b16 %v8952
    %v9883 = vunpack.c.l.b16 %v8953
    %v9884 = vunpack.c.h.b16 %v8953
    %v9885 = vunpack.c.l.b16 %v8954
    %v9886 = vunpack.c.h.b16 %v8954
    %v9887 = vunpack.c.l.b16 %v8955
    %v9888 = vunpack.c.h.b16 %v8955
    %v9889 = vunpack.c.l.b16 %v8956
    %v9890 = vunpack.c.h.b16 %v8956
    %v9891 = vunpack.c.l.b16 %v8957
    %v9892 = vunpack.c.h.b16 %v8957
    %v9893 = vunpack.c.l.b16 %v8958
    %v9894 = vunpack.c.h.b16 %v8958
    %v9895 = vunpack.c.l.b16 %v8959
    %v9896 = vunpack.c.h.b16 %v8959
    %v9897 = vunpack.c.l.b16 %v8960
    %v9898 = vunpack.c.h.b16 %v8960
    %v9899 = vunpack.c.l.b16 %v8961
    %v9900 = vunpack.c.h.b16 %v8961
    %v9901 = vunpack.c.l.b16 %v8962
    %v9902 = vunpack.c.h.b16 %v8962
    %v9903 = vunpack.c.l.b16 %v8963
    %v9904 = vunpack.c.h.b16 %v8963
    %v9905 = vunpack.c.l.b16 %v8964
    %v9906 = vunpack.c.h.b16 %v8964
    %v9907 = vunpack.c.l.b16 %v8965
    %v9908 = vunpack.c.h.b16 %v8965
    %v9909 = vunpack.c.l.b16 %v8966
    %v9910 = vunpack.c.h.b16 %v8966
    %v9911 = vunpack.c.l.b16 %v8967
    %v9912 = vunpack.c.h.b16 %v8967
    %v9913 = vunpack.c.l.b16 %v8968
    %v9914 = vunpack.c.h.b16 %v8968
    %v9915 = vunpack.c.l.b16 %v8969
    %v9916 = vunpack.c.h.b16 %v8969
    %v9917 = vunpack.c.l.b16 %v8970
    %v9918 = vunpack.c.h.b16 %v8970
    %v9919 = vunpack.c.l.b16 %v8971
    %v9920 = vunpack.c.h.b16 %v8971
    %v9921 = vunpack.c.l.b16 %v8972
    %v9922 = vunpack.c.h.b16 %v8972
    %v9923 = vunpack.c.l.b16 %v8973
    %v9924 = vunpack.c.h.b16 %v8973
    %v9925 = vunpack.c.l.b16 %v8974
    %v9926 = vunpack.c.h.b16 %v8974
    %v9927 = vunpack.c.l.b16 %v8975
    %v9928 = vunpack.c.h.b16 %v8975
    %v9929 = vunpack.c.l.b16 %v8976
    %v9930 = vunpack.c.h.b16 %v8976
    %v9931 = vunpack.c.l.b16 %v8977
    %v9932 = vunpack.c.h.b16 %v8977
    %v9933 = vunpack.c.l.b16 %v8978
    %v9934 = vunpack.c.h.b16 %v8978
    %v9935 = vunpack.c.l.b16 %v8979
    %v9936 = vunpack.c.h.b16 %v8979
    %v9937 = vunpack.c.l.b16 %v8980
    %v9938 = vunpack.c.h.b16 %v8980
    %v9939 = vunpack.c.l.b16 %v8981
    %v9940 = vunpack.c.h.b16 %v8981
    %v9941 = vunpack.c.l.b16 %v8982
    %v9942 = vunpack.c.h.b16 %v8982
    %v9943 = vunpack.c.l.b16 %v8983
    %v9944 = vunpack.c.h.b16 %v8983
    %v9945 = vunpack.c.l.b16 %v8984
    %v9946 = vunpack.c.h.b16 %v8984
    %v9947 = vunpack.c.l.b16 %v8985
    %v9948 = vunpack.c.h.b16 %v8985
    %v9949 = vunpack.c.l.b16 %v8986
    %v9950 = vunpack.c.h.b16 %v8986
    %v9951 = vunpack.c.l.b16 %v8987
    %v9952 = vunpack.c.h.b16 %v8987
    %v9953 = vunpack.c.l.b16 %v8988
    %v9954 = vunpack.c.h.b16 %v8988
    %v9955 = vunpack.c.l.b16 %v8989
    %v9956 = vunpack.c.h.b16 %v8989
    %v9957 = vunpack.c.l.b16 %v8990
    %v9958 = vunpack.c.h.b16 %v8990
    %v9959 = vunpack.c.l.b16 %v8991
    %v9960 = vunpack.c.h.b16 %v8991
    %v9961 = vunpack.c.l.b16 %v8992
    %v9962 = vunpack.c.h.b16 %v8992
    %v9963 = vunpack.c.l.b16 %v8993
    %v9964 = vunpack.c.h.b16 %v8993
    %v9965 = vunpack.c.l.b16 %v8994
    %v9966 = vunpack.c.h.b16 %v8994
    %v9967 = vunpack.c.l.b16 %v8995
    %v9968 = vunpack.c.h.b16 %v8995
    %v9969 = vunpack.c.l.b16 %v8996
    %v9970 = vunpack.c.h.b16 %v8996
    %v9971 = vunpack.c.l.b16 %v8997
    %v9972 = vunpack.c.h.b16 %v8997
    %v9973 = vunpack.c.l.b16 %v8998
    %v9974 = vunpack.c.h.b16 %v8998
    %v9975 = vunpack.c.l.b16 %v8999
    %v9976 = vunpack.c.h.b16 %v8999
    %v9977 = vunpack.c.l.b16 %v9000
    %v9978 = vunpack.c.h.b16 %v9000
    %v9979 = vunpack.c.l.b16 %v9001
    %v9980 = vunpack.c.h.b16 %v9001
    %v9981 = vunpack.c.l.b16 %v9002
    %v9982 = vunpack.c.h.b16 %v9002
    %v9983 = vunpack.c.l.b16 %v9003
    %v9984 = vunpack.c.h.b16 %v9003
    %v9985 = vunpack.c.l.b16 %v9004
    %v9986 = vunpack.c.h.b16 %v9004
    %v9987 = vunpack.c.l.b16 %v9005
    %v9988 = vunpack.c.h.b16 %v9005
    %v9989 = vunpack.c.l.b16 %v9006
    %v9990 = vunpack.c.h.b16 %v9006
    %v9991 = vunpack.c.l.b16 %v9007
    %v9992 = vunpack.c.h.b16 %v9007
    %v9993 = vunpack.c.l.b16 %v9008
    %v9994 = vunpack.c.h.b16 %v9008
    %v9995 = vunpack.c.l.b16 %v9009
    %v9996 = vunpack.c.h.b16 %v9009
    %v9997 = vunpack.c.l.b16 %v9010
    %v9998 = vunpack.c.h.b16 %v9010
    %v9999 = vunpack.c.l.b16 %v9011
    %v10000 = vunpack.c.h.b16 %v9011
    %v10001 = vunpack.c.l.b16 %v9012
    %v10002 = vunpack.c.h.b16 %v9012
    %v10003 = vunpack.c.l.b16 %v9013
    %v10004 = vunpack.c.h.b16 %v9013
    %v10005 = vunpack.c.l.b16 %v9014
    %v10006 = vunpack.c.h.b16 %v9014
    %v10007 = vunpack.c.l.b16 %v9015
    %v10008 = vunpack.c.h.b16 %v9015
    %v10009 = vunpack.c.l.b16 %v9016
    %v10010 = vunpack.c.h.b16 %v9016
    %v10011 = vunpack.c.l.b16 %v9017
    %v10012 = vunpack.c.h.b16 %v9017
    %v10013 = vunpack.c.l.b16 %v9018
    %v10014 = vunpack.c.h.b16 %v9018
    %v10015 = vunpack.c.l.b16 %v9019
    %v10016 = vunpack.c.h.b16 %v9019
    %v10017 = vunpack.c.l.b16 %v9020
    %v10018 = vunpack.c.h.b16 %v9020
    %v10019 = vunpack.c.l.b16 %v9021
    %v10020 = vunpack.c.h.b16 %v9021
    %v10021 = vunpack.c.l.b16 %v9022
    %v10022 = vunpack.c.h.b16 %v9022
    %v10023 = vunpack.c.l.b16 %v9023
    %v10024 = vunpack.c.h.b16 %v9023
    %v10025 = vunpack.c.l.b16 %v9024
    %v10026 = vunpack.c.h.b16 %v9024
    %v10027 = vunpack.c.l.b16 %v9025
    %v10028 = vunpack.c.h.b16 %v9025
    %v10029 = vunpack.c.l.b16 %v9026
    %v10030 = vunpack.c.h.b16 %v9026
    %v10031 = vunpack.c.l.b16 %v9027
    %v10032 = vunpack.c.h.b16 %v9027
    %v10033 = vunpack.c.l.b16 %v9028
    %v10034 = vunpack.c.h.b16 %v9028
    %v10035 = vunpack.c.l.b16 %v9029
    %v10036 = vunpack.c.h.b16 %v9029
    %v10037 = vunpack.c.l.b16 %v9030
    %v10038 = vunpack.c.h.b16 %v9030
    %v10039 = vunpack.c.l.b16 %v9031
    %v10040 = vunpack.c.h.b16 %v9031
    %v10041 = vunpack.c.l.b16 %v9032
    %v10042 = vunpack.c.h.b16 %v9032
    %v10043 = vunpack.c.l.b16 %v9033
    %v10044 = vunpack.c.h.b16 %v9033
    %v10045 = vunpack.c.l.b16 %v9034
    %v10046 = vunpack.c.h.b16 %v9034
    %v10047 = vunpack.c.l.b16 %v9035
    %v10048 = vunpack.c.h.b16 %v9035
    %v10049 = vunpack.c.l.b16 %v9036
    %v10050 = vunpack.c.h.b16 %v9036
    %v10051 = vunpack.c.l.b16 %v9037
    %v10052 = vunpack.c.h.b16 %v9037
    %v10053 = vunpack.c.l.b16 %v9038
    %v10054 = vunpack.c.h.b16 %v9038
    %v10055 = vunpack.c.l.b16 %v9039
    %v10056 = vunpack.c.h.b16 %v9039
    %v10057 = vunpack.c.l.b16 %v9040
    %v10058 = vunpack.c.h.b16 %v9040
    %v10059 = vunpack.c.l.b16 %v9041
    %v10060 = vunpack.c.h.b16 %v9041
    %v10061 = vunpack.c.l.b16 %v9042
    %v10062 = vunpack.c.h.b16 %v9042
    %v10063 = vunpack.c.l.b16 %v9043
    %v10064 = vunpack.c.h.b16 %v9043
    %v10065 = vunpack.c.l.b16 %v9044
    %v10066 = vunpack.c.h.b16 %v9044
    %v10067 = vunpack.c.l.b16 %v9045
    %v10068 = vunpack.c.h.b16 %v9045
    %v10069 = vunpack.c.l.b16 %v9046
    %v10070 = vunpack.c.h.b16 %v9046
    %v10071 = vunpack.c.l.b16 %v9047
    %v10072 = vunpack.c.h.b16 %v9047
    %v10073 = vunpack.c.l.b16 %v9048
    %v10074 = vunpack.c.h.b16 %v9048
    %v10075 = vunpack.c.l.b16 %v9049
    %v10076 = vunpack.c.h.b16 %v9049
    %v10077 = vunpack.c.l.b16 %v9050
    %v10078 = vunpack.c.h.b16 %v9050
    %v10079 = vunpack.c.l.b16 %v9051
    %v10080 = vunpack.c.h.b16 %v9051
    %v10081 = vunpack.c.l.b16 %v9052
    %v10082 = vunpack.c.h.b16 %v9052
    %v10083 = vunpack.c.l.b16 %v9053
    %v10084 = vunpack.c.h.b16 %v9053
    %v10085 = vunpack.c.l.b16 %v9054
    %v10086 = vunpack.c.h.b16 %v9054
    %v10087 = vunpack.c.l.b16 %v9055
    %v10088 = vunpack.c.h.b16 %v9055
    %v10089 = vunpack.c.l.b16 %v9056
    %v10090 = vunpack.c.h.b16 %v9056
    %v10091 = vunpack.c.l.b16 %v9057
    %v10092 = vunpack.c.h.b16 %v9057
    %v10093 = vunpack.c.l.b16 %v9058
    %v10094 = vunpack.c.h.b16 %v9058
    %v10095 = vunpack.c.l.b16 %v9059
    %v10096 = vunpack.c.h.b16 %v9059
    %v10097 = vunpack.c.l.b16 %v9060
    %v10098 = vunpack.c.h.b16 %v9060
    %v10099 = vunpack.c.l.b16 %v9061
    %v10100 = vunpack.c.h.b16 %v9061
    %v10101 = vunpack.c.l.b16 %v9062
    %v10102 = vunpack.c.h.b16 %v9062
    %v10103 = vunpack.c.l.b16 %v9063
    %v10104 = vunpack.c.h.b16 %v9063
    %v10105 = vunpack.c.l.b16 %v9064
    %v10106 = vunpack.c.h.b16 %v9064
    %v10107 = vunpack.c.l.b16 %v9065
    %v10108 = vunpack.c.h.b16 %v9065
    %v10109 = vunpack.c.l.b16 %v9066
    %v10110 = vunpack.c.h.b16 %v9066
    %v10111 = vunpack.c.l.b16 %v9067
    %v10112 = vunpack.c.h.b16 %v9067
    %v10113 = vunpack.c.l.b16 %v9068
    %v10114 = vunpack.c.h.b16 %v9068
    %v10115 = vunpack.c.l.b16 %v9069
    %v10116 = vunpack.c.h.b16 %v9069
    %v10117 = vunpack.c.l.b16 %v9070
    %v10118 = vunpack.c.h.b16 %v9070
    %v10119 = vunpack.c.l.b16 %v9071
    %v10120 = vunpack.c.h.b16 %v9071
    %v10121 = vunpack.c.l.b16 %v9072
    %v10122 = vunpack.c.h.b16 %v9072
    %v10123 = vunpack.c.l.b16 %v9073
    %v10124 = vunpack.c.h.b16 %v9073
    %v10125 = vunpack.c.l.b16 %v9074
    %v10126 = vunpack.c.h.b16 %v9074
    %v10127 = vunpack.c.l.b16 %v9075
    %v10128 = vunpack.c.h.b16 %v9075
    %v10129 = vunpack.c.l.b16 %v9076
    %v10130 = vunpack.c.h.b16 %v9076
    %v10131 = vunpack.c.l.b16 %v9077
    %v10132 = vunpack.c.h.b16 %v9077
    %v10133 = vunpack.c.l.b16 %v9078
    %v10134 = vunpack.c.h.b16 %v9078
    %v10135 = vunpack.c.l.b16 %v9079
    %v10136 = vunpack.c.h.b16 %v9079
    %v10137 = vunpack.c.l.b16 %v9080
    %v10138 = vunpack.c.h.b16 %v9080
    %v10139 = vunpack.c.l.b16 %v9081
    %v10140 = vunpack.c.h.b16 %v9081
    %v10141 = vunpack.c.l.b16 %v9082
    %v10142 = vunpack.c.h.b16 %v9082
    %v10143 = vunpack.c.l.b16 %v9083
    %v10144 = vunpack.c.h.b16 %v9083
    %v10145 = vunpack.c.l.b16 %v9084
    %v10146 = vunpack.c.h.b16 %v9084
    %v10147 = vunpack.c.l.b16 %v9085
    %v10148 = vunpack.c.h.b16 %v9085
    %v10149 = vunpack.c.l.b16 %v9086
    %v10150 = vunpack.c.h.b16 %v9086
    %v10151 = vunpack.c.l.b16 %v9087
    %v10152 = vunpack.c.h.b16 %v9087
    %v10153 = vunpack.c.l.b16 %v9088
    %v10154 = vunpack.c.h.b16 %v9088
    %v10155 = vunpack.c.l.b16 %v9089
    %v10156 = vunpack.c.h.b16 %v9089
    %v10157 = vunpack.c.l.b16 %v9090
    %v10158 = vunpack.c.h.b16 %v9090
    %v10159 = vunpack.c.l.b16 %v9091
    %v10160 = vunpack.c.h.b16 %v9091
    %v10161 = vunpack.c.l.b16 %v9092
    %v10162 = vunpack.c.h.b16 %v9092
    %v10163 = vunpack.c.l.b16 %v9093
    %v10164 = vunpack.c.h.b16 %v9093
    %v10165 = vunpack.c.l.b16 %v9094
    %v10166 = vunpack.c.h.b16 %v9094
    %v10167 = vunpack.c.l.b16 %v9095
    %v10168 = vunpack.c.h.b16 %v9095
    %v10169 = vunpack.c.l.b16 %v9096
    %v10170 = vunpack.c.h.b16 %v9096
    %v10171 = vunpack.c.l.b16 %v9097
    %v10172 = vunpack.c.h.b16 %v9097
    %v10173 = vunpack.c.l.b16 %v9098
    %v10174 = vunpack.c.h.b16 %v9098
    %v10175 = vunpack.c.l.b16 %v9099
    %v10176 = vunpack.c.h.b16 %v9099
    %v10177 = vunpack.c.l.b16 %v9100
    %v10178 = vunpack.c.h.b16 %v9100
    %v10179 = vunpack.c.l.b16 %v9101
    %v10180 = vunpack.c.h.b16 %v9101
    %v10181 = vunpack.c.l.b16 %v9102
    %v10182 = vunpack.c.h.b16 %v9102
    %v10183 = vunpack.c.l.b16 %v9103
    %v10184 = vunpack.c.h.b16 %v9103
    %v10185 = vunpack.c.l.b16 %v9104
    %v10186 = vunpack.c.h.b16 %v9104
    %v10187 = vunpack.c.l.b16 %v9105
    %v10188 = vunpack.c.h.b16 %v9105
    %v10189 = vunpack.c.l.b16 %v9106
    %v10190 = vunpack.c.h.b16 %v9106
    %v10191 = vunpack.c.l.b16 %v9107
    %v10192 = vunpack.c.h.b16 %v9107
    %v10193 = vunpack.c.l.b16 %v9108
    %v10194 = vunpack.c.h.b16 %v9108
    %v10195 = vunpack.c.l.b16 %v9109
    %v10196 = vunpack.c.h.b16 %v9109
    %v10197 = vunpack.c.l.b16 %v9110
    %v10198 = vunpack.c.h.b16 %v9110
    %v10199 = vunpack.c.l.b16 %v9111
    %v10200 = vunpack.c.h.b16 %v9111
    %v10201 = vunpack.c.l.b16 %v9112
    %v10202 = vunpack.c.h.b16 %v9112
    %v10203 = vunpack.c.l.b16 %v9113
    %v10204 = vunpack.c.h.b16 %v9113
    %v10205 = vunpack.c.l.b16 %v9114
    %v10206 = vunpack.c.h.b16 %v9114
    %v10207 = vunpack.c.l.b16 %v9115
    %v10208 = vunpack.c.h.b16 %v9115
    %v10209 = vunpack.c.l.b16 %v9116
    %v10210 = vunpack.c.h.b16 %v9116
    %v10211 = vunpack.c.l.b16 %v9117
    %v10212 = vunpack.c.h.b16 %v9117
    %v10213 = vunpack.c.l.b16 %v9118
    %v10214 = vunpack.c.h.b16 %v9118
    %v10215 = vunpack.c.l.b16 %v9119
    %v10216 = vunpack.c.h.b16 %v9119
    %v10217 = vunpack.c.l.b16 %v9120
    %v10218 = vunpack.c.h.b16 %v9120
    %v10219 = vunpack.c.l.b16 %v9121
    %v10220 = vunpack.c.h.b16 %v9121
    %v10221 = vunpack.c.l.b16 %v9122
    %v10222 = vunpack.c.h.b16 %v9122
    %v10223 = vunpack.c.l.b16 %v9123
    %v10224 = vunpack.c.h.b16 %v9123
    %v10225 = vunpack.c.l.b16 %v9124
    %v10226 = vunpack.c.h.b16 %v9124
    %v10227 = vunpack.c.l.b16 %v9125
    %v10228 = vunpack.c.h.b16 %v9125
    %v10229 = vunpack.c.l.b16 %v9126
    %v10230 = vunpack.c.h.b16 %v9126
    %v10231 = vunpack.c.l.b16 %v9127
    %v10232 = vunpack.c.h.b16 %v9127
    %v10233 = vunpack.c.l.b16 %v9128
    %v10234 = vunpack.c.h.b16 %v9128
    %v10235 = vunpack.c.l.b16 %v9129
    %v10236 = vunpack.c.h.b16 %v9129
    %v10237 = vunpack.c.l.b16 %v9130
    %v10238 = vunpack.c.h.b16 %v9130
    %v10239 = vunpack.c.l.b16 %v9131
    %v10240 = vunpack.c.h.b16 %v9131
    %v10241 = vunpack.c.l.b16 %v9132
    %v10242 = vunpack.c.h.b16 %v9132
    %v10243 = vunpack.c.l.b16 %v9133
    %v10244 = vunpack.c.h.b16 %v9133
    %v10245 = vunpack.c.l.b16 %v9134
    %v10246 = vunpack.c.h.b16 %v9134
    %v10247 = vunpack.c.l.b16 %v9135
    %v10248 = vunpack.c.h.b16 %v9135
    %v10249 = vunpack.c.l.b16 %v9136
    %v10250 = vunpack.c.h.b16 %v9136
    %v10251 = vunpack.c.l.b16 %v9137
    %v10252 = vunpack.c.h.b16 %v9137
    %v10253 = vunpack.c.l.b16 %v9138
    %v10254 = vunpack.c.h.b16 %v9138
    %v10255 = vunpack.c.l.b16 %v9139
    %v10256 = vunpack.c.h.b16 %v9139
    %v10257 = vunpack.c.l.b16 %v9140
    %v10258 = vunpack.c.h.b16 %v9140
    %v10259 = vunpack.c.l.b16 %v9141
    %v10260 = vunpack.c.h.b16 %v9141
    %v10261 = vunpack.c.l.b16 %v9142
    %v10262 = vunpack.c.h.b16 %v9142
    %v10263 = vunpack.c.l.b16 %v9143
    %v10264 = vunpack.c.h.b16 %v9143
    %v10265 = vunpack.c.l.b16 %v9144
    %v10266 = vunpack.c.h.b16 %v9144
    %v10267 = vunpack.c.l.b16 %v9145
    %v10268 = vunpack.c.h.b16 %v9145
    %v10269 = vunpack.c.l.b16 %v9146
    %v10270 = vunpack.c.h.b16 %v9146
    %v10271 = vunpack.c.l.b16 %v9147
    %v10272 = vunpack.c.h.b16 %v9147
    %v10273 = vunpack.c.l.b16 %v9148
    %v10274 = vunpack.c.h.b16 %v9148
    %v10275 = vunpack.c.l.b16 %v9149
    %v10276 = vunpack.c.h.b16 %v9149
    %v10277 = vunpack.c.l.b16 %v9150
    %v10278 = vunpack.c.h.b16 %v9150
    %v10279 = vunpack.c.l.b16 %v9151
    %v10280 = vunpack.c.h.b16 %v9151
    %v10281 = vunpack.c.l.b16 %v9152
    %v10282 = vunpack.c.h.b16 %v9152
    %v10283 = vunpack.c.l.b16 %v9153
    %v10284 = vunpack.c.h.b16 %v9153
    %v10285 = vunpack.c.l.b16 %v9154
    %v10286 = vunpack.c.h.b16 %v9154
    %v10287 = vunpack.c.l.b16 %v9155
    %v10288 = vunpack.c.h.b16 %v9155
    %v10289 = vunpack.c.l.b16 %v9156
    %v10290 = vunpack.c.h.b16 %v9156
    %v10291 = vunpack.c.l.b16 %v9157
    %v10292 = vunpack.c.h.b16 %v9157
    %v10293 = vunpack.c.l.b16 %v9158
    %v10294 = vunpack.c.h.b16 %v9158
    %v10295 = vunpack.c.l.b16 %v9159
    %v10296 = vunpack.c.h.b16 %v9159
    %v10297 = vunpack.c.l.b16 %v9160
    %v10298 = vunpack.c.h.b16 %v9160
    %v10299 = vunpack.c.l.b16 %v9161
    %v10300 = vunpack.c.h.b16 %v9161
    %v10301 = vunpack.c.l.b16 %v9162
    %v10302 = vunpack.c.h.b16 %v9162
    %v10303 = vunpack.c.l.b16 %v9163
    %v10304 = vunpack.c.h.b16 %v9163
    %v10305 = vunpack.c.l.b16 %v9164
    %v10306 = vunpack.c.h.b16 %v9164
    %v10307 = vunpack.c.l.b16 %v9165
    %v10308 = vunpack.c.h.b16 %v9165
    %v10309 = vunpack.c.l.b16 %v9166
    %v10310 = vunpack.c.h.b16 %v9166
    %v10311 = vunpack.c.l.b16 %v9167
    %v10312 = vunpack.c.h.b16 %v9167
    %v10313 = vunpack.c.l.b16 %v9168
    %v10314 = vunpack.c.h.b16 %v9168
    %v10315 = vunpack.c.l.b16 %v9169
    %v10316 = vunpack.c.h.b16 %v9169
    %v10317 = vunpack.c.l.b16 %v9170
    %v10318 = vunpack.c.h.b16 %v9170
    %v10319 = vunpack.c.l.b16 %v9171
    %v10320 = vunpack.c.h.b16 %v9171
    %v10321 = vunpack.c.l.b16 %v9172
    %v10322 = vunpack.c.h.b16 %v9172
    %v10323 = vunpack.c.l.b16 %v9173
    %v10324 = vunpack.c.h.b16 %v9173
    %v10325 = vunpack.c.l.b16 %v9174
    %v10326 = vunpack.c.h.b16 %v9174
    %v10327 = vunpack.c.l.b16 %v9175
    %v10328 = vunpack.c.h.b16 %v9175
    %v10329 = vunpack.c.l.b16 %v9176
    %v10330 = vunpack.c.h.b16 %v9176
    %v10331 = vunpack.c.l.b16 %v9177
    %v10332 = vunpack.c.h.b16 %v9177
    %v10333 = vunpack.c.l.b16 %v9178
    %v10334 = vunpack.c.h.b16 %v9178
    %v10335 = vunpack.c.l.b16 %v9179
    %v10336 = vunpack.c.h.b16 %v9179
    %v10337 = vunpack.c.l.b16 %v9180
    %v10338 = vunpack.c.h.b16 %v9180
    %v10339 = vunpack.c.l.b16 %v9181
    %v10340 = vunpack.c.h.b16 %v9181
    %v10341 = vunpack.c.l.b16 %v9182
    %v10342 = vunpack.c.h.b16 %v9182
    %v10343 = vunpack.c.l.b16 %v9183
    %v10344 = vunpack.c.h.b16 %v9183
    %v10345 = vunpack.c.l.b16 %v9184
    %v10346 = vunpack.c.h.b16 %v9184
    %v10347 = vunpack.c.l.b16 %v9185
    %v10348 = vunpack.c.h.b16 %v9185
    %v10349 = vunpack.c.l.b16 %v9186
    %v10350 = vunpack.c.h.b16 %v9186
    %v10351 = vunpack.c.l.b16 %v9187
    %v10352 = vunpack.c.h.b16 %v9187
    %v10353 = vunpack.c.l.b16 %v9188
    %v10354 = vunpack.c.h.b16 %v9188
    %v10355 = vunpack.c.l.b16 %v9189
    %v10356 = vunpack.c.h.b16 %v9189
    %v10357 = vunpack.c.l.b16 %v9190
    %v10358 = vunpack.c.h.b16 %v9190
    %v10359 = vunpack.c.l.b16 %v9191
    %v10360 = vunpack.c.h.b16 %v9191
    %v10361 = vunpack.c.l.b16 %v9192
    %v10362 = vunpack.c.h.b16 %v9192
    %v10363 = vunpack.c.l.b16 %v9193
    %v10364 = vunpack.c.h.b16 %v9193
    %v10365 = vunpack.c.l.b16 %v9194
    %v10366 = vunpack.c.h.b16 %v9194
    %v10367 = vunpack.c.l.b16 %v9195
    %v10368 = vunpack.c.h.b16 %v9195
    %v10369 = vunpack.c.l.b16 %v9196
    %v10370 = vunpack.c.h.b16 %v9196
    %v10371 = vunpack.c.l.b16 %v9197
    %v10372 = vunpack.c.h.b16 %v9197
    %v10373 = vunpack.c.l.b16 %v9198
    %v10374 = vunpack.c.h.b16 %v9198
    %v10375 = vunpack.c.l.b16 %v9199
    %v10376 = vunpack.c.h.b16 %v9199
    %v10377 = vunpack.c.l.b16 %v9200
    %v10378 = vunpack.c.h.b16 %v9200
    %v10379 = vunpack.c.l.b16 %v9201
    %v10380 = vunpack.c.h.b16 %v9201
    %v10381 = vunpack.c.l.b16 %v9202
    %v10382 = vunpack.c.h.b16 %v9202
    %v10383 = vunpack.c.l.b16 %v9203
    %v10384 = vunpack.c.h.b16 %v9203
    %v10385 = vunpack.c.l.b16 %v9204
    %v10386 = vunpack.c.h.b16 %v9204
    %v10387 = vunpack.c.l.b16 %v9205
    %v10388 = vunpack.c.h.b16 %v9205
    %v10389 = vunpack.c.l.b16 %v9206
    %v10390 = vunpack.c.h.b16 %v9206
    %v10391 = vpack.c.b16 %v9629, %v9623
    %v10392 = vpack.c.b16 %v9630, %v9624
    %v10393 = vpack.c.b16 %v9631, %v9625
    %v10394 = vpack.c.b16 %v9632, %v9626
    %v10395 = vpack.c.b16 %v9633, %v9627
    %v10396 = vpack.c.b16 %v9634, %v9628
    %v10397 = vpack.c.b16 %v9641, %v9635
    %v10398 = vpack.c.b16 %v9642, %v9636
    %v10399 = vpack.c.b16 %v9643, %v9637
    %v10400 = vpack.c.b16 %v9644, %v9638
    %v10401 = vpack.c.b16 %v9645, %v9639
    %v10402 = vpack.c.b16 %v9646, %v9640
    %v10403 = vpack.c.b16 %v9653, %v9647
    %v10404 = vpack.c.b16 %v9654, %v9648
    %v10405 = vpack.c.b16 %v9655, %v9649
    %v10406 = vpack.c.b16 %v9656, %v9650
    %v10407 = vpack.c.b16 %v9657, %v9651
    %v10408 = vpack.c.b16 %v9658, %v9652
    %v10409 = vpack.c.b16 %v9665, %v9659
    %v10410 = vpack.c.b16 %v9666, %v9660
    %v10411 = vpack.c.b16 %v9667, %v9661
    %v10412 = vpack.c.b16 %v9668, %v9662
    %v10413 = vpack.c.b16 %v9669, %v9663
    %v10414 = vpack.c.b16 %v9670, %v9664
    %v10415 = vpack.c.b16 %v9677, %v9671
    %v10416 = vpack.c.b16 %v9678, %v9672
    %v10417 = vpack.c.b16 %v9679, %v9673
    %v10418 = vpack.c.b16 %v9680, %v9674
    %v10419 = vpack.c.b16 %v9681, %v9675
    %v10420 = vpack.c.b16 %v9682, %v9676
    %v10421 = vpack.c.b16 %v9689, %v9683
    %v10422 = vpack.c.b16 %v9690, %v9684
    %v10423 = vpack.c.b16 %v9691, %v9685
    %v10424 = vpack.c.b16 %v9692, %v9686
    %v10425 = vpack.c.b16 %v9693, %v9687
    %v10426 = vpack.c.b16 %v9694, %v9688
    %v10427 = vpack.c.b16 %v9701, %v9695
    %v10428 = vpack.c.b16 %v9702, %v9696
    %v10429 = vpack.c.b16 %v9703, %v9697
    %v10430 = vpack.c.b16 %v9704, %v9698
    %v10431 = vpack.c.b16 %v9705, %v9699
    %v10432 = vpack.c.b16 %v9706, %v9700
    %v10433 = vpack.c.b16 %v9713, %v9707
    %v10434 = vpack.c.b16 %v9714, %v9708
    %v10435 = vpack.c.b16 %v9715, %v9709
    %v10436 = vpack.c.b16 %v9716, %v9710
    %v10437 = vpack.c.b16 %v9717, %v9711
    %v10438 = vpack.c.b16 %v9718, %v9712
    %v10439 = vpack.c.b16 %v9725, %v9719
    %v10440 = vpack.c.b16 %v9726, %v9720
    %v10441 = vpack.c.b16 %v9727, %v9721
    %v10442 = vpack.c.b16 %v9728, %v9722
    %v10443 = vpack.c.b16 %v9729, %v9723
    %v10444 = vpack.c.b16 %v9730, %v9724
    %v10445 = vpack.c.b16 %v9737, %v9731
    %v10446 = vpack.c.b16 %v9738, %v9732
    %v10447 = vpack.c.b16 %v9739, %v9733
    %v10448 = vpack.c.b16 %v9740, %v9734
    %v10449 = vpack.c.b16 %v9741, %v9735
    %v10450 = vpack.c.b16 %v9742, %v9736
    %v10451 = vpack.c.b16 %v9749, %v9743
    %v10452 = vpack.c.b16 %v9750, %v9744
    %v10453 = vpack.c.b16 %v9751, %v9745
    %v10454 = vpack.c.b16 %v9752, %v9746
    %v10455 = vpack.c.b16 %v9753, %v9747
    %v10456 = vpack.c.b16 %v9754, %v9748
    %v10457 = vpack.c.b16 %v9761, %v9755
    %v10458 = vpack.c.b16 %v9762, %v9756
    %v10459 = vpack.c.b16 %v9763, %v9757
    %v10460 = vpack.c.b16 %v9764, %v9758
    %v10461 = vpack.c.b16 %v9765, %v9759
    %v10462 = vpack.c.b16 %v9766, %v9760
    %v10463 = vpack.c.b16 %v9773, %v9767
    %v10464 = vpack.c.b16 %v9774, %v9768
    %v10465 = vpack.c.b16 %v9775, %v9769
    %v10466 = vpack.c.b16 %v9776, %v9770
    %v10467 = vpack.c.b16 %v9777, %v9771
    %v10468 = vpack.c.b16 %v9778, %v9772
    %v10469 = vpack.c.b16 %v9785, %v9779
    %v10470 = vpack.c.b16 %v9786, %v9780
    %v10471 = vpack.c.b16 %v9787, %v9781
    %v10472 = vpack.c.b16 %v9788, %v9782
    %v10473 = vpack.c.b16 %v9789, %v9783
    %v10474 = vpack.c.b16 %v9790, %v9784
    %v10475 = vpack.c.b16 %v9797, %v9791
    %v10476 = vpack.c.b16 %v9798, %v9792
    %v10477 = vpack.c.b16 %v9799, %v9793
    %v10478 = vpack.c.b16 %v9800, %v9794
    %v10479 = vpack.c.b16 %v9801, %v9795
    %v10480 = vpack.c.b16 %v9802, %v9796
    %v10481 = vpack.c.b16 %v9809, %v9803
    %v10482 = vpack.c.b16 %v9810, %v9804
    %v10483 = vpack.c.b16 %v9811, %v9805
    %v10484 = vpack.c.b16 %v9812, %v9806
    %v10485 = vpack.c.b16 %v9813, %v9807
    %v10486 = vpack.c.b16 %v9814, %v9808
    %v10487 = vpack.c.b16 %v9821, %v9815
    %v10488 = vpack.c.b16 %v9822, %v9816
    %v10489 = vpack.c.b16 %v9823, %v9817
    %v10490 = vpack.c.b16 %v9824, %v9818
    %v10491 = vpack.c.b16 %v9825, %v9819
    %v10492 = vpack.c.b16 %v9826, %v9820
    %v10493 = vpack.c.b16 %v9833, %v9827
    %v10494 = vpack.c.b16 %v9834, %v9828
    %v10495 = vpack.c.b16 %v9835, %v9829
    %v10496 = vpack.c.b16 %v9836, %v9830
    %v10497 = vpack.c.b16 %v9837, %v9831
    %v10498 = vpack.c.b16 %v9838, %v9832
    %v10499 = vpack.c.b16 %v9845, %v9839
    %v10500 = vpack.c.b16 %v9846, %v9840
    %v10501 = vpack.c.b16 %v9847, %v9841
    %v10502 = vpack.c.b16 %v9848, %v9842
    %v10503 = vpack.c.b16 %v9849, %v9843
    %v10504 = vpack.c.b16 %v9850, %v9844
    %v10505 = vpack.c.b16 %v9857, %v9851
    %v10506 = vpack.c.b16 %v9858, %v9852
    %v10507 = vpack.c.b16 %v9859, %v9853
    %v10508 = vpack.c.b16 %v9860, %v9854
    %v10509 = vpack.c.b16 %v9861, %v9855
    %v10510 = vpack.c.b16 %v9862, %v9856
    %v10511 = vpack.c.b16 %v9869, %v9863
    %v10512 = vpack.c.b16 %v9870, %v9864
    %v10513 = vpack.c.b16 %v9871, %v9865
    %v10514 = vpack.c.b16 %v9872, %v9866
    %v10515 = vpack.c.b16 %v9873, %v9867
    %v10516 = vpack.c.b16 %v9874, %v9868
    %v10517 = vpack.c.b16 %v9881, %v9875
    %v10518 = vpack.c.b16 %v9882, %v9876
    %v10519 = vpack.c.b16 %v9883, %v9877
    %v10520 = vpack.c.b16 %v9884, %v9878
    %v10521 = vpack.c.b16 %v9885, %v9879
    %v10522 = vpack.c.b16 %v9886, %v9880
    %v10523 = vpack.c.b16 %v9893, %v9887
    %v10524 = vpack.c.b16 %v9894, %v9888
    %v10525 = vpack.c.b16 %v9895, %v9889
    %v10526 = vpack.c.b16 %v9896, %v9890
    %v10527 = vpack.c.b16 %v9897, %v9891
    %v10528 = vpack.c.b16 %v9898, %v9892
    %v10529 = vpack.c.b16 %v9905, %v9899
    %v10530 = vpack.c.b16 %v9906, %v9900
    %v10531 = vpack.c.b16 %v9907, %v9901
    %v10532 = vpack.c.b16 %v9908, %v9902
    %v10533 = vpack.c.b16 %v9909, %v9903
    %v10534 = vpack.c.b16 %v9910, %v9904
    %v10535 = vpack.c.b16 %v9917, %v9911
    %v10536 = vpack.c.b16 %v9918, %v9912
    %v10537 = vpack.c.b16 %v9919, %v9913
    %v10538 = vpack.c.b16 %v9920, %v9914
    %v10539 = vpack.c.b16 %v9921, %v9915
    %v10540 = vpack.c.b16 %v9922, %v9916
    %v10541 = vpack.c.b16 %v9929, %v9923
    %v10542 = vpack.c.b16 %v9930, %v9924
    %v10543 = vpack.c.b16 %v9931, %v9925
    %v10544 = vpack.c.b16 %v9932, %v9926
    %v10545 = vpack.c.b16 %v9933, %v9927
    %v10546 = vpack.c.b16 %v9934, %v9928
    %v10547 = vpack.c.b16 %v9941, %v9935
    %v10548 = vpack.c.b16 %v9942, %v9936
    %v10549 = vpack.c.b16 %v9943, %v9937
    %v10550 = vpack.c.b16 %v9944, %v9938
    %v10551 = vpack.c.b16 %v9945, %v9939
    %v10552 = vpack.c.b16 %v9946, %v9940
    %v10553 = vpack.c.b16 %v9953, %v9947
    %v10554 = vpack.c.b16 %v9954, %v9948
    %v10555 = vpack.c.b16 %v9955, %v9949
    %v10556 = vpack.c.b16 %v9956, %v9950
    %v10557 = vpack.c.b16 %v9957, %v9951
    %v10558 = vpack.c.b16 %v9958, %v9952
    %v10559 = vpack.c.b16 %v9965, %v9959
    %v10560 = vpack.c.b16 %v9966, %v9960
    %v10561 = vpack.c.b16 %v9967, %v9961
    %v10562 = vpack.c.b16 %v9968, %v9962
    %v10563 = vpack.c.b16 %v9969, %v9963
    %v10564 = vpack.c.b16 %v9970, %v9964
    %v10565 = vpack.c.b16 %v9977, %v9971
    %v10566 = vpack.c.b16 %v9978, %v9972
    %v10567 = vpack.c.b16 %v9979, %v9973
    %v10568 = vpack.c.b16 %v9980, %v9974
    %v10569 = vpack.c.b16 %v9981, %v9975
    %v10570 = vpack.c.b16 %v9982, %v9976
    %v10571 = vpack.c.b16 %v9989, %v9983
    %v10572 = vpack.c.b16 %v9990, %v9984
    %v10573 = vpack.c.b16 %v9991, %v9985
    %v10574 = vpack.c.b16 %v9992, %v9986
    %v10575 = vpack.c.b16 %v9993, %v9987
    %v10576 = vpack.c.b16 %v9994, %v9988
    %v10577 = vpack.c.b16 %v10001, %v9995
    %v10578 = vpack.c.b16 %v10002, %v9996
    %v10579 = vpack.c.b16 %v10003, %v9997
    %v10580 = vpack.c.b16 %v10004, %v9998
    %v10581 = vpack.c.b16 %v10005, %v9999
    %v10582 = vpack.c.b16 %v10006, %v10000
    %v10583 = vpack.c.b16 %v10013, %v10007
    %v10584 = vpack.c.b16 %v10014, %v10008
    %v10585 = vpack.c.b16 %v10015, %v10009
    %v10586 = vpack.c.b16 %v10016, %v10010
    %v10587 = vpack.c.b16 %v10017, %v10011
    %v10588 = vpack.c.b16 %v10018, %v10012
    %v10589 = vpack.c.b16 %v10025, %v10019
    %v10590 = vpack.c.b16 %v10026, %v10020
    %v10591 = vpack.c.b16 %v10027, %v10021
    %v10592 = vpack.c.b16 %v10028, %v10022
    %v10593 = vpack.c.b16 %v10029, %v10023
    %v10594 = vpack.c.b16 %v10030, %v10024
    %v10595 = vpack.c.b16 %v10037, %v10031
    %v10596 = vpack.c.b16 %v10038, %v10032
    %v10597 = vpack.c.b16 %v10039, %v10033
    %v10598 = vpack.c.b16 %v10040, %v10034
    %v10599 = vpack.c.b16 %v10041, %v10035
    %v10600 = vpack.c.b16 %v10042, %v10036
    %v10601 = vpack.c.b16 %v10049, %v10043
    %v10602 = vpack.c.b16 %v10050, %v10044
    %v10603 = vpack.c.b16 %v10051, %v10045
    %v10604 = vpack.c.b16 %v10052, %v10046
    %v10605 = vpack.c.b16 %v10053, %v10047
    %v10606 = vpack.c.b16 %v10054, %v10048
    %v10607 = vpack.c.b16 %v10061, %v10055
    %v10608 = vpack.c.b16 %v10062, %v10056
    %v10609 = vpack.c.b16 %v10063, %v10057
    %v10610 = vpack.c.b16 %v10064, %v10058
    %v10611 = vpack.c.b16 %v10065, %v10059
    %v10612 = vpack.c.b16 %v10066, %v10060
    %v10613 = vpack.c.b16 %v10073, %v10067
    %v10614 = vpack.c.b16 %v10074, %v10068
    %v10615 = vpack.c.b16 %v10075, %v10069
    %v10616 = vpack.c.b16 %v10076, %v10070
    %v10617 = vpack.c.b16 %v10077, %v10071
    %v10618 = vpack.c.b16 %v10078, %v10072
    %v10619 = vpack.c.b16 %v10085, %v10079
    %v10620 = vpack.c.b16 %v10086, %v10080
    %v10621 = vpack.c.b16 %v10087, %v10081
    %v10622 = vpack.c.b16 %v10088, %v10082
    %v10623 = vpack.c.b16 %v10089, %v10083
    %v10624 = vpack.c.b16 %v10090, %v10084
    %v10625 = vpack.c.b16 %v10097, %v10091
    %v10626 = vpack.c.b16 %v10098, %v10092
    %v10627 = vpack.c.b16 %v10099, %v10093
    %v10628 = vpack.c.b16 %v10100, %v10094
    %v10629 = vpack.c.b16 %v10101, %v10095
    %v10630 = vpack.c.b16 %v10102, %v10096
    %v10631 = vpack.c.b16 %v10109, %v10103
    %v10632 = vpack.c.b16 %v10110, %v10104
    %v10633 = vpack.c.b16 %v10111, %v10105
    %v10634 = vpack.c.b16 %v10112, %v10106
    %v10635 = vpack.c.b16 %v10113, %v10107
    %v10636 = vpack.c.b16 %v10114, %v10108
    %v10637 = vpack.c.b16 %v10121, %v10115
    %v10638 = vpack.c.b16 %v10122, %v10116
    %v10639 = vpack.c.b16 %v10123, %v10117
    %v10640 = vpack.c.b16 %v10124, %v10118
    %v10641 = vpack.c.b16 %v10125, %v10119
    %v10642 = vpack.c.b16 %v10126, %v10120
    %v10643 = vpack.c.b16 %v10133, %v10127
    %v10644 = vpack.c.b16 %v10134, %v10128
    %v10645 = vpack.c.b16 %v10135, %v10129
    %v10646 = vpack.c.b16 %v10136, %v10130
    %v10647 = vpack.c.b16 %v10137, %v10131
    %v10648 = vpack.c.b16 %v10138, %v10132
    %v10649 = vpack.c.b16 %v10145, %v10139
    %v10650 = vpack.c.b16 %v10146, %v10140
    %v10651 = vpack.c.b16 %v10147, %v10141
    %v10652 = vpack.c.b16 %v10148, %v10142
    %v10653 = vpack.c.b16 %v10149, %v10143
    %v10654 = vpack.c.b16 %v10150, %v10144
    %v10655 = vpack.c.b16 %v10157, %v10151
    %v10656 = vpack.c.b16 %v10158, %v10152
    %v10657 = vpack.c.b16 %v10159, %v10153
    %v10658 = vpack.c.b16 %v10160, %v10154
    %v10659 = vpack.c.b16 %v10161, %v10155
    %v10660 = vpack.c.b16 %v10162, %v10156
    %v10661 = vpack.c.b16 %v10169, %v10163
    %v10662 = vpack.c.b16 %v10170, %v10164
    %v10663 = vpack.c.b16 %v10171, %v10165
    %v10664 = vpack.c.b16 %v10172, %v10166
    %v10665 = vpack.c.b16 %v10173, %v10167
    %v10666 = vpack.c.b16 %v10174, %v10168
    %v10667 = vpack.c.b16 %v10181, %v10175
    %v10668 = vpack.c.b16 %v10182, %v10176
    %v10669 = vpack.c.b16 %v10183, %v10177
    %v10670 = vpack.c.b16 %v10184, %v10178
    %v10671 = vpack.c.b16 %v10185, %v10179
    %v10672 = vpack.c.b16 %v10186, %v10180
    %v10673 = vpack.c.b16 %v10193, %v10187
    %v10674 = vpack.c.b16 %v10194, %v10188
    %v10675 = vpack.c.b16 %v10195, %v10189
    %v10676 = vpack.c.b16 %v10196, %v10190
    %v10677 = vpack.c.b16 %v10197, %v10191
    %v10678 = vpack.c.b16 %v10198, %v10192
    %v10679 = vpack.c.b16 %v10205, %v10199
    %v10680 = vpack.c.b16 %v10206, %v10200
    %v10681 = vpack.c.b16 %v10207, %v10201
    %v10682 = vpack.c.b16 %v10208, %v10202
    %v10683 = vpack.c.b16 %v10209, %v10203
    %v10684 = vpack.c.b16 %v10210, %v10204
    %v10685 = vpack.c.b16 %v10217, %v10211
    %v10686 = vpack.c.b16 %v10218, %v10212
    %v10687 = vpack.c.b16 %v10219, %v10213
    %v10688 = vpack.c.b16 %v10220, %v10214
    %v10689 = vpack.c.b16 %v10221, %v10215
    %v10690 = vpack.c.b16 %v10222, %v10216
    %v10691 = vpack.c.b16 %v10229, %v10223
    %v10692 = vpack.c.b16 %v10230, %v10224
    %v10693 = vpack.c.b16 %v10231, %v10225
    %v10694 = vpack.c.b16 %v10232, %v10226
    %v10695 = vpack.c.b16 %v10233, %v10227
    %v10696 = vpack.c.b16 %v10234, %v10228
    %v10697 = vpack.c.b16 %v10241, %v10235
    %v10698 = vpack.c.b16 %v10242, %v10236
    %v10699 = vpack.c.b16 %v10243, %v10237
    %v10700 = vpack.c.b16 %v10244, %v10238
    %v10701 = vpack.c.b16 %v10245, %v10239
    %v10702 = vpack.c.b16 %v10246, %v10240
    %v10703 = vpack.c.b16 %v10253, %v10247
    %v10704 = vpack.c.b16 %v10254, %v10248
    %v10705 = vpack.c.b16 %v10255, %v10249
    %v10706 = vpack.c.b16 %v10256, %v10250
    %v10707 = vpack.c.b16 %v10257, %v10251
    %v10708 = vpack.c.b16 %v10258, %v10252
    %v10709 = vpack.c.b16 %v10265, %v10259
    %v10710 = vpack.c.b16 %v10266, %v10260
    %v10711 = vpack.c.b16 %v10267, %v10261
    %v10712 = vpack.c.b16 %v10268, %v10262
    %v10713 = vpack.c.b16 %v10269, %v10263
    %v10714 = vpack.c.b16 %v10270, %v10264
    %v10715 = vpack.c.b16 %v10277, %v10271
    %v10716 = vpack.c.b16 %v10278, %v10272
    %v10717 = vpack.c.b16 %v10279, %v10273
    %v10718 = vpack.c.b16 %v10280, %v10274
    %v10719 = vpack.c.b16 %v10281, %v10275
    %v10720 = vpack.c.b16 %v10282, %v10276
    %v10721 = vpack.c.b16 %v10289, %v10283
    %v10722 = vpack.c.b16 %v10290, %v10284
    %v10723 = vpack.c.b16 %v10291, %v10285
    %v10724 = vpack.c.b16 %v10292, %v10286
    %v10725 = vpack.c.b16 %v10293, %v10287
    %v10726 = vpack.c.b16 %v10294, %v10288
    %v10727 = vpack.c.b16 %v10301, %v10295
    %v10728 = vpack.c.b16 %v10302, %v10296
    %v10729 = vpack.c.b16 %v10303, %v10297
    %v10730 = vpack.c.b16 %v10304, %v10298
    %v10731 = vpack.c.b16 %v10305, %v10299
    %v10732 = vpack.c.b16 %v10306, %v10300
    %v10733 = vpack.c.b16 %v10313, %v10307
    %v10734 = vpack.c.b16 %v10314, %v10308
    %v10735 = vpack.c.b16 %v10315, %v10309
    %v10736 = vpack.c.b16 %v10316, %v10310
    %v10737 = vpack.c.b16 %v10317, %v10311
    %v10738 = vpack.c.b16 %v10318, %v10312
    %v10739 = vpack.c.b16 %v10325, %v10319
    %v10740 = vpack.c.b16 %v10326, %v10320
    %v10741 = vpack.c.b16 %v10327, %v10321
    %v10742 = vpack.c.b16 %v10328, %v10322
    %v10743 = vpack.c.b16 %v10329, %v10323
    %v10744 = vpack.c.b16 %v10330, %v10324
    %v10745 = vpack.c.b16 %v10337, %v10331
    %v10746 = vpack.c.b16 %v10338, %v10332
    %v10747 = vpack.c.b16 %v10339, %v10333
    %v10748 = vpack.c.b16 %v10340, %v10334
    %v10749 = vpack.c.b16 %v10341, %v10335
    %v10750 = vpack.c.b16 %v10342, %v10336
    %v10751 = vpack.c.b16 %v10349, %v10343
    %v10752 = vpack.c.b16 %v10350, %v10344
    %v10753 = vpack.c.b16 %v10351, %v10345
    %v10754 = vpack.c.b16 %v10352, %v10346
    %v10755 = vpack.c.b16 %v10353, %v10347
    %v10756 = vpack.c.b16 %v10354, %v10348
    %v10757 = vpack.c.b16 %v10361, %v10355
    %v10758 = vpack.c.b16 %v10362, %v10356
    %v10759 = vpack.c.b16 %v10363, %v10357
    %v10760 = vpack.c.b16 %v10364, %v10358
    %v10761 = vpack.c.b16 %v10365, %v10359
    %v10762 = vpack.c.b16 %v10366, %v10360
    %v10763 = vpack.c.b16 %v10373, %v10367
    %v10764 = vpack.c.b16 %v10374, %v10368
    %v10765 = vpack.c.b16 %v10375, %v10369
    %v10766 = vpack.c.b16 %v10376, %v10370
    %v10767 = vpack.c.b16 %v10377, %v10371
    %v10768 = vpack.c.b16 %v10378, %v10372
    %v10769 = vpack.c.b16 %v10385, %v10379
    %v10770 = vpack.c.b16 %v10386, %v10380
    %v10771 = vpack.c.b16 %v10387, %v10381
    %v10772 = vpack.c.b16 %v10388, %v10382
    %v10773 = vpack.c.b16 %v10389, %v10383
    %v10774 = vpack.c.b16 %v10390, %v10384
    %11159 = vmatprep.subr.bf16.mxu0 %v10434
    %11160 = vmatpush1.bf16.msra.mxu0 %v10433
    %11161 = vmatprep.subr.bf16.mxu0 %v10428
    %11162 = vmatpush1.bf16.msra.mxu0 %v10427
    %11163 = vmatprep.subr.bf16.mxu0 %v10422
    %11164 = vmatpush1.bf16.msra.mxu0 %v10421
    %11165 = vmatprep.subr.bf16.mxu0 %v10416
    %11166 = vmatpush1.bf16.msra.mxu0 %v10415
    %11167 = vmatprep.subr.bf16.mxu0 %v10410
    %11168 = vmatpush1.bf16.msra.mxu0 %v10409
    %11169 = vmatprep.subr.bf16.mxu0 %v10404
    %11170 = vmatpush1.bf16.msra.mxu0 %v10403
    %11171 = vmatprep.subr.bf16.mxu0 %v10398
    %11172 = vmatpush1.bf16.msra.mxu0 %v10397
    %11173 = vmatprep.subr.bf16.mxu0 %v10392
    %11174 = vmatpush1.bf16.msra.mxu0 %v10391
    %11175 = vmatprep.subr.bf16.mxu0 %v10482
    %11176 = vmatpush2.bf16.msra.mxu0 %v10481
    %11177 = vmatprep.subr.bf16.mxu0 %v10476
    %11178 = vmatpush2.bf16.msra.mxu0 %v10475
    %11179 = vmatprep.subr.bf16.mxu0 %v10470
    %11180 = vmatpush2.bf16.msra.mxu0 %v10469
    %11181 = vmatprep.subr.bf16.mxu0 %v10464
    %11182 = vmatpush2.bf16.msra.mxu0 %v10463
    %11183 = vmatprep.subr.bf16.mxu0 %v10458
    %11184 = vmatpush2.bf16.msra.mxu0 %v10457
    %11185 = vmatprep.subr.bf16.mxu0 %v10452
    %11186 = vmatpush2.bf16.msra.mxu0 %v10451
    %11187 = vmatprep.subr.bf16.mxu0 %v10446
    %11188 = vmatpush2.bf16.msra.mxu0 %v10445
    %11189 = vmatprep.subr.bf16.mxu0 %v10440
    %11190 = vmatpush2.bf16.msra.mxu0 %v10439
    %11191 = vmatprep.mubr.bf16.mxu0 %v8816
    %11192 = vmatmul.mubr.bf16.gmra.mxu0 %v8815
    %v11193 = vpop.f32.mrf.mxu0
    %v11194 = vadd.f32 %v9212, %v11193
    %v11195 = vpop.f32.mrf.mxu0
    %v11196 = vadd.f32 %v9216, %v11195
    %v11197 = vpop.f32.mrf.mxu0
    %v11198 = vpop.f32.mrf.mxu0
    %11199 = vdwg.mxu0
    %11200 = vmatprep.subr.bf16.mxu0 %v10530
    %11201 = vmatpush1.bf16.msra.mxu0 %v10529
    %11202 = vmatprep.subr.bf16.mxu0 %v10524
    %11203 = vmatpush1.bf16.msra.mxu0 %v10523
    %11204 = vmatprep.subr.bf16.mxu0 %v10518
    %11205 = vmatpush1.bf16.msra.mxu0 %v10517
    %11206 = vmatprep.subr.bf16.mxu0 %v10512
    %11207 = vmatpush1.bf16.msra.mxu0 %v10511
    %11208 = vmatprep.subr.bf16.mxu0 %v10506
    %11209 = vmatpush1.bf16.msra.mxu0 %v10505
    %11210 = vmatprep.subr.bf16.mxu0 %v10500
    %11211 = vmatpush1.bf16.msra.mxu0 %v10499
    %11212 = vmatprep.subr.bf16.mxu0 %v10494
    %11213 = vmatpush1.bf16.msra.mxu0 %v10493
    %11214 = vmatprep.subr.bf16.mxu0 %v10488
    %11215 = vmatpush1.bf16.msra.mxu0 %v10487
    %11216 = vmatprep.subr.bf16.mxu0 %v10578
    %11217 = vmatpush2.bf16.msra.mxu0 %v10577
    %11218 = vmatprep.subr.bf16.mxu0 %v10572
    %11219 = vmatpush2.bf16.msra.mxu0 %v10571
    %11220 = vmatprep.subr.bf16.mxu0 %v10566
    %11221 = vmatpush2.bf16.msra.mxu0 %v10565
    %11222 = vmatprep.subr.bf16.mxu0 %v10560
    %11223 = vmatpush2.bf16.msra.mxu0 %v10559
    %11224 = vmatprep.subr.bf16.mxu0 %v10554
    %11225 = vmatpush2.bf16.msra.mxu0 %v10553
    %11226 = vmatprep.subr.bf16.mxu0 %v10548
    %11227 = vmatpush2.bf16.msra.mxu0 %v10547
    %11228 = vmatprep.subr.bf16.mxu0 %v10542
    %11229 = vmatpush2.bf16.msra.mxu0 %v10541
    %11230 = vmatprep.subr.bf16.mxu0 %v10536
    %11231 = vmatpush2.bf16.msra.mxu0 %v10535
    %11232 = vmatprep.mubr.bf16.mxu0 %v8818
    %11233 = vmatmul.mubr.bf16.gmra.mxu0 %v8817
    %v11234 = vpop.f32.mrf.mxu0
    %v11235 = vadd.f32 %v11194, %v11234
    %v11236 = vpop.f32.mrf.mxu0
    %v11237 = vadd.f32 %v11196, %v11236
    %v11238 = vpop.f32.mrf.mxu0
    %v11239 = vpop.f32.mrf.mxu0
    %11240 = vdwg.mxu0
    %11241 = vmatprep.subr.bf16.mxu0 %v10626
    %11242 = vmatpush1.bf16.msra.mxu0 %v10625
    %11243 = vmatprep.subr.bf16.mxu0 %v10620
    %11244 = vmatpush1.bf16.msra.mxu0 %v10619
    %11245 = vmatprep.subr.bf16.mxu0 %v10614
    %11246 = vmatpush1.bf16.msra.mxu0 %v10613
    %11247 = vmatprep.subr.bf16.mxu0 %v10608
    %11248 = vmatpush1.bf16.msra.mxu0 %v10607
    %11249 = vmatprep.subr.bf16.mxu0 %v10602
    %11250 = vmatpush1.bf16.msra.mxu0 %v10601
    %11251 = vmatprep.subr.bf16.mxu0 %v10596
    %11252 = vmatpush1.bf16.msra.mxu0 %v10595
    %11253 = vmatprep.subr.bf16.mxu0 %v10590
    %11254 = vmatpush1.bf16.msra.mxu0 %v10589
    %11255 = vmatprep.subr.bf16.mxu0 %v10584
    %11256 = vmatpush1.bf16.msra.mxu0 %v10583
    %11257 = vmatprep.subr.bf16.mxu0 %v10674
    %11258 = vmatpush2.bf16.msra.mxu0 %v10673
    %11259 = vmatprep.subr.bf16.mxu0 %v10668
    %11260 = vmatpush2.bf16.msra.mxu0 %v10667
    %11261 = vmatprep.subr.bf16.mxu0 %v10662
    %11262 = vmatpush2.bf16.msra.mxu0 %v10661
    %11263 = vmatprep.subr.bf16.mxu0 %v10656
    %11264 = vmatpush2.bf16.msra.mxu0 %v10655
    %11265 = vmatprep.subr.bf16.mxu0 %v10650
    %11266 = vmatpush2.bf16.msra.mxu0 %v10649
    %11267 = vmatprep.subr.bf16.mxu0 %v10644
    %11268 = vmatpush2.bf16.msra.mxu0 %v10643
    %11269 = vmatprep.subr.bf16.mxu0 %v10638
    %11270 = vmatpush2.bf16.msra.mxu0 %v10637
    %11271 = vmatprep.subr.bf16.mxu0 %v10632
    %11272 = vmatpush2.bf16.msra.mxu0 %v10631
    %11273 = vmatprep.mubr.bf16.mxu0 %v8820
    %11274 = vmatmul.mubr.bf16.gmra.mxu0 %v8819
    %v11275 = vpop.f32.mrf.mxu0
    %v11276 = vadd.f32 %v11235, %v11275
    %v11277 = vpop.f32.mrf.mxu0
    %v11278 = vadd.f32 %v11237, %v11277
    %v11279 = vpop.f32.mrf.mxu0
    %v11280 = vpop.f32.mrf.mxu0
    %11281 = vdwg.mxu0
    %11282 = vmatprep.subr.bf16.mxu0 %v10722
    %11283 = vmatpush1.bf16.msra.mxu0 %v10721
    %11284 = vmatprep.subr.bf16.mxu0 %v10716
    %11285 = vmatpush1.bf16.msra.mxu0 %v10715
    %11286 = vmatprep.subr.bf16.mxu0 %v10710
    %11287 = vmatpush1.bf16.msra.mxu0 %v10709
    %11288 = vmatprep.subr.bf16.mxu0 %v10704
    %11289 = vmatpush1.bf16.msra.mxu0 %v10703
    %11290 = vmatprep.subr.bf16.mxu0 %v10698
    %11291 = vmatpush1.bf16.msra.mxu0 %v10697
    %11292 = vmatprep.subr.bf16.mxu0 %v10692
    %11293 = vmatpush1.bf16.msra.mxu0 %v10691
    %11294 = vmatprep.subr.bf16.mxu0 %v10686
    %11295 = vmatpush1.bf16.msra.mxu0 %v10685
    %11296 = vmatprep.subr.bf16.mxu0 %v10680
    %11297 = vmatpush1.bf16.msra.mxu0 %v10679
    %11298 = vmatprep.subr.bf16.mxu0 %v10770
    %11299 = vmatpush2.bf16.msra.mxu0 %v10769
    %11300 = vmatprep.subr.bf16.mxu0 %v10764
    %11301 = vmatpush2.bf16.msra.mxu0 %v10763
    %11302 = vmatprep.subr.bf16.mxu0 %v10758
    %11303 = vmatpush2.bf16.msra.mxu0 %v10757
    %11304 = vmatprep.subr.bf16.mxu0 %v10752
    %11305 = vmatpush2.bf16.msra.mxu0 %v10751
    %11306 = vmatprep.subr.bf16.mxu0 %v10746
    %11307 = vmatpush2.bf16.msra.mxu0 %v10745
    %11308 = vmatprep.subr.bf16.mxu0 %v10740
    %11309 = vmatpush2.bf16.msra.mxu0 %v10739
    %11310 = vmatprep.subr.bf16.mxu0 %v10734
    %11311 = vmatpush2.bf16.msra.mxu0 %v10733
    %11312 = vmatprep.subr.bf16.mxu0 %v10728
    %11313 = vmatpush2.bf16.msra.mxu0 %v10727
    %11314 = vmatprep.mubr.bf16.mxu0 %v8822
    %11315 = vmatmul.mubr.bf16.gmra.mxu0 %v8821
    %v11316 = vpop.f32.mrf.mxu0
    %v11317 = vadd.f32 %v11276, %v11316
    %v11318 = vpop.f32.mrf.mxu0
    %v11319 = vadd.f32 %v11278, %v11318
    %v11320 = vpop.f32.mrf.mxu0
    %v11321 = vpop.f32.mrf.mxu0
    %11322 = vdwg.mxu0
    %11323 = vmatprep.subr.bf16.mxu0 %v10436
    %11324 = vmatpush1.bf16.msra.mxu0 %v10435
    %11325 = vmatprep.subr.bf16.mxu0 %v10430
    %11326 = vmatpush1.bf16.msra.mxu0 %v10429
    %11327 = vmatprep.subr.bf16.mxu0 %v10424
    %11328 = vmatpush1.bf16.msra.mxu0 %v10423
    %11329 = vmatprep.subr.bf16.mxu0 %v10418
    %11330 = vmatpush1.bf16.msra.mxu0 %v10417
    %11331 = vmatprep.subr.bf16.mxu0 %v10412
    %11332 = vmatpush1.bf16.msra.mxu0 %v10411
    %11333 = vmatprep.subr.bf16.mxu0 %v10406
    %11334 = vmatpush1.bf16.msra.mxu0 %v10405
    %11335 = vmatprep.subr.bf16.mxu0 %v10400
    %11336 = vmatpush1.bf16.msra.mxu0 %v10399
    %11337 = vmatprep.subr.bf16.mxu0 %v10394
    %11338 = vmatpush1.bf16.msra.mxu0 %v10393
    %11339 = vmatprep.subr.bf16.mxu0 %v10484
    %11340 = vmatpush2.bf16.msra.mxu0 %v10483
    %11341 = vmatprep.subr.bf16.mxu0 %v10478
    %11342 = vmatpush2.bf16.msra.mxu0 %v10477
    %11343 = vmatprep.subr.bf16.mxu0 %v10472
    %11344 = vmatpush2.bf16.msra.mxu0 %v10471
    %11345 = vmatprep.subr.bf16.mxu0 %v10466
    %11346 = vmatpush2.bf16.msra.mxu0 %v10465
    %11347 = vmatprep.subr.bf16.mxu0 %v10460
    %11348 = vmatpush2.bf16.msra.mxu0 %v10459
    %11349 = vmatprep.subr.bf16.mxu0 %v10454
    %11350 = vmatpush2.bf16.msra.mxu0 %v10453
    %11351 = vmatprep.subr.bf16.mxu0 %v10448
    %11352 = vmatpush2.bf16.msra.mxu0 %v10447
    %11353 = vmatprep.subr.bf16.mxu0 %v10442
    %11354 = vmatpush2.bf16.msra.mxu0 %v10441
    %11355 = vmatprep.mubr.bf16.mxu0 %v8816
    %11356 = vmatmul.mubr.bf16.gmra.mxu0 %v8815
    %v11357 = vpop.f32.mrf.mxu0
    %v11358 = vadd.f32 %v9220, %v11357
    %v11359 = vpop.f32.mrf.mxu0
    %v11360 = vadd.f32 %v9224, %v11359
    %v11361 = vpop.f32.mrf.mxu0
    %v11362 = vpop.f32.mrf.mxu0
    %11363 = vdwg.mxu0
    %11364 = vmatprep.subr.bf16.mxu0 %v10532
    %11365 = vmatpush1.bf16.msra.mxu0 %v10531
    %11366 = vmatprep.subr.bf16.mxu0 %v10526
    %11367 = vmatpush1.bf16.msra.mxu0 %v10525
    %11368 = vmatprep.subr.bf16.mxu0 %v10520
    %11369 = vmatpush1.bf16.msra.mxu0 %v10519
    %11370 = vmatprep.subr.bf16.mxu0 %v10514
    %11371 = vmatpush1.bf16.msra.mxu0 %v10513
    %11372 = vmatprep.subr.bf16.mxu0 %v10508
    %11373 = vmatpush1.bf16.msra.mxu0 %v10507
    %11374 = vmatprep.subr.bf16.mxu0 %v10502
    %11375 = vmatpush1.bf16.msra.mxu0 %v10501
    %11376 = vmatprep.subr.bf16.mxu0 %v10496
    %11377 = vmatpush1.bf16.msra.mxu0 %v10495
    %11378 = vmatprep.subr.bf16.mxu0 %v10490
    %11379 = vmatpush1.bf16.msra.mxu0 %v10489
    %11380 = vmatprep.subr.bf16.mxu0 %v10580
    %11381 = vmatpush2.bf16.msra.mxu0 %v10579
    %11382 = vmatprep.subr.bf16.mxu0 %v10574
    %11383 = vmatpush2.bf16.msra.mxu0 %v10573
    %11384 = vmatprep.subr.bf16.mxu0 %v10568
    %11385 = vmatpush2.bf16.msra.mxu0 %v10567
    %11386 = vmatprep.subr.bf16.mxu0 %v10562
    %11387 = vmatpush2.bf16.msra.mxu0 %v10561
    %11388 = vmatprep.subr.bf16.mxu0 %v10556
    %11389 = vmatpush2.bf16.msra.mxu0 %v10555
    %11390 = vmatprep.subr.bf16.mxu0 %v10550
    %11391 = vmatpush2.bf16.msra.mxu0 %v10549
    %11392 = vmatprep.subr.bf16.mxu0 %v10544
    %11393 = vmatpush2.bf16.msra.mxu0 %v10543
    %11394 = vmatprep.subr.bf16.mxu0 %v10538
    %11395 = vmatpush2.bf16.msra.mxu0 %v10537
    %11396 = vmatprep.mubr.bf16.mxu0 %v8818
    %11397 = vmatmul.mubr.bf16.gmra.mxu0 %v8817
    %v11398 = vpop.f32.mrf.mxu0
    %v11399 = vadd.f32 %v11358, %v11398
    %v11400 = vpop.f32.mrf.mxu0
    %v11401 = vadd.f32 %v11360, %v11400
    %v11402 = vpop.f32.mrf.mxu0
    %v11403 = vpop.f32.mrf.mxu0
    %11404 = vdwg.mxu0
    %11405 = vmatprep.subr.bf16.mxu0 %v10628
    %11406 = vmatpush1.bf16.msra.mxu0 %v10627
    %11407 = vmatprep.subr.bf16.mxu0 %v10622
    %11408 = vmatpush1.bf16.msra.mxu0 %v10621
    %11409 = vmatprep.subr.bf16.mxu0 %v10616
    %11410 = vmatpush1.bf16.msra.mxu0 %v10615
    %11411 = vmatprep.subr.bf16.mxu0 %v10610
    %11412 = vmatpush1.bf16.msra.mxu0 %v10609
    %11413 = vmatprep.subr.bf16.mxu0 %v10604
    %11414 = vmatpush1.bf16.msra.mxu0 %v10603
    %11415 = vmatprep.subr.bf16.mxu0 %v10598
    %11416 = vmatpush1.bf16.msra.mxu0 %v10597
    %11417 = vmatprep.subr.bf16.mxu0 %v10592
    %11418 = vmatpush1.bf16.msra.mxu0 %v10591
    %11419 = vmatprep.subr.bf16.mxu0 %v10586
    %11420 = vmatpush1.bf16.msra.mxu0 %v10585
    %11421 = vmatprep.subr.bf16.mxu0 %v10676
    %11422 = vmatpush2.bf16.msra.mxu0 %v10675
    %11423 = vmatprep.subr.bf16.mxu0 %v10670
    %11424 = vmatpush2.bf16.msra.mxu0 %v10669
    %11425 = vmatprep.subr.bf16.mxu0 %v10664
    %11426 = vmatpush2.bf16.msra.mxu0 %v10663
    %11427 = vmatprep.subr.bf16.mxu0 %v10658
    %11428 = vmatpush2.bf16.msra.mxu0 %v10657
    %11429 = vmatprep.subr.bf16.mxu0 %v10652
    %11430 = vmatpush2.bf16.msra.mxu0 %v10651
    %11431 = vmatprep.subr.bf16.mxu0 %v10646
    %11432 = vmatpush2.bf16.msra.mxu0 %v10645
    %11433 = vmatprep.subr.bf16.mxu0 %v10640
    %11434 = vmatpush2.bf16.msra.mxu0 %v10639
    %11435 = vmatprep.subr.bf16.mxu0 %v10634
    %11436 = vmatpush2.bf16.msra.mxu0 %v10633
    %11437 = vmatprep.mubr.bf16.mxu0 %v8820
    %11438 = vmatmul.mubr.bf16.gmra.mxu0 %v8819
    %v11439 = vpop.f32.mrf.mxu0
    %v11440 = vadd.f32 %v11399, %v11439
    %v11441 = vpop.f32.mrf.mxu0
    %v11442 = vadd.f32 %v11401, %v11441
    %v11443 = vpop.f32.mrf.mxu0
    %v11444 = vpop.f32.mrf.mxu0
    %11445 = vdwg.mxu0
    %11446 = vmatprep.subr.bf16.mxu0 %v10724
    %11447 = vmatpush1.bf16.msra.mxu0 %v10723
    %11448 = vmatprep.subr.bf16.mxu0 %v10718
    %11449 = vmatpush1.bf16.msra.mxu0 %v10717
    %11450 = vmatprep.subr.bf16.mxu0 %v10712
    %11451 = vmatpush1.bf16.msra.mxu0 %v10711
    %11452 = vmatprep.subr.bf16.mxu0 %v10706
    %11453 = vmatpush1.bf16.msra.mxu0 %v10705
    %11454 = vmatprep.subr.bf16.mxu0 %v10700
    %11455 = vmatpush1.bf16.msra.mxu0 %v10699
    %11456 = vmatprep.subr.bf16.mxu0 %v10694
    %11457 = vmatpush1.bf16.msra.mxu0 %v10693
    %11458 = vmatprep.subr.bf16.mxu0 %v10688
    %11459 = vmatpush1.bf16.msra.mxu0 %v10687
    %11460 = vmatprep.subr.bf16.mxu0 %v10682
    %11461 = vmatpush1.bf16.msra.mxu0 %v10681
    %11462 = vmatprep.subr.bf16.mxu0 %v10772
    %11463 = vmatpush2.bf16.msra.mxu0 %v10771
    %11464 = vmatprep.subr.bf16.mxu0 %v10766
    %11465 = vmatpush2.bf16.msra.mxu0 %v10765
    %11466 = vmatprep.subr.bf16.mxu0 %v10760
    %11467 = vmatpush2.bf16.msra.mxu0 %v10759
    %11468 = vmatprep.subr.bf16.mxu0 %v10754
    %11469 = vmatpush2.bf16.msra.mxu0 %v10753
    %11470 = vmatprep.subr.bf16.mxu0 %v10748
    %11471 = vmatpush2.bf16.msra.mxu0 %v10747
    %11472 = vmatprep.subr.bf16.mxu0 %v10742
    %11473 = vmatpush2.bf16.msra.mxu0 %v10741
    %11474 = vmatprep.subr.bf16.mxu0 %v10736
    %11475 = vmatpush2.bf16.msra.mxu0 %v10735
    %11476 = vmatprep.subr.bf16.mxu0 %v10730
    %11477 = vmatpush2.bf16.msra.mxu0 %v10729
    %11478 = vmatprep.mubr.bf16.mxu0 %v8822
    %11479 = vmatmul.mubr.bf16.gmra.mxu0 %v8821
    %v11480 = vpop.f32.mrf.mxu0
    %v11481 = vadd.f32 %v11440, %v11480
    %v11482 = vpop.f32.mrf.mxu0
    %v11483 = vadd.f32 %v11442, %v11482
    %v11484 = vpop.f32.mrf.mxu0
    %v11485 = vpop.f32.mrf.mxu0
    %11486 = vdwg.mxu0
    %11487 = vmatprep.subr.bf16.mxu0 %v10438
    %11488 = vmatpush1.bf16.msra.mxu0 %v10437
    %11489 = vmatprep.subr.bf16.mxu0 %v10432
    %11490 = vmatpush1.bf16.msra.mxu0 %v10431
    %11491 = vmatprep.subr.bf16.mxu0 %v10426
    %11492 = vmatpush1.bf16.msra.mxu0 %v10425
    %11493 = vmatprep.subr.bf16.mxu0 %v10420
    %11494 = vmatpush1.bf16.msra.mxu0 %v10419
    %11495 = vmatprep.subr.bf16.mxu0 %v10414
    %11496 = vmatpush1.bf16.msra.mxu0 %v10413
    %11497 = vmatprep.subr.bf16.mxu0 %v10408
    %11498 = vmatpush1.bf16.msra.mxu0 %v10407
    %11499 = vmatprep.subr.bf16.mxu0 %v10402
    %11500 = vmatpush1.bf16.msra.mxu0 %v10401
    %11501 = vmatprep.subr.bf16.mxu0 %v10396
    %11502 = vmatpush1.bf16.msra.mxu0 %v10395
    %11503 = vmatprep.subr.bf16.mxu0 %v10486
    %11504 = vmatpush2.bf16.msra.mxu0 %v10485
    %11505 = vmatprep.subr.bf16.mxu0 %v10480
    %11506 = vmatpush2.bf16.msra.mxu0 %v10479
    %11507 = vmatprep.subr.bf16.mxu0 %v10474
    %11508 = vmatpush2.bf16.msra.mxu0 %v10473
    %11509 = vmatprep.subr.bf16.mxu0 %v10468
    %11510 = vmatpush2.bf16.msra.mxu0 %v10467
    %11511 = vmatprep.subr.bf16.mxu0 %v10462
    %11512 = vmatpush2.bf16.msra.mxu0 %v10461
    %11513 = vmatprep.subr.bf16.mxu0 %v10456
    %11514 = vmatpush2.bf16.msra.mxu0 %v10455
    %11515 = vmatprep.subr.bf16.mxu0 %v10450
    %11516 = vmatpush2.bf16.msra.mxu0 %v10449
    %11517 = vmatprep.subr.bf16.mxu0 %v10444
    %11518 = vmatpush2.bf16.msra.mxu0 %v10443
    %11519 = vmatprep.mubr.bf16.mxu0 %v8816
    %11520 = vmatmul.mubr.bf16.gmra.mxu0 %v8815
    %v11521 = vpop.f32.mrf.mxu0
    %v11522 = vadd.f32 %v9228, %v11521
    %v11523 = vpop.f32.mrf.mxu0
    %v11524 = vadd.f32 %v9232, %v11523
    %v11525 = vpop.f32.mrf.mxu0
    %v11526 = vpop.f32.mrf.mxu0
    %11527 = vdwg.mxu0
    %11528 = vmatprep.subr.bf16.mxu0 %v10534
    %11529 = vmatpush1.bf16.msra.mxu0 %v10533
    %11530 = vmatprep.subr.bf16.mxu0 %v10528
    %11531 = vmatpush1.bf16.msra.mxu0 %v10527
    %11532 = vmatprep.subr.bf16.mxu0 %v10522
    %11533 = vmatpush1.bf16.msra.mxu0 %v10521
    %11534 = vmatprep.subr.bf16.mxu0 %v10516
    %11535 = vmatpush1.bf16.msra.mxu0 %v10515
    %11536 = vmatprep.subr.bf16.mxu0 %v10510
    %11537 = vmatpush1.bf16.msra.mxu0 %v10509
    %11538 = vmatprep.subr.bf16.mxu0 %v10504
    %11539 = vmatpush1.bf16.msra.mxu0 %v10503
    %11540 = vmatprep.subr.bf16.mxu0 %v10498
    %11541 = vmatpush1.bf16.msra.mxu0 %v10497
    %11542 = vmatprep.subr.bf16.mxu0 %v10492
    %11543 = vmatpush1.bf16.msra.mxu0 %v10491
    %11544 = vmatprep.subr.bf16.mxu0 %v10582
    %11545 = vmatpush2.bf16.msra.mxu0 %v10581
    %11546 = vmatprep.subr.bf16.mxu0 %v10576
    %11547 = vmatpush2.bf16.msra.mxu0 %v10575
    %11548 = vmatprep.subr.bf16.mxu0 %v10570
    %11549 = vmatpush2.bf16.msra.mxu0 %v10569
    %11550 = vmatprep.subr.bf16.mxu0 %v10564
    %11551 = vmatpush2.bf16.msra.mxu0 %v10563
    %11552 = vmatprep.subr.bf16.mxu0 %v10558
    %11553 = vmatpush2.bf16.msra.mxu0 %v10557
    %11554 = vmatprep.subr.bf16.mxu0 %v10552
    %11555 = vmatpush2.bf16.msra.mxu0 %v10551
    %11556 = vmatprep.subr.bf16.mxu0 %v10546
    %11557 = vmatpush2.bf16.msra.mxu0 %v10545
    %11558 = vmatprep.subr.bf16.mxu0 %v10540
    %11559 = vmatpush2.bf16.msra.mxu0 %v10539
    %11560 = vmatprep.mubr.bf16.mxu0 %v8818
    %11561 = vmatmul.mubr.bf16.gmra.mxu0 %v8817
    %v11562 = vpop.f32.mrf.mxu0
    %v11563 = vadd.f32 %v11522, %v11562
    %v11564 = vpop.f32.mrf.mxu0
    %v11565 = vadd.f32 %v11524, %v11564
    %v11566 = vpop.f32.mrf.mxu0
    %v11567 = vpop.f32.mrf.mxu0
    %11568 = vdwg.mxu0
    %11569 = vmatprep.subr.bf16.mxu0 %v10630
    %11570 = vmatpush1.bf16.msra.mxu0 %v10629
    %11571 = vmatprep.subr.bf16.mxu0 %v10624
    %11572 = vmatpush1.bf16.msra.mxu0 %v10623
    %11573 = vmatprep.subr.bf16.mxu0 %v10618
    %11574 = vmatpush1.bf16.msra.mxu0 %v10617
    %11575 = vmatprep.subr.bf16.mxu0 %v10612
    %11576 = vmatpush1.bf16.msra.mxu0 %v10611
    %11577 = vmatprep.subr.bf16.mxu0 %v10606
    %11578 = vmatpush1.bf16.msra.mxu0 %v10605
    %11579 = vmatprep.subr.bf16.mxu0 %v10600
    %11580 = vmatpush1.bf16.msra.mxu0 %v10599
    %11581 = vmatprep.subr.bf16.mxu0 %v10594
    %11582 = vmatpush1.bf16.msra.mxu0 %v10593
    %11583 = vmatprep.subr.bf16.mxu0 %v10588
    %11584 = vmatpush1.bf16.msra.mxu0 %v10587
    %11585 = vmatprep.subr.bf16.mxu0 %v10678
    %11586 = vmatpush2.bf16.msra.mxu0 %v10677
    %11587 = vmatprep.subr.bf16.mxu0 %v10672
    %11588 = vmatpush2.bf16.msra.mxu0 %v10671
    %11589 = vmatprep.subr.bf16.mxu0 %v10666
    %11590 = vmatpush2.bf16.msra.mxu0 %v10665
    %11591 = vmatprep.subr.bf16.mxu0 %v10660
    %11592 = vmatpush2.bf16.msra.mxu0 %v10659
    %11593 = vmatprep.subr.bf16.mxu0 %v10654
    %11594 = vmatpush2.bf16.msra.mxu0 %v10653
    %11595 = vmatprep.subr.bf16.mxu0 %v10648
    %11596 = vmatpush2.bf16.msra.mxu0 %v10647
    %11597 = vmatprep.subr.bf16.mxu0 %v10642
    %11598 = vmatpush2.bf16.msra.mxu0 %v10641
    %11599 = vmatprep.subr.bf16.mxu0 %v10636
    %11600 = vmatpush2.bf16.msra.mxu0 %v10635
    %11601 = vmatprep.mubr.bf16.mxu0 %v8820
    %11602 = vmatmul.mubr.bf16.gmra.mxu0 %v8819
    %v11603 = vpop.f32.mrf.mxu0
    %v11604 = vadd.f32 %v11563, %v11603
    %v11605 = vpop.f32.mrf.mxu0
    %v11606 = vadd.f32 %v11565, %v11605
    %v11607 = vpop.f32.mrf.mxu0
    %v11608 = vpop.f32.mrf.mxu0
    %11609 = vdwg.mxu0
    %11610 = vmatprep.subr.bf16.mxu0 %v10726
    %11611 = vmatpush1.bf16.msra.mxu0 %v10725
    %11612 = vmatprep.subr.bf16.mxu0 %v10720
    %11613 = vmatpush1.bf16.msra.mxu0 %v10719
    %11614 = vmatprep.subr.bf16.mxu0 %v10714
    %11615 = vmatpush1.bf16.msra.mxu0 %v10713
    %11616 = vmatprep.subr.bf16.mxu0 %v10708
    %11617 = vmatpush1.bf16.msra.mxu0 %v10707
    %11618 = vmatprep.subr.bf16.mxu0 %v10702
    %11619 = vmatpush1.bf16.msra.mxu0 %v10701
    %11620 = vmatprep.subr.bf16.mxu0 %v10696
    %11621 = vmatpush1.bf16.msra.mxu0 %v10695
    %11622 = vmatprep.subr.bf16.mxu0 %v10690
    %11623 = vmatpush1.bf16.msra.mxu0 %v10689
    %11624 = vmatprep.subr.bf16.mxu0 %v10684
    %11625 = vmatpush1.bf16.msra.mxu0 %v10683
    %11626 = vmatprep.subr.bf16.mxu0 %v10774
    %11627 = vmatpush2.bf16.msra.mxu0 %v10773
    %11628 = vmatprep.subr.bf16.mxu0 %v10768
    %11629 = vmatpush2.bf16.msra.mxu0 %v10767
    %11630 = vmatprep.subr.bf16.mxu0 %v10762
    %11631 = vmatpush2.bf16.msra.mxu0 %v10761
    %11632 = vmatprep.subr.bf16.mxu0 %v10756
    %11633 = vmatpush2.bf16.msra.mxu0 %v10755
    %11634 = vmatprep.subr.bf16.mxu0 %v10750
    %11635 = vmatpush2.bf16.msra.mxu0 %v10749
    %11636 = vmatprep.subr.bf16.mxu0 %v10744
    %11637 = vmatpush2.bf16.msra.mxu0 %v10743
    %11638 = vmatprep.subr.bf16.mxu0 %v10738
    %11639 = vmatpush2.bf16.msra.mxu0 %v10737
    %11640 = vmatprep.subr.bf16.mxu0 %v10732
    %11641 = vmatpush2.bf16.msra.mxu0 %v10731
    %11642 = vmatprep.mubr.bf16.mxu0 %v8822
    %11643 = vmatmul.mubr.bf16.gmra.mxu0 %v8821
    %v11644 = vpop.f32.mrf.mxu0
    %v11645 = vadd.f32 %v11604, %v11644
    %v11646 = vpop.f32.mrf.mxu0
    %v11647 = vadd.f32 %v11606, %v11646
    %v11648 = vpop.f32.mrf.mxu0
    %v11649 = vpop.f32.mrf.mxu0
    %11650 = vdwg.mxu0
    %11651 = vst [vmem:[#allocation14] sm:$0xff] %v11317
    %11652 = vst [vmem:[#allocation14 + $0x8] sm:$0xff] %v11319
    %11653 = vst [vmem:[#allocation14 + $0x10] sm:$0xff] %v11481
    %11654 = vst [vmem:[#allocation14 + $0x18] sm:$0xff] %v11483
    %11655 = vst [vmem:[#allocation14 + $0x20] sm:$0xff] %v11645
    %11656 = vst [vmem:[#allocation14 + $0x28] sm:$0xff] %v11647
    // Predicated region
    $region58: #{tpu_custom_call.1} parent=1 // pred_check
      _
    $region59: #{tpu_custom_call.1} parent=1 // pred_check_branch
      %11658 = sbr.rel (0) target = $region61
    $region60: #{tpu_custom_call.1} parent=1 // pred_region
      %s11660 = ssub.s32 768, 768
      %11661 = vsyncadd [#allocation4], %s11660
      %s11663 = sshll.u32 [#allocation14], 4
      %s11664 = int_to_ptr.vmem [resolvable:$true] %s11663
      %11666 = dma.vmem_to_hbm [thread:$0]  %s11664, 768, %s7, [#allocation4]
    $region61: #{tpu_custom_call.1} parent=1 // pred_fallthru
      _
    // Predicated region
    $region62: #{tpu_custom_call.1} parent=1 // pred_check
      _
    $region63: #{tpu_custom_call.1} parent=1 // pred_check_branch
      %11668 = sbr.rel (0) target = $region65
    $region64: #{tpu_custom_call.1} parent=1 // pred_region
      %11669 = dma.done [#allocation4], 768
    $region65: #{tpu_custom_call.1} parent=1 // pred_fallthru
      _
    %11670 = vsyncpa [#allocation3], 1
    %11671 = vsyncpa [#allocation6], 1
    %11672 = vsyncpa [#allocation9], 1
    %11673 = vsyncpa [#allocation12], 1
    %11674 = vsyncpa [#allocation4], 1

</llo_original>
